<compile_context>
chip_gen: v7x
topology: tpu7x:2x2x1
jax: 0.10.0
libtpu: 0.0.40
codegen_flags: <defaults>
</compile_context>

<pallas_src>
import functools

import jax
import jax.numpy as jnp
from jax import lax
from jax.experimental import pallas as pl
from jax.experimental.pallas import tpu as pltpu


def _pool2x2(y, pooling):
    """2x2 / stride-2 pooling of a (B, H, W, C) conv output on the VPU."""
    b, h, w, c = y.shape
    # Row pooling: split H -> (H//2, 2) (leading-dim split, free) and combine
    # the two row phases elementwise.
    yr = y.reshape(b, h // 2, 2, w, c)
    if pooling == "max":
        t = jnp.maximum(yr[:, :, 0], yr[:, :, 1])
    else:
        t = yr[:, :, 0] + yr[:, :, 1]
    # Column pooling: even / odd column extraction with static single-column
    # slices + concat (tiny tensors), combined on the VPU.
    even = jnp.concatenate([t[:, :, j:j + 1, :] for j in range(0, w, 2)], axis=2)
    odd = jnp.concatenate([t[:, :, j:j + 1, :] for j in range(1, w, 2)], axis=2)
    if pooling == "max":
        return jnp.maximum(even, odd)
    return 0.25 * (even + odd)


def _width_taps(xp_ref, k, w_out, dtype):
    """Width-tap tensor wt[b, ip, j, kw*C + c] = xp[b, ip, j + kw, c].

    Built once per layer; per-kh conv slabs are then plain leading-dim slices.
    """
    return jnp.concatenate(
        [xp_ref[:, :, kw:kw + w_out, :].astype(dtype) for kw in range(k)],
        axis=-1)


def _conv_accum(wtaps, w_ref, k, h_out):
    """Per-kh accumulated im2col matmul.

    wtaps: (B, Hpad, W, k*C) bf16, w_ref: (k, k*C, Cout) bf16.
    Returns (B*H*W, Cout) f32.
    """
    b, _, w_out, kc = wtaps.shape
    m = b * h_out * w_out
    acc = jnp.zeros((m, w_ref.shape[-1]), jnp.float32)
    for kh in range(k):
        slab = wtaps[:, kh:kh + h_out].reshape(m, kc)
        acc = acc + jnp.dot(slab, w_ref[kh], preferred_element_type=jnp.float32)
    return acc


def _layoutnet_kernel(p1_ref, w1_ref, b1_ref, w2_ref, b2_ref, w3_ref, b3_ref,
                      w4_ref, b4_ref, o_ref, xp2_ref, xp3_ref, xp4_ref, *,
                      pooling):
    """Whole LayoutNet forward for one block of B images (one grid step)."""
    f32 = jnp.float32
    bf16 = jnp.bfloat16
    B = p1_ref.shape[0]

    # Halos of the padded-activation scratch buffers must be zero.  Re-zeroed
    # every step (required: with dimension_semantics=("parallel",) a second
    # TensorCore never sees step 0, so no program_id==0 guard here).
    xp2_ref[...] = jnp.zeros_like(xp2_ref)
    xp3_ref[...] = jnp.zeros_like(xp3_ref)
    xp4_ref[...] = jnp.zeros_like(xp4_ref)

    # ---- layer 1: conv 3->32 (k=9, patch pre-built, K padded to 256), pool,
    #      relu.  One MXU dot over all B*16*16 output pixels.
    p1 = p1_ref[...].reshape(B * 256, 256)                       # bf16
    y1 = jnp.dot(p1, w1_ref[...], preferred_element_type=f32) + b1_ref[...]
    y1 = y1.reshape(B, 16, 16, 32)
    a1 = jnp.maximum(_pool2x2(y1, pooling), 0.0)                 # (B, 8, 8, 32)
    xp2_ref[:, 3:11, 3:11, :] = a1

    # ---- layer 2: conv 32->64 (k=7, dense K=224 per kh), pool, relu
    wt2 = _width_taps(xp2_ref, 7, 8, bf16)                       # (B, 14, 8, 224)
    y2 = _conv_accum(wt2, w2_ref, 7, 8) + b2_ref[...]            # (B*64, 64)
    y2 = y2.reshape(B, 8, 8, 64)
    a2 = jnp.maximum(_pool2x2(y2, pooling), 0.0)                 # (B, 4, 4, 64)
    xp3_ref[:, 4:8, 4:8, :] = a2

    # ---- layer 3: conv 64->32 (k=9, dense K=576 per kh), relu
    wt3 = _width_taps(xp3_ref, 9, 4, bf16)                       # (B, 12, 4, 576)
    y3 = _conv_accum(wt3, w3_ref, 9, 4) + b3_ref[...]            # (B*16, 32)
    a3 = jnp.maximum(y3, 0.0).reshape(B, 4, 4, 32)
    xp4_ref[:, 3:7, 3:7, :] = a3

    # ---- layer 4: conv 32->1 (k=7), relu.  Cout=1 -> VPU multiply +
    #      cross-lane reduce instead of an N=1 MXU dot.
    wt4 = _width_taps(xp4_ref, 7, 4, f32)                        # (B, 10, 4, 224)
    y4 = jnp.zeros((B, 4, 4), f32)
    for kh in range(7):
        y4 = y4 + jnp.sum(wt4[:, kh:kh + 4] * w4_ref[kh], axis=-1)
    y4 = y4 + b4_ref[...]
    o_ref[...] = jnp.maximum(y4, 0.0).astype(o_ref.dtype)


def _pick_block(n):
    """Largest batch block that divides n while keeping the grid >= 2."""
    for b in (8, 4, 2, 1):
        if n % b == 0 and (n // b) >= 2:
            return b
    return 1


def _prep_inputs(x_nhwc, params):
    """Wrapper-side layout work: layer-1 patch + per-kh flattened bf16 weights."""
    (w1, b1), (w2, b2), (w3, b3), (w4, b4) = params
    f32, bf16 = jnp.float32, jnp.bfloat16

    # Layer-1 im2col patch (feature order (kh, kw, ci)); K padded 243 -> 256,
    # shipped in bf16 to halve the dominant input HBM stream.
    xp = jnp.pad(x_nhwc, ((0, 0), (4, 4), (4, 4), (0, 0)))
    slabs = [xp[:, kh:kh + 16, kw:kw + 16, :]
             for kh in range(9) for kw in range(9)]
    p1 = jnp.concatenate(slabs, axis=-1)                          # (N, 16, 16, 243)
    p1 = jnp.pad(p1, ((0, 0), (0, 0), (0, 0), (0, 13))).astype(bf16)

    # Weights: dense per-kh slabs (kw, ci) row-major -- matches the in-kernel
    # width-tap feature order.  bf16 for the MXU layers, f32 for the VPU layer.
    w1f = jnp.pad(w1.astype(f32).reshape(9 * 9 * 3, 32),
                  ((0, 13), (0, 0))).astype(bf16)                 # (256, 32)
    w2f = w2.astype(f32).reshape(7, 7 * 32, 64).astype(bf16)      # (7, 224, 64)
    w3f = w3.astype(f32).reshape(9, 9 * 64, 32).astype(bf16)      # (9, 576, 32)
    w4f = w4.astype(f32).reshape(7, 7 * 32)                       # (7, 224)
    return (p1, w1f, b1.reshape(1, 32).astype(f32),
            w2f, b2.reshape(1, 64).astype(f32),
            w3f, b3.reshape(1, 32).astype(f32),
            w4f, b4.reshape(1, 1).astype(f32))


@functools.partial(jax.jit, static_argnames=("pooling",))
def layoutnet_forward(x_nchw, params, pooling="max"):
    """Pallas equivalent of LayoutNet.forward.  NCHW in / NCHW out."""
    if pooling not in ("max", "avg"):
        raise ValueError("wrong pooling type for layoutnet!")
    x = jnp.transpose(x_nchw, (0, 2, 3, 1)).astype(jnp.float32)   # NCHW -> NHWC
    n = x.shape[0]
    bb = _pick_block(n)
    inputs = _prep_inputs(x, params)

    def full_spec(a):
        nd = a.ndim
        return pl.BlockSpec(a.shape, lambda i, _nd=nd: (0,) * _nd)

    kernel = functools.partial(_layoutnet_kernel, pooling=pooling)
    out = pl.pallas_call(
        kernel,
        out_shape=jax.ShapeDtypeStruct((n, 4, 4), jnp.float32),
        grid_spec=pltpu.PrefetchScalarGridSpec(
            num_scalar_prefetch=0,
            grid=(n // bb,),
            in_specs=[
                pl.BlockSpec((bb, 16, 16, 256), lambda i: (i, 0, 0, 0)),
                full_spec(inputs[1]), full_spec(inputs[2]),
                full_spec(inputs[3]), full_spec(inputs[4]),
                full_spec(inputs[5]), full_spec(inputs[6]),
                full_spec(inputs[7]), full_spec(inputs[8]),
            ],
            out_specs=pl.BlockSpec((bb, 4, 4), lambda i: (i, 0, 0)),
            scratch_shapes=[
                pltpu.VMEM((bb, 14, 14, 32), jnp.float32),  # padded in, layer 2
                pltpu.VMEM((bb, 12, 12, 64), jnp.float32),  # padded in, layer 3
                pltpu.VMEM((bb, 10, 10, 32), jnp.float32),  # padded in, layer 4
            ],
        ),
        compiler_params=pltpu.CompilerParams(
            dimension_semantics=("parallel",),
            vmem_limit_bytes=32 * 1024 * 1024),
    )(*inputs)
    return out.reshape(n, 1, 4, 4)


def reference_forward(x_nchw, params, pooling="max"):
    """Pure-JAX reference (lax.conv + reduce_window) for verification."""
    x = jnp.transpose(x_nchw, (0, 2, 3, 1))

    def conv(x, w, b, k):
        pad = (k - 1) // 2
        y = lax.conv_general_dilated(
            x, w, window_strides=(1, 1), padding=[(pad, pad), (pad, pad)],
            dimension_numbers=("NHWC", "HWIO", "NHWC"),
            precision=lax.Precision.HIGHEST)
        return y + b[None, None, None, :]

    def pool(x):
        if pooling == "max":
            return lax.reduce_window(x, -jnp.inf, lax.max,
                                     (1, 2, 2, 1), (1, 2, 2, 1), "VALID")
        return lax.reduce_window(x, 0.0, lax.add,
                                 (1, 2, 2, 1), (1, 2, 2, 1), "VALID") / 4.0

    (w1, b1), (w2, b2), (w3, b3), (w4, b4) = params
    x = jnp.maximum(pool(conv(x, w1, b1, 9)), 0.0)
    x = jnp.maximum(pool(conv(x, w2, b2, 7)), 0.0)
    x = jnp.maximum(conv(x, w3, b3, 9), 0.0)
    x = jnp.maximum(conv(x, w4, b4, 7), 0.0)
    return jnp.transpose(x, (0, 3, 1, 2))


if __name__ == "__main__":
    key = jax.random.PRNGKey(0)
    kx, *kp = jax.random.split(key, 9)

    # NCHW input, like the PyTorch module expects (Conv2d(3, ...)).
    x = jax.random.normal(kx, (2, 3, 16, 16), jnp.float32)

    # Deterministic synthetic parameters (HWIO layout), fan-in scaled so
    # activations stay O(1) (bf16-friendly, like real conv inits).
    layer_shapes = [(9, 9, 3, 32), (7, 7, 32, 64), (9, 9, 64, 32), (7, 7, 32, 1)]
    params = []
    for idx, ws in enumerate(layer_shapes):
        fan_in = float(ws[0] * ws[1] * ws[2])
        w = jax.random.normal(kp[2 * idx], ws, jnp.float32) / jnp.sqrt(fan_in)
        b = 0.1 * jax.random.normal(kp[2 * idx + 1], (ws[-1],), jnp.float32)
        params.append((w, b))
    params = tuple(params)

    out = jax.block_until_ready(layoutnet_forward(x, params, pooling="max"))
    assert out.shape == (2, 1, 4, 4), out.shape
    ref = reference_forward(x, params, pooling="max")
    if not bool(jnp.allclose(out, ref, rtol=2e-2, atol=2e-2)):
        raise AssertionError("Pallas LayoutNet (max) does not match reference")

    out_avg = jax.block_until_ready(layoutnet_forward(x, params, pooling="avg"))
    ref_avg = reference_forward(x, params, pooling="avg")
    if not bool(jnp.allclose(out_avg, ref_avg, rtol=2e-2, atol=2e-2)):
        raise AssertionError("Pallas LayoutNet (avg) does not match reference")

    print("KERNEL_OK")
</pallas_src>

<mosaic_0001>
module attributes {stable_mosaic.version = 11 : i64} {
  func.func @_layoutnet_kernel(%arg0: i32, %arg1: memref<1x16x16x256xbf16, #tpu.memory_space<vmem>>, %arg2: memref<256x32xbf16, #tpu.memory_space<vmem>>, %arg3: memref<1x32xf32, #tpu.memory_space<vmem>>, %arg4: memref<7x224x64xbf16, #tpu.memory_space<vmem>>, %arg5: memref<1x64xf32, #tpu.memory_space<vmem>>, %arg6: memref<9x576x32xbf16, #tpu.memory_space<vmem>>, %arg7: memref<1x32xf32, #tpu.memory_space<vmem>>, %arg8: memref<7x224xf32, #tpu.memory_space<vmem>>, %arg9: memref<1x1xf32, #tpu.memory_space<vmem>>, %arg10: memref<1x4x4xf32, #tpu.memory_space<vmem>>, %arg11: memref<1x14x14x32xf32, #tpu.memory_space<vmem>>, %arg12: memref<1x12x12x64xf32, #tpu.memory_space<vmem>>, %arg13: memref<1x10x10x32xf32, #tpu.memory_space<vmem>>) attributes {dimension_semantics = [#tpu.dimension_semantics<parallel>], iteration_bounds = array<i64: 2>, scalar_prefetch = 0 : i64, scratch_operands = 3 : i64, tpu.core_type = #tpu.core_type<tc>, window_params = [{transform_indices = @transform_0, window_bounds = array<i64: 1, 16, 16, 256>}, {pipeline_mode = #tpu.pipeline_mode<synchronous>, transform_indices = @transform_1, window_bounds = array<i64: 256, 32>}, {pipeline_mode = #tpu.pipeline_mode<synchronous>, transform_indices = @transform_2, window_bounds = array<i64: 1, 32>}, {pipeline_mode = #tpu.pipeline_mode<synchronous>, transform_indices = @transform_3, window_bounds = array<i64: 7, 224, 64>}, {pipeline_mode = #tpu.pipeline_mode<synchronous>, transform_indices = @transform_4, window_bounds = array<i64: 1, 64>}, {pipeline_mode = #tpu.pipeline_mode<synchronous>, transform_indices = @transform_5, window_bounds = array<i64: 9, 576, 32>}, {pipeline_mode = #tpu.pipeline_mode<synchronous>, transform_indices = @transform_6, window_bounds = array<i64: 1, 32>}, {pipeline_mode = #tpu.pipeline_mode<synchronous>, transform_indices = @transform_7, window_bounds = array<i64: 7, 224>}, {pipeline_mode = #tpu.pipeline_mode<synchronous>, transform_indices = @transform_8, window_bounds = array<i64: 1, 1>}, {transform_indices = @transform_9, window_bounds = array<i64: 1, 4, 4>}]} {
    %cst = arith.constant 0.000000e+00 : f32
    %0 = vector.broadcast %cst : f32 to vector<1x14x14x32xf32>
    %c0 = arith.constant 0 : index
    %c0_0 = arith.constant 0 : index
    %c0_1 = arith.constant 0 : index
    %c0_2 = arith.constant 0 : index
    %1 = vector.load %arg11[%c0, %c0_0, %c0_1, %c0_2] : memref<1x14x14x32xf32, #tpu.memory_space<vmem>>, vector<1x14x14x32xf32>
    tpu.vector_store %arg11[%c0, %c0_0, %c0_1, %c0_2], %0 {strides = array<i32>} : memref<1x14x14x32xf32, #tpu.memory_space<vmem>>, vector<1x14x14x32xf32>,
    %cst_3 = arith.constant 0.000000e+00 : f32
    %2 = vector.broadcast %cst_3 : f32 to vector<1x12x12x64xf32>
    %c0_4 = arith.constant 0 : index
    %c0_5 = arith.constant 0 : index
    %c0_6 = arith.constant 0 : index
    %c0_7 = arith.constant 0 : index
    %3 = vector.load %arg12[%c0_4, %c0_5, %c0_6, %c0_7] : memref<1x12x12x64xf32, #tpu.memory_space<vmem>>, vector<1x12x12x64xf32>
    tpu.vector_store %arg12[%c0_4, %c0_5, %c0_6, %c0_7], %2 {strides = array<i32>} : memref<1x12x12x64xf32, #tpu.memory_space<vmem>>, vector<1x12x12x64xf32>,
    %cst_8 = arith.constant 0.000000e+00 : f32
    %4 = vector.broadcast %cst_8 : f32 to vector<1x10x10x32xf32>
    %c0_9 = arith.constant 0 : index
    %c0_10 = arith.constant 0 : index
    %c0_11 = arith.constant 0 : index
    %c0_12 = arith.constant 0 : index
    %5 = vector.load %arg13[%c0_9, %c0_10, %c0_11, %c0_12] : memref<1x10x10x32xf32, #tpu.memory_space<vmem>>, vector<1x10x10x32xf32>
    tpu.vector_store %arg13[%c0_9, %c0_10, %c0_11, %c0_12], %4 {strides = array<i32>} : memref<1x10x10x32xf32, #tpu.memory_space<vmem>>, vector<1x10x10x32xf32>,
    %c0_13 = arith.constant 0 : index
    %c0_14 = arith.constant 0 : index
    %c0_15 = arith.constant 0 : index
    %c0_16 = arith.constant 0 : index
    %6 = vector.load %arg1[%c0_13, %c0_14, %c0_15, %c0_16] : memref<1x16x16x256xbf16, #tpu.memory_space<vmem>>, vector<1x16x16x256xbf16>
    %7 = vector.shape_cast %6 : vector<1x16x16x256xbf16> to vector<256x256xbf16>
    %c0_17 = arith.constant 0 : index
    %c0_18 = arith.constant 0 : index
    %8 = vector.load %arg2[%c0_17, %c0_18] : memref<256x32xbf16, #tpu.memory_space<vmem>>, vector<256x32xbf16>
    %cst_19 = arith.constant dense<0.000000e+00> : vector<256x32xf32>
    %9 = tpu.matmul %7, %8, %cst_19 {dimension_numbers = #tpu.dot_dimension_numbers<[1], [0], [0], [1], [0, 0, 1, 1], [], []>} : vector<256x256xbf16>, vector<256x32xbf16>, vector<256x32xf32> -> vector<256x32xf32>
    %c0_20 = arith.constant 0 : index
    %c0_21 = arith.constant 0 : index
    %10 = vector.load %arg3[%c0_20, %c0_21] : memref<1x32xf32, #tpu.memory_space<vmem>>, vector<1x32xf32>
    %11 = vector.broadcast %10 : vector<1x32xf32> to vector<256x32xf32>
    %12 = arith.addf %9, %11 : vector<256x32xf32>
    %13 = vector.shape_cast %12 : vector<256x32xf32> to vector<1x16x16x32xf32>
    %14 = vector.shape_cast %13 : vector<1x16x16x32xf32> to vector<1x8x2x16x32xf32>
    %15 = vector.extract_strided_slice %14 {offsets = [0, 0, 0, 0, 0], sizes = [1, 8, 1, 16, 32], strides = [1, 1, 1, 1, 1]} : vector<1x8x2x16x32xf32> to vector<1x8x1x16x32xf32>
    %16 = vector.shape_cast %15 : vector<1x8x1x16x32xf32> to vector<1x8x16x32xf32>
    %17 = vector.extract_strided_slice %14 {offsets = [0, 0, 1, 0, 0], sizes = [1, 8, 1, 16, 32], strides = [1, 1, 1, 1, 1]} : vector<1x8x2x16x32xf32> to vector<1x8x1x16x32xf32>
    %18 = vector.shape_cast %17 : vector<1x8x1x16x32xf32> to vector<1x8x16x32xf32>
    %19 = arith.maximumf %16, %18 : vector<1x8x16x32xf32>
    %20 = vector.extract_strided_slice %19 {offsets = [0, 0, 0, 0], sizes = [1, 8, 1, 32], strides = [1, 1, 1, 1]} : vector<1x8x16x32xf32> to vector<1x8x1x32xf32>
    %21 = vector.extract_strided_slice %19 {offsets = [0, 0, 2, 0], sizes = [1, 8, 1, 32], strides = [1, 1, 1, 1]} : vector<1x8x16x32xf32> to vector<1x8x1x32xf32>
    %22 = vector.extract_strided_slice %19 {offsets = [0, 0, 4, 0], sizes = [1, 8, 1, 32], strides = [1, 1, 1, 1]} : vector<1x8x16x32xf32> to vector<1x8x1x32xf32>
    %23 = vector.extract_strided_slice %19 {offsets = [0, 0, 6, 0], sizes = [1, 8, 1, 32], strides = [1, 1, 1, 1]} : vector<1x8x16x32xf32> to vector<1x8x1x32xf32>
    %24 = vector.extract_strided_slice %19 {offsets = [0, 0, 8, 0], sizes = [1, 8, 1, 32], strides = [1, 1, 1, 1]} : vector<1x8x16x32xf32> to vector<1x8x1x32xf32>
    %25 = vector.extract_strided_slice %19 {offsets = [0, 0, 10, 0], sizes = [1, 8, 1, 32], strides = [1, 1, 1, 1]} : vector<1x8x16x32xf32> to vector<1x8x1x32xf32>
    %26 = vector.extract_strided_slice %19 {offsets = [0, 0, 12, 0], sizes = [1, 8, 1, 32], strides = [1, 1, 1, 1]} : vector<1x8x16x32xf32> to vector<1x8x1x32xf32>
    %27 = vector.extract_strided_slice %19 {offsets = [0, 0, 14, 0], sizes = [1, 8, 1, 32], strides = [1, 1, 1, 1]} : vector<1x8x16x32xf32> to vector<1x8x1x32xf32>
    %28 = tpu.concatenate %20, %21, %22, %23, %24, %25, %26, %27 in 2 : vector<1x8x1x32xf32>, vector<1x8x1x32xf32>, vector<1x8x1x32xf32>, vector<1x8x1x32xf32>, vector<1x8x1x32xf32>, vector<1x8x1x32xf32>, vector<1x8x1x32xf32>, vector<1x8x1x32xf32> -> vector<1x8x8x32xf32>
    %29 = vector.extract_strided_slice %19 {offsets = [0, 0, 1, 0], sizes = [1, 8, 1, 32], strides = [1, 1, 1, 1]} : vector<1x8x16x32xf32> to vector<1x8x1x32xf32>
    %30 = vector.extract_strided_slice %19 {offsets = [0, 0, 3, 0], sizes = [1, 8, 1, 32], strides = [1, 1, 1, 1]} : vector<1x8x16x32xf32> to vector<1x8x1x32xf32>
    %31 = vector.extract_strided_slice %19 {offsets = [0, 0, 5, 0], sizes = [1, 8, 1, 32], strides = [1, 1, 1, 1]} : vector<1x8x16x32xf32> to vector<1x8x1x32xf32>
    %32 = vector.extract_strided_slice %19 {offsets = [0, 0, 7, 0], sizes = [1, 8, 1, 32], strides = [1, 1, 1, 1]} : vector<1x8x16x32xf32> to vector<1x8x1x32xf32>
    %33 = vector.extract_strided_slice %19 {offsets = [0, 0, 9, 0], sizes = [1, 8, 1, 32], strides = [1, 1, 1, 1]} : vector<1x8x16x32xf32> to vector<1x8x1x32xf32>
    %34 = vector.extract_strided_slice %19 {offsets = [0, 0, 11, 0], sizes = [1, 8, 1, 32], strides = [1, 1, 1, 1]} : vector<1x8x16x32xf32> to vector<1x8x1x32xf32>
    %35 = vector.extract_strided_slice %19 {offsets = [0, 0, 13, 0], sizes = [1, 8, 1, 32], strides = [1, 1, 1, 1]} : vector<1x8x16x32xf32> to vector<1x8x1x32xf32>
    %36 = vector.extract_strided_slice %19 {offsets = [0, 0, 15, 0], sizes = [1, 8, 1, 32], strides = [1, 1, 1, 1]} : vector<1x8x16x32xf32> to vector<1x8x1x32xf32>
    %37 = tpu.concatenate %29, %30, %31, %32, %33, %34, %35, %36 in 2 : vector<1x8x1x32xf32>, vector<1x8x1x32xf32>, vector<1x8x1x32xf32>, vector<1x8x1x32xf32>, vector<1x8x1x32xf32>, vector<1x8x1x32xf32>, vector<1x8x1x32xf32>, vector<1x8x1x32xf32> -> vector<1x8x8x32xf32>
    %38 = arith.maximumf %28, %37 : vector<1x8x8x32xf32>
    %cst_22 = arith.constant 0.000000e+00 : f32
    %39 = vector.broadcast %cst_22 : f32 to vector<1x8x8x32xf32>
    %40 = arith.maximumf %38, %39 : vector<1x8x8x32xf32>
    %c0_23 = arith.constant 0 : index
    %c3 = arith.constant 3 : index
    %c3_24 = arith.constant 3 : index
    %c0_25 = arith.constant 0 : index
    %41 = vector.load %arg11[%c0_23, %c3, %c3_24, %c0_25] : memref<1x14x14x32xf32, #tpu.memory_space<vmem>>, vector<1x8x8x32xf32>
    tpu.vector_store %arg11[%c0_23, %c3, %c3_24, %c0_25], %40 {strides = array<i32>} : memref<1x14x14x32xf32, #tpu.memory_space<vmem>>, vector<1x8x8x32xf32>,
    %c0_26 = arith.constant 0 : index
    %c0_27 = arith.constant 0 : index
    %c0_28 = arith.constant 0 : index
    %c0_29 = arith.constant 0 : index
    %42 = vector.load %arg11[%c0_26, %c0_27, %c0_28, %c0_29] : memref<1x14x14x32xf32, #tpu.memory_space<vmem>>, vector<1x14x8x32xf32>
    %43 = arith.truncf %42 : vector<1x14x8x32xf32> to vector<1x14x8x32xbf16>
    %c0_30 = arith.constant 0 : index
    %c0_31 = arith.constant 0 : index
    %c1 = arith.constant 1 : index
    %c0_32 = arith.constant 0 : index
    %44 = vector.load %arg11[%c0_30, %c0_31, %c1, %c0_32] : memref<1x14x14x32xf32, #tpu.memory_space<vmem>>, vector<1x14x8x32xf32>
    %45 = arith.truncf %44 : vector<1x14x8x32xf32> to vector<1x14x8x32xbf16>
    %c0_33 = arith.constant 0 : index
    %c0_34 = arith.constant 0 : index
    %c2 = arith.constant 2 : index
    %c0_35 = arith.constant 0 : index
    %46 = vector.load %arg11[%c0_33, %c0_34, %c2, %c0_35] : memref<1x14x14x32xf32, #tpu.memory_space<vmem>>, vector<1x14x8x32xf32>
    %47 = arith.truncf %46 : vector<1x14x8x32xf32> to vector<1x14x8x32xbf16>
    %c0_36 = arith.constant 0 : index
    %c0_37 = arith.constant 0 : index
    %c3_38 = arith.constant 3 : index
    %c0_39 = arith.constant 0 : index
    %48 = vector.load %arg11[%c0_36, %c0_37, %c3_38, %c0_39] : memref<1x14x14x32xf32, #tpu.memory_space<vmem>>, vector<1x14x8x32xf32>
    %49 = arith.truncf %48 : vector<1x14x8x32xf32> to vector<1x14x8x32xbf16>
    %c0_40 = arith.constant 0 : index
    %c0_41 = arith.constant 0 : index
    %c4 = arith.constant 4 : index
    %c0_42 = arith.constant 0 : index
    %50 = vector.load %arg11[%c0_40, %c0_41, %c4, %c0_42] : memref<1x14x14x32xf32, #tpu.memory_space<vmem>>, vector<1x14x8x32xf32>
    %51 = arith.truncf %50 : vector<1x14x8x32xf32> to vector<1x14x8x32xbf16>
    %c0_43 = arith.constant 0 : index
    %c0_44 = arith.constant 0 : index
    %c5 = arith.constant 5 : index
    %c0_45 = arith.constant 0 : index
    %52 = vector.load %arg11[%c0_43, %c0_44, %c5, %c0_45] : memref<1x14x14x32xf32, #tpu.memory_space<vmem>>, vector<1x14x8x32xf32>
    %53 = arith.truncf %52 : vector<1x14x8x32xf32> to vector<1x14x8x32xbf16>
    %c0_46 = arith.constant 0 : index
    %c0_47 = arith.constant 0 : index
    %c6 = arith.constant 6 : index
    %c0_48 = arith.constant 0 : index
    %54 = vector.load %arg11[%c0_46, %c0_47, %c6, %c0_48] : memref<1x14x14x32xf32, #tpu.memory_space<vmem>>, vector<1x14x8x32xf32>
    %55 = arith.truncf %54 : vector<1x14x8x32xf32> to vector<1x14x8x32xbf16>
    %56 = tpu.concatenate %43, %45, %47, %49, %51, %53, %55 in 3 : vector<1x14x8x32xbf16>, vector<1x14x8x32xbf16>, vector<1x14x8x32xbf16>, vector<1x14x8x32xbf16>, vector<1x14x8x32xbf16>, vector<1x14x8x32xbf16>, vector<1x14x8x32xbf16> -> vector<1x14x8x224xbf16>
    %cst_49 = arith.constant 0.000000e+00 : f32
    %57 = vector.broadcast %cst_49 : f32 to vector<64x64xf32>
    %58 = vector.extract_strided_slice %56 {offsets = [0, 0, 0, 0], sizes = [1, 8, 8, 224], strides = [1, 1, 1, 1]} : vector<1x14x8x224xbf16> to vector<1x8x8x224xbf16>
    %59 = vector.shape_cast %58 : vector<1x8x8x224xbf16> to vector<64x224xbf16>
    %c0_50 = arith.constant 0 : index
    %c0_51 = arith.constant 0 : index
    %c0_52 = arith.constant 0 : index
    %60 = vector.load %arg4[%c0_50, %c0_51, %c0_52] : memref<7x224x64xbf16, #tpu.memory_space<vmem>>, vector<1x224x64xbf16>
    %61 = vector.shape_cast %60 : vector<1x224x64xbf16> to vector<224x64xbf16>
    %cst_53 = arith.constant dense<0.000000e+00> : vector<64x64xf32>
    %62 = tpu.matmul %59, %61, %cst_53 {dimension_numbers = #tpu.dot_dimension_numbers<[1], [0], [0], [1], [0, 0, 1, 1], [], []>} : vector<64x224xbf16>, vector<224x64xbf16>, vector<64x64xf32> -> vector<64x64xf32>
    %63 = arith.addf %57, %62 : vector<64x64xf32>
    %64 = vector.extract_strided_slice %56 {offsets = [0, 1, 0, 0], sizes = [1, 8, 8, 224], strides = [1, 1, 1, 1]} : vector<1x14x8x224xbf16> to vector<1x8x8x224xbf16>
    %65 = vector.shape_cast %64 : vector<1x8x8x224xbf16> to vector<64x224xbf16>
    %c1_54 = arith.constant 1 : index
    %c0_55 = arith.constant 0 : index
    %c0_56 = arith.constant 0 : index
    %66 = vector.load %arg4[%c1_54, %c0_55, %c0_56] : memref<7x224x64xbf16, #tpu.memory_space<vmem>>, vector<1x224x64xbf16>
    %67 = vector.shape_cast %66 : vector<1x224x64xbf16> to vector<224x64xbf16>
    %cst_57 = arith.constant dense<0.000000e+00> : vector<64x64xf32>
    %68 = tpu.matmul %65, %67, %cst_57 {dimension_numbers = #tpu.dot_dimension_numbers<[1], [0], [0], [1], [0, 0, 1, 1], [], []>} : vector<64x224xbf16>, vector<224x64xbf16>, vector<64x64xf32> -> vector<64x64xf32>
    %69 = arith.addf %63, %68 : vector<64x64xf32>
    %70 = vector.extract_strided_slice %56 {offsets = [0, 2, 0, 0], sizes = [1, 8, 8, 224], strides = [1, 1, 1, 1]} : vector<1x14x8x224xbf16> to vector<1x8x8x224xbf16>
    %71 = vector.shape_cast %70 : vector<1x8x8x224xbf16> to vector<64x224xbf16>
    %c2_58 = arith.constant 2 : index
    %c0_59 = arith.constant 0 : index
    %c0_60 = arith.constant 0 : index
    %72 = vector.load %arg4[%c2_58, %c0_59, %c0_60] : memref<7x224x64xbf16, #tpu.memory_space<vmem>>, vector<1x224x64xbf16>
    %73 = vector.shape_cast %72 : vector<1x224x64xbf16> to vector<224x64xbf16>
    %cst_61 = arith.constant dense<0.000000e+00> : vector<64x64xf32>
    %74 = tpu.matmul %71, %73, %cst_61 {dimension_numbers = #tpu.dot_dimension_numbers<[1], [0], [0], [1], [0, 0, 1, 1], [], []>} : vector<64x224xbf16>, vector<224x64xbf16>, vector<64x64xf32> -> vector<64x64xf32>
    %75 = arith.addf %69, %74 : vector<64x64xf32>
    %76 = vector.extract_strided_slice %56 {offsets = [0, 3, 0, 0], sizes = [1, 8, 8, 224], strides = [1, 1, 1, 1]} : vector<1x14x8x224xbf16> to vector<1x8x8x224xbf16>
    %77 = vector.shape_cast %76 : vector<1x8x8x224xbf16> to vector<64x224xbf16>
    %c3_62 = arith.constant 3 : index
    %c0_63 = arith.constant 0 : index
    %c0_64 = arith.constant 0 : index
    %78 = vector.load %arg4[%c3_62, %c0_63, %c0_64] : memref<7x224x64xbf16, #tpu.memory_space<vmem>>, vector<1x224x64xbf16>
    %79 = vector.shape_cast %78 : vector<1x224x64xbf16> to vector<224x64xbf16>
    %cst_65 = arith.constant dense<0.000000e+00> : vector<64x64xf32>
    %80 = tpu.matmul %77, %79, %cst_65 {dimension_numbers = #tpu.dot_dimension_numbers<[1], [0], [0], [1], [0, 0, 1, 1], [], []>} : vector<64x224xbf16>, vector<224x64xbf16>, vector<64x64xf32> -> vector<64x64xf32>
    %81 = arith.addf %75, %80 : vector<64x64xf32>
    %82 = vector.extract_strided_slice %56 {offsets = [0, 4, 0, 0], sizes = [1, 8, 8, 224], strides = [1, 1, 1, 1]} : vector<1x14x8x224xbf16> to vector<1x8x8x224xbf16>
    %83 = vector.shape_cast %82 : vector<1x8x8x224xbf16> to vector<64x224xbf16>
    %c4_66 = arith.constant 4 : index
    %c0_67 = arith.constant 0 : index
    %c0_68 = arith.constant 0 : index
    %84 = vector.load %arg4[%c4_66, %c0_67, %c0_68] : memref<7x224x64xbf16, #tpu.memory_space<vmem>>, vector<1x224x64xbf16>
    %85 = vector.shape_cast %84 : vector<1x224x64xbf16> to vector<224x64xbf16>
    %cst_69 = arith.constant dense<0.000000e+00> : vector<64x64xf32>
    %86 = tpu.matmul %83, %85, %cst_69 {dimension_numbers = #tpu.dot_dimension_numbers<[1], [0], [0], [1], [0, 0, 1, 1], [], []>} : vector<64x224xbf16>, vector<224x64xbf16>, vector<64x64xf32> -> vector<64x64xf32>
    %87 = arith.addf %81, %86 : vector<64x64xf32>
    %88 = vector.extract_strided_slice %56 {offsets = [0, 5, 0, 0], sizes = [1, 8, 8, 224], strides = [1, 1, 1, 1]} : vector<1x14x8x224xbf16> to vector<1x8x8x224xbf16>
    %89 = vector.shape_cast %88 : vector<1x8x8x224xbf16> to vector<64x224xbf16>
    %c5_70 = arith.constant 5 : index
    %c0_71 = arith.constant 0 : index
    %c0_72 = arith.constant 0 : index
    %90 = vector.load %arg4[%c5_70, %c0_71, %c0_72] : memref<7x224x64xbf16, #tpu.memory_space<vmem>>, vector<1x224x64xbf16>
    %91 = vector.shape_cast %90 : vector<1x224x64xbf16> to vector<224x64xbf16>
    %cst_73 = arith.constant dense<0.000000e+00> : vector<64x64xf32>
    %92 = tpu.matmul %89, %91, %cst_73 {dimension_numbers = #tpu.dot_dimension_numbers<[1], [0], [0], [1], [0, 0, 1, 1], [], []>} : vector<64x224xbf16>, vector<224x64xbf16>, vector<64x64xf32> -> vector<64x64xf32>
    %93 = arith.addf %87, %92 : vector<64x64xf32>
    %94 = vector.extract_strided_slice %56 {offsets = [0, 6, 0, 0], sizes = [1, 8, 8, 224], strides = [1, 1, 1, 1]} : vector<1x14x8x224xbf16> to vector<1x8x8x224xbf16>
    %95 = vector.shape_cast %94 : vector<1x8x8x224xbf16> to vector<64x224xbf16>
    %c6_74 = arith.constant 6 : index
    %c0_75 = arith.constant 0 : index
    %c0_76 = arith.constant 0 : index
    %96 = vector.load %arg4[%c6_74, %c0_75, %c0_76] : memref<7x224x64xbf16, #tpu.memory_space<vmem>>, vector<1x224x64xbf16>
    %97 = vector.shape_cast %96 : vector<1x224x64xbf16> to vector<224x64xbf16>
    %cst_77 = arith.constant dense<0.000000e+00> : vector<64x64xf32>
    %98 = tpu.matmul %95, %97, %cst_77 {dimension_numbers = #tpu.dot_dimension_numbers<[1], [0], [0], [1], [0, 0, 1, 1], [], []>} : vector<64x224xbf16>, vector<224x64xbf16>, vector<64x64xf32> -> vector<64x64xf32>
    %99 = arith.addf %93, %98 : vector<64x64xf32>
    %c0_78 = arith.constant 0 : index
    %c0_79 = arith.constant 0 : index
    %100 = vector.load %arg5[%c0_78, %c0_79] : memref<1x64xf32, #tpu.memory_space<vmem>>, vector<1x64xf32>
    %101 = vector.broadcast %100 : vector<1x64xf32> to vector<64x64xf32>
    %102 = arith.addf %99, %101 : vector<64x64xf32>
    %103 = vector.shape_cast %102 : vector<64x64xf32> to vector<1x8x8x64xf32>
    %104 = vector.shape_cast %103 : vector<1x8x8x64xf32> to vector<1x4x2x8x64xf32>
    %105 = vector.extract_strided_slice %104 {offsets = [0, 0, 0, 0, 0], sizes = [1, 4, 1, 8, 64], strides = [1, 1, 1, 1, 1]} : vector<1x4x2x8x64xf32> to vector<1x4x1x8x64xf32>
    %106 = vector.shape_cast %105 : vector<1x4x1x8x64xf32> to vector<1x4x8x64xf32>
    %107 = vector.extract_strided_slice %104 {offsets = [0, 0, 1, 0, 0], sizes = [1, 4, 1, 8, 64], strides = [1, 1, 1, 1, 1]} : vector<1x4x2x8x64xf32> to vector<1x4x1x8x64xf32>
    %108 = vector.shape_cast %107 : vector<1x4x1x8x64xf32> to vector<1x4x8x64xf32>
    %109 = arith.maximumf %106, %108 : vector<1x4x8x64xf32>
    %110 = vector.extract_strided_slice %109 {offsets = [0, 0, 0, 0], sizes = [1, 4, 1, 64], strides = [1, 1, 1, 1]} : vector<1x4x8x64xf32> to vector<1x4x1x64xf32>
    %111 = vector.extract_strided_slice %109 {offsets = [0, 0, 2, 0], sizes = [1, 4, 1, 64], strides = [1, 1, 1, 1]} : vector<1x4x8x64xf32> to vector<1x4x1x64xf32>
    %112 = vector.extract_strided_slice %109 {offsets = [0, 0, 4, 0], sizes = [1, 4, 1, 64], strides = [1, 1, 1, 1]} : vector<1x4x8x64xf32> to vector<1x4x1x64xf32>
    %113 = vector.extract_strided_slice %109 {offsets = [0, 0, 6, 0], sizes = [1, 4, 1, 64], strides = [1, 1, 1, 1]} : vector<1x4x8x64xf32> to vector<1x4x1x64xf32>
    %114 = tpu.concatenate %110, %111, %112, %113 in 2 : vector<1x4x1x64xf32>, vector<1x4x1x64xf32>, vector<1x4x1x64xf32>, vector<1x4x1x64xf32> -> vector<1x4x4x64xf32>
    %115 = vector.extract_strided_slice %109 {offsets = [0, 0, 1, 0], sizes = [1, 4, 1, 64], strides = [1, 1, 1, 1]} : vector<1x4x8x64xf32> to vector<1x4x1x64xf32>
    %116 = vector.extract_strided_slice %109 {offsets = [0, 0, 3, 0], sizes = [1, 4, 1, 64], strides = [1, 1, 1, 1]} : vector<1x4x8x64xf32> to vector<1x4x1x64xf32>
    %117 = vector.extract_strided_slice %109 {offsets = [0, 0, 5, 0], sizes = [1, 4, 1, 64], strides = [1, 1, 1, 1]} : vector<1x4x8x64xf32> to vector<1x4x1x64xf32>
    %118 = vector.extract_strided_slice %109 {offsets = [0, 0, 7, 0], sizes = [1, 4, 1, 64], strides = [1, 1, 1, 1]} : vector<1x4x8x64xf32> to vector<1x4x1x64xf32>
    %119 = tpu.concatenate %115, %116, %117, %118 in 2 : vector<1x4x1x64xf32>, vector<1x4x1x64xf32>, vector<1x4x1x64xf32>, vector<1x4x1x64xf32> -> vector<1x4x4x64xf32>
    %120 = arith.maximumf %114, %119 : vector<1x4x4x64xf32>
    %cst_80 = arith.constant 0.000000e+00 : f32
    %121 = vector.broadcast %cst_80 : f32 to vector<1x4x4x64xf32>
    %122 = arith.maximumf %120, %121 : vector<1x4x4x64xf32>
    %c0_81 = arith.constant 0 : index
    %c4_82 = arith.constant 4 : index
    %c4_83 = arith.constant 4 : index
    %c0_84 = arith.constant 0 : index
    %123 = vector.load %arg12[%c0_81, %c4_82, %c4_83, %c0_84] : memref<1x12x12x64xf32, #tpu.memory_space<vmem>>, vector<1x4x4x64xf32>
    tpu.vector_store %arg12[%c0_81, %c4_82, %c4_83, %c0_84], %122 {strides = array<i32>} : memref<1x12x12x64xf32, #tpu.memory_space<vmem>>, vector<1x4x4x64xf32>,
    %c0_85 = arith.constant 0 : index
    %c0_86 = arith.constant 0 : index
    %c0_87 = arith.constant 0 : index
    %c0_88 = arith.constant 0 : index
    %124 = vector.load %arg12[%c0_85, %c0_86, %c0_87, %c0_88] : memref<1x12x12x64xf32, #tpu.memory_space<vmem>>, vector<1x12x4x64xf32>
    %125 = arith.truncf %124 : vector<1x12x4x64xf32> to vector<1x12x4x64xbf16>
    %c0_89 = arith.constant 0 : index
    %c0_90 = arith.constant 0 : index
    %c1_91 = arith.constant 1 : index
    %c0_92 = arith.constant 0 : index
    %126 = vector.load %arg12[%c0_89, %c0_90, %c1_91, %c0_92] : memref<1x12x12x64xf32, #tpu.memory_space<vmem>>, vector<1x12x4x64xf32>
    %127 = arith.truncf %126 : vector<1x12x4x64xf32> to vector<1x12x4x64xbf16>
    %c0_93 = arith.constant 0 : index
    %c0_94 = arith.constant 0 : index
    %c2_95 = arith.constant 2 : index
    %c0_96 = arith.constant 0 : index
    %128 = vector.load %arg12[%c0_93, %c0_94, %c2_95, %c0_96] : memref<1x12x12x64xf32, #tpu.memory_space<vmem>>, vector<1x12x4x64xf32>
    %129 = arith.truncf %128 : vector<1x12x4x64xf32> to vector<1x12x4x64xbf16>
    %c0_97 = arith.constant 0 : index
    %c0_98 = arith.constant 0 : index
    %c3_99 = arith.constant 3 : index
    %c0_100 = arith.constant 0 : index
    %130 = vector.load %arg12[%c0_97, %c0_98, %c3_99, %c0_100] : memref<1x12x12x64xf32, #tpu.memory_space<vmem>>, vector<1x12x4x64xf32>
    %131 = arith.truncf %130 : vector<1x12x4x64xf32> to vector<1x12x4x64xbf16>
    %c0_101 = arith.constant 0 : index
    %c0_102 = arith.constant 0 : index
    %c4_103 = arith.constant 4 : index
    %c0_104 = arith.constant 0 : index
    %132 = vector.load %arg12[%c0_101, %c0_102, %c4_103, %c0_104] : memref<1x12x12x64xf32, #tpu.memory_space<vmem>>, vector<1x12x4x64xf32>
    %133 = arith.truncf %132 : vector<1x12x4x64xf32> to vector<1x12x4x64xbf16>
    %c0_105 = arith.constant 0 : index
    %c0_106 = arith.constant 0 : index
    %c5_107 = arith.constant 5 : index
    %c0_108 = arith.constant 0 : index
    %134 = vector.load %arg12[%c0_105, %c0_106, %c5_107, %c0_108] : memref<1x12x12x64xf32, #tpu.memory_space<vmem>>, vector<1x12x4x64xf32>
    %135 = arith.truncf %134 : vector<1x12x4x64xf32> to vector<1x12x4x64xbf16>
    %c0_109 = arith.constant 0 : index
    %c0_110 = arith.constant 0 : index
    %c6_111 = arith.constant 6 : index
    %c0_112 = arith.constant 0 : index
    %136 = vector.load %arg12[%c0_109, %c0_110, %c6_111, %c0_112] : memref<1x12x12x64xf32, #tpu.memory_space<vmem>>, vector<1x12x4x64xf32>
    %137 = arith.truncf %136 : vector<1x12x4x64xf32> to vector<1x12x4x64xbf16>
    %c0_113 = arith.constant 0 : index
    %c0_114 = arith.constant 0 : index
    %c7 = arith.constant 7 : index
    %c0_115 = arith.constant 0 : index
    %138 = vector.load %arg12[%c0_113, %c0_114, %c7, %c0_115] : memref<1x12x12x64xf32, #tpu.memory_space<vmem>>, vector<1x12x4x64xf32>
    %139 = arith.truncf %138 : vector<1x12x4x64xf32> to vector<1x12x4x64xbf16>
    %c0_116 = arith.constant 0 : index
    %c0_117 = arith.constant 0 : index
    %c8 = arith.constant 8 : index
    %c0_118 = arith.constant 0 : index
    %140 = vector.load %arg12[%c0_116, %c0_117, %c8, %c0_118] : memref<1x12x12x64xf32, #tpu.memory_space<vmem>>, vector<1x12x4x64xf32>
    %141 = arith.truncf %140 : vector<1x12x4x64xf32> to vector<1x12x4x64xbf16>
    %142 = tpu.concatenate %125, %127, %129, %131, %133, %135, %137, %139, %141 in 3 : vector<1x12x4x64xbf16>, vector<1x12x4x64xbf16>, vector<1x12x4x64xbf16>, vector<1x12x4x64xbf16>, vector<1x12x4x64xbf16>, vector<1x12x4x64xbf16>, vector<1x12x4x64xbf16>, vector<1x12x4x64xbf16>, vector<1x12x4x64xbf16> -> vector<1x12x4x576xbf16>
    %cst_119 = arith.constant 0.000000e+00 : f32
    %143 = vector.broadcast %cst_119 : f32 to vector<16x32xf32>
    %144 = vector.extract_strided_slice %142 {offsets = [0, 0, 0, 0], sizes = [1, 4, 4, 576], strides = [1, 1, 1, 1]} : vector<1x12x4x576xbf16> to vector<1x4x4x576xbf16>
    %145 = vector.shape_cast %144 : vector<1x4x4x576xbf16> to vector<16x576xbf16>
    %c0_120 = arith.constant 0 : index
    %c0_121 = arith.constant 0 : index
    %c0_122 = arith.constant 0 : index
    %146 = vector.load %arg6[%c0_120, %c0_121, %c0_122] : memref<9x576x32xbf16, #tpu.memory_space<vmem>>, vector<1x576x32xbf16>
    %147 = vector.shape_cast %146 : vector<1x576x32xbf16> to vector<576x32xbf16>
    %cst_123 = arith.constant dense<0.000000e+00> : vector<16x32xf32>
    %148 = tpu.matmul %145, %147, %cst_123 {dimension_numbers = #tpu.dot_dimension_numbers<[1], [0], [0], [1], [0, 0, 1, 1], [], []>} : vector<16x576xbf16>, vector<576x32xbf16>, vector<16x32xf32> -> vector<16x32xf32>
    %149 = arith.addf %143, %148 : vector<16x32xf32>
    %150 = vector.extract_strided_slice %142 {offsets = [0, 1, 0, 0], sizes = [1, 4, 4, 576], strides = [1, 1, 1, 1]} : vector<1x12x4x576xbf16> to vector<1x4x4x576xbf16>
    %151 = vector.shape_cast %150 : vector<1x4x4x576xbf16> to vector<16x576xbf16>
    %c1_124 = arith.constant 1 : index
    %c0_125 = arith.constant 0 : index
    %c0_126 = arith.constant 0 : index
    %152 = vector.load %arg6[%c1_124, %c0_125, %c0_126] : memref<9x576x32xbf16, #tpu.memory_space<vmem>>, vector<1x576x32xbf16>
    %153 = vector.shape_cast %152 : vector<1x576x32xbf16> to vector<576x32xbf16>
    %cst_127 = arith.constant dense<0.000000e+00> : vector<16x32xf32>
    %154 = tpu.matmul %151, %153, %cst_127 {dimension_numbers = #tpu.dot_dimension_numbers<[1], [0], [0], [1], [0, 0, 1, 1], [], []>} : vector<16x576xbf16>, vector<576x32xbf16>, vector<16x32xf32> -> vector<16x32xf32>
    %155 = arith.addf %149, %154 : vector<16x32xf32>
    %156 = vector.extract_strided_slice %142 {offsets = [0, 2, 0, 0], sizes = [1, 4, 4, 576], strides = [1, 1, 1, 1]} : vector<1x12x4x576xbf16> to vector<1x4x4x576xbf16>
    %157 = vector.shape_cast %156 : vector<1x4x4x576xbf16> to vector<16x576xbf16>
    %c2_128 = arith.constant 2 : index
    %c0_129 = arith.constant 0 : index
    %c0_130 = arith.constant 0 : index
    %158 = vector.load %arg6[%c2_128, %c0_129, %c0_130] : memref<9x576x32xbf16, #tpu.memory_space<vmem>>, vector<1x576x32xbf16>
    %159 = vector.shape_cast %158 : vector<1x576x32xbf16> to vector<576x32xbf16>
    %cst_131 = arith.constant dense<0.000000e+00> : vector<16x32xf32>
    %160 = tpu.matmul %157, %159, %cst_131 {dimension_numbers = #tpu.dot_dimension_numbers<[1], [0], [0], [1], [0, 0, 1, 1], [], []>} : vector<16x576xbf16>, vector<576x32xbf16>, vector<16x32xf32> -> vector<16x32xf32>
    %161 = arith.addf %155, %160 : vector<16x32xf32>
    %162 = vector.extract_strided_slice %142 {offsets = [0, 3, 0, 0], sizes = [1, 4, 4, 576], strides = [1, 1, 1, 1]} : vector<1x12x4x576xbf16> to vector<1x4x4x576xbf16>
    %163 = vector.shape_cast %162 : vector<1x4x4x576xbf16> to vector<16x576xbf16>
    %c3_132 = arith.constant 3 : index
    %c0_133 = arith.constant 0 : index
    %c0_134 = arith.constant 0 : index
    %164 = vector.load %arg6[%c3_132, %c0_133, %c0_134] : memref<9x576x32xbf16, #tpu.memory_space<vmem>>, vector<1x576x32xbf16>
    %165 = vector.shape_cast %164 : vector<1x576x32xbf16> to vector<576x32xbf16>
    %cst_135 = arith.constant dense<0.000000e+00> : vector<16x32xf32>
    %166 = tpu.matmul %163, %165, %cst_135 {dimension_numbers = #tpu.dot_dimension_numbers<[1], [0], [0], [1], [0, 0, 1, 1], [], []>} : vector<16x576xbf16>, vector<576x32xbf16>, vector<16x32xf32> -> vector<16x32xf32>
    %167 = arith.addf %161, %166 : vector<16x32xf32>
    %168 = vector.extract_strided_slice %142 {offsets = [0, 4, 0, 0], sizes = [1, 4, 4, 576], strides = [1, 1, 1, 1]} : vector<1x12x4x576xbf16> to vector<1x4x4x576xbf16>
    %169 = vector.shape_cast %168 : vector<1x4x4x576xbf16> to vector<16x576xbf16>
    %c4_136 = arith.constant 4 : index
    %c0_137 = arith.constant 0 : index
    %c0_138 = arith.constant 0 : index
    %170 = vector.load %arg6[%c4_136, %c0_137, %c0_138] : memref<9x576x32xbf16, #tpu.memory_space<vmem>>, vector<1x576x32xbf16>
    %171 = vector.shape_cast %170 : vector<1x576x32xbf16> to vector<576x32xbf16>
    %cst_139 = arith.constant dense<0.000000e+00> : vector<16x32xf32>
    %172 = tpu.matmul %169, %171, %cst_139 {dimension_numbers = #tpu.dot_dimension_numbers<[1], [0], [0], [1], [0, 0, 1, 1], [], []>} : vector<16x576xbf16>, vector<576x32xbf16>, vector<16x32xf32> -> vector<16x32xf32>
    %173 = arith.addf %167, %172 : vector<16x32xf32>
    %174 = vector.extract_strided_slice %142 {offsets = [0, 5, 0, 0], sizes = [1, 4, 4, 576], strides = [1, 1, 1, 1]} : vector<1x12x4x576xbf16> to vector<1x4x4x576xbf16>
    %175 = vector.shape_cast %174 : vector<1x4x4x576xbf16> to vector<16x576xbf16>
    %c5_140 = arith.constant 5 : index
    %c0_141 = arith.constant 0 : index
    %c0_142 = arith.constant 0 : index
    %176 = vector.load %arg6[%c5_140, %c0_141, %c0_142] : memref<9x576x32xbf16, #tpu.memory_space<vmem>>, vector<1x576x32xbf16>
    %177 = vector.shape_cast %176 : vector<1x576x32xbf16> to vector<576x32xbf16>
    %cst_143 = arith.constant dense<0.000000e+00> : vector<16x32xf32>
    %178 = tpu.matmul %175, %177, %cst_143 {dimension_numbers = #tpu.dot_dimension_numbers<[1], [0], [0], [1], [0, 0, 1, 1], [], []>} : vector<16x576xbf16>, vector<576x32xbf16>, vector<16x32xf32> -> vector<16x32xf32>
    %179 = arith.addf %173, %178 : vector<16x32xf32>
    %180 = vector.extract_strided_slice %142 {offsets = [0, 6, 0, 0], sizes = [1, 4, 4, 576], strides = [1, 1, 1, 1]} : vector<1x12x4x576xbf16> to vector<1x4x4x576xbf16>
    %181 = vector.shape_cast %180 : vector<1x4x4x576xbf16> to vector<16x576xbf16>
    %c6_144 = arith.constant 6 : index
    %c0_145 = arith.constant 0 : index
    %c0_146 = arith.constant 0 : index
    %182 = vector.load %arg6[%c6_144, %c0_145, %c0_146] : memref<9x576x32xbf16, #tpu.memory_space<vmem>>, vector<1x576x32xbf16>
    %183 = vector.shape_cast %182 : vector<1x576x32xbf16> to vector<576x32xbf16>
    %cst_147 = arith.constant dense<0.000000e+00> : vector<16x32xf32>
    %184 = tpu.matmul %181, %183, %cst_147 {dimension_numbers = #tpu.dot_dimension_numbers<[1], [0], [0], [1], [0, 0, 1, 1], [], []>} : vector<16x576xbf16>, vector<576x32xbf16>, vector<16x32xf32> -> vector<16x32xf32>
    %185 = arith.addf %179, %184 : vector<16x32xf32>
    %186 = vector.extract_strided_slice %142 {offsets = [0, 7, 0, 0], sizes = [1, 4, 4, 576], strides = [1, 1, 1, 1]} : vector<1x12x4x576xbf16> to vector<1x4x4x576xbf16>
    %187 = vector.shape_cast %186 : vector<1x4x4x576xbf16> to vector<16x576xbf16>
    %c7_148 = arith.constant 7 : index
    %c0_149 = arith.constant 0 : index
    %c0_150 = arith.constant 0 : index
    %188 = vector.load %arg6[%c7_148, %c0_149, %c0_150] : memref<9x576x32xbf16, #tpu.memory_space<vmem>>, vector<1x576x32xbf16>
    %189 = vector.shape_cast %188 : vector<1x576x32xbf16> to vector<576x32xbf16>
    %cst_151 = arith.constant dense<0.000000e+00> : vector<16x32xf32>
    %190 = tpu.matmul %187, %189, %cst_151 {dimension_numbers = #tpu.dot_dimension_numbers<[1], [0], [0], [1], [0, 0, 1, 1], [], []>} : vector<16x576xbf16>, vector<576x32xbf16>, vector<16x32xf32> -> vector<16x32xf32>
    %191 = arith.addf %185, %190 : vector<16x32xf32>
    %192 = vector.extract_strided_slice %142 {offsets = [0, 8, 0, 0], sizes = [1, 4, 4, 576], strides = [1, 1, 1, 1]} : vector<1x12x4x576xbf16> to vector<1x4x4x576xbf16>
    %193 = vector.shape_cast %192 : vector<1x4x4x576xbf16> to vector<16x576xbf16>
    %c8_152 = arith.constant 8 : index
    %c0_153 = arith.constant 0 : index
    %c0_154 = arith.constant 0 : index
    %194 = vector.load %arg6[%c8_152, %c0_153, %c0_154] : memref<9x576x32xbf16, #tpu.memory_space<vmem>>, vector<1x576x32xbf16>
    %195 = vector.shape_cast %194 : vector<1x576x32xbf16> to vector<576x32xbf16>
    %cst_155 = arith.constant dense<0.000000e+00> : vector<16x32xf32>
    %196 = tpu.matmul %193, %195, %cst_155 {dimension_numbers = #tpu.dot_dimension_numbers<[1], [0], [0], [1], [0, 0, 1, 1], [], []>} : vector<16x576xbf16>, vector<576x32xbf16>, vector<16x32xf32> -> vector<16x32xf32>
    %197 = arith.addf %191, %196 : vector<16x32xf32>
    %c0_156 = arith.constant 0 : index
    %c0_157 = arith.constant 0 : index
    %198 = vector.load %arg7[%c0_156, %c0_157] : memref<1x32xf32, #tpu.memory_space<vmem>>, vector<1x32xf32>
    %199 = vector.broadcast %198 : vector<1x32xf32> to vector<16x32xf32>
    %200 = arith.addf %197, %199 : vector<16x32xf32>
    %cst_158 = arith.constant 0.000000e+00 : f32
    %201 = vector.broadcast %cst_158 : f32 to vector<16x32xf32>
    %202 = arith.maximumf %200, %201 : vector<16x32xf32>
    %203 = vector.shape_cast %202 : vector<16x32xf32> to vector<1x4x4x32xf32>
    %c0_159 = arith.constant 0 : index
    %c3_160 = arith.constant 3 : index
    %c3_161 = arith.constant 3 : index
    %c0_162 = arith.constant 0 : index
    %204 = vector.load %arg13[%c0_159, %c3_160, %c3_161, %c0_162] : memref<1x10x10x32xf32, #tpu.memory_space<vmem>>, vector<1x4x4x32xf32>
    tpu.vector_store %arg13[%c0_159, %c3_160, %c3_161, %c0_162], %203 {strides = array<i32>} : memref<1x10x10x32xf32, #tpu.memory_space<vmem>>, vector<1x4x4x32xf32>,
    %c0_163 = arith.constant 0 : index
    %c0_164 = arith.constant 0 : index
    %c0_165 = arith.constant 0 : index
    %c0_166 = arith.constant 0 : index
    %205 = vector.load %arg13[%c0_163, %c0_164, %c0_165, %c0_166] : memref<1x10x10x32xf32, #tpu.memory_space<vmem>>, vector<1x10x4x32xf32>
    %c0_167 = arith.constant 0 : index
    %c0_168 = arith.constant 0 : index
    %c1_169 = arith.constant 1 : index
    %c0_170 = arith.constant 0 : index
    %206 = vector.load %arg13[%c0_167, %c0_168, %c1_169, %c0_170] : memref<1x10x10x32xf32, #tpu.memory_space<vmem>>, vector<1x10x4x32xf32>
    %c0_171 = arith.constant 0 : index
    %c0_172 = arith.constant 0 : index
    %c2_173 = arith.constant 2 : index
    %c0_174 = arith.constant 0 : index
    %207 = vector.load %arg13[%c0_171, %c0_172, %c2_173, %c0_174] : memref<1x10x10x32xf32, #tpu.memory_space<vmem>>, vector<1x10x4x32xf32>
    %c0_175 = arith.constant 0 : index
    %c0_176 = arith.constant 0 : index
    %c3_177 = arith.constant 3 : index
    %c0_178 = arith.constant 0 : index
    %208 = vector.load %arg13[%c0_175, %c0_176, %c3_177, %c0_178] : memref<1x10x10x32xf32, #tpu.memory_space<vmem>>, vector<1x10x4x32xf32>
    %c0_179 = arith.constant 0 : index
    %c0_180 = arith.constant 0 : index
    %c4_181 = arith.constant 4 : index
    %c0_182 = arith.constant 0 : index
    %209 = vector.load %arg13[%c0_179, %c0_180, %c4_181, %c0_182] : memref<1x10x10x32xf32, #tpu.memory_space<vmem>>, vector<1x10x4x32xf32>
    %c0_183 = arith.constant 0 : index
    %c0_184 = arith.constant 0 : index
    %c5_185 = arith.constant 5 : index
    %c0_186 = arith.constant 0 : index
    %210 = vector.load %arg13[%c0_183, %c0_184, %c5_185, %c0_186] : memref<1x10x10x32xf32, #tpu.memory_space<vmem>>, vector<1x10x4x32xf32>
    %c0_187 = arith.constant 0 : index
    %c0_188 = arith.constant 0 : index
    %c6_189 = arith.constant 6 : index
    %c0_190 = arith.constant 0 : index
    %211 = vector.load %arg13[%c0_187, %c0_188, %c6_189, %c0_190] : memref<1x10x10x32xf32, #tpu.memory_space<vmem>>, vector<1x10x4x32xf32>
    %212 = tpu.concatenate %205, %206, %207, %208, %209, %210, %211 in 3 : vector<1x10x4x32xf32>, vector<1x10x4x32xf32>, vector<1x10x4x32xf32>, vector<1x10x4x32xf32>, vector<1x10x4x32xf32>, vector<1x10x4x32xf32>, vector<1x10x4x32xf32> -> vector<1x10x4x224xf32>
    %cst_191 = arith.constant 0.000000e+00 : f32
    %213 = vector.broadcast %cst_191 : f32 to vector<1x4x4xf32>
    %214 = vector.extract_strided_slice %212 {offsets = [0, 0, 0, 0], sizes = [1, 4, 4, 224], strides = [1, 1, 1, 1]} : vector<1x10x4x224xf32> to vector<1x4x4x224xf32>
    %c0_192 = arith.constant 0 : index
    %c0_193 = arith.constant 0 : index
    %215 = vector.load %arg8[%c0_192, %c0_193] : memref<7x224xf32, #tpu.memory_space<vmem>>, vector<1x224xf32>
    %216 = vector.shape_cast %215 : vector<1x224xf32> to vector<224xf32>
    %217 = vector.shape_cast %216 : vector<224xf32> to vector<1x1x1x224xf32>
    %218 = vector.broadcast %217 : vector<1x1x1x224xf32> to vector<1x4x4x224xf32>
    %219 = arith.mulf %214, %218 : vector<1x4x4x224xf32>
    %cst_194 = arith.constant dense<0.000000e+00> : vector<1x4x4xf32>
    %220 = vector.multi_reduction <add>, %219, %cst_194 [3] : vector<1x4x4x224xf32> to vector<1x4x4xf32>
    %221 = arith.addf %213, %220 : vector<1x4x4xf32>
    %222 = vector.extract_strided_slice %212 {offsets = [0, 1, 0, 0], sizes = [1, 4, 4, 224], strides = [1, 1, 1, 1]} : vector<1x10x4x224xf32> to vector<1x4x4x224xf32>
    %c1_195 = arith.constant 1 : index
    %c0_196 = arith.constant 0 : index
    %223 = vector.load %arg8[%c1_195, %c0_196] : memref<7x224xf32, #tpu.memory_space<vmem>>, vector<1x224xf32>
    %224 = vector.shape_cast %223 : vector<1x224xf32> to vector<224xf32>
    %225 = vector.shape_cast %224 : vector<224xf32> to vector<1x1x1x224xf32>
    %226 = vector.broadcast %225 : vector<1x1x1x224xf32> to vector<1x4x4x224xf32>
    %227 = arith.mulf %222, %226 : vector<1x4x4x224xf32>
    %cst_197 = arith.constant dense<0.000000e+00> : vector<1x4x4xf32>
    %228 = vector.multi_reduction <add>, %227, %cst_197 [3] : vector<1x4x4x224xf32> to vector<1x4x4xf32>
    %229 = arith.addf %221, %228 : vector<1x4x4xf32>
    %230 = vector.extract_strided_slice %212 {offsets = [0, 2, 0, 0], sizes = [1, 4, 4, 224], strides = [1, 1, 1, 1]} : vector<1x10x4x224xf32> to vector<1x4x4x224xf32>
    %c2_198 = arith.constant 2 : index
    %c0_199 = arith.constant 0 : index
    %231 = vector.load %arg8[%c2_198, %c0_199] : memref<7x224xf32, #tpu.memory_space<vmem>>, vector<1x224xf32>
    %232 = vector.shape_cast %231 : vector<1x224xf32> to vector<224xf32>
    %233 = vector.shape_cast %232 : vector<224xf32> to vector<1x1x1x224xf32>
    %234 = vector.broadcast %233 : vector<1x1x1x224xf32> to vector<1x4x4x224xf32>
    %235 = arith.mulf %230, %234 : vector<1x4x4x224xf32>
    %cst_200 = arith.constant dense<0.000000e+00> : vector<1x4x4xf32>
    %236 = vector.multi_reduction <add>, %235, %cst_200 [3] : vector<1x4x4x224xf32> to vector<1x4x4xf32>
    %237 = arith.addf %229, %236 : vector<1x4x4xf32>
    %238 = vector.extract_strided_slice %212 {offsets = [0, 3, 0, 0], sizes = [1, 4, 4, 224], strides = [1, 1, 1, 1]} : vector<1x10x4x224xf32> to vector<1x4x4x224xf32>
    %c3_201 = arith.constant 3 : index
    %c0_202 = arith.constant 0 : index
    %239 = vector.load %arg8[%c3_201, %c0_202] : memref<7x224xf32, #tpu.memory_space<vmem>>, vector<1x224xf32>
    %240 = vector.shape_cast %239 : vector<1x224xf32> to vector<224xf32>
    %241 = vector.shape_cast %240 : vector<224xf32> to vector<1x1x1x224xf32>
    %242 = vector.broadcast %241 : vector<1x1x1x224xf32> to vector<1x4x4x224xf32>
    %243 = arith.mulf %238, %242 : vector<1x4x4x224xf32>
    %cst_203 = arith.constant dense<0.000000e+00> : vector<1x4x4xf32>
    %244 = vector.multi_reduction <add>, %243, %cst_203 [3] : vector<1x4x4x224xf32> to vector<1x4x4xf32>
    %245 = arith.addf %237, %244 : vector<1x4x4xf32>
    %246 = vector.extract_strided_slice %212 {offsets = [0, 4, 0, 0], sizes = [1, 4, 4, 224], strides = [1, 1, 1, 1]} : vector<1x10x4x224xf32> to vector<1x4x4x224xf32>
    %c4_204 = arith.constant 4 : index
    %c0_205 = arith.constant 0 : index
    %247 = vector.load %arg8[%c4_204, %c0_205] : memref<7x224xf32, #tpu.memory_space<vmem>>, vector<1x224xf32>
    %248 = vector.shape_cast %247 : vector<1x224xf32> to vector<224xf32>
    %249 = vector.shape_cast %248 : vector<224xf32> to vector<1x1x1x224xf32>
    %250 = vector.broadcast %249 : vector<1x1x1x224xf32> to vector<1x4x4x224xf32>
    %251 = arith.mulf %246, %250 : vector<1x4x4x224xf32>
    %cst_206 = arith.constant dense<0.000000e+00> : vector<1x4x4xf32>
    %252 = vector.multi_reduction <add>, %251, %cst_206 [3] : vector<1x4x4x224xf32> to vector<1x4x4xf32>
    %253 = arith.addf %245, %252 : vector<1x4x4xf32>
    %254 = vector.extract_strided_slice %212 {offsets = [0, 5, 0, 0], sizes = [1, 4, 4, 224], strides = [1, 1, 1, 1]} : vector<1x10x4x224xf32> to vector<1x4x4x224xf32>
    %c5_207 = arith.constant 5 : index
    %c0_208 = arith.constant 0 : index
    %255 = vector.load %arg8[%c5_207, %c0_208] : memref<7x224xf32, #tpu.memory_space<vmem>>, vector<1x224xf32>
    %256 = vector.shape_cast %255 : vector<1x224xf32> to vector<224xf32>
    %257 = vector.shape_cast %256 : vector<224xf32> to vector<1x1x1x224xf32>
    %258 = vector.broadcast %257 : vector<1x1x1x224xf32> to vector<1x4x4x224xf32>
    %259 = arith.mulf %254, %258 : vector<1x4x4x224xf32>
    %cst_209 = arith.constant dense<0.000000e+00> : vector<1x4x4xf32>
    %260 = vector.multi_reduction <add>, %259, %cst_209 [3] : vector<1x4x4x224xf32> to vector<1x4x4xf32>
    %261 = arith.addf %253, %260 : vector<1x4x4xf32>
    %262 = vector.extract_strided_slice %212 {offsets = [0, 6, 0, 0], sizes = [1, 4, 4, 224], strides = [1, 1, 1, 1]} : vector<1x10x4x224xf32> to vector<1x4x4x224xf32>
    %c6_210 = arith.constant 6 : index
    %c0_211 = arith.constant 0 : index
    %263 = vector.load %arg8[%c6_210, %c0_211] : memref<7x224xf32, #tpu.memory_space<vmem>>, vector<1x224xf32>
    %264 = vector.shape_cast %263 : vector<1x224xf32> to vector<224xf32>
    %265 = vector.shape_cast %264 : vector<224xf32> to vector<1x1x1x224xf32>
    %266 = vector.broadcast %265 : vector<1x1x1x224xf32> to vector<1x4x4x224xf32>
    %267 = arith.mulf %262, %266 : vector<1x4x4x224xf32>
    %cst_212 = arith.constant dense<0.000000e+00> : vector<1x4x4xf32>
    %268 = vector.multi_reduction <add>, %267, %cst_212 [3] : vector<1x4x4x224xf32> to vector<1x4x4xf32>
    %269 = arith.addf %261, %268 : vector<1x4x4xf32>
    %c0_213 = arith.constant 0 : index
    %c0_214 = arith.constant 0 : index
    %270 = vector.load %arg9[%c0_213, %c0_214] : memref<1x1xf32, #tpu.memory_space<vmem>>, vector<1x1xf32>
    %271 = vector.shape_cast %270 : vector<1x1xf32> to vector<1x1x1xf32>
    %272 = vector.broadcast %271 : vector<1x1x1xf32> to vector<1x4x4xf32>
    %273 = arith.addf %269, %272 : vector<1x4x4xf32>
    %cst_215 = arith.constant 0.000000e+00 : f32
    %274 = vector.broadcast %cst_215 : f32 to vector<1x4x4xf32>
    %275 = arith.maximumf %273, %274 : vector<1x4x4xf32>
    %c0_216 = arith.constant 0 : index
    %c0_217 = arith.constant 0 : index
    %c0_218 = arith.constant 0 : index
    %276 = vector.load %arg10[%c0_216, %c0_217, %c0_218] : memref<1x4x4xf32, #tpu.memory_space<vmem>>, vector<1x4x4xf32>
    tpu.vector_store %arg10[%c0_216, %c0_217, %c0_218], %275 {strides = array<i32>} : memref<1x4x4xf32, #tpu.memory_space<vmem>>, vector<1x4x4xf32>,
    return
  }
  func.func @transform_0(%arg0: i32) -> (i32, i32, i32, i32) {
    %c0_i32 = arith.constant 0 : i32
    %c0_i32_0 = arith.constant 0 : i32
    %c0_i32_1 = arith.constant 0 : i32
    %c0_i32_2 = arith.constant 0 : i32
    return %arg0, %c0_i32, %c0_i32_0, %c0_i32_1 : i32, i32, i32, i32
  }
  func.func @transform_1(%arg0: i32) -> (i32, i32) {
    %c0_i32 = arith.constant 0 : i32
    %c0_i32_0 = arith.constant 0 : i32
    %c0_i32_1 = arith.constant 0 : i32
    return %c0_i32, %c0_i32_0 : i32, i32
  }
  func.func @transform_2(%arg0: i32) -> (i32, i32) {
    %c0_i32 = arith.constant 0 : i32
    %c0_i32_0 = arith.constant 0 : i32
    %c0_i32_1 = arith.constant 0 : i32
    return %c0_i32, %c0_i32_0 : i32, i32
  }
  func.func @transform_3(%arg0: i32) -> (i32, i32, i32) {
    %c0_i32 = arith.constant 0 : i32
    %c0_i32_0 = arith.constant 0 : i32
    %c0_i32_1 = arith.constant 0 : i32
    %c0_i32_2 = arith.constant 0 : i32
    return %c0_i32, %c0_i32_0, %c0_i32_1 : i32, i32, i32
  }
  func.func @transform_4(%arg0: i32) -> (i32, i32) {
    %c0_i32 = arith.constant 0 : i32
    %c0_i32_0 = arith.constant 0 : i32
    %c0_i32_1 = arith.constant 0 : i32
    return %c0_i32, %c0_i32_0 : i32, i32
  }
  func.func @transform_5(%arg0: i32) -> (i32, i32, i32) {
    %c0_i32 = arith.constant 0 : i32
    %c0_i32_0 = arith.constant 0 : i32
    %c0_i32_1 = arith.constant 0 : i32
    %c0_i32_2 = arith.constant 0 : i32
    return %c0_i32, %c0_i32_0, %c0_i32_1 : i32, i32, i32
  }
  func.func @transform_6(%arg0: i32) -> (i32, i32) {
    %c0_i32 = arith.constant 0 : i32
    %c0_i32_0 = arith.constant 0 : i32
    %c0_i32_1 = arith.constant 0 : i32
    return %c0_i32, %c0_i32_0 : i32, i32
  }
  func.func @transform_7(%arg0: i32) -> (i32, i32) {
    %c0_i32 = arith.constant 0 : i32
    %c0_i32_0 = arith.constant 0 : i32
    %c0_i32_1 = arith.constant 0 : i32
    return %c0_i32, %c0_i32_0 : i32, i32
  }
  func.func @transform_8(%arg0: i32) -> (i32, i32) {
    %c0_i32 = arith.constant 0 : i32
    %c0_i32_0 = arith.constant 0 : i32
    %c0_i32_1 = arith.constant 0 : i32
    return %c0_i32, %c0_i32_0 : i32, i32
  }
  func.func @transform_9(%arg0: i32) -> (i32, i32, i32) {
    %c0_i32 = arith.constant 0 : i32
    %c0_i32_0 = arith.constant 0 : i32
    %c0_i32_1 = arith.constant 0 : i32
    return %arg0, %c0_i32, %c0_i32_0 : i32, i32, i32
  }
}

</mosaic_0001>

<llo_original>
// kernel: layoutnet_forward.1
$region0: #{layoutnet_forward.1}
  #allocation0 [shape = 'u32[]', space=smem, size = 0x4, offset = 0x4, fixed_abs, tag = 'smem constant byte address 0x4 - core index']
  #allocation1 [shape = 'u32[144,128]{1,0:T(1,128)}', space=vmem, size = 0x12000, scoped, tag = 'internal scratch']
  #allocation2 [shape = 'f32[1,14,14,32]{3,2,1,0:T(8,128)}', space=vmem, size = 0x1c000, scoped, tag = 'scratch operand']
  #allocation3 [shape = 'f32[1,12,12,64]{3,2,1,0:T(8,128)}', space=vmem, size = 0x18000, scoped, tag = 'scratch operand']
  #allocation4 [shape = 'f32[1,10,10,32]{3,2,1,0:T(8,128)}', space=vmem, size = 0x14000, scoped, tag = 'scratch operand']
  #allocation5 [shape = 'f32[1,1]{1,0:T(1,128)S(1)}', space=vmem, size = 0x200, scoped, tag = 'scoped memory for layoutnet_forward.1']
  %s0 = inlined_call_operand.vmem [shape: bf16[2,16,16,256], index: 0, kind: input, shape index: {}]
  %s1 = inlined_call_operand.vmem [shape: bf16[256,32], index: 1, kind: input, shape index: {}]
  %s2 = inlined_call_operand.vmem [shape: f32[1,32], index: 2, kind: input, shape index: {}]
  %s3 = inlined_call_operand.vmem [shape: bf16[7,224,64], index: 3, kind: input, shape index: {}]
  %s4 = inlined_call_operand.vmem [shape: f32[1,64], index: 4, kind: input, shape index: {}]
  %s5 = inlined_call_operand.vmem [shape: bf16[9,576,32], index: 5, kind: input, shape index: {}]
  %s6 = inlined_call_operand.vmem [shape: f32[1,32], index: 6, kind: input, shape index: {}]
  %s7 = inlined_call_operand.vmem [shape: f32[7,224], index: 7, kind: input, shape index: {}]
  %s8 = inlined_call_operand.<no memory space> [shape: f32[1,1], index: 8, kind: input, shape index: {}]
  %s9 = inlined_call_operand.hbm [shape: f32[2,4,4], index: 9, kind: output, shape index: {}]
  %s10 = sld [smem:[#allocation0]]
  $region69: #{layoutnet_forward.1} parent=0
    _
  %s12 = ssub.s32 1, %s10
  %s13 = scalar_select 0, %s12, %s10
  %v14 = vstv %s8
  %15 = vst [vmem:[#allocation5] sm:$0x1] %v14
  $region1: #{layoutnet_forward.1} parent=0
    #allocation6 [shape = 'u8[4096]{0}', space=vmem, size = 0x1000, scoped, tag = 'output window, operand 0']
    #allocation7 [shape = 's32[2]{0}', space=sflag, size = 0x8, scoped, tag = 'scoped memory for layoutnet_forward.1']
    %16 = vsyncpa [#allocation7], 0
    %s17 = scalar_lea.sflag [#allocation7], 1
    %18 = vsyncpa %s17, 0
    loop: start=0, step=1, limit=4
    $region2: #{layoutnet_forward.1} parent=1 // loop_pre_header
      _
    $region3: #{layoutnet_forward.1} parent=1 // loop_header
      %s20 = sphi 0, %s24
      %p21 = scmp.ge.s32.totalorder %s20, 4
      %s30 = sphi 0, %s32
      %s33 = sphi 0, %s30
      %s34 = sphi 0, %s33
      %s50 = sphi 0, %s34
      %s54 = sphi 0, %s54
      %s56 = sphi 0, %s54
      %s57 = sphi 0, %s56
      %s71 = sphi 0, %s57
      %s75 = sphi 0, %s75
      %s77 = sphi 0, %s75
      %s78 = sphi 0, %s77
      %s92 = sphi 0, %s78
      %s96 = sphi 0, %s96
      %s98 = sphi 0, %s96
      %s99 = sphi 0, %s98
      %s113 = sphi 0, %s99
      %s117 = sphi 0, %s117
      %s119 = sphi 0, %s117
      %s120 = sphi 0, %s119
      %s134 = sphi 0, %s120
      %s138 = sphi 0, %s138
      %s140 = sphi 0, %s138
      %s141 = sphi 0, %s140
      %s155 = sphi 0, %s141
      %s159 = sphi 0, %s159
      %s161 = sphi 0, %s159
      %s162 = sphi 0, %s161
      %s176 = sphi 0, %s162
      %s180 = sphi 0, %s180
      %s182 = sphi 0, %s180
      %s183 = sphi 0, %s182
      %s197 = sphi 0, %s183
      %s201 = sphi 0, %s201
      %s203 = sphi 0, %s201
      %s204 = sphi 0, %s203
      %s218 = sphi 0, %s204
      %s224 = sphi 0, %s226
      %s227 = sphi 0, %s224
      %s228 = sphi 0, %s227
      %s244 = sphi 0, %s228
    $region4: #{layoutnet_forward.1} parent=1 // loop_header_branch
      %23 = sbr.rel (%p21) target = $region8
    $region5: #{layoutnet_forward.1} parent=1 // loop_body
      %s25 = ssub.s32 %s20, 1
      %s26 = ssub.s32 %s20, 2
      %s27 = sadd.s32 %s20, 1
      %s28 = ssub.s32 %s20, %s27
      %p29 = scmp.eq.s32.totalorder %s28, 0
      %s31 = sadd.s32 %s30, 1
      %s32 = scalar_select %p29, %s30, %s31
      %p35 = pneg %p29
      %p36 = scmp.eq.s32.totalorder %s20, 1
      %p37 = por %p35, %p36
      %p38 = scmp.ne.s32.totalorder %s30, %s33
      %p39 = scmp.eq.s32.totalorder %s20, 0
      %p40 = por %p38, %p39
      %p41 = scmp.ne.s32.totalorder %s30, %s33
      %p42 = scmp.eq.s32.totalorder %s25, 1
      %p43 = por %p41, %p42
      %p44 = scmp.ne.s32.totalorder %s33, %s34
      %p45 = scmp.eq.s32.totalorder %s25, 0
      %p46 = por %p44, %p45
      %p47 = scmp.ne.s32.totalorder %s33, %s34
      %p48 = scmp.eq.s32.totalorder %s26, 1
      %p49 = por %p47, %p48
      %p51 = scmp.ne.s32.totalorder %s34, %s50
      %p52 = scmp.eq.s32.totalorder %s26, 0
      %p53 = por %p51, %p52
      %s55 = sadd.s32 %s54, 1
      %p58 = scmp.eq.s32.totalorder %s20, 1
      %p59 = scmp.ne.s32.totalorder %s54, %s56
      %p60 = scmp.eq.s32.totalorder %s20, 0
      %p61 = por %p59, %p60
      %p62 = scmp.ne.s32.totalorder %s54, %s56
      %p63 = scmp.eq.s32.totalorder %s25, 1
      %p64 = por %p62, %p63
      %p65 = scmp.ne.s32.totalorder %s56, %s57
      %p66 = scmp.eq.s32.totalorder %s25, 0
      %p67 = por %p65, %p66
      %p68 = scmp.ne.s32.totalorder %s56, %s57
      %p69 = scmp.eq.s32.totalorder %s26, 1
      %p70 = por %p68, %p69
      %p72 = scmp.ne.s32.totalorder %s57, %s71
      %p73 = scmp.eq.s32.totalorder %s26, 0
      %p74 = por %p72, %p73
      %s76 = sadd.s32 %s75, 1
      %p79 = scmp.eq.s32.totalorder %s20, 1
      %p80 = scmp.ne.s32.totalorder %s75, %s77
      %p81 = scmp.eq.s32.totalorder %s20, 0
      %p82 = por %p80, %p81
      %p83 = scmp.ne.s32.totalorder %s75, %s77
      %p84 = scmp.eq.s32.totalorder %s25, 1
      %p85 = por %p83, %p84
      %p86 = scmp.ne.s32.totalorder %s77, %s78
      %p87 = scmp.eq.s32.totalorder %s25, 0
      %p88 = por %p86, %p87
      %p89 = scmp.ne.s32.totalorder %s77, %s78
      %p90 = scmp.eq.s32.totalorder %s26, 1
      %p91 = por %p89, %p90
      %p93 = scmp.ne.s32.totalorder %s78, %s92
      %p94 = scmp.eq.s32.totalorder %s26, 0
      %p95 = por %p93, %p94
      %s97 = sadd.s32 %s96, 1
      %p100 = scmp.eq.s32.totalorder %s20, 1
      %p101 = scmp.ne.s32.totalorder %s96, %s98
      %p102 = scmp.eq.s32.totalorder %s20, 0
      %p103 = por %p101, %p102
      %p104 = scmp.ne.s32.totalorder %s96, %s98
      %p105 = scmp.eq.s32.totalorder %s25, 1
      %p106 = por %p104, %p105
      %p107 = scmp.ne.s32.totalorder %s98, %s99
      %p108 = scmp.eq.s32.totalorder %s25, 0
      %p109 = por %p107, %p108
      %p110 = scmp.ne.s32.totalorder %s98, %s99
      %p111 = scmp.eq.s32.totalorder %s26, 1
      %p112 = por %p110, %p111
      %p114 = scmp.ne.s32.totalorder %s99, %s113
      %p115 = scmp.eq.s32.totalorder %s26, 0
      %p116 = por %p114, %p115
      %s118 = sadd.s32 %s117, 1
      %p121 = scmp.eq.s32.totalorder %s20, 1
      %p122 = scmp.ne.s32.totalorder %s117, %s119
      %p123 = scmp.eq.s32.totalorder %s20, 0
      %p124 = por %p122, %p123
      %p125 = scmp.ne.s32.totalorder %s117, %s119
      %p126 = scmp.eq.s32.totalorder %s25, 1
      %p127 = por %p125, %p126
      %p128 = scmp.ne.s32.totalorder %s119, %s120
      %p129 = scmp.eq.s32.totalorder %s25, 0
      %p130 = por %p128, %p129
      %p131 = scmp.ne.s32.totalorder %s119, %s120
      %p132 = scmp.eq.s32.totalorder %s26, 1
      %p133 = por %p131, %p132
      %p135 = scmp.ne.s32.totalorder %s120, %s134
      %p136 = scmp.eq.s32.totalorder %s26, 0
      %p137 = por %p135, %p136
      %s139 = sadd.s32 %s138, 1
      %p142 = scmp.eq.s32.totalorder %s20, 1
      %p143 = scmp.ne.s32.totalorder %s138, %s140
      %p144 = scmp.eq.s32.totalorder %s20, 0
      %p145 = por %p143, %p144
      %p146 = scmp.ne.s32.totalorder %s138, %s140
      %p147 = scmp.eq.s32.totalorder %s25, 1
      %p148 = por %p146, %p147
      %p149 = scmp.ne.s32.totalorder %s140, %s141
      %p150 = scmp.eq.s32.totalorder %s25, 0
      %p151 = por %p149, %p150
      %p152 = scmp.ne.s32.totalorder %s140, %s141
      %p153 = scmp.eq.s32.totalorder %s26, 1
      %p154 = por %p152, %p153
      %p156 = scmp.ne.s32.totalorder %s141, %s155
      %p157 = scmp.eq.s32.totalorder %s26, 0
      %p158 = por %p156, %p157
      %s160 = sadd.s32 %s159, 1
      %p163 = scmp.eq.s32.totalorder %s20, 1
      %p164 = scmp.ne.s32.totalorder %s159, %s161
      %p165 = scmp.eq.s32.totalorder %s20, 0
      %p166 = por %p164, %p165
      %p167 = scmp.ne.s32.totalorder %s159, %s161
      %p168 = scmp.eq.s32.totalorder %s25, 1
      %p169 = por %p167, %p168
      %p170 = scmp.ne.s32.totalorder %s161, %s162
      %p171 = scmp.eq.s32.totalorder %s25, 0
      %p172 = por %p170, %p171
      %p173 = scmp.ne.s32.totalorder %s161, %s162
      %p174 = scmp.eq.s32.totalorder %s26, 1
      %p175 = por %p173, %p174
      %p177 = scmp.ne.s32.totalorder %s162, %s176
      %p178 = scmp.eq.s32.totalorder %s26, 0
      %p179 = por %p177, %p178
      %s181 = sadd.s32 %s180, 1
      %p184 = scmp.eq.s32.totalorder %s20, 1
      %p185 = scmp.ne.s32.totalorder %s180, %s182
      %p186 = scmp.eq.s32.totalorder %s20, 0
      %p187 = por %p185, %p186
      %p188 = scmp.ne.s32.totalorder %s180, %s182
      %p189 = scmp.eq.s32.totalorder %s25, 1
      %p190 = por %p188, %p189
      %p191 = scmp.ne.s32.totalorder %s182, %s183
      %p192 = scmp.eq.s32.totalorder %s25, 0
      %p193 = por %p191, %p192
      %p194 = scmp.ne.s32.totalorder %s182, %s183
      %p195 = scmp.eq.s32.totalorder %s26, 1
      %p196 = por %p194, %p195
      %p198 = scmp.ne.s32.totalorder %s183, %s197
      %p199 = scmp.eq.s32.totalorder %s26, 0
      %p200 = por %p198, %p199
      %s202 = sadd.s32 %s201, 1
      %p205 = scmp.eq.s32.totalorder %s20, 1
      %p206 = scmp.ne.s32.totalorder %s201, %s203
      %p207 = scmp.eq.s32.totalorder %s20, 0
      %p208 = por %p206, %p207
      %p209 = scmp.ne.s32.totalorder %s201, %s203
      %p210 = scmp.eq.s32.totalorder %s25, 1
      %p211 = por %p209, %p210
      %p212 = scmp.ne.s32.totalorder %s203, %s204
      %p213 = scmp.eq.s32.totalorder %s25, 0
      %p214 = por %p212, %p213
      %p215 = scmp.ne.s32.totalorder %s203, %s204
      %p216 = scmp.eq.s32.totalorder %s26, 1
      %p217 = por %p215, %p216
      %p219 = scmp.ne.s32.totalorder %s204, %s218
      %p220 = scmp.eq.s32.totalorder %s26, 0
      %p221 = por %p219, %p220
      %s222 = ssub.s32 %s20, %s27
      %p223 = scmp.eq.s32.totalorder %s222, 0
      %s225 = sadd.s32 %s224, 1
      %s226 = scalar_select %p223, %s224, %s225
      %p229 = pneg %p223
      %p230 = scmp.eq.s32.totalorder %s20, 1
      %p231 = por %p229, %p230
      %p232 = scmp.ne.s32.totalorder %s224, %s227
      %p233 = scmp.eq.s32.totalorder %s20, 0
      %p234 = por %p232, %p233
      %p235 = scmp.ne.s32.totalorder %s224, %s227
      %p236 = scmp.eq.s32.totalorder %s25, 1
      %p237 = por %p235, %p236
      %p238 = scmp.ne.s32.totalorder %s227, %s228
      %p239 = scmp.eq.s32.totalorder %s25, 0
      %p240 = por %p238, %p239
      %p241 = scmp.ne.s32.totalorder %s227, %s228
      %p242 = scmp.eq.s32.totalorder %s26, 1
      %p243 = por %p241, %p242
      %p245 = scmp.ne.s32.totalorder %s228, %s244
      %p246 = scmp.eq.s32.totalorder %s26, 0
      %p247 = por %p245, %p246
      %p248 = scmp.le.s32.totalorder 1, %s20
      %p249 = scmp.lt.s32.totalorder %s20, 3
      %p250 = pnand %p248, %p249
      %p251 = pneg %p250
      // Predicated region
      $region9: #{layoutnet_forward.1} parent=5 // pred_check
        _
      $region10: #{layoutnet_forward.1} parent=5 // pred_check_branch
        %253 = sbr.rel (%p250) target = $region12
      $region11: #{layoutnet_forward.1} parent=5 // pred_region
        %s254 = ssub.s32 %s20, 1
        // Predicated region
        $region13: #{layoutnet_forward.1} parent=11 // pred_check
          %p255 = pneg %p67
        $region14: #{layoutnet_forward.1} parent=11 // pred_check_branch
          %257 = sbr.rel (%p255) target = $region16
        $region15: #{layoutnet_forward.1} parent=11 // pred_region
          _
        $region16: #{layoutnet_forward.1} parent=11 // pred_fallthru
          _
        // Predicated region
        $region17: #{layoutnet_forward.1} parent=11 // pred_check
          %p258 = pneg %p88
        $region18: #{layoutnet_forward.1} parent=11 // pred_check_branch
          %260 = sbr.rel (%p258) target = $region20
        $region19: #{layoutnet_forward.1} parent=11 // pred_region
          _
        $region20: #{layoutnet_forward.1} parent=11 // pred_fallthru
          _
        // Predicated region
        $region21: #{layoutnet_forward.1} parent=11 // pred_check
          %p261 = pneg %p109
        $region22: #{layoutnet_forward.1} parent=11 // pred_check_branch
          %263 = sbr.rel (%p261) target = $region24
        $region23: #{layoutnet_forward.1} parent=11 // pred_region
          _
        $region24: #{layoutnet_forward.1} parent=11 // pred_fallthru
          _
        // Predicated region
        $region25: #{layoutnet_forward.1} parent=11 // pred_check
          %p264 = pneg %p130
        $region26: #{layoutnet_forward.1} parent=11 // pred_check_branch
          %266 = sbr.rel (%p264) target = $region28
        $region27: #{layoutnet_forward.1} parent=11 // pred_region
          _
        $region28: #{layoutnet_forward.1} parent=11 // pred_fallthru
          _
        // Predicated region
        $region29: #{layoutnet_forward.1} parent=11 // pred_check
          %p267 = pneg %p151
        $region30: #{layoutnet_forward.1} parent=11 // pred_check_branch
          %269 = sbr.rel (%p267) target = $region32
        $region31: #{layoutnet_forward.1} parent=11 // pred_region
          _
        $region32: #{layoutnet_forward.1} parent=11 // pred_fallthru
          _
        // Predicated region
        $region33: #{layoutnet_forward.1} parent=11 // pred_check
          %p270 = pneg %p172
        $region34: #{layoutnet_forward.1} parent=11 // pred_check_branch
          %272 = sbr.rel (%p270) target = $region36
        $region35: #{layoutnet_forward.1} parent=11 // pred_region
          _
        $region36: #{layoutnet_forward.1} parent=11 // pred_fallthru
          _
        // Predicated region
        $region37: #{layoutnet_forward.1} parent=11 // pred_check
          %p273 = pneg %p193
        $region38: #{layoutnet_forward.1} parent=11 // pred_check_branch
          %275 = sbr.rel (%p273) target = $region40
        $region39: #{layoutnet_forward.1} parent=11 // pred_region
          _
        $region40: #{layoutnet_forward.1} parent=11 // pred_fallthru
          _
        // Predicated region
        $region41: #{layoutnet_forward.1} parent=11 // pred_check
          %p276 = pneg %p214
        $region42: #{layoutnet_forward.1} parent=11 // pred_check_branch
          %278 = sbr.rel (%p276) target = $region44
        $region43: #{layoutnet_forward.1} parent=11 // pred_region
          _
        $region44: #{layoutnet_forward.1} parent=11 // pred_fallthru
          _
      $region12: #{layoutnet_forward.1} parent=5 // pred_fallthru
        _
      %p279 = scmp.lt.s32.totalorder %s20, 2
      // Predicated region
      $region45: #{layoutnet_forward.1} parent=5 // pred_check
        %p280 = pneg %p279
      $region46: #{layoutnet_forward.1} parent=5 // pred_check_branch
        %282 = sbr.rel (%p280) target = $region48
      $region47: #{layoutnet_forward.1} parent=5 // pred_region
        // Predicated region
        $region49: #{layoutnet_forward.1} parent=47 // pred_check
          %p283 = pneg %p40
        $region50: #{layoutnet_forward.1} parent=47 // pred_check_branch
          %285 = sbr.rel (%p283) target = $region52
        $region51: #{layoutnet_forward.1} parent=47 // pred_region
          %p286 = scmp.lt.s32.totalorder %s20, 1
          %s287 = scalar_select %p286, %s20, 1
          %s288 = smul.addr %s287, 64
          %s289 = smul.addr %s288, 4
          %s290 = scalar_lea.vmem %s0, %s289
        $region52: #{layoutnet_forward.1} parent=47 // pred_fallthru
          _
      $region48: #{layoutnet_forward.1} parent=5 // pred_fallthru
        _
      %p291 = scmp.le.s32.totalorder 1, %s20
      %p292 = scmp.lt.s32.totalorder %s20, 3
      %p293 = pnand %p291, %p292
      %p294 = pneg %p293
      // Predicated region
      $region53: #{layoutnet_forward.1} parent=5 // pred_check
        _
      $region54: #{layoutnet_forward.1} parent=5 // pred_check_branch
        %296 = sbr.rel (%p293) target = $region56
      $region55: #{layoutnet_forward.1} parent=5 // pred_region
        %s297 = ssub.s32 %s20, 1
        %p298 = scmp.lt.s32.totalorder %s25, 1
        %s299 = scalar_select %p298, %s25, 1
        %s300 = smul.addr %s299, 64
        %s301 = smul.addr %s300, 4
        %s302 = scalar_lea.vmem %s0, %s301
        %p303 = pneg %p46
        %p304 = pneg %p43
        %p305 = pneg %p67
        %p306 = pneg %p64
        %p307 = pneg %p88
        %p308 = pneg %p85
        %p309 = pneg %p109
        %p310 = pneg %p106
        %p311 = pneg %p130
        %p312 = pneg %p127
        %p313 = pneg %p151
        %p314 = pneg %p148
        %p315 = pneg %p172
        %p316 = pneg %p169
        %p317 = pneg %p193
        %p318 = pneg %p190
        %p319 = pneg %p214
        %p320 = pneg %p211
        %p321 = pneg %p240
        %p322 = pneg %p237
        %s323 = sand.u32 %s227, 1
        %s324 = scalar_lea.sflag [#allocation7], %s323
        %s325 = sand.u32 %s227, 1
        %s326 = smul.addr %s325, 4
        %s327 = scalar_lea.vmem [#allocation6], %s326
        %p328 = scmp.lt.s32.totalorder %s25, 1
        %s329 = scalar_select %p328, %s25, 1
        %s330 = smul.addr %s329, 64
        %s331 = smul.addr %s330, 4
        %s332 = scalar_lea.vmem %s0, %s331
        %vm334 = vcmask 261120
        %335 = vst.msk [vmem:[#allocation2] sm:$0xff] %vm334, 0.0
        %vm336 = vcmask 259072
        %337 = vst.msk [vmem:[#allocation2 + $0x8] sm:$0x3f] %vm336, 0.0
        %338 = vst.msk [vmem:[#allocation2 + $0x10] sm:$0xff] %vm334, 0.0
        %339 = vst.msk [vmem:[#allocation2 + $0x18] sm:$0x3f] %vm336, 0.0
        %340 = vst.msk [vmem:[#allocation2 + $0x20] sm:$0xff] %vm334, 0.0
        %341 = vst.msk [vmem:[#allocation2 + $0x28] sm:$0x3f] %vm336, 0.0
        %342 = vst.msk [vmem:[#allocation2 + $0x30] sm:$0xff] %vm334, 0.0
        %343 = vst.msk [vmem:[#allocation2 + $0x38] sm:$0x3f] %vm336, 0.0
        %344 = vst.msk [vmem:[#allocation2 + $0x40] sm:$0xff] %vm334, 0.0
        %345 = vst.msk [vmem:[#allocation2 + $0x48] sm:$0x3f] %vm336, 0.0
        %346 = vst.msk [vmem:[#allocation2 + $0x50] sm:$0xff] %vm334, 0.0
        %347 = vst.msk [vmem:[#allocation2 + $0x58] sm:$0x3f] %vm336, 0.0
        %348 = vst.msk [vmem:[#allocation2 + $0x60] sm:$0xff] %vm334, 0.0
        %349 = vst.msk [vmem:[#allocation2 + $0x68] sm:$0x3f] %vm336, 0.0
        %350 = vst.msk [vmem:[#allocation2 + $0x70] sm:$0xff] %vm334, 0.0
        %351 = vst.msk [vmem:[#allocation2 + $0x78] sm:$0x3f] %vm336, 0.0
        %352 = vst.msk [vmem:[#allocation2 + $0x80] sm:$0xff] %vm334, 0.0
        %353 = vst.msk [vmem:[#allocation2 + $0x88] sm:$0x3f] %vm336, 0.0
        %354 = vst.msk [vmem:[#allocation2 + $0x90] sm:$0xff] %vm334, 0.0
        %355 = vst.msk [vmem:[#allocation2 + $0x98] sm:$0x3f] %vm336, 0.0
        %356 = vst.msk [vmem:[#allocation2 + $0xa0] sm:$0xff] %vm334, 0.0
        %357 = vst.msk [vmem:[#allocation2 + $0xa8] sm:$0x3f] %vm336, 0.0
        %358 = vst.msk [vmem:[#allocation2 + $0xb0] sm:$0xff] %vm334, 0.0
        %359 = vst.msk [vmem:[#allocation2 + $0xb8] sm:$0x3f] %vm336, 0.0
        %360 = vst.msk [vmem:[#allocation2 + $0xc0] sm:$0xff] %vm334, 0.0
        %361 = vst.msk [vmem:[#allocation2 + $0xc8] sm:$0x3f] %vm336, 0.0
        %362 = vst.msk [vmem:[#allocation2 + $0xd0] sm:$0xff] %vm334, 0.0
        %363 = vst.msk [vmem:[#allocation2 + $0xd8] sm:$0x3f] %vm336, 0.0
        %vm364 = vcmask 523264
        %365 = vst.msk [vmem:[#allocation3] sm:$0xff] %vm364, 0.0
        %vm366 = vcmask 519168
        %367 = vst.msk [vmem:[#allocation3 + $0x8] sm:$0xf] %vm366, 0.0
        %368 = vst.msk [vmem:[#allocation3 + $0x10] sm:$0xff] %vm364, 0.0
        %369 = vst.msk [vmem:[#allocation3 + $0x18] sm:$0xf] %vm366, 0.0
        %370 = vst.msk [vmem:[#allocation3 + $0x20] sm:$0xff] %vm364, 0.0
        %371 = vst.msk [vmem:[#allocation3 + $0x28] sm:$0xf] %vm366, 0.0
        %372 = vst.msk [vmem:[#allocation3 + $0x30] sm:$0xff] %vm364, 0.0
        %373 = vst.msk [vmem:[#allocation3 + $0x38] sm:$0xf] %vm366, 0.0
        %374 = vst.msk [vmem:[#allocation3 + $0x40] sm:$0xff] %vm364, 0.0
        %375 = vst.msk [vmem:[#allocation3 + $0x48] sm:$0xf] %vm366, 0.0
        %376 = vst.msk [vmem:[#allocation3 + $0x50] sm:$0xff] %vm364, 0.0
        %377 = vst.msk [vmem:[#allocation3 + $0x58] sm:$0xf] %vm366, 0.0
        %378 = vst.msk [vmem:[#allocation3 + $0x60] sm:$0xff] %vm364, 0.0
        %379 = vst.msk [vmem:[#allocation3 + $0x68] sm:$0xf] %vm366, 0.0
        %380 = vst.msk [vmem:[#allocation3 + $0x70] sm:$0xff] %vm364, 0.0
        %381 = vst.msk [vmem:[#allocation3 + $0x78] sm:$0xf] %vm366, 0.0
        %382 = vst.msk [vmem:[#allocation3 + $0x80] sm:$0xff] %vm364, 0.0
        %383 = vst.msk [vmem:[#allocation3 + $0x88] sm:$0xf] %vm366, 0.0
        %384 = vst.msk [vmem:[#allocation3 + $0x90] sm:$0xff] %vm364, 0.0
        %385 = vst.msk [vmem:[#allocation3 + $0x98] sm:$0xf] %vm366, 0.0
        %386 = vst.msk [vmem:[#allocation3 + $0xa0] sm:$0xff] %vm364, 0.0
        %387 = vst.msk [vmem:[#allocation3 + $0xa8] sm:$0xf] %vm366, 0.0
        %388 = vst.msk [vmem:[#allocation3 + $0xb0] sm:$0xff] %vm364, 0.0
        %389 = vst.msk [vmem:[#allocation3 + $0xb8] sm:$0xf] %vm366, 0.0
        %390 = vst.msk [vmem:[#allocation4] sm:$0xff] %vm334, 0.0
        %vm391 = vcmask 254976
        %392 = vst.msk [vmem:[#allocation4 + $0x8] sm:$0x3] %vm391, 0.0
        %393 = vst.msk [vmem:[#allocation4 + $0x10] sm:$0xff] %vm334, 0.0
        %394 = vst.msk [vmem:[#allocation4 + $0x18] sm:$0x3] %vm391, 0.0
        %395 = vst.msk [vmem:[#allocation4 + $0x20] sm:$0xff] %vm334, 0.0
        %396 = vst.msk [vmem:[#allocation4 + $0x28] sm:$0x3] %vm391, 0.0
        %397 = vst.msk [vmem:[#allocation4 + $0x30] sm:$0xff] %vm334, 0.0
        %398 = vst.msk [vmem:[#allocation4 + $0x38] sm:$0x3] %vm391, 0.0
        %399 = vst.msk [vmem:[#allocation4 + $0x40] sm:$0xff] %vm334, 0.0
        %400 = vst.msk [vmem:[#allocation4 + $0x48] sm:$0x3] %vm391, 0.0
        %401 = vst.msk [vmem:[#allocation4 + $0x50] sm:$0xff] %vm334, 0.0
        %402 = vst.msk [vmem:[#allocation4 + $0x58] sm:$0x3] %vm391, 0.0
        %403 = vst.msk [vmem:[#allocation4 + $0x60] sm:$0xff] %vm334, 0.0
        %404 = vst.msk [vmem:[#allocation4 + $0x68] sm:$0x3] %vm391, 0.0
        %405 = vst.msk [vmem:[#allocation4 + $0x70] sm:$0xff] %vm334, 0.0
        %406 = vst.msk [vmem:[#allocation4 + $0x78] sm:$0x3] %vm391, 0.0
        %407 = vst.msk [vmem:[#allocation4 + $0x80] sm:$0xff] %vm334, 0.0
        %408 = vst.msk [vmem:[#allocation4 + $0x88] sm:$0x3] %vm391, 0.0
        %409 = vst.msk [vmem:[#allocation4 + $0x90] sm:$0xff] %vm334, 0.0
        %410 = vst.msk [vmem:[#allocation4 + $0x98] sm:$0x3] %vm391, 0.0
        %v411 = vld [vmem:[%s332] sm:$0xff]
        %v412 = vld [vmem:[%s332 + $0x8] sm:$0xff]
        %v413 = vld [vmem:[%s332 + $0x10] sm:$0xff]
        %v414 = vld [vmem:[%s332 + $0x18] sm:$0xff]
        %v415 = vld [vmem:[%s332 + $0x20] sm:$0xff]
        %v416 = vld [vmem:[%s332 + $0x28] sm:$0xff]
        %v417 = vld [vmem:[%s332 + $0x30] sm:$0xff]
        %v418 = vld [vmem:[%s332 + $0x38] sm:$0xff]
        %v419 = vld [vmem:[%s332 + $0x40] sm:$0xff]
        %v420 = vld [vmem:[%s332 + $0x48] sm:$0xff]
        %v421 = vld [vmem:[%s332 + $0x50] sm:$0xff]
        %v422 = vld [vmem:[%s332 + $0x58] sm:$0xff]
        %v423 = vld [vmem:[%s332 + $0x60] sm:$0xff]
        %v424 = vld [vmem:[%s332 + $0x68] sm:$0xff]
        %v425 = vld [vmem:[%s332 + $0x70] sm:$0xff]
        %v426 = vld [vmem:[%s332 + $0x78] sm:$0xff]
        %v427 = vld [vmem:[%s332 + $0x80] sm:$0xff]
        %v428 = vld [vmem:[%s332 + $0x88] sm:$0xff]
        %v429 = vld [vmem:[%s332 + $0x90] sm:$0xff]
        %v430 = vld [vmem:[%s332 + $0x98] sm:$0xff]
        %v431 = vld [vmem:[%s332 + $0xa0] sm:$0xff]
        %v432 = vld [vmem:[%s332 + $0xa8] sm:$0xff]
        %v433 = vld [vmem:[%s332 + $0xb0] sm:$0xff]
        %v434 = vld [vmem:[%s332 + $0xb8] sm:$0xff]
        %v435 = vld [vmem:[%s332 + $0xc0] sm:$0xff]
        %v436 = vld [vmem:[%s332 + $0xc8] sm:$0xff]
        %v437 = vld [vmem:[%s332 + $0xd0] sm:$0xff]
        %v438 = vld [vmem:[%s332 + $0xd8] sm:$0xff]
        %v439 = vld [vmem:[%s332 + $0xe0] sm:$0xff]
        %v440 = vld [vmem:[%s332 + $0xe8] sm:$0xff]
        %v441 = vld [vmem:[%s332 + $0xf0] sm:$0xff]
        %v442 = vld [vmem:[%s332 + $0xf8] sm:$0xff]
        %v443 = vld [vmem:[%s1] sm:$0xf]
        %v444 = vld [vmem:[%s1 + $0x4] sm:$0xf]
        %v445 = vld [vmem:[%s1 + $0x8] sm:$0xf]
        %v446 = vld [vmem:[%s1 + $0xc] sm:$0xf]
        %v447 = vld [vmem:[%s1 + $0x10] sm:$0xf]
        %v448 = vld [vmem:[%s1 + $0x14] sm:$0xf]
        %v449 = vld [vmem:[%s1 + $0x18] sm:$0xf]
        %v450 = vld [vmem:[%s1 + $0x1c] sm:$0xf]
        %v451 = vld [vmem:[%s1 + $0x20] sm:$0xf]
        %v452 = vld [vmem:[%s1 + $0x24] sm:$0xf]
        %v453 = vld [vmem:[%s1 + $0x28] sm:$0xf]
        %v454 = vld [vmem:[%s1 + $0x2c] sm:$0xf]
        %v455 = vld [vmem:[%s1 + $0x30] sm:$0xf]
        %v456 = vld [vmem:[%s1 + $0x34] sm:$0xf]
        %v457 = vld [vmem:[%s1 + $0x38] sm:$0xf]
        %v458 = vld [vmem:[%s1 + $0x3c] sm:$0xf]
        %v459 = vld [vmem:[%s1 + $0x40] sm:$0xf]
        %v460 = vld [vmem:[%s1 + $0x44] sm:$0xf]
        %v461 = vld [vmem:[%s1 + $0x48] sm:$0xf]
        %v462 = vld [vmem:[%s1 + $0x4c] sm:$0xf]
        %v463 = vld [vmem:[%s1 + $0x50] sm:$0xf]
        %v464 = vld [vmem:[%s1 + $0x54] sm:$0xf]
        %v465 = vld [vmem:[%s1 + $0x58] sm:$0xf]
        %v466 = vld [vmem:[%s1 + $0x5c] sm:$0xf]
        %v467 = vld [vmem:[%s1 + $0x60] sm:$0xf]
        %v468 = vld [vmem:[%s1 + $0x64] sm:$0xf]
        %v469 = vld [vmem:[%s1 + $0x68] sm:$0xf]
        %v470 = vld [vmem:[%s1 + $0x6c] sm:$0xf]
        %v471 = vld [vmem:[%s1 + $0x70] sm:$0xf]
        %v472 = vld [vmem:[%s1 + $0x74] sm:$0xf]
        %v473 = vld [vmem:[%s1 + $0x78] sm:$0xf]
        %v474 = vld [vmem:[%s1 + $0x7c] sm:$0xf]
        %v475 = vld [vmem:[%s2] sm:$0x1]
        %v477 = vlaneseq
        %v478 = vshrl.u32 %v477, 7
        %v479 = vsub.s32 0, %v478
        %v480 = vrot.slane %v475, %v479
        %v514 = vunpack.c.l.b16 %v411
        %v515 = vunpack.c.h.b16 %v411
        %v516 = vunpack.c.l.b16 %v412
        %v517 = vunpack.c.h.b16 %v412
        %v518 = vunpack.c.l.b16 %v413
        %v519 = vunpack.c.h.b16 %v413
        %v520 = vunpack.c.l.b16 %v414
        %v521 = vunpack.c.h.b16 %v414
        %v522 = vunpack.c.l.b16 %v415
        %v523 = vunpack.c.h.b16 %v415
        %v524 = vunpack.c.l.b16 %v416
        %v525 = vunpack.c.h.b16 %v416
        %v526 = vunpack.c.l.b16 %v417
        %v527 = vunpack.c.h.b16 %v417
        %v528 = vunpack.c.l.b16 %v418
        %v529 = vunpack.c.h.b16 %v418
        %v530 = vunpack.c.l.b16 %v419
        %v531 = vunpack.c.h.b16 %v419
        %v532 = vunpack.c.l.b16 %v420
        %v533 = vunpack.c.h.b16 %v420
        %v534 = vunpack.c.l.b16 %v421
        %v535 = vunpack.c.h.b16 %v421
        %v536 = vunpack.c.l.b16 %v422
        %v537 = vunpack.c.h.b16 %v422
        %v538 = vunpack.c.l.b16 %v423
        %v539 = vunpack.c.h.b16 %v423
        %v540 = vunpack.c.l.b16 %v424
        %v541 = vunpack.c.h.b16 %v424
        %v542 = vunpack.c.l.b16 %v425
        %v543 = vunpack.c.h.b16 %v425
        %v544 = vunpack.c.l.b16 %v426
        %v545 = vunpack.c.h.b16 %v426
        %v546 = vunpack.c.l.b16 %v427
        %v547 = vunpack.c.h.b16 %v427
        %v548 = vunpack.c.l.b16 %v428
        %v549 = vunpack.c.h.b16 %v428
        %v550 = vunpack.c.l.b16 %v429
        %v551 = vunpack.c.h.b16 %v429
        %v552 = vunpack.c.l.b16 %v430
        %v553 = vunpack.c.h.b16 %v430
        %v554 = vunpack.c.l.b16 %v431
        %v555 = vunpack.c.h.b16 %v431
        %v556 = vunpack.c.l.b16 %v432
        %v557 = vunpack.c.h.b16 %v432
        %v558 = vunpack.c.l.b16 %v433
        %v559 = vunpack.c.h.b16 %v433
        %v560 = vunpack.c.l.b16 %v434
        %v561 = vunpack.c.h.b16 %v434
        %v562 = vunpack.c.l.b16 %v435
        %v563 = vunpack.c.h.b16 %v435
        %v564 = vunpack.c.l.b16 %v436
        %v565 = vunpack.c.h.b16 %v436
        %v566 = vunpack.c.l.b16 %v437
        %v567 = vunpack.c.h.b16 %v437
        %v568 = vunpack.c.l.b16 %v438
        %v569 = vunpack.c.h.b16 %v438
        %v570 = vunpack.c.l.b16 %v439
        %v571 = vunpack.c.h.b16 %v439
        %v572 = vunpack.c.l.b16 %v440
        %v573 = vunpack.c.h.b16 %v440
        %v574 = vunpack.c.l.b16 %v441
        %v575 = vunpack.c.h.b16 %v441
        %v576 = vunpack.c.l.b16 %v442
        %v577 = vunpack.c.h.b16 %v442
        %v578 = vpack.c.b16 %v516, %v514
        %v579 = vpack.c.b16 %v517, %v515
        %v580 = vpack.c.b16 %v520, %v518
        %v581 = vpack.c.b16 %v521, %v519
        %v582 = vpack.c.b16 %v524, %v522
        %v583 = vpack.c.b16 %v525, %v523
        %v584 = vpack.c.b16 %v528, %v526
        %v585 = vpack.c.b16 %v529, %v527
        %v586 = vpack.c.b16 %v532, %v530
        %v587 = vpack.c.b16 %v533, %v531
        %v588 = vpack.c.b16 %v536, %v534
        %v589 = vpack.c.b16 %v537, %v535
        %v590 = vpack.c.b16 %v540, %v538
        %v591 = vpack.c.b16 %v541, %v539
        %v592 = vpack.c.b16 %v544, %v542
        %v593 = vpack.c.b16 %v545, %v543
        %v594 = vpack.c.b16 %v548, %v546
        %v595 = vpack.c.b16 %v549, %v547
        %v596 = vpack.c.b16 %v552, %v550
        %v597 = vpack.c.b16 %v553, %v551
        %v598 = vpack.c.b16 %v556, %v554
        %v599 = vpack.c.b16 %v557, %v555
        %v600 = vpack.c.b16 %v560, %v558
        %v601 = vpack.c.b16 %v561, %v559
        %v602 = vpack.c.b16 %v564, %v562
        %v603 = vpack.c.b16 %v565, %v563
        %v604 = vpack.c.b16 %v568, %v566
        %v605 = vpack.c.b16 %v569, %v567
        %v606 = vpack.c.b16 %v572, %v570
        %v607 = vpack.c.b16 %v573, %v571
        %v608 = vpack.c.b16 %v576, %v574
        %v609 = vpack.c.b16 %v577, %v575
        %v674 = vunpack.c.l.b16 %v443
        %v675 = vunpack.c.l.b16 %v444
        %v676 = vunpack.c.l.b16 %v445
        %v677 = vunpack.c.l.b16 %v446
        %v678 = vunpack.c.l.b16 %v447
        %v679 = vunpack.c.l.b16 %v448
        %v680 = vunpack.c.l.b16 %v449
        %v681 = vunpack.c.l.b16 %v450
        %v682 = vunpack.c.l.b16 %v451
        %v683 = vunpack.c.l.b16 %v452
        %v684 = vunpack.c.l.b16 %v453
        %v685 = vunpack.c.l.b16 %v454
        %v686 = vunpack.c.l.b16 %v455
        %v687 = vunpack.c.l.b16 %v456
        %v688 = vunpack.c.l.b16 %v457
        %v689 = vunpack.c.l.b16 %v458
        %v690 = vunpack.c.l.b16 %v459
        %v691 = vunpack.c.l.b16 %v460
        %v692 = vunpack.c.l.b16 %v461
        %v693 = vunpack.c.l.b16 %v462
        %v694 = vunpack.c.l.b16 %v463
        %v695 = vunpack.c.l.b16 %v464
        %v696 = vunpack.c.l.b16 %v465
        %v697 = vunpack.c.l.b16 %v466
        %v698 = vunpack.c.l.b16 %v467
        %v699 = vunpack.c.l.b16 %v468
        %v700 = vunpack.c.l.b16 %v469
        %v701 = vunpack.c.l.b16 %v470
        %v702 = vunpack.c.l.b16 %v471
        %v703 = vunpack.c.l.b16 %v472
        %v704 = vunpack.c.l.b16 %v473
        %v705 = vunpack.c.l.b16 %v474
        %v706 = vpack.c.b16 %v675, %v674
        %v707 = vpack.c.b16 %v677, %v676
        %v708 = vpack.c.b16 %v679, %v678
        %v709 = vpack.c.b16 %v681, %v680
        %v710 = vpack.c.b16 %v683, %v682
        %v711 = vpack.c.b16 %v685, %v684
        %v712 = vpack.c.b16 %v687, %v686
        %v713 = vpack.c.b16 %v689, %v688
        %v714 = vpack.c.b16 %v691, %v690
        %v715 = vpack.c.b16 %v693, %v692
        %v716 = vpack.c.b16 %v695, %v694
        %v717 = vpack.c.b16 %v697, %v696
        %v718 = vpack.c.b16 %v699, %v698
        %v719 = vpack.c.b16 %v701, %v700
        %v720 = vpack.c.b16 %v703, %v702
        %v721 = vpack.c.b16 %v705, %v704
        %738 = vmatprep.subr.bf16.mxu0 0
        %739 = vmatpush1.bf16.msra.mxu0 %v706
        %740 = vmatprep.subr.bf16.mxu0 0
        %741 = vmatpush1.bf16.msra.mxu0 %v707
        %742 = vmatprep.subr.bf16.mxu0 0
        %743 = vmatpush1.bf16.msra.mxu0 %v708
        %744 = vmatprep.subr.bf16.mxu0 0
        %745 = vmatpush1.bf16.msra.mxu0 %v709
        %746 = vmatprep.subr.bf16.mxu0 0
        %747 = vmatpush1.bf16.msra.mxu0 %v710
        %748 = vmatprep.subr.bf16.mxu0 0
        %749 = vmatpush1.bf16.msra.mxu0 %v711
        %750 = vmatprep.subr.bf16.mxu0 0
        %751 = vmatpush1.bf16.msra.mxu0 %v712
        %752 = vmatprep.subr.bf16.mxu0 0
        %753 = vmatpush1.bf16.msra.mxu0 %v713
        %754 = vmatprep.subr.bf16.mxu0 0
        %755 = vmatpush1.bf16.msra.mxu0 %v714
        %756 = vmatprep.subr.bf16.mxu0 0
        %757 = vmatpush1.bf16.msra.mxu0 %v715
        %758 = vmatprep.subr.bf16.mxu0 0
        %759 = vmatpush1.bf16.msra.mxu0 %v716
        %760 = vmatprep.subr.bf16.mxu0 0
        %761 = vmatpush1.bf16.msra.mxu0 %v717
        %762 = vmatprep.subr.bf16.mxu0 0
        %763 = vmatpush1.bf16.msra.mxu0 %v718
        %764 = vmatprep.subr.bf16.mxu0 0
        %765 = vmatpush1.bf16.msra.mxu0 %v719
        %766 = vmatprep.subr.bf16.mxu0 0
        %767 = vmatpush1.bf16.msra.mxu0 %v720
        %768 = vmatprep.subr.bf16.mxu0 0
        %769 = vmatpush1.bf16.msra.mxu0 %v721
        %770 = vmatprep.mubr.bf16.mxu0 %v579
        %771 = vmatmul.mubr.bf16.gmra.mrb[0].mxu0 %v578
        %v772 = vpop.f32.mrb[0].mxu0
        %v773 = vadd.f32 %v480, %v772
        %v774 = vpop.f32.mrb[0].mxu0
        %v775 = vpop.f32.mrb[0].mxu0
        %v776 = vadd.f32 %v480, %v775
        %v777 = vpop.f32.mrb[0].mxu0
        %778 = vmatprep.mubr.bf16.mxu0 %v581
        %779 = vmatmul.mubr.bf16.gmra.mrb[0].mxu0 %v580
        %v780 = vpop.f32.mrb[0].mxu0
        %v781 = vadd.f32 %v480, %v780
        %v782 = vpop.f32.mrb[0].mxu0
        %v783 = vpop.f32.mrb[0].mxu0
        %v784 = vadd.f32 %v480, %v783
        %v785 = vpop.f32.mrb[0].mxu0
        %786 = vmatprep.mubr.bf16.mxu0 %v583
        %787 = vmatmul.mubr.bf16.gmra.mrb[0].mxu0 %v582
        %v788 = vpop.f32.mrb[0].mxu0
        %v789 = vadd.f32 %v480, %v788
        %v790 = vpop.f32.mrb[0].mxu0
        %v791 = vpop.f32.mrb[0].mxu0
        %v792 = vadd.f32 %v480, %v791
        %v793 = vpop.f32.mrb[0].mxu0
        %794 = vmatprep.mubr.bf16.mxu0 %v585
        %795 = vmatmul.mubr.bf16.gmra.mrb[0].mxu0 %v584
        %v796 = vpop.f32.mrb[0].mxu0
        %v797 = vadd.f32 %v480, %v796
        %v798 = vpop.f32.mrb[0].mxu0
        %v799 = vpop.f32.mrb[0].mxu0
        %v800 = vadd.f32 %v480, %v799
        %v801 = vpop.f32.mrb[0].mxu0
        %802 = vmatprep.mubr.bf16.mxu0 %v587
        %803 = vmatmul.mubr.bf16.gmra.mrb[0].mxu0 %v586
        %v804 = vpop.f32.mrb[0].mxu0
        %v805 = vadd.f32 %v480, %v804
        %v806 = vpop.f32.mrb[0].mxu0
        %v807 = vpop.f32.mrb[0].mxu0
        %v808 = vadd.f32 %v480, %v807
        %v809 = vpop.f32.mrb[0].mxu0
        %810 = vmatprep.mubr.bf16.mxu0 %v589
        %811 = vmatmul.mubr.bf16.gmra.mrb[0].mxu0 %v588
        %v812 = vpop.f32.mrb[0].mxu0
        %v813 = vadd.f32 %v480, %v812
        %v814 = vpop.f32.mrb[0].mxu0
        %v815 = vpop.f32.mrb[0].mxu0
        %v816 = vadd.f32 %v480, %v815
        %v817 = vpop.f32.mrb[0].mxu0
        %818 = vmatprep.mubr.bf16.mxu0 %v591
        %819 = vmatmul.mubr.bf16.gmra.mrb[0].mxu0 %v590
        %v820 = vpop.f32.mrb[0].mxu0
        %v821 = vadd.f32 %v480, %v820
        %v822 = vpop.f32.mrb[0].mxu0
        %v823 = vpop.f32.mrb[0].mxu0
        %v824 = vadd.f32 %v480, %v823
        %v825 = vpop.f32.mrb[0].mxu0
        %826 = vmatprep.mubr.bf16.mxu0 %v593
        %827 = vmatmul.mubr.bf16.gmra.mrb[0].mxu0 %v592
        %v828 = vpop.f32.mrb[0].mxu0
        %v829 = vadd.f32 %v480, %v828
        %v830 = vpop.f32.mrb[0].mxu0
        %v831 = vpop.f32.mrb[0].mxu0
        %v832 = vadd.f32 %v480, %v831
        %v833 = vpop.f32.mrb[0].mxu0
        %834 = vmatprep.mubr.bf16.mxu0 %v595
        %835 = vmatmul.mubr.bf16.gmra.mrb[0].mxu0 %v594
        %v836 = vpop.f32.mrb[0].mxu0
        %v837 = vadd.f32 %v480, %v836
        %v838 = vpop.f32.mrb[0].mxu0
        %v839 = vpop.f32.mrb[0].mxu0
        %v840 = vadd.f32 %v480, %v839
        %v841 = vpop.f32.mrb[0].mxu0
        %842 = vmatprep.mubr.bf16.mxu0 %v597
        %843 = vmatmul.mubr.bf16.gmra.mrb[0].mxu0 %v596
        %v844 = vpop.f32.mrb[0].mxu0
        %v845 = vadd.f32 %v480, %v844
        %v846 = vpop.f32.mrb[0].mxu0
        %v847 = vpop.f32.mrb[0].mxu0
        %v848 = vadd.f32 %v480, %v847
        %v849 = vpop.f32.mrb[0].mxu0
        %850 = vmatprep.mubr.bf16.mxu0 %v599
        %851 = vmatmul.mubr.bf16.gmra.mrb[0].mxu0 %v598
        %v852 = vpop.f32.mrb[0].mxu0
        %v853 = vadd.f32 %v480, %v852
        %v854 = vpop.f32.mrb[0].mxu0
        %v855 = vpop.f32.mrb[0].mxu0
        %v856 = vadd.f32 %v480, %v855
        %v857 = vpop.f32.mrb[0].mxu0
        %858 = vmatprep.mubr.bf16.mxu0 %v601
        %859 = vmatmul.mubr.bf16.gmra.mrb[0].mxu0 %v600
        %v860 = vpop.f32.mrb[0].mxu0
        %v861 = vadd.f32 %v480, %v860
        %v862 = vpop.f32.mrb[0].mxu0
        %v863 = vpop.f32.mrb[0].mxu0
        %v864 = vadd.f32 %v480, %v863
        %v865 = vpop.f32.mrb[0].mxu0
        %866 = vmatprep.mubr.bf16.mxu0 %v603
        %867 = vmatmul.mubr.bf16.gmra.mrb[0].mxu0 %v602
        %v868 = vpop.f32.mrb[0].mxu0
        %v869 = vadd.f32 %v480, %v868
        %v870 = vpop.f32.mrb[0].mxu0
        %v871 = vpop.f32.mrb[0].mxu0
        %v872 = vadd.f32 %v480, %v871
        %v873 = vpop.f32.mrb[0].mxu0
        %874 = vmatprep.mubr.bf16.mxu0 %v605
        %875 = vmatmul.mubr.bf16.gmra.mrb[0].mxu0 %v604
        %v876 = vpop.f32.mrb[0].mxu0
        %v877 = vadd.f32 %v480, %v876
        %v878 = vpop.f32.mrb[0].mxu0
        %v879 = vpop.f32.mrb[0].mxu0
        %v880 = vadd.f32 %v480, %v879
        %v881 = vpop.f32.mrb[0].mxu0
        %882 = vmatprep.mubr.bf16.mxu0 %v607
        %883 = vmatmul.mubr.bf16.gmra.mrb[0].mxu0 %v606
        %v884 = vpop.f32.mrb[0].mxu0
        %v885 = vadd.f32 %v480, %v884
        %v886 = vpop.f32.mrb[0].mxu0
        %v887 = vpop.f32.mrb[0].mxu0
        %v888 = vadd.f32 %v480, %v887
        %v889 = vpop.f32.mrb[0].mxu0
        %890 = vmatprep.mubr.bf16.mxu0 %v609
        %891 = vmatmul.mubr.bf16.gmra.mrb[0].mxu0 %v608
        %v892 = vpop.f32.mrb[0].mxu0
        %v893 = vadd.f32 %v480, %v892
        %v894 = vpop.f32.mrb[0].mxu0
        %v895 = vpop.f32.mrb[0].mxu0
        %v896 = vadd.f32 %v480, %v895
        %v897 = vpop.f32.mrb[0].mxu0
        %898 = vdwg.mxu0
        %v899 = vmax.f32 %v773, %v781
        %v900 = vmax.f32 %v776, %v784
        %v901 = vmax.f32 %v789, %v797
        %v902 = vmax.f32 %v792, %v800
        %v903 = vmax.f32 %v805, %v813
        %v904 = vmax.f32 %v808, %v816
        %v905 = vmax.f32 %v821, %v829
        %v906 = vmax.f32 %v824, %v832
        %v907 = vmax.f32 %v837, %v845
        %v908 = vmax.f32 %v840, %v848
        %v909 = vmax.f32 %v853, %v861
        %v910 = vmax.f32 %v856, %v864
        %v911 = vmax.f32 %v869, %v877
        %v912 = vmax.f32 %v872, %v880
        %v913 = vmax.f32 %v885, %v893
        %v914 = vmax.f32 %v888, %v896
        %v923 = vrot.slane %v899, 1
        %v924 = vrot.slane %v901, 1
        %v925 = vrot.slane %v903, 1
        %v926 = vrot.slane %v905, 1
        %v927 = vrot.slane %v907, 1
        %v928 = vrot.slane %v909, 1
        %v929 = vrot.slane %v911, 1
        %v930 = vrot.slane %v913, 1
        %v939 = vrot.slane %v899, 2
        %v940 = vrot.slane %v901, 2
        %v941 = vrot.slane %v903, 2
        %v942 = vrot.slane %v905, 2
        %v943 = vrot.slane %v907, 2
        %v944 = vrot.slane %v909, 2
        %v945 = vrot.slane %v911, 2
        %v946 = vrot.slane %v913, 2
        %v955 = vrot.slane %v899, 3
        %v956 = vrot.slane %v901, 3
        %v957 = vrot.slane %v903, 3
        %v958 = vrot.slane %v905, 3
        %v959 = vrot.slane %v907, 3
        %v960 = vrot.slane %v909, 3
        %v961 = vrot.slane %v911, 3
        %v962 = vrot.slane %v913, 3
        %v979 = vrot.slane %v900, 4
        %v980 = vrot.slane %v902, 4
        %v981 = vrot.slane %v904, 4
        %v982 = vrot.slane %v906, 4
        %v983 = vrot.slane %v908, 4
        %v984 = vrot.slane %v910, 4
        %v985 = vrot.slane %v912, 4
        %v986 = vrot.slane %v914, 4
        %v995 = vrot.slane %v900, 5
        %v996 = vrot.slane %v902, 5
        %v997 = vrot.slane %v904, 5
        %v998 = vrot.slane %v906, 5
        %v999 = vrot.slane %v908, 5
        %v1000 = vrot.slane %v910, 5
        %v1001 = vrot.slane %v912, 5
        %v1002 = vrot.slane %v914, 5
        %v1011 = vrot.slane %v900, 6
        %v1012 = vrot.slane %v902, 6
        %v1013 = vrot.slane %v904, 6
        %v1014 = vrot.slane %v906, 6
        %v1015 = vrot.slane %v908, 6
        %v1016 = vrot.slane %v910, 6
        %v1017 = vrot.slane %v912, 6
        %v1018 = vrot.slane %v914, 6
        %v1027 = vrot.slane %v900, 7
        %v1028 = vrot.slane %v902, 7
        %v1029 = vrot.slane %v904, 7
        %v1030 = vrot.slane %v906, 7
        %v1031 = vrot.slane %v908, 7
        %v1032 = vrot.slane %v910, 7
        %v1033 = vrot.slane %v912, 7
        %v1034 = vrot.slane %v914, 7
        %vm1043 = vcmask 1040384
        %v1044 = vsel %vm1043, %v899, %v923
        %v1045 = vsel %vm1043, %v901, %v924
        %v1046 = vsel %vm1043, %v903, %v925
        %v1047 = vsel %vm1043, %v905, %v926
        %v1048 = vsel %vm1043, %v907, %v927
        %v1049 = vsel %vm1043, %v909, %v928
        %v1050 = vsel %vm1043, %v911, %v929
        %v1051 = vsel %vm1043, %v913, %v930
        %vm1052 = vcmask 1041408
        %v1053 = vsel %vm1052, %v1044, %v939
        %v1054 = vsel %vm1052, %v1045, %v940
        %v1055 = vsel %vm1052, %v1046, %v941
        %v1056 = vsel %vm1052, %v1047, %v942
        %v1057 = vsel %vm1052, %v1048, %v943
        %v1058 = vsel %vm1052, %v1049, %v944
        %v1059 = vsel %vm1052, %v1050, %v945
        %v1060 = vsel %vm1052, %v1051, %v946
        %vm1061 = vcmask 1042432
        %v1062 = vsel %vm1061, %v1053, %v955
        %v1063 = vsel %vm1061, %v1054, %v956
        %v1064 = vsel %vm1061, %v1055, %v957
        %v1065 = vsel %vm1061, %v1056, %v958
        %v1066 = vsel %vm1061, %v1057, %v959
        %v1067 = vsel %vm1061, %v1058, %v960
        %v1068 = vsel %vm1061, %v1059, %v961
        %v1069 = vsel %vm1061, %v1060, %v962
        %vm1070 = vcmask 1043456
        %v1071 = vsel %vm1070, %v1062, %v979
        %v1072 = vsel %vm1070, %v1063, %v980
        %v1073 = vsel %vm1070, %v1064, %v981
        %v1074 = vsel %vm1070, %v1065, %v982
        %v1075 = vsel %vm1070, %v1066, %v983
        %v1076 = vsel %vm1070, %v1067, %v984
        %v1077 = vsel %vm1070, %v1068, %v985
        %v1078 = vsel %vm1070, %v1069, %v986
        %vm1079 = vcmask 1044480
        %v1080 = vsel %vm1079, %v1071, %v995
        %v1081 = vsel %vm1079, %v1072, %v996
        %v1082 = vsel %vm1079, %v1073, %v997
        %v1083 = vsel %vm1079, %v1074, %v998
        %v1084 = vsel %vm1079, %v1075, %v999
        %v1085 = vsel %vm1079, %v1076, %v1000
        %v1086 = vsel %vm1079, %v1077, %v1001
        %v1087 = vsel %vm1079, %v1078, %v1002
        %vm1088 = vcmask 1045504
        %v1089 = vsel %vm1088, %v1080, %v1011
        %v1090 = vsel %vm1088, %v1081, %v1012
        %v1091 = vsel %vm1088, %v1082, %v1013
        %v1092 = vsel %vm1088, %v1083, %v1014
        %v1093 = vsel %vm1088, %v1084, %v1015
        %v1094 = vsel %vm1088, %v1085, %v1016
        %v1095 = vsel %vm1088, %v1086, %v1017
        %v1096 = vsel %vm1088, %v1087, %v1018
        %vm1097 = vcmask 1046528
        %v1098 = vsel %vm1097, %v1089, %v1027
        %v1099 = vsel %vm1097, %v1090, %v1028
        %v1100 = vsel %vm1097, %v1091, %v1029
        %v1101 = vsel %vm1097, %v1092, %v1030
        %v1102 = vsel %vm1097, %v1093, %v1031
        %v1103 = vsel %vm1097, %v1094, %v1032
        %v1104 = vsel %vm1097, %v1095, %v1033
        %v1105 = vsel %vm1097, %v1096, %v1034
        %v1106 = vrot.slane %v899, 4
        %v1107 = vrot.slane %v901, 4
        %v1108 = vrot.slane %v903, 4
        %v1109 = vrot.slane %v905, 4
        %v1110 = vrot.slane %v907, 4
        %v1111 = vrot.slane %v909, 4
        %v1112 = vrot.slane %v911, 4
        %v1113 = vrot.slane %v913, 4
        %v1122 = vsel %vm1043, %v923, %v939
        %v1123 = vsel %vm1043, %v924, %v940
        %v1124 = vsel %vm1043, %v925, %v941
        %v1125 = vsel %vm1043, %v926, %v942
        %v1126 = vsel %vm1043, %v927, %v943
        %v1127 = vsel %vm1043, %v928, %v944
        %v1128 = vsel %vm1043, %v929, %v945
        %v1129 = vsel %vm1043, %v930, %v946
        %v1130 = vsel %vm1052, %v1122, %v955
        %v1131 = vsel %vm1052, %v1123, %v956
        %v1132 = vsel %vm1052, %v1124, %v957
        %v1133 = vsel %vm1052, %v1125, %v958
        %v1134 = vsel %vm1052, %v1126, %v959
        %v1135 = vsel %vm1052, %v1127, %v960
        %v1136 = vsel %vm1052, %v1128, %v961
        %v1137 = vsel %vm1052, %v1129, %v962
        %v1138 = vsel %vm1061, %v1130, %v1106
        %v1139 = vsel %vm1061, %v1131, %v1107
        %v1140 = vsel %vm1061, %v1132, %v1108
        %v1141 = vsel %vm1061, %v1133, %v1109
        %v1142 = vsel %vm1061, %v1134, %v1110
        %v1143 = vsel %vm1061, %v1135, %v1111
        %v1144 = vsel %vm1061, %v1136, %v1112
        %v1145 = vsel %vm1061, %v1137, %v1113
        %v1146 = vsel %vm1070, %v1138, %v995
        %v1147 = vsel %vm1070, %v1139, %v996
        %v1148 = vsel %vm1070, %v1140, %v997
        %v1149 = vsel %vm1070, %v1141, %v998
        %v1150 = vsel %vm1070, %v1142, %v999
        %v1151 = vsel %vm1070, %v1143, %v1000
        %v1152 = vsel %vm1070, %v1144, %v1001
        %v1153 = vsel %vm1070, %v1145, %v1002
        %v1154 = vsel %vm1079, %v1146, %v1011
        %v1155 = vsel %vm1079, %v1147, %v1012
        %v1156 = vsel %vm1079, %v1148, %v1013
        %v1157 = vsel %vm1079, %v1149, %v1014
        %v1158 = vsel %vm1079, %v1150, %v1015
        %v1159 = vsel %vm1079, %v1151, %v1016
        %v1160 = vsel %vm1079, %v1152, %v1017
        %v1161 = vsel %vm1079, %v1153, %v1018
        %v1162 = vsel %vm1088, %v1154, %v1027
        %v1163 = vsel %vm1088, %v1155, %v1028
        %v1164 = vsel %vm1088, %v1156, %v1029
        %v1165 = vsel %vm1088, %v1157, %v1030
        %v1166 = vsel %vm1088, %v1158, %v1031
        %v1167 = vsel %vm1088, %v1159, %v1032
        %v1168 = vsel %vm1088, %v1160, %v1033
        %v1169 = vsel %vm1088, %v1161, %v1034
        %v1170 = vsel %vm1097, %v1162, %v900
        %v1171 = vsel %vm1097, %v1163, %v902
        %v1172 = vsel %vm1097, %v1164, %v904
        %v1173 = vsel %vm1097, %v1165, %v906
        %v1174 = vsel %vm1097, %v1166, %v908
        %v1175 = vsel %vm1097, %v1167, %v910
        %v1176 = vsel %vm1097, %v1168, %v912
        %v1177 = vsel %vm1097, %v1169, %v914
        %v1178 = vmax.f32 %v1098, %v1170
        %v1179 = vmax.f32 %v1099, %v1171
        %v1180 = vmax.f32 %v1100, %v1172
        %v1181 = vmax.f32 %v1101, %v1173
        %v1182 = vmax.f32 %v1102, %v1174
        %v1183 = vmax.f32 %v1103, %v1175
        %v1184 = vmax.f32 %v1104, %v1176
        %v1185 = vmax.f32 %v1105, %v1177
        %v1186 = vmax.f32 %v1178, 0.0
        %v1187 = vmax.f32 %v1179, 0.0
        %v1188 = vmax.f32 %v1180, 0.0
        %v1189 = vmax.f32 %v1181, 0.0
        %v1190 = vmax.f32 %v1182, 0.0
        %v1191 = vmax.f32 %v1183, 0.0
        %v1192 = vmax.f32 %v1184, 0.0
        %v1193 = vmax.f32 %v1185, 0.0
        %s1194 = scalar_lea.vmem [#allocation2], 48
        %1195 = vst.msk [vmem:[%s1194 + $0x3] sm:$0xff] %vm334, %v1186
        %1196 = vst.msk [vmem:[%s1194 + $0x13] sm:$0xff] %vm334, %v1187
        %1197 = vst.msk [vmem:[%s1194 + $0x23] sm:$0xff] %vm334, %v1188
        %1198 = vst.msk [vmem:[%s1194 + $0x33] sm:$0xff] %vm334, %v1189
        %1199 = vst.msk [vmem:[%s1194 + $0x43] sm:$0xff] %vm334, %v1190
        %1200 = vst.msk [vmem:[%s1194 + $0x53] sm:$0xff] %vm334, %v1191
        %1201 = vst.msk [vmem:[%s1194 + $0x63] sm:$0xff] %vm334, %v1192
        %1202 = vst.msk [vmem:[%s1194 + $0x73] sm:$0xff] %vm334, %v1193
        %v1203 = vld [vmem:[#allocation2] sm:$0xff]
        %v1204 = vld [vmem:[#allocation2 + $0x10] sm:$0xff]
        %v1205 = vld [vmem:[#allocation2 + $0x20] sm:$0xff]
        %v1206 = vld [vmem:[#allocation2 + $0x30] sm:$0xff]
        %v1207 = vld [vmem:[#allocation2 + $0x40] sm:$0xff]
        %v1208 = vld [vmem:[#allocation2 + $0x50] sm:$0xff]
        %v1209 = vld [vmem:[#allocation2 + $0x60] sm:$0xff]
        %v1210 = vld [vmem:[#allocation2 + $0x70] sm:$0xff]
        %v1211 = vld [vmem:[#allocation2 + $0x80] sm:$0xff]
        %v1212 = vld [vmem:[#allocation2 + $0x90] sm:$0xff]
        %v1213 = vld [vmem:[#allocation2 + $0xa0] sm:$0xff]
        %v1214 = vld [vmem:[#allocation2 + $0xb0] sm:$0xff]
        %v1215 = vld [vmem:[#allocation2 + $0xc0] sm:$0xff]
        %v1216 = vld [vmem:[#allocation2 + $0xd0] sm:$0xff]
        %v1217 = vpack.c.bf16 %v1203, %v1203
        %v1218 = vpack.c.bf16 %v1204, %v1204
        %v1219 = vpack.c.bf16 %v1205, %v1205
        %v1220 = vpack.c.bf16 %v1206, %v1206
        %v1221 = vpack.c.bf16 %v1207, %v1207
        %v1222 = vpack.c.bf16 %v1208, %v1208
        %v1223 = vpack.c.bf16 %v1209, %v1209
        %v1224 = vpack.c.bf16 %v1210, %v1210
        %v1225 = vpack.c.bf16 %v1211, %v1211
        %v1226 = vpack.c.bf16 %v1212, %v1212
        %v1227 = vpack.c.bf16 %v1213, %v1213
        %v1228 = vpack.c.bf16 %v1214, %v1214
        %v1229 = vpack.c.bf16 %v1215, %v1215
        %v1230 = vpack.c.bf16 %v1216, %v1216
        %v1231 = vld [vmem:[#allocation2 + $0x1] sm:$0xff]
        %v1232 = vld [vmem:[#allocation2 + $0x11] sm:$0xff]
        %v1233 = vld [vmem:[#allocation2 + $0x21] sm:$0xff]
        %v1234 = vld [vmem:[#allocation2 + $0x31] sm:$0xff]
        %v1235 = vld [vmem:[#allocation2 + $0x41] sm:$0xff]
        %v1236 = vld [vmem:[#allocation2 + $0x51] sm:$0xff]
        %v1237 = vld [vmem:[#allocation2 + $0x61] sm:$0xff]
        %v1238 = vld [vmem:[#allocation2 + $0x71] sm:$0xff]
        %v1239 = vld [vmem:[#allocation2 + $0x81] sm:$0xff]
        %v1240 = vld [vmem:[#allocation2 + $0x91] sm:$0xff]
        %v1241 = vld [vmem:[#allocation2 + $0xa1] sm:$0xff]
        %v1242 = vld [vmem:[#allocation2 + $0xb1] sm:$0xff]
        %v1243 = vld [vmem:[#allocation2 + $0xc1] sm:$0xff]
        %v1244 = vld [vmem:[#allocation2 + $0xd1] sm:$0xff]
        %v1245 = vpack.c.bf16 %v1231, %v1231
        %v1246 = vpack.c.bf16 %v1232, %v1232
        %v1247 = vpack.c.bf16 %v1233, %v1233
        %v1248 = vpack.c.bf16 %v1234, %v1234
        %v1249 = vpack.c.bf16 %v1235, %v1235
        %v1250 = vpack.c.bf16 %v1236, %v1236
        %v1251 = vpack.c.bf16 %v1237, %v1237
        %v1252 = vpack.c.bf16 %v1238, %v1238
        %v1253 = vpack.c.bf16 %v1239, %v1239
        %v1254 = vpack.c.bf16 %v1240, %v1240
        %v1255 = vpack.c.bf16 %v1241, %v1241
        %v1256 = vpack.c.bf16 %v1242, %v1242
        %v1257 = vpack.c.bf16 %v1243, %v1243
        %v1258 = vpack.c.bf16 %v1244, %v1244
        %v1259 = vld [vmem:[#allocation2 + $0x2] sm:$0xff]
        %v1260 = vld [vmem:[#allocation2 + $0x12] sm:$0xff]
        %v1261 = vld [vmem:[#allocation2 + $0x22] sm:$0xff]
        %v1262 = vld [vmem:[#allocation2 + $0x32] sm:$0xff]
        %v1263 = vld [vmem:[#allocation2 + $0x42] sm:$0xff]
        %v1264 = vld [vmem:[#allocation2 + $0x52] sm:$0xff]
        %v1265 = vld [vmem:[#allocation2 + $0x62] sm:$0xff]
        %v1266 = vld [vmem:[#allocation2 + $0x72] sm:$0xff]
        %v1267 = vld [vmem:[#allocation2 + $0x82] sm:$0xff]
        %v1268 = vld [vmem:[#allocation2 + $0x92] sm:$0xff]
        %v1269 = vld [vmem:[#allocation2 + $0xa2] sm:$0xff]
        %v1270 = vld [vmem:[#allocation2 + $0xb2] sm:$0xff]
        %v1271 = vld [vmem:[#allocation2 + $0xc2] sm:$0xff]
        %v1272 = vld [vmem:[#allocation2 + $0xd2] sm:$0xff]
        %v1273 = vpack.c.bf16 %v1259, %v1259
        %v1274 = vpack.c.bf16 %v1260, %v1260
        %v1275 = vpack.c.bf16 %v1261, %v1261
        %v1276 = vpack.c.bf16 %v1262, %v1262
        %v1277 = vpack.c.bf16 %v1263, %v1263
        %v1278 = vpack.c.bf16 %v1264, %v1264
        %v1279 = vpack.c.bf16 %v1265, %v1265
        %v1280 = vpack.c.bf16 %v1266, %v1266
        %v1281 = vpack.c.bf16 %v1267, %v1267
        %v1282 = vpack.c.bf16 %v1268, %v1268
        %v1283 = vpack.c.bf16 %v1269, %v1269
        %v1284 = vpack.c.bf16 %v1270, %v1270
        %v1285 = vpack.c.bf16 %v1271, %v1271
        %v1286 = vpack.c.bf16 %v1272, %v1272
        %v1287 = vld [vmem:[#allocation2 + $0x3] sm:$0xff]
        %v1288 = vld [vmem:[#allocation2 + $0x13] sm:$0xff]
        %v1289 = vld [vmem:[#allocation2 + $0x23] sm:$0xff]
        %v1290 = vld [vmem:[#allocation2 + $0x33] sm:$0xff]
        %v1291 = vld [vmem:[#allocation2 + $0x43] sm:$0xff]
        %v1292 = vld [vmem:[#allocation2 + $0x53] sm:$0xff]
        %v1293 = vld [vmem:[#allocation2 + $0x63] sm:$0xff]
        %v1294 = vld [vmem:[#allocation2 + $0x73] sm:$0xff]
        %v1295 = vld [vmem:[#allocation2 + $0x83] sm:$0xff]
        %v1296 = vld [vmem:[#allocation2 + $0x93] sm:$0xff]
        %v1297 = vld [vmem:[#allocation2 + $0xa3] sm:$0xff]
        %v1298 = vld [vmem:[#allocation2 + $0xb3] sm:$0xff]
        %v1299 = vld [vmem:[#allocation2 + $0xc3] sm:$0xff]
        %v1300 = vld [vmem:[#allocation2 + $0xd3] sm:$0xff]
        %v1301 = vpack.c.bf16 %v1287, %v1287
        %v1302 = vpack.c.bf16 %v1288, %v1288
        %v1303 = vpack.c.bf16 %v1289, %v1289
        %v1304 = vpack.c.bf16 %v1290, %v1290
        %v1305 = vpack.c.bf16 %v1291, %v1291
        %v1306 = vpack.c.bf16 %v1292, %v1292
        %v1307 = vpack.c.bf16 %v1293, %v1293
        %v1308 = vpack.c.bf16 %v1294, %v1294
        %v1309 = vpack.c.bf16 %v1295, %v1295
        %v1310 = vpack.c.bf16 %v1296, %v1296
        %v1311 = vpack.c.bf16 %v1297, %v1297
        %v1312 = vpack.c.bf16 %v1298, %v1298
        %v1313 = vpack.c.bf16 %v1299, %v1299
        %v1314 = vpack.c.bf16 %v1300, %v1300
        %v1315 = vld [vmem:[#allocation2 + $0x4] sm:$0xff]
        %v1316 = vld [vmem:[#allocation2 + $0x14] sm:$0xff]
        %v1317 = vld [vmem:[#allocation2 + $0x24] sm:$0xff]
        %v1318 = vld [vmem:[#allocation2 + $0x34] sm:$0xff]
        %v1319 = vld [vmem:[#allocation2 + $0x44] sm:$0xff]
        %v1320 = vld [vmem:[#allocation2 + $0x54] sm:$0xff]
        %v1321 = vld [vmem:[#allocation2 + $0x64] sm:$0xff]
        %v1322 = vld [vmem:[#allocation2 + $0x74] sm:$0xff]
        %v1323 = vld [vmem:[#allocation2 + $0x84] sm:$0xff]
        %v1324 = vld [vmem:[#allocation2 + $0x94] sm:$0xff]
        %v1325 = vld [vmem:[#allocation2 + $0xa4] sm:$0xff]
        %v1326 = vld [vmem:[#allocation2 + $0xb4] sm:$0xff]
        %v1327 = vld [vmem:[#allocation2 + $0xc4] sm:$0xff]
        %v1328 = vld [vmem:[#allocation2 + $0xd4] sm:$0xff]
        %v1329 = vpack.c.bf16 %v1315, %v1315
        %v1330 = vpack.c.bf16 %v1316, %v1316
        %v1331 = vpack.c.bf16 %v1317, %v1317
        %v1332 = vpack.c.bf16 %v1318, %v1318
        %v1333 = vpack.c.bf16 %v1319, %v1319
        %v1334 = vpack.c.bf16 %v1320, %v1320
        %v1335 = vpack.c.bf16 %v1321, %v1321
        %v1336 = vpack.c.bf16 %v1322, %v1322
        %v1337 = vpack.c.bf16 %v1323, %v1323
        %v1338 = vpack.c.bf16 %v1324, %v1324
        %v1339 = vpack.c.bf16 %v1325, %v1325
        %v1340 = vpack.c.bf16 %v1326, %v1326
        %v1341 = vpack.c.bf16 %v1327, %v1327
        %v1342 = vpack.c.bf16 %v1328, %v1328
        %v1343 = vld [vmem:[#allocation2 + $0x5] sm:$0xff]
        %v1344 = vld [vmem:[#allocation2 + $0x15] sm:$0xff]
        %v1345 = vld [vmem:[#allocation2 + $0x25] sm:$0xff]
        %v1346 = vld [vmem:[#allocation2 + $0x35] sm:$0xff]
        %v1347 = vld [vmem:[#allocation2 + $0x45] sm:$0xff]
        %v1348 = vld [vmem:[#allocation2 + $0x55] sm:$0xff]
        %v1349 = vld [vmem:[#allocation2 + $0x65] sm:$0xff]
        %v1350 = vld [vmem:[#allocation2 + $0x75] sm:$0xff]
        %v1351 = vld [vmem:[#allocation2 + $0x85] sm:$0xff]
        %v1352 = vld [vmem:[#allocation2 + $0x95] sm:$0xff]
        %v1353 = vld [vmem:[#allocation2 + $0xa5] sm:$0xff]
        %v1354 = vld [vmem:[#allocation2 + $0xb5] sm:$0xff]
        %v1355 = vld [vmem:[#allocation2 + $0xc5] sm:$0xff]
        %v1356 = vld [vmem:[#allocation2 + $0xd5] sm:$0xff]
        %v1357 = vpack.c.bf16 %v1343, %v1343
        %v1358 = vpack.c.bf16 %v1344, %v1344
        %v1359 = vpack.c.bf16 %v1345, %v1345
        %v1360 = vpack.c.bf16 %v1346, %v1346
        %v1361 = vpack.c.bf16 %v1347, %v1347
        %v1362 = vpack.c.bf16 %v1348, %v1348
        %v1363 = vpack.c.bf16 %v1349, %v1349
        %v1364 = vpack.c.bf16 %v1350, %v1350
        %v1365 = vpack.c.bf16 %v1351, %v1351
        %v1366 = vpack.c.bf16 %v1352, %v1352
        %v1367 = vpack.c.bf16 %v1353, %v1353
        %v1368 = vpack.c.bf16 %v1354, %v1354
        %v1369 = vpack.c.bf16 %v1355, %v1355
        %v1370 = vpack.c.bf16 %v1356, %v1356
        %v1371 = vld [vmem:[#allocation2 + $0x6] sm:$0xff]
        %v1372 = vld [vmem:[#allocation2 + $0x16] sm:$0xff]
        %v1373 = vld [vmem:[#allocation2 + $0x26] sm:$0xff]
        %v1374 = vld [vmem:[#allocation2 + $0x36] sm:$0xff]
        %v1375 = vld [vmem:[#allocation2 + $0x46] sm:$0xff]
        %v1376 = vld [vmem:[#allocation2 + $0x56] sm:$0xff]
        %v1377 = vld [vmem:[#allocation2 + $0x66] sm:$0xff]
        %v1378 = vld [vmem:[#allocation2 + $0x76] sm:$0xff]
        %v1379 = vld [vmem:[#allocation2 + $0x86] sm:$0xff]
        %v1380 = vld [vmem:[#allocation2 + $0x96] sm:$0xff]
        %v1381 = vld [vmem:[#allocation2 + $0xa6] sm:$0xff]
        %v1382 = vld [vmem:[#allocation2 + $0xb6] sm:$0xff]
        %v1383 = vld [vmem:[#allocation2 + $0xc6] sm:$0xff]
        %v1384 = vld [vmem:[#allocation2 + $0xd6] sm:$0xff]
        %v1385 = vpack.c.bf16 %v1371, %v1371
        %v1386 = vpack.c.bf16 %v1372, %v1372
        %v1387 = vpack.c.bf16 %v1373, %v1373
        %v1388 = vpack.c.bf16 %v1374, %v1374
        %v1389 = vpack.c.bf16 %v1375, %v1375
        %v1390 = vpack.c.bf16 %v1376, %v1376
        %v1391 = vpack.c.bf16 %v1377, %v1377
        %v1392 = vpack.c.bf16 %v1378, %v1378
        %v1393 = vpack.c.bf16 %v1379, %v1379
        %v1394 = vpack.c.bf16 %v1380, %v1380
        %v1395 = vpack.c.bf16 %v1381, %v1381
        %v1396 = vpack.c.bf16 %v1382, %v1382
        %v1397 = vpack.c.bf16 %v1383, %v1383
        %v1398 = vpack.c.bf16 %v1384, %v1384
        %1413 = vrot.lane.b32.xlu0 %v1245, 32
        %v1414 = vpop.permute.xlu0 %1413
        %1415 = vrot.lane.b32.xlu0 %v1246, 32
        %v1416 = vpop.permute.xlu0 %1415
        %1417 = vrot.lane.b32.xlu0 %v1247, 32
        %v1418 = vpop.permute.xlu0 %1417
        %1419 = vrot.lane.b32.xlu0 %v1248, 32
        %v1420 = vpop.permute.xlu0 %1419
        %1421 = vrot.lane.b32.xlu0 %v1249, 32
        %v1422 = vpop.permute.xlu0 %1421
        %1423 = vrot.lane.b32.xlu0 %v1250, 32
        %v1424 = vpop.permute.xlu0 %1423
        %1425 = vrot.lane.b32.xlu0 %v1251, 32
        %v1426 = vpop.permute.xlu0 %1425
        %1427 = vrot.lane.b32.xlu0 %v1252, 32
        %v1428 = vpop.permute.xlu0 %1427
        %1429 = vrot.lane.b32.xlu0 %v1253, 32
        %v1430 = vpop.permute.xlu0 %1429
        %1431 = vrot.lane.b32.xlu0 %v1254, 32
        %v1432 = vpop.permute.xlu0 %1431
        %1433 = vrot.lane.b32.xlu0 %v1255, 32
        %v1434 = vpop.permute.xlu0 %1433
        %1435 = vrot.lane.b32.xlu0 %v1256, 32
        %v1436 = vpop.permute.xlu0 %1435
        %1437 = vrot.lane.b32.xlu0 %v1257, 32
        %v1438 = vpop.permute.xlu0 %1437
        %1439 = vrot.lane.b32.xlu0 %v1258, 32
        %v1440 = vpop.permute.xlu0 %1439
        %1455 = vrot.lane.b32.xlu0 %v1273, 64
        %v1456 = vpop.permute.xlu0 %1455
        %1457 = vrot.lane.b32.xlu0 %v1274, 64
        %v1458 = vpop.permute.xlu0 %1457
        %1459 = vrot.lane.b32.xlu0 %v1275, 64
        %v1460 = vpop.permute.xlu0 %1459
        %1461 = vrot.lane.b32.xlu0 %v1276, 64
        %v1462 = vpop.permute.xlu0 %1461
        %1463 = vrot.lane.b32.xlu0 %v1277, 64
        %v1464 = vpop.permute.xlu0 %1463
        %1465 = vrot.lane.b32.xlu0 %v1278, 64
        %v1466 = vpop.permute.xlu0 %1465
        %1467 = vrot.lane.b32.xlu0 %v1279, 64
        %v1468 = vpop.permute.xlu0 %1467
        %1469 = vrot.lane.b32.xlu0 %v1280, 64
        %v1470 = vpop.permute.xlu0 %1469
        %1471 = vrot.lane.b32.xlu0 %v1281, 64
        %v1472 = vpop.permute.xlu0 %1471
        %1473 = vrot.lane.b32.xlu0 %v1282, 64
        %v1474 = vpop.permute.xlu0 %1473
        %1475 = vrot.lane.b32.xlu0 %v1283, 64
        %v1476 = vpop.permute.xlu0 %1475
        %1477 = vrot.lane.b32.xlu0 %v1284, 64
        %v1478 = vpop.permute.xlu0 %1477
        %1479 = vrot.lane.b32.xlu0 %v1285, 64
        %v1480 = vpop.permute.xlu0 %1479
        %1481 = vrot.lane.b32.xlu0 %v1286, 64
        %v1482 = vpop.permute.xlu0 %1481
        %1497 = vrot.lane.b32.xlu0 %v1301, 96
        %v1498 = vpop.permute.xlu0 %1497
        %1499 = vrot.lane.b32.xlu0 %v1302, 96
        %v1500 = vpop.permute.xlu0 %1499
        %1501 = vrot.lane.b32.xlu0 %v1303, 96
        %v1502 = vpop.permute.xlu0 %1501
        %1503 = vrot.lane.b32.xlu0 %v1304, 96
        %v1504 = vpop.permute.xlu0 %1503
        %1505 = vrot.lane.b32.xlu0 %v1305, 96
        %v1506 = vpop.permute.xlu0 %1505
        %1507 = vrot.lane.b32.xlu0 %v1306, 96
        %v1508 = vpop.permute.xlu0 %1507
        %1509 = vrot.lane.b32.xlu0 %v1307, 96
        %v1510 = vpop.permute.xlu0 %1509
        %1511 = vrot.lane.b32.xlu0 %v1308, 96
        %v1512 = vpop.permute.xlu0 %1511
        %1513 = vrot.lane.b32.xlu0 %v1309, 96
        %v1514 = vpop.permute.xlu0 %1513
        %1515 = vrot.lane.b32.xlu0 %v1310, 96
        %v1516 = vpop.permute.xlu0 %1515
        %1517 = vrot.lane.b32.xlu0 %v1311, 96
        %v1518 = vpop.permute.xlu0 %1517
        %1519 = vrot.lane.b32.xlu0 %v1312, 96
        %v1520 = vpop.permute.xlu0 %1519
        %1521 = vrot.lane.b32.xlu0 %v1313, 96
        %v1522 = vpop.permute.xlu0 %1521
        %1523 = vrot.lane.b32.xlu0 %v1314, 96
        %v1524 = vpop.permute.xlu0 %1523
        %1539 = vrot.lane.b32.xlu0 %v1357, 32
        %v1540 = vpop.permute.xlu0 %1539
        %1541 = vrot.lane.b32.xlu0 %v1358, 32
        %v1542 = vpop.permute.xlu0 %1541
        %1543 = vrot.lane.b32.xlu0 %v1359, 32
        %v1544 = vpop.permute.xlu0 %1543
        %1545 = vrot.lane.b32.xlu0 %v1360, 32
        %v1546 = vpop.permute.xlu0 %1545
        %1547 = vrot.lane.b32.xlu0 %v1361, 32
        %v1548 = vpop.permute.xlu0 %1547
        %1549 = vrot.lane.b32.xlu0 %v1362, 32
        %v1550 = vpop.permute.xlu0 %1549
        %1551 = vrot.lane.b32.xlu0 %v1363, 32
        %v1552 = vpop.permute.xlu0 %1551
        %1553 = vrot.lane.b32.xlu0 %v1364, 32
        %v1554 = vpop.permute.xlu0 %1553
        %1555 = vrot.lane.b32.xlu0 %v1365, 32
        %v1556 = vpop.permute.xlu0 %1555
        %1557 = vrot.lane.b32.xlu0 %v1366, 32
        %v1558 = vpop.permute.xlu0 %1557
        %1559 = vrot.lane.b32.xlu0 %v1367, 32
        %v1560 = vpop.permute.xlu0 %1559
        %1561 = vrot.lane.b32.xlu0 %v1368, 32
        %v1562 = vpop.permute.xlu0 %1561
        %1563 = vrot.lane.b32.xlu0 %v1369, 32
        %v1564 = vpop.permute.xlu0 %1563
        %1565 = vrot.lane.b32.xlu0 %v1370, 32
        %v1566 = vpop.permute.xlu0 %1565
        %1581 = vrot.lane.b32.xlu0 %v1385, 64
        %v1582 = vpop.permute.xlu0 %1581
        %1583 = vrot.lane.b32.xlu0 %v1386, 64
        %v1584 = vpop.permute.xlu0 %1583
        %1585 = vrot.lane.b32.xlu0 %v1387, 64
        %v1586 = vpop.permute.xlu0 %1585
        %1587 = vrot.lane.b32.xlu0 %v1388, 64
        %v1588 = vpop.permute.xlu0 %1587
        %1589 = vrot.lane.b32.xlu0 %v1389, 64
        %v1590 = vpop.permute.xlu0 %1589
        %1591 = vrot.lane.b32.xlu0 %v1390, 64
        %v1592 = vpop.permute.xlu0 %1591
        %1593 = vrot.lane.b32.xlu0 %v1391, 64
        %v1594 = vpop.permute.xlu0 %1593
        %1595 = vrot.lane.b32.xlu0 %v1392, 64
        %v1596 = vpop.permute.xlu0 %1595
        %1597 = vrot.lane.b32.xlu0 %v1393, 64
        %v1598 = vpop.permute.xlu0 %1597
        %1599 = vrot.lane.b32.xlu0 %v1394, 64
        %v1600 = vpop.permute.xlu0 %1599
        %1601 = vrot.lane.b32.xlu0 %v1395, 64
        %v1602 = vpop.permute.xlu0 %1601
        %1603 = vrot.lane.b32.xlu0 %v1396, 64
        %v1604 = vpop.permute.xlu0 %1603
        %1605 = vrot.lane.b32.xlu0 %v1397, 64
        %v1606 = vpop.permute.xlu0 %1605
        %1607 = vrot.lane.b32.xlu0 %v1398, 64
        %v1608 = vpop.permute.xlu0 %1607
        %v1611 = vsel %vm334, %v1217, %v1414
        %v1614 = vsel %vm334, %v1218, %v1416
        %v1617 = vsel %vm334, %v1219, %v1418
        %v1620 = vsel %vm334, %v1220, %v1420
        %v1623 = vsel %vm334, %v1221, %v1422
        %v1626 = vsel %vm334, %v1222, %v1424
        %v1629 = vsel %vm334, %v1223, %v1426
        %v1632 = vsel %vm334, %v1224, %v1428
        %v1635 = vsel %vm334, %v1225, %v1430
        %v1638 = vsel %vm334, %v1226, %v1432
        %v1641 = vsel %vm334, %v1227, %v1434
        %v1644 = vsel %vm334, %v1228, %v1436
        %v1647 = vsel %vm334, %v1229, %v1438
        %v1650 = vsel %vm334, %v1230, %v1440
        %v1652 = vsel %vm364, %v1611, %v1456
        %v1654 = vsel %vm364, %v1614, %v1458
        %v1656 = vsel %vm364, %v1617, %v1460
        %v1658 = vsel %vm364, %v1620, %v1462
        %v1660 = vsel %vm364, %v1623, %v1464
        %v1662 = vsel %vm364, %v1626, %v1466
        %v1664 = vsel %vm364, %v1629, %v1468
        %v1666 = vsel %vm364, %v1632, %v1470
        %v1668 = vsel %vm364, %v1635, %v1472
        %v1670 = vsel %vm364, %v1638, %v1474
        %v1672 = vsel %vm364, %v1641, %v1476
        %v1674 = vsel %vm364, %v1644, %v1478
        %v1676 = vsel %vm364, %v1647, %v1480
        %v1678 = vsel %vm364, %v1650, %v1482
        %vm1679 = vcmask 785408
        %v1681 = vsel %vm1679, %v1652, %v1498
        %v1683 = vsel %vm1679, %v1654, %v1500
        %v1685 = vsel %vm1679, %v1656, %v1502
        %v1687 = vsel %vm1679, %v1658, %v1504
        %v1689 = vsel %vm1679, %v1660, %v1506
        %v1691 = vsel %vm1679, %v1662, %v1508
        %v1693 = vsel %vm1679, %v1664, %v1510
        %v1695 = vsel %vm1679, %v1666, %v1512
        %v1697 = vsel %vm1679, %v1668, %v1514
        %v1699 = vsel %vm1679, %v1670, %v1516
        %v1701 = vsel %vm1679, %v1672, %v1518
        %v1703 = vsel %vm1679, %v1674, %v1520
        %v1705 = vsel %vm1679, %v1676, %v1522
        %v1707 = vsel %vm1679, %v1678, %v1524
        %v1710 = vsel %vm334, %v1329, %v1540
        %v1713 = vsel %vm334, %v1330, %v1542
        %v1716 = vsel %vm334, %v1331, %v1544
        %v1719 = vsel %vm334, %v1332, %v1546
        %v1722 = vsel %vm334, %v1333, %v1548
        %v1725 = vsel %vm334, %v1334, %v1550
        %v1728 = vsel %vm334, %v1335, %v1552
        %v1731 = vsel %vm334, %v1336, %v1554
        %v1734 = vsel %vm334, %v1337, %v1556
        %v1737 = vsel %vm334, %v1338, %v1558
        %v1740 = vsel %vm334, %v1339, %v1560
        %v1743 = vsel %vm334, %v1340, %v1562
        %v1746 = vsel %vm334, %v1341, %v1564
        %v1749 = vsel %vm334, %v1342, %v1566
        %v1751 = vsel %vm364, %v1710, %v1582
        %v1753 = vsel %vm364, %v1713, %v1584
        %v1755 = vsel %vm364, %v1716, %v1586
        %v1757 = vsel %vm364, %v1719, %v1588
        %v1759 = vsel %vm364, %v1722, %v1590
        %v1761 = vsel %vm364, %v1725, %v1592
        %v1763 = vsel %vm364, %v1728, %v1594
        %v1765 = vsel %vm364, %v1731, %v1596
        %v1767 = vsel %vm364, %v1734, %v1598
        %v1769 = vsel %vm364, %v1737, %v1600
        %v1771 = vsel %vm364, %v1740, %v1602
        %v1773 = vsel %vm364, %v1743, %v1604
        %v1775 = vsel %vm364, %v1746, %v1606
        %v1777 = vsel %vm364, %v1749, %v1608
        %v1794 = vunpack.c.l.b16 %v1681
        %v1795 = vunpack.c.l.b16 %v1751
        %v1796 = vunpack.c.l.b16 %v1683
        %v1797 = vunpack.c.l.b16 %v1753
        %v1798 = vunpack.c.l.b16 %v1685
        %v1799 = vunpack.c.l.b16 %v1755
        %v1800 = vunpack.c.l.b16 %v1687
        %v1801 = vunpack.c.l.b16 %v1757
        %v1802 = vunpack.c.l.b16 %v1689
        %v1803 = vunpack.c.l.b16 %v1759
        %v1804 = vunpack.c.l.b16 %v1691
        %v1805 = vunpack.c.l.b16 %v1761
        %v1806 = vunpack.c.l.b16 %v1693
        %v1807 = vunpack.c.l.b16 %v1763
        %v1808 = vunpack.c.l.b16 %v1695
        %v1809 = vunpack.c.l.b16 %v1765
        %v1810 = vld [vmem:[%s3] sm:$0xf]
        %v1811 = vld [vmem:[%s3 + $0x4] sm:$0xf]
        %v1812 = vld [vmem:[%s3 + $0x8] sm:$0xf]
        %v1813 = vld [vmem:[%s3 + $0xc] sm:$0xf]
        %v1814 = vld [vmem:[%s3 + $0x10] sm:$0xf]
        %v1815 = vld [vmem:[%s3 + $0x14] sm:$0xf]
        %v1816 = vld [vmem:[%s3 + $0x18] sm:$0xf]
        %v1817 = vld [vmem:[%s3 + $0x1c] sm:$0xf]
        %v1818 = vld [vmem:[%s3 + $0x20] sm:$0xf]
        %v1819 = vld [vmem:[%s3 + $0x24] sm:$0xf]
        %v1820 = vld [vmem:[%s3 + $0x28] sm:$0xf]
        %v1821 = vld [vmem:[%s3 + $0x2c] sm:$0xf]
        %v1822 = vld [vmem:[%s3 + $0x30] sm:$0xf]
        %v1823 = vld [vmem:[%s3 + $0x34] sm:$0xf]
        %v1824 = vld [vmem:[%s3 + $0x38] sm:$0xf]
        %v1825 = vld [vmem:[%s3 + $0x3c] sm:$0xf]
        %v1826 = vld [vmem:[%s3 + $0x40] sm:$0xf]
        %v1827 = vld [vmem:[%s3 + $0x44] sm:$0xf]
        %v1828 = vld [vmem:[%s3 + $0x48] sm:$0xf]
        %v1829 = vld [vmem:[%s3 + $0x4c] sm:$0xf]
        %v1830 = vld [vmem:[%s3 + $0x50] sm:$0xf]
        %v1831 = vld [vmem:[%s3 + $0x54] sm:$0xf]
        %v1832 = vld [vmem:[%s3 + $0x58] sm:$0xf]
        %v1833 = vld [vmem:[%s3 + $0x5c] sm:$0xf]
        %v1834 = vld [vmem:[%s3 + $0x60] sm:$0xf]
        %v1835 = vld [vmem:[%s3 + $0x64] sm:$0xf]
        %v1836 = vld [vmem:[%s3 + $0x68] sm:$0xf]
        %v1837 = vld [vmem:[%s3 + $0x6c] sm:$0xf]
        %v1840 = vunpack.c.l.b16 %v1697
        %v1841 = vunpack.c.l.b16 %v1767
        %s1842 = scalar_lea.vmem %s3, 112
        %v1843 = vld [vmem:[%s1842] sm:$0xf]
        %v1844 = vld [vmem:[%s1842 + $0x4] sm:$0xf]
        %v1845 = vld [vmem:[%s1842 + $0x8] sm:$0xf]
        %v1846 = vld [vmem:[%s1842 + $0xc] sm:$0xf]
        %v1847 = vld [vmem:[%s1842 + $0x10] sm:$0xf]
        %v1848 = vld [vmem:[%s1842 + $0x14] sm:$0xf]
        %v1849 = vld [vmem:[%s1842 + $0x18] sm:$0xf]
        %v1850 = vld [vmem:[%s1842 + $0x1c] sm:$0xf]
        %v1851 = vld [vmem:[%s1842 + $0x20] sm:$0xf]
        %v1852 = vld [vmem:[%s1842 + $0x24] sm:$0xf]
        %v1853 = vld [vmem:[%s1842 + $0x28] sm:$0xf]
        %v1854 = vld [vmem:[%s1842 + $0x2c] sm:$0xf]
        %v1855 = vld [vmem:[%s1842 + $0x30] sm:$0xf]
        %v1856 = vld [vmem:[%s1842 + $0x34] sm:$0xf]
        %v1857 = vld [vmem:[%s1842 + $0x38] sm:$0xf]
        %v1858 = vld [vmem:[%s1842 + $0x3c] sm:$0xf]
        %v1859 = vld [vmem:[%s1842 + $0x40] sm:$0xf]
        %v1860 = vld [vmem:[%s1842 + $0x44] sm:$0xf]
        %v1861 = vld [vmem:[%s1842 + $0x48] sm:$0xf]
        %v1862 = vld [vmem:[%s1842 + $0x4c] sm:$0xf]
        %v1863 = vld [vmem:[%s1842 + $0x50] sm:$0xf]
        %v1864 = vld [vmem:[%s1842 + $0x54] sm:$0xf]
        %v1865 = vld [vmem:[%s1842 + $0x58] sm:$0xf]
        %v1866 = vld [vmem:[%s1842 + $0x5c] sm:$0xf]
        %v1867 = vld [vmem:[%s1842 + $0x60] sm:$0xf]
        %v1868 = vld [vmem:[%s1842 + $0x64] sm:$0xf]
        %v1869 = vld [vmem:[%s1842 + $0x68] sm:$0xf]
        %v1870 = vld [vmem:[%s1842 + $0x6c] sm:$0xf]
        %v1871 = vpack.c.b16 %v1798, %v1796
        %v1872 = vpack.c.b16 %v1799, %v1797
        %v1873 = vpack.c.b16 %v1802, %v1800
        %v1874 = vpack.c.b16 %v1803, %v1801
        %v1875 = vpack.c.b16 %v1806, %v1804
        %v1876 = vpack.c.b16 %v1807, %v1805
        %v1877 = vpack.c.b16 %v1840, %v1808
        %v1878 = vpack.c.b16 %v1841, %v1809
        %v1911 = vunpack.c.l.b16 %v1843
        %v1912 = vunpack.c.l.b16 %v1844
        %v1913 = vunpack.c.l.b16 %v1845
        %v1914 = vunpack.c.l.b16 %v1846
        %v1915 = vunpack.c.l.b16 %v1847
        %v1916 = vunpack.c.l.b16 %v1848
        %v1917 = vunpack.c.l.b16 %v1849
        %v1918 = vunpack.c.l.b16 %v1850
        %v1919 = vunpack.c.l.b16 %v1851
        %v1920 = vunpack.c.l.b16 %v1852
        %v1921 = vunpack.c.l.b16 %v1853
        %v1922 = vunpack.c.l.b16 %v1854
        %v1923 = vunpack.c.l.b16 %v1855
        %v1924 = vunpack.c.l.b16 %v1856
        %v1925 = vunpack.c.l.b16 %v1857
        %v1926 = vunpack.c.l.b16 %v1858
        %v1927 = vunpack.c.l.b16 %v1859
        %v1928 = vunpack.c.l.b16 %v1860
        %v1929 = vunpack.c.l.b16 %v1861
        %v1930 = vunpack.c.l.b16 %v1862
        %v1931 = vunpack.c.l.b16 %v1863
        %v1932 = vunpack.c.l.b16 %v1864
        %v1933 = vunpack.c.l.b16 %v1865
        %v1934 = vunpack.c.l.b16 %v1866
        %v1935 = vunpack.c.l.b16 %v1867
        %v1936 = vunpack.c.l.b16 %v1868
        %v1937 = vunpack.c.l.b16 %v1869
        %v1938 = vunpack.c.l.b16 %v1870
        %v1939 = vpack.c.b16 %v1912, %v1911
        %v1940 = vpack.c.b16 %v1914, %v1913
        %v1941 = vpack.c.b16 %v1916, %v1915
        %v1942 = vpack.c.b16 %v1918, %v1917
        %v1943 = vpack.c.b16 %v1920, %v1919
        %v1944 = vpack.c.b16 %v1922, %v1921
        %v1945 = vpack.c.b16 %v1924, %v1923
        %v1946 = vpack.c.b16 %v1926, %v1925
        %v1947 = vpack.c.b16 %v1928, %v1927
        %v1948 = vpack.c.b16 %v1930, %v1929
        %v1949 = vpack.c.b16 %v1932, %v1931
        %v1950 = vpack.c.b16 %v1934, %v1933
        %v1951 = vpack.c.b16 %v1936, %v1935
        %v1952 = vpack.c.b16 %v1938, %v1937
        %v1968 = vsel %vm1679, %v1872, 0
        %v1971 = vsel %vm1679, %v1874, 0
        %v1974 = vsel %vm1679, %v1876, 0
        %v1977 = vsel %vm1679, %v1878, 0
        %1979 = vmatprep.subr.bf16.mxu0 0
        %1980 = vmatpush1.bf16.msra.mxu0 %v1939
        %1981 = vmatprep.subr.bf16.mxu0 0
        %1982 = vmatpush1.bf16.msra.mxu0 %v1940
        %1983 = vmatprep.subr.bf16.mxu0 0
        %1984 = vmatpush1.bf16.msra.mxu0 %v1941
        %1985 = vmatprep.subr.bf16.mxu0 0
        %1986 = vmatpush1.bf16.msra.mxu0 %v1942
        %1987 = vmatprep.subr.bf16.mxu0 0
        %1988 = vmatpush1.bf16.msra.mxu0 %v1943
        %1989 = vmatprep.subr.bf16.mxu0 0
        %1990 = vmatpush1.bf16.msra.mxu0 %v1944
        %1991 = vmatprep.subr.bf16.mxu0 0
        %1992 = vmatpush1.bf16.msra.mxu0 %v1945
        %1993 = vmatprep.subr.bf16.mxu0 0
        %1994 = vmatpush1.bf16.msra.mxu0 %v1946
        %1995 = vmatprep.subr.bf16.mxu0 0
        %1996 = vmatpush1.bf16.msra.mxu0 %v1947
        %1997 = vmatprep.subr.bf16.mxu0 0
        %1998 = vmatpush1.bf16.msra.mxu0 %v1948
        %1999 = vmatprep.subr.bf16.mxu0 0
        %2000 = vmatpush1.bf16.msra.mxu0 %v1949
        %2001 = vmatprep.subr.bf16.mxu0 0
        %2002 = vmatpush1.bf16.msra.mxu0 %v1950
        %2003 = vmatprep.subr.bf16.mxu0 0
        %2004 = vmatpush1.bf16.msra.mxu0 %v1951
        %2005 = vmatprep.subr.bf16.mxu0 0
        %2006 = vmatpush1.bf16.msra.mxu0 %v1952
        %2007 = vmatprep.subr.bf16.mxu0 0
        %2008 = vmatpush1.bf16.msra.mxu0 0
        %2009 = vmatprep.subr.bf16.mxu0 0
        %2010 = vmatpush1.bf16.msra.mxu0 0
        %2011 = vmatprep.mubr.bf16.mxu0 %v1968
        %2012 = vmatmul.mubr.bf16.gmra.mrb[0].mxu0 %v1871
        %v2013 = vpop.f32.mrb[0].mxu0
        %v2014 = vadd.f32 0.0, %v2013
        %v2015 = vpop.f32.mrb[0].mxu0
        %v2016 = vpop.f32.mrb[0].mxu0
        %v2017 = vadd.f32 0.0, %v2016
        %v2018 = vpop.f32.mrb[0].mxu0
        %2019 = vmatprep.mubr.bf16.mxu0 %v1971
        %2020 = vmatmul.mubr.bf16.gmra.mrb[0].mxu0 %v1873
        %v2021 = vpop.f32.mrb[0].mxu0
        %v2022 = vadd.f32 0.0, %v2021
        %v2023 = vpop.f32.mrb[0].mxu0
        %v2024 = vpop.f32.mrb[0].mxu0
        %v2025 = vadd.f32 0.0, %v2024
        %v2026 = vpop.f32.mrb[0].mxu0
        %2027 = vmatprep.mubr.bf16.mxu0 %v1974
        %2028 = vmatmul.mubr.bf16.gmra.mrb[0].mxu0 %v1875
        %v2029 = vpop.f32.mrb[0].mxu0
        %v2030 = vadd.f32 0.0, %v2029
        %v2031 = vpop.f32.mrb[0].mxu0
        %v2032 = vpop.f32.mrb[0].mxu0
        %v2033 = vadd.f32 0.0, %v2032
        %v2034 = vpop.f32.mrb[0].mxu0
        %2035 = vmatprep.mubr.bf16.mxu0 %v1977
        %2036 = vmatmul.mubr.bf16.gmra.mrb[0].mxu0 %v1877
        %v2037 = vpop.f32.mrb[0].mxu0
        %v2038 = vadd.f32 0.0, %v2037
        %v2039 = vpop.f32.mrb[0].mxu0
        %v2040 = vpop.f32.mrb[0].mxu0
        %v2041 = vadd.f32 0.0, %v2040
        %v2042 = vpop.f32.mrb[0].mxu0
        %2043 = vdwg.mxu0
        %v2044 = vpack.c.b16 %v1796, %v1794
        %v2045 = vpack.c.b16 %v1797, %v1795
        %v2046 = vpack.c.b16 %v1800, %v1798
        %v2047 = vpack.c.b16 %v1801, %v1799
        %v2048 = vpack.c.b16 %v1804, %v1802
        %v2049 = vpack.c.b16 %v1805, %v1803
        %v2050 = vpack.c.b16 %v1808, %v1806
        %v2051 = vpack.c.b16 %v1809, %v1807
        %v2084 = vunpack.c.l.b16 %v1810
        %v2085 = vunpack.c.l.b16 %v1811
        %v2086 = vunpack.c.l.b16 %v1812
        %v2087 = vunpack.c.l.b16 %v1813
        %v2088 = vunpack.c.l.b16 %v1814
        %v2089 = vunpack.c.l.b16 %v1815
        %v2090 = vunpack.c.l.b16 %v1816
        %v2091 = vunpack.c.l.b16 %v1817
        %v2092 = vunpack.c.l.b16 %v1818
        %v2093 = vunpack.c.l.b16 %v1819
        %v2094 = vunpack.c.l.b16 %v1820
        %v2095 = vunpack.c.l.b16 %v1821
        %v2096 = vunpack.c.l.b16 %v1822
        %v2097 = vunpack.c.l.b16 %v1823
        %v2098 = vunpack.c.l.b16 %v1824
        %v2099 = vunpack.c.l.b16 %v1825
        %v2100 = vunpack.c.l.b16 %v1826
        %v2101 = vunpack.c.l.b16 %v1827
        %v2102 = vunpack.c.l.b16 %v1828
        %v2103 = vunpack.c.l.b16 %v1829
        %v2104 = vunpack.c.l.b16 %v1830
        %v2105 = vunpack.c.l.b16 %v1831
        %v2106 = vunpack.c.l.b16 %v1832
        %v2107 = vunpack.c.l.b16 %v1833
        %v2108 = vunpack.c.l.b16 %v1834
        %v2109 = vunpack.c.l.b16 %v1835
        %v2110 = vunpack.c.l.b16 %v1836
        %v2111 = vunpack.c.l.b16 %v1837
        %v2112 = vpack.c.b16 %v2085, %v2084
        %v2113 = vpack.c.b16 %v2087, %v2086
        %v2114 = vpack.c.b16 %v2089, %v2088
        %v2115 = vpack.c.b16 %v2091, %v2090
        %v2116 = vpack.c.b16 %v2093, %v2092
        %v2117 = vpack.c.b16 %v2095, %v2094
        %v2118 = vpack.c.b16 %v2097, %v2096
        %v2119 = vpack.c.b16 %v2099, %v2098
        %v2120 = vpack.c.b16 %v2101, %v2100
        %v2121 = vpack.c.b16 %v2103, %v2102
        %v2122 = vpack.c.b16 %v2105, %v2104
        %v2123 = vpack.c.b16 %v2107, %v2106
        %v2124 = vpack.c.b16 %v2109, %v2108
        %v2125 = vpack.c.b16 %v2111, %v2110
        %v2141 = vsel %vm1679, %v2045, 0
        %v2144 = vsel %vm1679, %v2047, 0
        %v2147 = vsel %vm1679, %v2049, 0
        %v2150 = vsel %vm1679, %v2051, 0
        %2152 = vmatprep.subr.bf16.mxu0 0
        %2153 = vmatpush1.bf16.msra.mxu0 %v2112
        %2154 = vmatprep.subr.bf16.mxu0 0
        %2155 = vmatpush1.bf16.msra.mxu0 %v2113
        %2156 = vmatprep.subr.bf16.mxu0 0
        %2157 = vmatpush1.bf16.msra.mxu0 %v2114
        %2158 = vmatprep.subr.bf16.mxu0 0
        %2159 = vmatpush1.bf16.msra.mxu0 %v2115
        %2160 = vmatprep.subr.bf16.mxu0 0
        %2161 = vmatpush1.bf16.msra.mxu0 %v2116
        %2162 = vmatprep.subr.bf16.mxu0 0
        %2163 = vmatpush1.bf16.msra.mxu0 %v2117
        %2164 = vmatprep.subr.bf16.mxu0 0
        %2165 = vmatpush1.bf16.msra.mxu0 %v2118
        %2166 = vmatprep.subr.bf16.mxu0 0
        %2167 = vmatpush1.bf16.msra.mxu0 %v2119
        %2168 = vmatprep.subr.bf16.mxu0 0
        %2169 = vmatpush1.bf16.msra.mxu0 %v2120
        %2170 = vmatprep.subr.bf16.mxu0 0
        %2171 = vmatpush1.bf16.msra.mxu0 %v2121
        %2172 = vmatprep.subr.bf16.mxu0 0
        %2173 = vmatpush1.bf16.msra.mxu0 %v2122
        %2174 = vmatprep.subr.bf16.mxu0 0
        %2175 = vmatpush1.bf16.msra.mxu0 %v2123
        %2176 = vmatprep.subr.bf16.mxu0 0
        %2177 = vmatpush1.bf16.msra.mxu0 %v2124
        %2178 = vmatprep.subr.bf16.mxu0 0
        %2179 = vmatpush1.bf16.msra.mxu0 %v2125
        %2180 = vmatprep.subr.bf16.mxu0 0
        %2181 = vmatpush1.bf16.msra.mxu0 0
        %2182 = vmatprep.subr.bf16.mxu0 0
        %2183 = vmatpush1.bf16.msra.mxu0 0
        %2184 = vmatprep.mubr.bf16.mxu0 %v2141
        %2185 = vmatmul.mubr.bf16.gmra.mrb[0].mxu0 %v2044
        %v2186 = vpop.f32.mrb[0].mxu0
        %v2187 = vadd.f32 %v2014, %v2186
        %v2188 = vpop.f32.mrb[0].mxu0
        %v2189 = vpop.f32.mrb[0].mxu0
        %v2190 = vadd.f32 %v2017, %v2189
        %v2191 = vpop.f32.mrb[0].mxu0
        %2192 = vmatprep.mubr.bf16.mxu0 %v2144
        %2193 = vmatmul.mubr.bf16.gmra.mrb[0].mxu0 %v2046
        %v2194 = vpop.f32.mrb[0].mxu0
        %v2195 = vadd.f32 %v2022, %v2194
        %v2196 = vpop.f32.mrb[0].mxu0
        %v2197 = vpop.f32.mrb[0].mxu0
        %v2198 = vadd.f32 %v2025, %v2197
        %v2199 = vpop.f32.mrb[0].mxu0
        %2200 = vmatprep.mubr.bf16.mxu0 %v2147
        %2201 = vmatmul.mubr.bf16.gmra.mrb[0].mxu0 %v2048
        %v2202 = vpop.f32.mrb[0].mxu0
        %v2203 = vadd.f32 %v2030, %v2202
        %v2204 = vpop.f32.mrb[0].mxu0
        %v2205 = vpop.f32.mrb[0].mxu0
        %v2206 = vadd.f32 %v2033, %v2205
        %v2207 = vpop.f32.mrb[0].mxu0
        %2208 = vmatprep.mubr.bf16.mxu0 %v2150
        %2209 = vmatmul.mubr.bf16.gmra.mrb[0].mxu0 %v2050
        %v2210 = vpop.f32.mrb[0].mxu0
        %v2211 = vadd.f32 %v2038, %v2210
        %v2212 = vpop.f32.mrb[0].mxu0
        %v2213 = vpop.f32.mrb[0].mxu0
        %v2214 = vadd.f32 %v2041, %v2213
        %v2215 = vpop.f32.mrb[0].mxu0
        %2216 = vdwg.mxu0
        %v2219 = vunpack.c.l.b16 %v1699
        %v2220 = vunpack.c.l.b16 %v1769
        %s2221 = scalar_lea.vmem %s3, 224
        %v2222 = vld [vmem:[%s2221] sm:$0xf]
        %v2223 = vld [vmem:[%s2221 + $0x4] sm:$0xf]
        %v2224 = vld [vmem:[%s2221 + $0x8] sm:$0xf]
        %v2225 = vld [vmem:[%s2221 + $0xc] sm:$0xf]
        %v2226 = vld [vmem:[%s2221 + $0x10] sm:$0xf]
        %v2227 = vld [vmem:[%s2221 + $0x14] sm:$0xf]
        %v2228 = vld [vmem:[%s2221 + $0x18] sm:$0xf]
        %v2229 = vld [vmem:[%s2221 + $0x1c] sm:$0xf]
        %v2230 = vld [vmem:[%s2221 + $0x20] sm:$0xf]
        %v2231 = vld [vmem:[%s2221 + $0x24] sm:$0xf]
        %v2232 = vld [vmem:[%s2221 + $0x28] sm:$0xf]
        %v2233 = vld [vmem:[%s2221 + $0x2c] sm:$0xf]
        %v2234 = vld [vmem:[%s2221 + $0x30] sm:$0xf]
        %v2235 = vld [vmem:[%s2221 + $0x34] sm:$0xf]
        %v2236 = vld [vmem:[%s2221 + $0x38] sm:$0xf]
        %v2237 = vld [vmem:[%s2221 + $0x3c] sm:$0xf]
        %v2238 = vld [vmem:[%s2221 + $0x40] sm:$0xf]
        %v2239 = vld [vmem:[%s2221 + $0x44] sm:$0xf]
        %v2240 = vld [vmem:[%s2221 + $0x48] sm:$0xf]
        %v2241 = vld [vmem:[%s2221 + $0x4c] sm:$0xf]
        %v2242 = vld [vmem:[%s2221 + $0x50] sm:$0xf]
        %v2243 = vld [vmem:[%s2221 + $0x54] sm:$0xf]
        %v2244 = vld [vmem:[%s2221 + $0x58] sm:$0xf]
        %v2245 = vld [vmem:[%s2221 + $0x5c] sm:$0xf]
        %v2246 = vld [vmem:[%s2221 + $0x60] sm:$0xf]
        %v2247 = vld [vmem:[%s2221 + $0x64] sm:$0xf]
        %v2248 = vld [vmem:[%s2221 + $0x68] sm:$0xf]
        %v2249 = vld [vmem:[%s2221 + $0x6c] sm:$0xf]
        %v2250 = vpack.c.b16 %v2219, %v1840
        %v2251 = vpack.c.b16 %v2220, %v1841
        %v2281 = vunpack.c.l.b16 %v2222
        %v2282 = vunpack.c.l.b16 %v2223
        %v2283 = vunpack.c.l.b16 %v2224
        %v2284 = vunpack.c.l.b16 %v2225
        %v2285 = vunpack.c.l.b16 %v2226
        %v2286 = vunpack.c.l.b16 %v2227
        %v2287 = vunpack.c.l.b16 %v2228
        %v2288 = vunpack.c.l.b16 %v2229
        %v2289 = vunpack.c.l.b16 %v2230
        %v2290 = vunpack.c.l.b16 %v2231
        %v2291 = vunpack.c.l.b16 %v2232
        %v2292 = vunpack.c.l.b16 %v2233
        %v2293 = vunpack.c.l.b16 %v2234
        %v2294 = vunpack.c.l.b16 %v2235
        %v2295 = vunpack.c.l.b16 %v2236
        %v2296 = vunpack.c.l.b16 %v2237
        %v2297 = vunpack.c.l.b16 %v2238
        %v2298 = vunpack.c.l.b16 %v2239
        %v2299 = vunpack.c.l.b16 %v2240
        %v2300 = vunpack.c.l.b16 %v2241
        %v2301 = vunpack.c.l.b16 %v2242
        %v2302 = vunpack.c.l.b16 %v2243
        %v2303 = vunpack.c.l.b16 %v2244
        %v2304 = vunpack.c.l.b16 %v2245
        %v2305 = vunpack.c.l.b16 %v2246
        %v2306 = vunpack.c.l.b16 %v2247
        %v2307 = vunpack.c.l.b16 %v2248
        %v2308 = vunpack.c.l.b16 %v2249
        %v2309 = vpack.c.b16 %v2282, %v2281
        %v2310 = vpack.c.b16 %v2284, %v2283
        %v2311 = vpack.c.b16 %v2286, %v2285
        %v2312 = vpack.c.b16 %v2288, %v2287
        %v2313 = vpack.c.b16 %v2290, %v2289
        %v2314 = vpack.c.b16 %v2292, %v2291
        %v2315 = vpack.c.b16 %v2294, %v2293
        %v2316 = vpack.c.b16 %v2296, %v2295
        %v2317 = vpack.c.b16 %v2298, %v2297
        %v2318 = vpack.c.b16 %v2300, %v2299
        %v2319 = vpack.c.b16 %v2302, %v2301
        %v2320 = vpack.c.b16 %v2304, %v2303
        %v2321 = vpack.c.b16 %v2306, %v2305
        %v2322 = vpack.c.b16 %v2308, %v2307
        %v2338 = vsel %vm1679, %v2251, 0
        %2340 = vmatprep.subr.bf16.mxu0 0
        %2341 = vmatpush1.bf16.msra.mxu0 %v2309
        %2342 = vmatprep.subr.bf16.mxu0 0
        %2343 = vmatpush1.bf16.msra.mxu0 %v2310
        %2344 = vmatprep.subr.bf16.mxu0 0
        %2345 = vmatpush1.bf16.msra.mxu0 %v2311
        %2346 = vmatprep.subr.bf16.mxu0 0
        %2347 = vmatpush1.bf16.msra.mxu0 %v2312
        %2348 = vmatprep.subr.bf16.mxu0 0
        %2349 = vmatpush1.bf16.msra.mxu0 %v2313
        %2350 = vmatprep.subr.bf16.mxu0 0
        %2351 = vmatpush1.bf16.msra.mxu0 %v2314
        %2352 = vmatprep.subr.bf16.mxu0 0
        %2353 = vmatpush1.bf16.msra.mxu0 %v2315
        %2354 = vmatprep.subr.bf16.mxu0 0
        %2355 = vmatpush1.bf16.msra.mxu0 %v2316
        %2356 = vmatprep.subr.bf16.mxu0 0
        %2357 = vmatpush1.bf16.msra.mxu0 %v2317
        %2358 = vmatprep.subr.bf16.mxu0 0
        %2359 = vmatpush1.bf16.msra.mxu0 %v2318
        %2360 = vmatprep.subr.bf16.mxu0 0
        %2361 = vmatpush1.bf16.msra.mxu0 %v2319
        %2362 = vmatprep.subr.bf16.mxu0 0
        %2363 = vmatpush1.bf16.msra.mxu0 %v2320
        %2364 = vmatprep.subr.bf16.mxu0 0
        %2365 = vmatpush1.bf16.msra.mxu0 %v2321
        %2366 = vmatprep.subr.bf16.mxu0 0
        %2367 = vmatpush1.bf16.msra.mxu0 %v2322
        %2368 = vmatprep.subr.bf16.mxu0 0
        %2369 = vmatpush1.bf16.msra.mxu0 0
        %2370 = vmatprep.subr.bf16.mxu0 0
        %2371 = vmatpush1.bf16.msra.mxu0 0
        %2372 = vmatprep.mubr.bf16.mxu0 %v2144
        %2373 = vmatmul.mubr.bf16.gmra.mrb[0].mxu0 %v2046
        %v2374 = vpop.f32.mrb[0].mxu0
        %v2375 = vadd.f32 0.0, %v2374
        %v2376 = vpop.f32.mrb[0].mxu0
        %v2377 = vpop.f32.mrb[0].mxu0
        %v2378 = vadd.f32 0.0, %v2377
        %v2379 = vpop.f32.mrb[0].mxu0
        %2380 = vmatprep.mubr.bf16.mxu0 %v2147
        %2381 = vmatmul.mubr.bf16.gmra.mrb[0].mxu0 %v2048
        %v2382 = vpop.f32.mrb[0].mxu0
        %v2383 = vadd.f32 0.0, %v2382
        %v2384 = vpop.f32.mrb[0].mxu0
        %v2385 = vpop.f32.mrb[0].mxu0
        %v2386 = vadd.f32 0.0, %v2385
        %v2387 = vpop.f32.mrb[0].mxu0
        %2388 = vmatprep.mubr.bf16.mxu0 %v2150
        %2389 = vmatmul.mubr.bf16.gmra.mrb[0].mxu0 %v2050
        %v2390 = vpop.f32.mrb[0].mxu0
        %v2391 = vadd.f32 0.0, %v2390
        %v2392 = vpop.f32.mrb[0].mxu0
        %v2393 = vpop.f32.mrb[0].mxu0
        %v2394 = vadd.f32 0.0, %v2393
        %v2395 = vpop.f32.mrb[0].mxu0
        %2396 = vmatprep.mubr.bf16.mxu0 %v2338
        %2397 = vmatmul.mubr.bf16.gmra.mrb[0].mxu0 %v2250
        %v2398 = vpop.f32.mrb[0].mxu0
        %v2399 = vadd.f32 0.0, %v2398
        %v2400 = vpop.f32.mrb[0].mxu0
        %v2401 = vpop.f32.mrb[0].mxu0
        %v2402 = vadd.f32 0.0, %v2401
        %v2403 = vpop.f32.mrb[0].mxu0
        %2404 = vdwg.mxu0
        %v2405 = vadd.f32 %v2187, %v2375
        %v2406 = vadd.f32 %v2190, %v2378
        %v2407 = vadd.f32 %v2195, %v2383
        %v2408 = vadd.f32 %v2198, %v2386
        %v2409 = vadd.f32 %v2203, %v2391
        %v2410 = vadd.f32 %v2206, %v2394
        %v2411 = vadd.f32 %v2211, %v2399
        %v2412 = vadd.f32 %v2214, %v2402
        %v2415 = vunpack.c.l.b16 %v1701
        %v2416 = vunpack.c.l.b16 %v1771
        %s2417 = scalar_lea.vmem %s3, 336
        %v2418 = vld [vmem:[%s2417] sm:$0xf]
        %v2419 = vld [vmem:[%s2417 + $0x4] sm:$0xf]
        %v2420 = vld [vmem:[%s2417 + $0x8] sm:$0xf]
        %v2421 = vld [vmem:[%s2417 + $0xc] sm:$0xf]
        %v2422 = vld [vmem:[%s2417 + $0x10] sm:$0xf]
        %v2423 = vld [vmem:[%s2417 + $0x14] sm:$0xf]
        %v2424 = vld [vmem:[%s2417 + $0x18] sm:$0xf]
        %v2425 = vld [vmem:[%s2417 + $0x1c] sm:$0xf]
        %v2426 = vld [vmem:[%s2417 + $0x20] sm:$0xf]
        %v2427 = vld [vmem:[%s2417 + $0x24] sm:$0xf]
        %v2428 = vld [vmem:[%s2417 + $0x28] sm:$0xf]
        %v2429 = vld [vmem:[%s2417 + $0x2c] sm:$0xf]
        %v2430 = vld [vmem:[%s2417 + $0x30] sm:$0xf]
        %v2431 = vld [vmem:[%s2417 + $0x34] sm:$0xf]
        %v2432 = vld [vmem:[%s2417 + $0x38] sm:$0xf]
        %v2433 = vld [vmem:[%s2417 + $0x3c] sm:$0xf]
        %v2434 = vld [vmem:[%s2417 + $0x40] sm:$0xf]
        %v2435 = vld [vmem:[%s2417 + $0x44] sm:$0xf]
        %v2436 = vld [vmem:[%s2417 + $0x48] sm:$0xf]
        %v2437 = vld [vmem:[%s2417 + $0x4c] sm:$0xf]
        %v2438 = vld [vmem:[%s2417 + $0x50] sm:$0xf]
        %v2439 = vld [vmem:[%s2417 + $0x54] sm:$0xf]
        %v2440 = vld [vmem:[%s2417 + $0x58] sm:$0xf]
        %v2441 = vld [vmem:[%s2417 + $0x5c] sm:$0xf]
        %v2442 = vld [vmem:[%s2417 + $0x60] sm:$0xf]
        %v2443 = vld [vmem:[%s2417 + $0x64] sm:$0xf]
        %v2444 = vld [vmem:[%s2417 + $0x68] sm:$0xf]
        %v2445 = vld [vmem:[%s2417 + $0x6c] sm:$0xf]
        %v2446 = vpack.c.b16 %v2415, %v2219
        %v2447 = vpack.c.b16 %v2416, %v2220
        %v2477 = vunpack.c.l.b16 %v2418
        %v2478 = vunpack.c.l.b16 %v2419
        %v2479 = vunpack.c.l.b16 %v2420
        %v2480 = vunpack.c.l.b16 %v2421
        %v2481 = vunpack.c.l.b16 %v2422
        %v2482 = vunpack.c.l.b16 %v2423
        %v2483 = vunpack.c.l.b16 %v2424
        %v2484 = vunpack.c.l.b16 %v2425
        %v2485 = vunpack.c.l.b16 %v2426
        %v2486 = vunpack.c.l.b16 %v2427
        %v2487 = vunpack.c.l.b16 %v2428
        %v2488 = vunpack.c.l.b16 %v2429
        %v2489 = vunpack.c.l.b16 %v2430
        %v2490 = vunpack.c.l.b16 %v2431
        %v2491 = vunpack.c.l.b16 %v2432
        %v2492 = vunpack.c.l.b16 %v2433
        %v2493 = vunpack.c.l.b16 %v2434
        %v2494 = vunpack.c.l.b16 %v2435
        %v2495 = vunpack.c.l.b16 %v2436
        %v2496 = vunpack.c.l.b16 %v2437
        %v2497 = vunpack.c.l.b16 %v2438
        %v2498 = vunpack.c.l.b16 %v2439
        %v2499 = vunpack.c.l.b16 %v2440
        %v2500 = vunpack.c.l.b16 %v2441
        %v2501 = vunpack.c.l.b16 %v2442
        %v2502 = vunpack.c.l.b16 %v2443
        %v2503 = vunpack.c.l.b16 %v2444
        %v2504 = vunpack.c.l.b16 %v2445
        %v2505 = vpack.c.b16 %v2478, %v2477
        %v2506 = vpack.c.b16 %v2480, %v2479
        %v2507 = vpack.c.b16 %v2482, %v2481
        %v2508 = vpack.c.b16 %v2484, %v2483
        %v2509 = vpack.c.b16 %v2486, %v2485
        %v2510 = vpack.c.b16 %v2488, %v2487
        %v2511 = vpack.c.b16 %v2490, %v2489
        %v2512 = vpack.c.b16 %v2492, %v2491
        %v2513 = vpack.c.b16 %v2494, %v2493
        %v2514 = vpack.c.b16 %v2496, %v2495
        %v2515 = vpack.c.b16 %v2498, %v2497
        %v2516 = vpack.c.b16 %v2500, %v2499
        %v2517 = vpack.c.b16 %v2502, %v2501
        %v2518 = vpack.c.b16 %v2504, %v2503
        %v2534 = vsel %vm1679, %v2447, 0
        %2536 = vmatprep.subr.bf16.mxu0 0
        %2537 = vmatpush1.bf16.msra.mxu0 %v2505
        %2538 = vmatprep.subr.bf16.mxu0 0
        %2539 = vmatpush1.bf16.msra.mxu0 %v2506
        %2540 = vmatprep.subr.bf16.mxu0 0
        %2541 = vmatpush1.bf16.msra.mxu0 %v2507
        %2542 = vmatprep.subr.bf16.mxu0 0
        %2543 = vmatpush1.bf16.msra.mxu0 %v2508
        %2544 = vmatprep.subr.bf16.mxu0 0
        %2545 = vmatpush1.bf16.msra.mxu0 %v2509
        %2546 = vmatprep.subr.bf16.mxu0 0
        %2547 = vmatpush1.bf16.msra.mxu0 %v2510
        %2548 = vmatprep.subr.bf16.mxu0 0
        %2549 = vmatpush1.bf16.msra.mxu0 %v2511
        %2550 = vmatprep.subr.bf16.mxu0 0
        %2551 = vmatpush1.bf16.msra.mxu0 %v2512
        %2552 = vmatprep.subr.bf16.mxu0 0
        %2553 = vmatpush1.bf16.msra.mxu0 %v2513
        %2554 = vmatprep.subr.bf16.mxu0 0
        %2555 = vmatpush1.bf16.msra.mxu0 %v2514
        %2556 = vmatprep.subr.bf16.mxu0 0
        %2557 = vmatpush1.bf16.msra.mxu0 %v2515
        %2558 = vmatprep.subr.bf16.mxu0 0
        %2559 = vmatpush1.bf16.msra.mxu0 %v2516
        %2560 = vmatprep.subr.bf16.mxu0 0
        %2561 = vmatpush1.bf16.msra.mxu0 %v2517
        %2562 = vmatprep.subr.bf16.mxu0 0
        %2563 = vmatpush1.bf16.msra.mxu0 %v2518
        %2564 = vmatprep.subr.bf16.mxu0 0
        %2565 = vmatpush1.bf16.msra.mxu0 0
        %2566 = vmatprep.subr.bf16.mxu0 0
        %2567 = vmatpush1.bf16.msra.mxu0 0
        %2568 = vmatprep.mubr.bf16.mxu0 %v1971
        %2569 = vmatmul.mubr.bf16.gmra.mrb[0].mxu0 %v1873
        %v2570 = vpop.f32.mrb[0].mxu0
        %v2571 = vadd.f32 0.0, %v2570
        %v2572 = vpop.f32.mrb[0].mxu0
        %v2573 = vpop.f32.mrb[0].mxu0
        %v2574 = vadd.f32 0.0, %v2573
        %v2575 = vpop.f32.mrb[0].mxu0
        %2576 = vmatprep.mubr.bf16.mxu0 %v1974
        %2577 = vmatmul.mubr.bf16.gmra.mrb[0].mxu0 %v1875
        %v2578 = vpop.f32.mrb[0].mxu0
        %v2579 = vadd.f32 0.0, %v2578
        %v2580 = vpop.f32.mrb[0].mxu0
        %v2581 = vpop.f32.mrb[0].mxu0
        %v2582 = vadd.f32 0.0, %v2581
        %v2583 = vpop.f32.mrb[0].mxu0
        %2584 = vmatprep.mubr.bf16.mxu0 %v1977
        %2585 = vmatmul.mubr.bf16.gmra.mrb[0].mxu0 %v1877
        %v2586 = vpop.f32.mrb[0].mxu0
        %v2587 = vadd.f32 0.0, %v2586
        %v2588 = vpop.f32.mrb[0].mxu0
        %v2589 = vpop.f32.mrb[0].mxu0
        %v2590 = vadd.f32 0.0, %v2589
        %v2591 = vpop.f32.mrb[0].mxu0
        %2592 = vmatprep.mubr.bf16.mxu0 %v2534
        %2593 = vmatmul.mubr.bf16.gmra.mrb[0].mxu0 %v2446
        %v2594 = vpop.f32.mrb[0].mxu0
        %v2595 = vadd.f32 0.0, %v2594
        %v2596 = vpop.f32.mrb[0].mxu0
        %v2597 = vpop.f32.mrb[0].mxu0
        %v2598 = vadd.f32 0.0, %v2597
        %v2599 = vpop.f32.mrb[0].mxu0
        %2600 = vdwg.mxu0
        %v2601 = vadd.f32 %v2405, %v2571
        %v2602 = vadd.f32 %v2406, %v2574
        %v2603 = vadd.f32 %v2407, %v2579
        %v2604 = vadd.f32 %v2408, %v2582
        %v2605 = vadd.f32 %v2409, %v2587
        %v2606 = vadd.f32 %v2410, %v2590
        %v2607 = vadd.f32 %v2411, %v2595
        %v2608 = vadd.f32 %v2412, %v2598
        %v2611 = vunpack.c.l.b16 %v1703
        %v2612 = vunpack.c.l.b16 %v1773
        %s2613 = scalar_lea.vmem %s3, 448
        %v2614 = vld [vmem:[%s2613] sm:$0xf]
        %v2615 = vld [vmem:[%s2613 + $0x4] sm:$0xf]
        %v2616 = vld [vmem:[%s2613 + $0x8] sm:$0xf]
        %v2617 = vld [vmem:[%s2613 + $0xc] sm:$0xf]
        %v2618 = vld [vmem:[%s2613 + $0x10] sm:$0xf]
        %v2619 = vld [vmem:[%s2613 + $0x14] sm:$0xf]
        %v2620 = vld [vmem:[%s2613 + $0x18] sm:$0xf]
        %v2621 = vld [vmem:[%s2613 + $0x1c] sm:$0xf]
        %v2622 = vld [vmem:[%s2613 + $0x20] sm:$0xf]
        %v2623 = vld [vmem:[%s2613 + $0x24] sm:$0xf]
        %v2624 = vld [vmem:[%s2613 + $0x28] sm:$0xf]
        %v2625 = vld [vmem:[%s2613 + $0x2c] sm:$0xf]
        %v2626 = vld [vmem:[%s2613 + $0x30] sm:$0xf]
        %v2627 = vld [vmem:[%s2613 + $0x34] sm:$0xf]
        %v2628 = vld [vmem:[%s2613 + $0x38] sm:$0xf]
        %v2629 = vld [vmem:[%s2613 + $0x3c] sm:$0xf]
        %v2630 = vld [vmem:[%s2613 + $0x40] sm:$0xf]
        %v2631 = vld [vmem:[%s2613 + $0x44] sm:$0xf]
        %v2632 = vld [vmem:[%s2613 + $0x48] sm:$0xf]
        %v2633 = vld [vmem:[%s2613 + $0x4c] sm:$0xf]
        %v2634 = vld [vmem:[%s2613 + $0x50] sm:$0xf]
        %v2635 = vld [vmem:[%s2613 + $0x54] sm:$0xf]
        %v2636 = vld [vmem:[%s2613 + $0x58] sm:$0xf]
        %v2637 = vld [vmem:[%s2613 + $0x5c] sm:$0xf]
        %v2638 = vld [vmem:[%s2613 + $0x60] sm:$0xf]
        %v2639 = vld [vmem:[%s2613 + $0x64] sm:$0xf]
        %v2640 = vld [vmem:[%s2613 + $0x68] sm:$0xf]
        %v2641 = vld [vmem:[%s2613 + $0x6c] sm:$0xf]
        %v2642 = vpack.c.b16 %v2611, %v2415
        %v2643 = vpack.c.b16 %v2612, %v2416
        %v2673 = vunpack.c.l.b16 %v2614
        %v2674 = vunpack.c.l.b16 %v2615
        %v2675 = vunpack.c.l.b16 %v2616
        %v2676 = vunpack.c.l.b16 %v2617
        %v2677 = vunpack.c.l.b16 %v2618
        %v2678 = vunpack.c.l.b16 %v2619
        %v2679 = vunpack.c.l.b16 %v2620
        %v2680 = vunpack.c.l.b16 %v2621
        %v2681 = vunpack.c.l.b16 %v2622
        %v2682 = vunpack.c.l.b16 %v2623
        %v2683 = vunpack.c.l.b16 %v2624
        %v2684 = vunpack.c.l.b16 %v2625
        %v2685 = vunpack.c.l.b16 %v2626
        %v2686 = vunpack.c.l.b16 %v2627
        %v2687 = vunpack.c.l.b16 %v2628
        %v2688 = vunpack.c.l.b16 %v2629
        %v2689 = vunpack.c.l.b16 %v2630
        %v2690 = vunpack.c.l.b16 %v2631
        %v2691 = vunpack.c.l.b16 %v2632
        %v2692 = vunpack.c.l.b16 %v2633
        %v2693 = vunpack.c.l.b16 %v2634
        %v2694 = vunpack.c.l.b16 %v2635
        %v2695 = vunpack.c.l.b16 %v2636
        %v2696 = vunpack.c.l.b16 %v2637
        %v2697 = vunpack.c.l.b16 %v2638
        %v2698 = vunpack.c.l.b16 %v2639
        %v2699 = vunpack.c.l.b16 %v2640
        %v2700 = vunpack.c.l.b16 %v2641
        %v2701 = vpack.c.b16 %v2674, %v2673
        %v2702 = vpack.c.b16 %v2676, %v2675
        %v2703 = vpack.c.b16 %v2678, %v2677
        %v2704 = vpack.c.b16 %v2680, %v2679
        %v2705 = vpack.c.b16 %v2682, %v2681
        %v2706 = vpack.c.b16 %v2684, %v2683
        %v2707 = vpack.c.b16 %v2686, %v2685
        %v2708 = vpack.c.b16 %v2688, %v2687
        %v2709 = vpack.c.b16 %v2690, %v2689
        %v2710 = vpack.c.b16 %v2692, %v2691
        %v2711 = vpack.c.b16 %v2694, %v2693
        %v2712 = vpack.c.b16 %v2696, %v2695
        %v2713 = vpack.c.b16 %v2698, %v2697
        %v2714 = vpack.c.b16 %v2700, %v2699
        %v2730 = vsel %vm1679, %v2643, 0
        %2732 = vmatprep.subr.bf16.mxu0 0
        %2733 = vmatpush1.bf16.msra.mxu0 %v2701
        %2734 = vmatprep.subr.bf16.mxu0 0
        %2735 = vmatpush1.bf16.msra.mxu0 %v2702
        %2736 = vmatprep.subr.bf16.mxu0 0
        %2737 = vmatpush1.bf16.msra.mxu0 %v2703
        %2738 = vmatprep.subr.bf16.mxu0 0
        %2739 = vmatpush1.bf16.msra.mxu0 %v2704
        %2740 = vmatprep.subr.bf16.mxu0 0
        %2741 = vmatpush1.bf16.msra.mxu0 %v2705
        %2742 = vmatprep.subr.bf16.mxu0 0
        %2743 = vmatpush1.bf16.msra.mxu0 %v2706
        %2744 = vmatprep.subr.bf16.mxu0 0
        %2745 = vmatpush1.bf16.msra.mxu0 %v2707
        %2746 = vmatprep.subr.bf16.mxu0 0
        %2747 = vmatpush1.bf16.msra.mxu0 %v2708
        %2748 = vmatprep.subr.bf16.mxu0 0
        %2749 = vmatpush1.bf16.msra.mxu0 %v2709
        %2750 = vmatprep.subr.bf16.mxu0 0
        %2751 = vmatpush1.bf16.msra.mxu0 %v2710
        %2752 = vmatprep.subr.bf16.mxu0 0
        %2753 = vmatpush1.bf16.msra.mxu0 %v2711
        %2754 = vmatprep.subr.bf16.mxu0 0
        %2755 = vmatpush1.bf16.msra.mxu0 %v2712
        %2756 = vmatprep.subr.bf16.mxu0 0
        %2757 = vmatpush1.bf16.msra.mxu0 %v2713
        %2758 = vmatprep.subr.bf16.mxu0 0
        %2759 = vmatpush1.bf16.msra.mxu0 %v2714
        %2760 = vmatprep.subr.bf16.mxu0 0
        %2761 = vmatpush1.bf16.msra.mxu0 0
        %2762 = vmatprep.subr.bf16.mxu0 0
        %2763 = vmatpush1.bf16.msra.mxu0 0
        %2764 = vmatprep.mubr.bf16.mxu0 %v2147
        %2765 = vmatmul.mubr.bf16.gmra.mrb[0].mxu0 %v2048
        %v2766 = vpop.f32.mrb[0].mxu0
        %v2767 = vadd.f32 0.0, %v2766
        %v2768 = vpop.f32.mrb[0].mxu0
        %v2769 = vpop.f32.mrb[0].mxu0
        %v2770 = vadd.f32 0.0, %v2769
        %v2771 = vpop.f32.mrb[0].mxu0
        %2772 = vmatprep.mubr.bf16.mxu0 %v2150
        %2773 = vmatmul.mubr.bf16.gmra.mrb[0].mxu0 %v2050
        %v2774 = vpop.f32.mrb[0].mxu0
        %v2775 = vadd.f32 0.0, %v2774
        %v2776 = vpop.f32.mrb[0].mxu0
        %v2777 = vpop.f32.mrb[0].mxu0
        %v2778 = vadd.f32 0.0, %v2777
        %v2779 = vpop.f32.mrb[0].mxu0
        %2780 = vmatprep.mubr.bf16.mxu0 %v2338
        %2781 = vmatmul.mubr.bf16.gmra.mrb[0].mxu0 %v2250
        %v2782 = vpop.f32.mrb[0].mxu0
        %v2783 = vadd.f32 0.0, %v2782
        %v2784 = vpop.f32.mrb[0].mxu0
        %v2785 = vpop.f32.mrb[0].mxu0
        %v2786 = vadd.f32 0.0, %v2785
        %v2787 = vpop.f32.mrb[0].mxu0
        %2788 = vmatprep.mubr.bf16.mxu0 %v2730
        %2789 = vmatmul.mubr.bf16.gmra.mrb[0].mxu0 %v2642
        %v2790 = vpop.f32.mrb[0].mxu0
        %v2791 = vadd.f32 0.0, %v2790
        %v2792 = vpop.f32.mrb[0].mxu0
        %v2793 = vpop.f32.mrb[0].mxu0
        %v2794 = vadd.f32 0.0, %v2793
        %v2795 = vpop.f32.mrb[0].mxu0
        %2796 = vdwg.mxu0
        %v2797 = vadd.f32 %v2601, %v2767
        %v2798 = vadd.f32 %v2602, %v2770
        %v2799 = vadd.f32 %v2603, %v2775
        %v2800 = vadd.f32 %v2604, %v2778
        %v2801 = vadd.f32 %v2605, %v2783
        %v2802 = vadd.f32 %v2606, %v2786
        %v2803 = vadd.f32 %v2607, %v2791
        %v2804 = vadd.f32 %v2608, %v2794
        %v2807 = vunpack.c.l.b16 %v1705
        %v2808 = vunpack.c.l.b16 %v1775
        %s2809 = scalar_lea.vmem %s3, 560
        %v2810 = vld [vmem:[%s2809] sm:$0xf]
        %v2811 = vld [vmem:[%s2809 + $0x4] sm:$0xf]
        %v2812 = vld [vmem:[%s2809 + $0x8] sm:$0xf]
        %v2813 = vld [vmem:[%s2809 + $0xc] sm:$0xf]
        %v2814 = vld [vmem:[%s2809 + $0x10] sm:$0xf]
        %v2815 = vld [vmem:[%s2809 + $0x14] sm:$0xf]
        %v2816 = vld [vmem:[%s2809 + $0x18] sm:$0xf]
        %v2817 = vld [vmem:[%s2809 + $0x1c] sm:$0xf]
        %v2818 = vld [vmem:[%s2809 + $0x20] sm:$0xf]
        %v2819 = vld [vmem:[%s2809 + $0x24] sm:$0xf]
        %v2820 = vld [vmem:[%s2809 + $0x28] sm:$0xf]
        %v2821 = vld [vmem:[%s2809 + $0x2c] sm:$0xf]
        %v2822 = vld [vmem:[%s2809 + $0x30] sm:$0xf]
        %v2823 = vld [vmem:[%s2809 + $0x34] sm:$0xf]
        %v2824 = vld [vmem:[%s2809 + $0x38] sm:$0xf]
        %v2825 = vld [vmem:[%s2809 + $0x3c] sm:$0xf]
        %v2826 = vld [vmem:[%s2809 + $0x40] sm:$0xf]
        %v2827 = vld [vmem:[%s2809 + $0x44] sm:$0xf]
        %v2828 = vld [vmem:[%s2809 + $0x48] sm:$0xf]
        %v2829 = vld [vmem:[%s2809 + $0x4c] sm:$0xf]
        %v2830 = vld [vmem:[%s2809 + $0x50] sm:$0xf]
        %v2831 = vld [vmem:[%s2809 + $0x54] sm:$0xf]
        %v2832 = vld [vmem:[%s2809 + $0x58] sm:$0xf]
        %v2833 = vld [vmem:[%s2809 + $0x5c] sm:$0xf]
        %v2834 = vld [vmem:[%s2809 + $0x60] sm:$0xf]
        %v2835 = vld [vmem:[%s2809 + $0x64] sm:$0xf]
        %v2836 = vld [vmem:[%s2809 + $0x68] sm:$0xf]
        %v2837 = vld [vmem:[%s2809 + $0x6c] sm:$0xf]
        %v2838 = vpack.c.b16 %v2807, %v2611
        %v2839 = vpack.c.b16 %v2808, %v2612
        %v2869 = vunpack.c.l.b16 %v2810
        %v2870 = vunpack.c.l.b16 %v2811
        %v2871 = vunpack.c.l.b16 %v2812
        %v2872 = vunpack.c.l.b16 %v2813
        %v2873 = vunpack.c.l.b16 %v2814
        %v2874 = vunpack.c.l.b16 %v2815
        %v2875 = vunpack.c.l.b16 %v2816
        %v2876 = vunpack.c.l.b16 %v2817
        %v2877 = vunpack.c.l.b16 %v2818
        %v2878 = vunpack.c.l.b16 %v2819
        %v2879 = vunpack.c.l.b16 %v2820
        %v2880 = vunpack.c.l.b16 %v2821
        %v2881 = vunpack.c.l.b16 %v2822
        %v2882 = vunpack.c.l.b16 %v2823
        %v2883 = vunpack.c.l.b16 %v2824
        %v2884 = vunpack.c.l.b16 %v2825
        %v2885 = vunpack.c.l.b16 %v2826
        %v2886 = vunpack.c.l.b16 %v2827
        %v2887 = vunpack.c.l.b16 %v2828
        %v2888 = vunpack.c.l.b16 %v2829
        %v2889 = vunpack.c.l.b16 %v2830
        %v2890 = vunpack.c.l.b16 %v2831
        %v2891 = vunpack.c.l.b16 %v2832
        %v2892 = vunpack.c.l.b16 %v2833
        %v2893 = vunpack.c.l.b16 %v2834
        %v2894 = vunpack.c.l.b16 %v2835
        %v2895 = vunpack.c.l.b16 %v2836
        %v2896 = vunpack.c.l.b16 %v2837
        %v2897 = vpack.c.b16 %v2870, %v2869
        %v2898 = vpack.c.b16 %v2872, %v2871
        %v2899 = vpack.c.b16 %v2874, %v2873
        %v2900 = vpack.c.b16 %v2876, %v2875
        %v2901 = vpack.c.b16 %v2878, %v2877
        %v2902 = vpack.c.b16 %v2880, %v2879
        %v2903 = vpack.c.b16 %v2882, %v2881
        %v2904 = vpack.c.b16 %v2884, %v2883
        %v2905 = vpack.c.b16 %v2886, %v2885
        %v2906 = vpack.c.b16 %v2888, %v2887
        %v2907 = vpack.c.b16 %v2890, %v2889
        %v2908 = vpack.c.b16 %v2892, %v2891
        %v2909 = vpack.c.b16 %v2894, %v2893
        %v2910 = vpack.c.b16 %v2896, %v2895
        %v2926 = vsel %vm1679, %v2839, 0
        %2928 = vmatprep.subr.bf16.mxu0 0
        %2929 = vmatpush1.bf16.msra.mxu0 %v2897
        %2930 = vmatprep.subr.bf16.mxu0 0
        %2931 = vmatpush1.bf16.msra.mxu0 %v2898
        %2932 = vmatprep.subr.bf16.mxu0 0
        %2933 = vmatpush1.bf16.msra.mxu0 %v2899
        %2934 = vmatprep.subr.bf16.mxu0 0
        %2935 = vmatpush1.bf16.msra.mxu0 %v2900
        %2936 = vmatprep.subr.bf16.mxu0 0
        %2937 = vmatpush1.bf16.msra.mxu0 %v2901
        %2938 = vmatprep.subr.bf16.mxu0 0
        %2939 = vmatpush1.bf16.msra.mxu0 %v2902
        %2940 = vmatprep.subr.bf16.mxu0 0
        %2941 = vmatpush1.bf16.msra.mxu0 %v2903
        %2942 = vmatprep.subr.bf16.mxu0 0
        %2943 = vmatpush1.bf16.msra.mxu0 %v2904
        %2944 = vmatprep.subr.bf16.mxu0 0
        %2945 = vmatpush1.bf16.msra.mxu0 %v2905
        %2946 = vmatprep.subr.bf16.mxu0 0
        %2947 = vmatpush1.bf16.msra.mxu0 %v2906
        %2948 = vmatprep.subr.bf16.mxu0 0
        %2949 = vmatpush1.bf16.msra.mxu0 %v2907
        %2950 = vmatprep.subr.bf16.mxu0 0
        %2951 = vmatpush1.bf16.msra.mxu0 %v2908
        %2952 = vmatprep.subr.bf16.mxu0 0
        %2953 = vmatpush1.bf16.msra.mxu0 %v2909
        %2954 = vmatprep.subr.bf16.mxu0 0
        %2955 = vmatpush1.bf16.msra.mxu0 %v2910
        %2956 = vmatprep.subr.bf16.mxu0 0
        %2957 = vmatpush1.bf16.msra.mxu0 0
        %2958 = vmatprep.subr.bf16.mxu0 0
        %2959 = vmatpush1.bf16.msra.mxu0 0
        %2960 = vmatprep.mubr.bf16.mxu0 %v1974
        %2961 = vmatmul.mubr.bf16.gmra.mrb[0].mxu0 %v1875
        %v2962 = vpop.f32.mrb[0].mxu0
        %v2963 = vadd.f32 0.0, %v2962
        %v2964 = vpop.f32.mrb[0].mxu0
        %v2965 = vpop.f32.mrb[0].mxu0
        %v2966 = vadd.f32 0.0, %v2965
        %v2967 = vpop.f32.mrb[0].mxu0
        %2968 = vmatprep.mubr.bf16.mxu0 %v1977
        %2969 = vmatmul.mubr.bf16.gmra.mrb[0].mxu0 %v1877
        %v2970 = vpop.f32.mrb[0].mxu0
        %v2971 = vadd.f32 0.0, %v2970
        %v2972 = vpop.f32.mrb[0].mxu0
        %v2973 = vpop.f32.mrb[0].mxu0
        %v2974 = vadd.f32 0.0, %v2973
        %v2975 = vpop.f32.mrb[0].mxu0
        %2976 = vmatprep.mubr.bf16.mxu0 %v2534
        %2977 = vmatmul.mubr.bf16.gmra.mrb[0].mxu0 %v2446
        %v2978 = vpop.f32.mrb[0].mxu0
        %v2979 = vadd.f32 0.0, %v2978
        %v2980 = vpop.f32.mrb[0].mxu0
        %v2981 = vpop.f32.mrb[0].mxu0
        %v2982 = vadd.f32 0.0, %v2981
        %v2983 = vpop.f32.mrb[0].mxu0
        %2984 = vmatprep.mubr.bf16.mxu0 %v2926
        %2985 = vmatmul.mubr.bf16.gmra.mrb[0].mxu0 %v2838
        %v2986 = vpop.f32.mrb[0].mxu0
        %v2987 = vadd.f32 0.0, %v2986
        %v2988 = vpop.f32.mrb[0].mxu0
        %v2989 = vpop.f32.mrb[0].mxu0
        %v2990 = vadd.f32 0.0, %v2989
        %v2991 = vpop.f32.mrb[0].mxu0
        %2992 = vdwg.mxu0
        %v2993 = vadd.f32 %v2797, %v2963
        %v2994 = vadd.f32 %v2798, %v2966
        %v2995 = vadd.f32 %v2799, %v2971
        %v2996 = vadd.f32 %v2800, %v2974
        %v2997 = vadd.f32 %v2801, %v2979
        %v2998 = vadd.f32 %v2802, %v2982
        %v2999 = vadd.f32 %v2803, %v2987
        %v3000 = vadd.f32 %v2804, %v2990
        %v3003 = vunpack.c.l.b16 %v1707
        %v3004 = vunpack.c.l.b16 %v1777
        %s3005 = scalar_lea.vmem %s3, 672
        %v3006 = vld [vmem:[%s3005] sm:$0xf]
        %v3007 = vld [vmem:[%s3005 + $0x4] sm:$0xf]
        %v3008 = vld [vmem:[%s3005 + $0x8] sm:$0xf]
        %v3009 = vld [vmem:[%s3005 + $0xc] sm:$0xf]
        %v3010 = vld [vmem:[%s3005 + $0x10] sm:$0xf]
        %v3011 = vld [vmem:[%s3005 + $0x14] sm:$0xf]
        %v3012 = vld [vmem:[%s3005 + $0x18] sm:$0xf]
        %v3013 = vld [vmem:[%s3005 + $0x1c] sm:$0xf]
        %v3014 = vld [vmem:[%s3005 + $0x20] sm:$0xf]
        %v3015 = vld [vmem:[%s3005 + $0x24] sm:$0xf]
        %v3016 = vld [vmem:[%s3005 + $0x28] sm:$0xf]
        %v3017 = vld [vmem:[%s3005 + $0x2c] sm:$0xf]
        %v3018 = vld [vmem:[%s3005 + $0x30] sm:$0xf]
        %v3019 = vld [vmem:[%s3005 + $0x34] sm:$0xf]
        %v3020 = vld [vmem:[%s3005 + $0x38] sm:$0xf]
        %v3021 = vld [vmem:[%s3005 + $0x3c] sm:$0xf]
        %v3022 = vld [vmem:[%s3005 + $0x40] sm:$0xf]
        %v3023 = vld [vmem:[%s3005 + $0x44] sm:$0xf]
        %v3024 = vld [vmem:[%s3005 + $0x48] sm:$0xf]
        %v3025 = vld [vmem:[%s3005 + $0x4c] sm:$0xf]
        %v3026 = vld [vmem:[%s3005 + $0x50] sm:$0xf]
        %v3027 = vld [vmem:[%s3005 + $0x54] sm:$0xf]
        %v3028 = vld [vmem:[%s3005 + $0x58] sm:$0xf]
        %v3029 = vld [vmem:[%s3005 + $0x5c] sm:$0xf]
        %v3030 = vld [vmem:[%s3005 + $0x60] sm:$0xf]
        %v3031 = vld [vmem:[%s3005 + $0x64] sm:$0xf]
        %v3032 = vld [vmem:[%s3005 + $0x68] sm:$0xf]
        %v3033 = vld [vmem:[%s3005 + $0x6c] sm:$0xf]
        %v3034 = vpack.c.b16 %v3003, %v2807
        %v3035 = vpack.c.b16 %v3004, %v2808
        %v3065 = vunpack.c.l.b16 %v3006
        %v3066 = vunpack.c.l.b16 %v3007
        %v3067 = vunpack.c.l.b16 %v3008
        %v3068 = vunpack.c.l.b16 %v3009
        %v3069 = vunpack.c.l.b16 %v3010
        %v3070 = vunpack.c.l.b16 %v3011
        %v3071 = vunpack.c.l.b16 %v3012
        %v3072 = vunpack.c.l.b16 %v3013
        %v3073 = vunpack.c.l.b16 %v3014
        %v3074 = vunpack.c.l.b16 %v3015
        %v3075 = vunpack.c.l.b16 %v3016
        %v3076 = vunpack.c.l.b16 %v3017
        %v3077 = vunpack.c.l.b16 %v3018
        %v3078 = vunpack.c.l.b16 %v3019
        %v3079 = vunpack.c.l.b16 %v3020
        %v3080 = vunpack.c.l.b16 %v3021
        %v3081 = vunpack.c.l.b16 %v3022
        %v3082 = vunpack.c.l.b16 %v3023
        %v3083 = vunpack.c.l.b16 %v3024
        %v3084 = vunpack.c.l.b16 %v3025
        %v3085 = vunpack.c.l.b16 %v3026
        %v3086 = vunpack.c.l.b16 %v3027
        %v3087 = vunpack.c.l.b16 %v3028
        %v3088 = vunpack.c.l.b16 %v3029
        %v3089 = vunpack.c.l.b16 %v3030
        %v3090 = vunpack.c.l.b16 %v3031
        %v3091 = vunpack.c.l.b16 %v3032
        %v3092 = vunpack.c.l.b16 %v3033
        %v3093 = vpack.c.b16 %v3066, %v3065
        %v3094 = vpack.c.b16 %v3068, %v3067
        %v3095 = vpack.c.b16 %v3070, %v3069
        %v3096 = vpack.c.b16 %v3072, %v3071
        %v3097 = vpack.c.b16 %v3074, %v3073
        %v3098 = vpack.c.b16 %v3076, %v3075
        %v3099 = vpack.c.b16 %v3078, %v3077
        %v3100 = vpack.c.b16 %v3080, %v3079
        %v3101 = vpack.c.b16 %v3082, %v3081
        %v3102 = vpack.c.b16 %v3084, %v3083
        %v3103 = vpack.c.b16 %v3086, %v3085
        %v3104 = vpack.c.b16 %v3088, %v3087
        %v3105 = vpack.c.b16 %v3090, %v3089
        %v3106 = vpack.c.b16 %v3092, %v3091
        %v3122 = vsel %vm1679, %v3035, 0
        %3124 = vmatprep.subr.bf16.mxu0 0
        %3125 = vmatpush1.bf16.msra.mxu0 %v3093
        %3126 = vmatprep.subr.bf16.mxu0 0
        %3127 = vmatpush1.bf16.msra.mxu0 %v3094
        %3128 = vmatprep.subr.bf16.mxu0 0
        %3129 = vmatpush1.bf16.msra.mxu0 %v3095
        %3130 = vmatprep.subr.bf16.mxu0 0
        %3131 = vmatpush1.bf16.msra.mxu0 %v3096
        %3132 = vmatprep.subr.bf16.mxu0 0
        %3133 = vmatpush1.bf16.msra.mxu0 %v3097
        %3134 = vmatprep.subr.bf16.mxu0 0
        %3135 = vmatpush1.bf16.msra.mxu0 %v3098
        %3136 = vmatprep.subr.bf16.mxu0 0
        %3137 = vmatpush1.bf16.msra.mxu0 %v3099
        %3138 = vmatprep.subr.bf16.mxu0 0
        %3139 = vmatpush1.bf16.msra.mxu0 %v3100
        %3140 = vmatprep.subr.bf16.mxu0 0
        %3141 = vmatpush1.bf16.msra.mxu0 %v3101
        %3142 = vmatprep.subr.bf16.mxu0 0
        %3143 = vmatpush1.bf16.msra.mxu0 %v3102
        %3144 = vmatprep.subr.bf16.mxu0 0
        %3145 = vmatpush1.bf16.msra.mxu0 %v3103
        %3146 = vmatprep.subr.bf16.mxu0 0
        %3147 = vmatpush1.bf16.msra.mxu0 %v3104
        %3148 = vmatprep.subr.bf16.mxu0 0
        %3149 = vmatpush1.bf16.msra.mxu0 %v3105
        %3150 = vmatprep.subr.bf16.mxu0 0
        %3151 = vmatpush1.bf16.msra.mxu0 %v3106
        %3152 = vmatprep.subr.bf16.mxu0 0
        %3153 = vmatpush1.bf16.msra.mxu0 0
        %3154 = vmatprep.subr.bf16.mxu0 0
        %3155 = vmatpush1.bf16.msra.mxu0 0
        %3156 = vmatprep.mubr.bf16.mxu0 %v2150
        %3157 = vmatmul.mubr.bf16.gmra.mrb[0].mxu0 %v2050
        %v3158 = vpop.f32.mrb[0].mxu0
        %v3159 = vadd.f32 0.0, %v3158
        %v3160 = vpop.f32.mrb[0].mxu0
        %v3161 = vpop.f32.mrb[0].mxu0
        %v3162 = vadd.f32 0.0, %v3161
        %v3163 = vpop.f32.mrb[0].mxu0
        %3164 = vmatprep.mubr.bf16.mxu0 %v2338
        %3165 = vmatmul.mubr.bf16.gmra.mrb[0].mxu0 %v2250
        %v3166 = vpop.f32.mrb[0].mxu0
        %v3167 = vadd.f32 0.0, %v3166
        %v3168 = vpop.f32.mrb[0].mxu0
        %v3169 = vpop.f32.mrb[0].mxu0
        %v3170 = vadd.f32 0.0, %v3169
        %v3171 = vpop.f32.mrb[0].mxu0
        %3172 = vmatprep.mubr.bf16.mxu0 %v2730
        %3173 = vmatmul.mubr.bf16.gmra.mrb[0].mxu0 %v2642
        %v3174 = vpop.f32.mrb[0].mxu0
        %v3175 = vadd.f32 0.0, %v3174
        %v3176 = vpop.f32.mrb[0].mxu0
        %v3177 = vpop.f32.mrb[0].mxu0
        %v3178 = vadd.f32 0.0, %v3177
        %v3179 = vpop.f32.mrb[0].mxu0
        %3180 = vmatprep.mubr.bf16.mxu0 %v3122
        %3181 = vmatmul.mubr.bf16.gmra.mrb[0].mxu0 %v3034
        %v3182 = vpop.f32.mrb[0].mxu0
        %v3183 = vadd.f32 0.0, %v3182
        %v3184 = vpop.f32.mrb[0].mxu0
        %v3185 = vpop.f32.mrb[0].mxu0
        %v3186 = vadd.f32 0.0, %v3185
        %v3187 = vpop.f32.mrb[0].mxu0
        %3188 = vdwg.mxu0
        %v3189 = vadd.f32 %v2993, %v3159
        %v3190 = vadd.f32 %v2994, %v3162
        %v3191 = vadd.f32 %v2995, %v3167
        %v3192 = vadd.f32 %v2996, %v3170
        %v3193 = vadd.f32 %v2997, %v3175
        %v3194 = vadd.f32 %v2998, %v3178
        %v3195 = vadd.f32 %v2999, %v3183
        %v3196 = vadd.f32 %v3000, %v3186
        %v3197 = vld [vmem:[%s4] sm:$0x1]
        %v3199 = vlaneseq
        %v3200 = vshrl.u32 %v3199, 7
        %v3201 = vsub.s32 0, %v3200
        %v3202 = vrot.slane %v3197, %v3201
        %v3204 = vadd.f32 %v3189, %v3202
        %v3205 = vadd.f32 %v3190, %v3202
        %v3206 = vadd.f32 %v3191, %v3202
        %v3207 = vadd.f32 %v3192, %v3202
        %v3208 = vadd.f32 %v3193, %v3202
        %v3209 = vadd.f32 %v3194, %v3202
        %v3210 = vadd.f32 %v3195, %v3202
        %v3211 = vadd.f32 %v3196, %v3202
        %v3212 = vmax.f32 %v3204, %v3205
        %v3213 = vmax.f32 %v3206, %v3207
        %v3214 = vmax.f32 %v3208, %v3209
        %v3215 = vmax.f32 %v3210, %v3211
        %v3220 = vrot.slane %v3212, 1
        %v3221 = vrot.slane %v3213, 1
        %v3222 = vrot.slane %v3214, 1
        %v3223 = vrot.slane %v3215, 1
        %v3228 = vrot.slane %v3212, 2
        %v3229 = vrot.slane %v3213, 2
        %v3230 = vrot.slane %v3214, 2
        %v3231 = vrot.slane %v3215, 2
        %v3236 = vrot.slane %v3212, 3
        %v3237 = vrot.slane %v3213, 3
        %v3238 = vrot.slane %v3214, 3
        %v3239 = vrot.slane %v3215, 3
        %v3244 = vsel %vm1043, %v3212, %v3220
        %v3245 = vsel %vm1043, %v3213, %v3221
        %v3246 = vsel %vm1043, %v3214, %v3222
        %v3247 = vsel %vm1043, %v3215, %v3223
        %v3248 = vsel %vm1052, %v3244, %v3228
        %v3249 = vsel %vm1052, %v3245, %v3229
        %v3250 = vsel %vm1052, %v3246, %v3230
        %v3251 = vsel %vm1052, %v3247, %v3231
        %v3252 = vsel %vm1061, %v3248, %v3236
        %v3253 = vsel %vm1061, %v3249, %v3237
        %v3254 = vsel %vm1061, %v3250, %v3238
        %v3255 = vsel %vm1061, %v3251, %v3239
        %v3256 = vrot.slane %v3212, 4
        %v3257 = vrot.slane %v3213, 4
        %v3258 = vrot.slane %v3214, 4
        %v3259 = vrot.slane %v3215, 4
        %v3264 = vsel %vm1043, %v3220, %v3228
        %v3265 = vsel %vm1043, %v3221, %v3229
        %v3266 = vsel %vm1043, %v3222, %v3230
        %v3267 = vsel %vm1043, %v3223, %v3231
        %v3268 = vsel %vm1052, %v3264, %v3236
        %v3269 = vsel %vm1052, %v3265, %v3237
        %v3270 = vsel %vm1052, %v3266, %v3238
        %v3271 = vsel %vm1052, %v3267, %v3239
        %v3272 = vsel %vm1061, %v3268, %v3256
        %v3273 = vsel %vm1061, %v3269, %v3257
        %v3274 = vsel %vm1061, %v3270, %v3258
        %v3275 = vsel %vm1061, %v3271, %v3259
        %v3276 = vmax.f32 %v3252, %v3272
        %v3277 = vmax.f32 %v3253, %v3273
        %v3278 = vmax.f32 %v3254, %v3274
        %v3279 = vmax.f32 %v3255, %v3275
        %v3280 = vmax.f32 %v3276, 0.0
        %v3281 = vmax.f32 %v3277, 0.0
        %v3282 = vmax.f32 %v3278, 0.0
        %v3283 = vmax.f32 %v3279, 0.0
        %s3284 = scalar_lea.vmem [#allocation3], 64
        %3285 = vst.msk [vmem:[%s3284 + $0x4] sm:$0xf] %vm366, %v3280
        %3286 = vst.msk [vmem:[%s3284 + $0x14] sm:$0xf] %vm366, %v3281
        %3287 = vst.msk [vmem:[%s3284 + $0x24] sm:$0xf] %vm366, %v3282
        %3288 = vst.msk [vmem:[%s3284 + $0x34] sm:$0xf] %vm366, %v3283
        %v3289 = vld [vmem:[#allocation3] sm:$0xf]
        %v3290 = vld [vmem:[#allocation3 + $0x10] sm:$0xf]
        %v3291 = vld [vmem:[#allocation3 + $0x20] sm:$0xf]
        %v3292 = vld [vmem:[#allocation3 + $0x30] sm:$0xf]
        %v3293 = vld [vmem:[#allocation3 + $0x40] sm:$0xf]
        %v3294 = vld [vmem:[#allocation3 + $0x50] sm:$0xf]
        %v3295 = vld [vmem:[#allocation3 + $0x60] sm:$0xf]
        %v3296 = vld [vmem:[#allocation3 + $0x70] sm:$0xf]
        %v3297 = vld [vmem:[#allocation3 + $0x80] sm:$0xf]
        %v3298 = vld [vmem:[#allocation3 + $0x90] sm:$0xf]
        %v3299 = vld [vmem:[#allocation3 + $0xa0] sm:$0xf]
        %v3300 = vld [vmem:[#allocation3 + $0xb0] sm:$0xf]
        %v3301 = vpack.c.bf16 %v3289, %v3289
        %v3302 = vpack.c.bf16 %v3290, %v3290
        %v3303 = vpack.c.bf16 %v3291, %v3291
        %v3304 = vpack.c.bf16 %v3292, %v3292
        %v3305 = vpack.c.bf16 %v3293, %v3293
        %v3306 = vpack.c.bf16 %v3294, %v3294
        %v3307 = vpack.c.bf16 %v3295, %v3295
        %v3308 = vpack.c.bf16 %v3296, %v3296
        %v3309 = vpack.c.bf16 %v3297, %v3297
        %v3310 = vpack.c.bf16 %v3298, %v3298
        %v3311 = vpack.c.bf16 %v3299, %v3299
        %v3312 = vpack.c.bf16 %v3300, %v3300
        %v3313 = vld [vmem:[#allocation3 + $0x1] sm:$0xf]
        %v3314 = vld [vmem:[#allocation3 + $0x11] sm:$0xf]
        %v3315 = vld [vmem:[#allocation3 + $0x21] sm:$0xf]
        %v3316 = vld [vmem:[#allocation3 + $0x31] sm:$0xf]
        %v3317 = vld [vmem:[#allocation3 + $0x41] sm:$0xf]
        %v3318 = vld [vmem:[#allocation3 + $0x51] sm:$0xf]
        %v3319 = vld [vmem:[#allocation3 + $0x61] sm:$0xf]
        %v3320 = vld [vmem:[#allocation3 + $0x71] sm:$0xf]
        %v3321 = vld [vmem:[#allocation3 + $0x81] sm:$0xf]
        %v3322 = vld [vmem:[#allocation3 + $0x91] sm:$0xf]
        %v3323 = vld [vmem:[#allocation3 + $0xa1] sm:$0xf]
        %v3324 = vld [vmem:[#allocation3 + $0xb1] sm:$0xf]
        %v3325 = vpack.c.bf16 %v3313, %v3313
        %v3326 = vpack.c.bf16 %v3314, %v3314
        %v3327 = vpack.c.bf16 %v3315, %v3315
        %v3328 = vpack.c.bf16 %v3316, %v3316
        %v3329 = vpack.c.bf16 %v3317, %v3317
        %v3330 = vpack.c.bf16 %v3318, %v3318
        %v3331 = vpack.c.bf16 %v3319, %v3319
        %v3332 = vpack.c.bf16 %v3320, %v3320
        %v3333 = vpack.c.bf16 %v3321, %v3321
        %v3334 = vpack.c.bf16 %v3322, %v3322
        %v3335 = vpack.c.bf16 %v3323, %v3323
        %v3336 = vpack.c.bf16 %v3324, %v3324
        %v3337 = vld [vmem:[#allocation3 + $0x2] sm:$0xf]
        %v3338 = vld [vmem:[#allocation3 + $0x12] sm:$0xf]
        %v3339 = vld [vmem:[#allocation3 + $0x22] sm:$0xf]
        %v3340 = vld [vmem:[#allocation3 + $0x32] sm:$0xf]
        %v3341 = vld [vmem:[#allocation3 + $0x42] sm:$0xf]
        %v3342 = vld [vmem:[#allocation3 + $0x52] sm:$0xf]
        %v3343 = vld [vmem:[#allocation3 + $0x62] sm:$0xf]
        %v3344 = vld [vmem:[#allocation3 + $0x72] sm:$0xf]
        %v3345 = vld [vmem:[#allocation3 + $0x82] sm:$0xf]
        %v3346 = vld [vmem:[#allocation3 + $0x92] sm:$0xf]
        %v3347 = vld [vmem:[#allocation3 + $0xa2] sm:$0xf]
        %v3348 = vld [vmem:[#allocation3 + $0xb2] sm:$0xf]
        %v3349 = vpack.c.bf16 %v3337, %v3337
        %v3350 = vpack.c.bf16 %v3338, %v3338
        %v3351 = vpack.c.bf16 %v3339, %v3339
        %v3352 = vpack.c.bf16 %v3340, %v3340
        %v3353 = vpack.c.bf16 %v3341, %v3341
        %v3354 = vpack.c.bf16 %v3342, %v3342
        %v3355 = vpack.c.bf16 %v3343, %v3343
        %v3356 = vpack.c.bf16 %v3344, %v3344
        %v3357 = vpack.c.bf16 %v3345, %v3345
        %v3358 = vpack.c.bf16 %v3346, %v3346
        %v3359 = vpack.c.bf16 %v3347, %v3347
        %v3360 = vpack.c.bf16 %v3348, %v3348
        %v3361 = vld [vmem:[#allocation3 + $0x3] sm:$0xf]
        %v3362 = vld [vmem:[#allocation3 + $0x13] sm:$0xf]
        %v3363 = vld [vmem:[#allocation3 + $0x23] sm:$0xf]
        %v3364 = vld [vmem:[#allocation3 + $0x33] sm:$0xf]
        %v3365 = vld [vmem:[#allocation3 + $0x43] sm:$0xf]
        %v3366 = vld [vmem:[#allocation3 + $0x53] sm:$0xf]
        %v3367 = vld [vmem:[#allocation3 + $0x63] sm:$0xf]
        %v3368 = vld [vmem:[#allocation3 + $0x73] sm:$0xf]
        %v3369 = vld [vmem:[#allocation3 + $0x83] sm:$0xf]
        %v3370 = vld [vmem:[#allocation3 + $0x93] sm:$0xf]
        %v3371 = vld [vmem:[#allocation3 + $0xa3] sm:$0xf]
        %v3372 = vld [vmem:[#allocation3 + $0xb3] sm:$0xf]
        %v3373 = vpack.c.bf16 %v3361, %v3361
        %v3374 = vpack.c.bf16 %v3362, %v3362
        %v3375 = vpack.c.bf16 %v3363, %v3363
        %v3376 = vpack.c.bf16 %v3364, %v3364
        %v3377 = vpack.c.bf16 %v3365, %v3365
        %v3378 = vpack.c.bf16 %v3366, %v3366
        %v3379 = vpack.c.bf16 %v3367, %v3367
        %v3380 = vpack.c.bf16 %v3368, %v3368
        %v3381 = vpack.c.bf16 %v3369, %v3369
        %v3382 = vpack.c.bf16 %v3370, %v3370
        %v3383 = vpack.c.bf16 %v3371, %v3371
        %v3384 = vpack.c.bf16 %v3372, %v3372
        %v3385 = vld [vmem:[#allocation3 + $0x4] sm:$0xf]
        %v3386 = vld [vmem:[#allocation3 + $0x14] sm:$0xf]
        %v3387 = vld [vmem:[#allocation3 + $0x24] sm:$0xf]
        %v3388 = vld [vmem:[#allocation3 + $0x34] sm:$0xf]
        %v3389 = vld [vmem:[#allocation3 + $0x44] sm:$0xf]
        %v3390 = vld [vmem:[#allocation3 + $0x54] sm:$0xf]
        %v3391 = vld [vmem:[#allocation3 + $0x64] sm:$0xf]
        %v3392 = vld [vmem:[#allocation3 + $0x74] sm:$0xf]
        %v3393 = vld [vmem:[#allocation3 + $0x84] sm:$0xf]
        %v3394 = vld [vmem:[#allocation3 + $0x94] sm:$0xf]
        %v3395 = vld [vmem:[#allocation3 + $0xa4] sm:$0xf]
        %v3396 = vld [vmem:[#allocation3 + $0xb4] sm:$0xf]
        %v3397 = vpack.c.bf16 %v3385, %v3385
        %v3398 = vpack.c.bf16 %v3386, %v3386
        %v3399 = vpack.c.bf16 %v3387, %v3387
        %v3400 = vpack.c.bf16 %v3388, %v3388
        %v3401 = vpack.c.bf16 %v3389, %v3389
        %v3402 = vpack.c.bf16 %v3390, %v3390
        %v3403 = vpack.c.bf16 %v3391, %v3391
        %v3404 = vpack.c.bf16 %v3392, %v3392
        %v3405 = vpack.c.bf16 %v3393, %v3393
        %v3406 = vpack.c.bf16 %v3394, %v3394
        %v3407 = vpack.c.bf16 %v3395, %v3395
        %v3408 = vpack.c.bf16 %v3396, %v3396
        %v3409 = vld [vmem:[#allocation3 + $0x5] sm:$0xf]
        %v3410 = vld [vmem:[#allocation3 + $0x15] sm:$0xf]
        %v3411 = vld [vmem:[#allocation3 + $0x25] sm:$0xf]
        %v3412 = vld [vmem:[#allocation3 + $0x35] sm:$0xf]
        %v3413 = vld [vmem:[#allocation3 + $0x45] sm:$0xf]
        %v3414 = vld [vmem:[#allocation3 + $0x55] sm:$0xf]
        %v3415 = vld [vmem:[#allocation3 + $0x65] sm:$0xf]
        %v3416 = vld [vmem:[#allocation3 + $0x75] sm:$0xf]
        %v3417 = vld [vmem:[#allocation3 + $0x85] sm:$0xf]
        %v3418 = vld [vmem:[#allocation3 + $0x95] sm:$0xf]
        %v3419 = vld [vmem:[#allocation3 + $0xa5] sm:$0xf]
        %v3420 = vld [vmem:[#allocation3 + $0xb5] sm:$0xf]
        %v3421 = vpack.c.bf16 %v3409, %v3409
        %v3422 = vpack.c.bf16 %v3410, %v3410
        %v3423 = vpack.c.bf16 %v3411, %v3411
        %v3424 = vpack.c.bf16 %v3412, %v3412
        %v3425 = vpack.c.bf16 %v3413, %v3413
        %v3426 = vpack.c.bf16 %v3414, %v3414
        %v3427 = vpack.c.bf16 %v3415, %v3415
        %v3428 = vpack.c.bf16 %v3416, %v3416
        %v3429 = vpack.c.bf16 %v3417, %v3417
        %v3430 = vpack.c.bf16 %v3418, %v3418
        %v3431 = vpack.c.bf16 %v3419, %v3419
        %v3432 = vpack.c.bf16 %v3420, %v3420
        %v3433 = vld [vmem:[#allocation3 + $0x6] sm:$0xf]
        %v3434 = vld [vmem:[#allocation3 + $0x16] sm:$0xf]
        %v3435 = vld [vmem:[#allocation3 + $0x26] sm:$0xf]
        %v3436 = vld [vmem:[#allocation3 + $0x36] sm:$0xf]
        %v3437 = vld [vmem:[#allocation3 + $0x46] sm:$0xf]
        %v3438 = vld [vmem:[#allocation3 + $0x56] sm:$0xf]
        %v3439 = vld [vmem:[#allocation3 + $0x66] sm:$0xf]
        %v3440 = vld [vmem:[#allocation3 + $0x76] sm:$0xf]
        %v3441 = vld [vmem:[#allocation3 + $0x86] sm:$0xf]
        %v3442 = vld [vmem:[#allocation3 + $0x96] sm:$0xf]
        %v3443 = vld [vmem:[#allocation3 + $0xa6] sm:$0xf]
        %v3444 = vld [vmem:[#allocation3 + $0xb6] sm:$0xf]
        %v3445 = vpack.c.bf16 %v3433, %v3433
        %v3446 = vpack.c.bf16 %v3434, %v3434
        %v3447 = vpack.c.bf16 %v3435, %v3435
        %v3448 = vpack.c.bf16 %v3436, %v3436
        %v3449 = vpack.c.bf16 %v3437, %v3437
        %v3450 = vpack.c.bf16 %v3438, %v3438
        %v3451 = vpack.c.bf16 %v3439, %v3439
        %v3452 = vpack.c.bf16 %v3440, %v3440
        %v3453 = vpack.c.bf16 %v3441, %v3441
        %v3454 = vpack.c.bf16 %v3442, %v3442
        %v3455 = vpack.c.bf16 %v3443, %v3443
        %v3456 = vpack.c.bf16 %v3444, %v3444
        %v3457 = vld [vmem:[#allocation3 + $0x7] sm:$0xf]
        %v3458 = vld [vmem:[#allocation3 + $0x17] sm:$0xf]
        %v3459 = vld [vmem:[#allocation3 + $0x27] sm:$0xf]
        %v3460 = vld [vmem:[#allocation3 + $0x37] sm:$0xf]
        %v3461 = vld [vmem:[#allocation3 + $0x47] sm:$0xf]
        %v3462 = vld [vmem:[#allocation3 + $0x57] sm:$0xf]
        %v3463 = vld [vmem:[#allocation3 + $0x67] sm:$0xf]
        %v3464 = vld [vmem:[#allocation3 + $0x77] sm:$0xf]
        %v3465 = vld [vmem:[#allocation3 + $0x87] sm:$0xf]
        %v3466 = vld [vmem:[#allocation3 + $0x97] sm:$0xf]
        %v3467 = vld [vmem:[#allocation3 + $0xa7] sm:$0xf]
        %v3468 = vld [vmem:[#allocation3 + $0xb7] sm:$0xf]
        %v3469 = vpack.c.bf16 %v3457, %v3457
        %v3470 = vpack.c.bf16 %v3458, %v3458
        %v3471 = vpack.c.bf16 %v3459, %v3459
        %v3472 = vpack.c.bf16 %v3460, %v3460
        %v3473 = vpack.c.bf16 %v3461, %v3461
        %v3474 = vpack.c.bf16 %v3462, %v3462
        %v3475 = vpack.c.bf16 %v3463, %v3463
        %v3476 = vpack.c.bf16 %v3464, %v3464
        %v3477 = vpack.c.bf16 %v3465, %v3465
        %v3478 = vpack.c.bf16 %v3466, %v3466
        %v3479 = vpack.c.bf16 %v3467, %v3467
        %v3480 = vpack.c.bf16 %v3468, %v3468
        %v3481 = vld [vmem:[#allocation3 + $0x8] sm:$0xf]
        %v3482 = vld [vmem:[#allocation3 + $0x18] sm:$0xf]
        %v3483 = vld [vmem:[#allocation3 + $0x28] sm:$0xf]
        %v3484 = vld [vmem:[#allocation3 + $0x38] sm:$0xf]
        %v3485 = vld [vmem:[#allocation3 + $0x48] sm:$0xf]
        %v3486 = vld [vmem:[#allocation3 + $0x58] sm:$0xf]
        %v3487 = vld [vmem:[#allocation3 + $0x68] sm:$0xf]
        %v3488 = vld [vmem:[#allocation3 + $0x78] sm:$0xf]
        %v3489 = vld [vmem:[#allocation3 + $0x88] sm:$0xf]
        %v3490 = vld [vmem:[#allocation3 + $0x98] sm:$0xf]
        %v3491 = vld [vmem:[#allocation3 + $0xa8] sm:$0xf]
        %v3492 = vld [vmem:[#allocation3 + $0xb8] sm:$0xf]
        %v3493 = vpack.c.bf16 %v3481, %v3481
        %v3494 = vpack.c.bf16 %v3482, %v3482
        %v3495 = vpack.c.bf16 %v3483, %v3483
        %v3496 = vpack.c.bf16 %v3484, %v3484
        %v3497 = vpack.c.bf16 %v3485, %v3485
        %v3498 = vpack.c.bf16 %v3486, %v3486
        %v3499 = vpack.c.bf16 %v3487, %v3487
        %v3500 = vpack.c.bf16 %v3488, %v3488
        %v3501 = vpack.c.bf16 %v3489, %v3489
        %v3502 = vpack.c.bf16 %v3490, %v3490
        %v3503 = vpack.c.bf16 %v3491, %v3491
        %v3504 = vpack.c.bf16 %v3492, %v3492
        %3517 = vrot.lane.b32.xlu0 %v3325, 64
        %v3518 = vpop.permute.xlu0 %3517
        %3519 = vrot.lane.b32.xlu0 %v3326, 64
        %v3520 = vpop.permute.xlu0 %3519
        %3521 = vrot.lane.b32.xlu0 %v3327, 64
        %v3522 = vpop.permute.xlu0 %3521
        %3523 = vrot.lane.b32.xlu0 %v3328, 64
        %v3524 = vpop.permute.xlu0 %3523
        %3525 = vrot.lane.b32.xlu0 %v3329, 64
        %v3526 = vpop.permute.xlu0 %3525
        %3527 = vrot.lane.b32.xlu0 %v3330, 64
        %v3528 = vpop.permute.xlu0 %3527
        %3529 = vrot.lane.b32.xlu0 %v3331, 64
        %v3530 = vpop.permute.xlu0 %3529
        %3531 = vrot.lane.b32.xlu0 %v3332, 64
        %v3532 = vpop.permute.xlu0 %3531
        %3533 = vrot.lane.b32.xlu0 %v3333, 64
        %v3534 = vpop.permute.xlu0 %3533
        %3535 = vrot.lane.b32.xlu0 %v3334, 64
        %v3536 = vpop.permute.xlu0 %3535
        %3537 = vrot.lane.b32.xlu0 %v3335, 64
        %v3538 = vpop.permute.xlu0 %3537
        %3539 = vrot.lane.b32.xlu0 %v3336, 64
        %v3540 = vpop.permute.xlu0 %3539
        %3553 = vrot.lane.b32.xlu0 %v3373, 64
        %v3554 = vpop.permute.xlu0 %3553
        %3555 = vrot.lane.b32.xlu0 %v3374, 64
        %v3556 = vpop.permute.xlu0 %3555
        %3557 = vrot.lane.b32.xlu0 %v3375, 64
        %v3558 = vpop.permute.xlu0 %3557
        %3559 = vrot.lane.b32.xlu0 %v3376, 64
        %v3560 = vpop.permute.xlu0 %3559
        %3561 = vrot.lane.b32.xlu0 %v3377, 64
        %v3562 = vpop.permute.xlu0 %3561
        %3563 = vrot.lane.b32.xlu0 %v3378, 64
        %v3564 = vpop.permute.xlu0 %3563
        %3565 = vrot.lane.b32.xlu0 %v3379, 64
        %v3566 = vpop.permute.xlu0 %3565
        %3567 = vrot.lane.b32.xlu0 %v3380, 64
        %v3568 = vpop.permute.xlu0 %3567
        %3569 = vrot.lane.b32.xlu0 %v3381, 64
        %v3570 = vpop.permute.xlu0 %3569
        %3571 = vrot.lane.b32.xlu0 %v3382, 64
        %v3572 = vpop.permute.xlu0 %3571
        %3573 = vrot.lane.b32.xlu0 %v3383, 64
        %v3574 = vpop.permute.xlu0 %3573
        %3575 = vrot.lane.b32.xlu0 %v3384, 64
        %v3576 = vpop.permute.xlu0 %3575
        %3589 = vrot.lane.b32.xlu0 %v3421, 64
        %v3590 = vpop.permute.xlu0 %3589
        %3591 = vrot.lane.b32.xlu0 %v3422, 64
        %v3592 = vpop.permute.xlu0 %3591
        %3593 = vrot.lane.b32.xlu0 %v3423, 64
        %v3594 = vpop.permute.xlu0 %3593
        %3595 = vrot.lane.b32.xlu0 %v3424, 64
        %v3596 = vpop.permute.xlu0 %3595
        %3597 = vrot.lane.b32.xlu0 %v3425, 64
        %v3598 = vpop.permute.xlu0 %3597
        %3599 = vrot.lane.b32.xlu0 %v3426, 64
        %v3600 = vpop.permute.xlu0 %3599
        %3601 = vrot.lane.b32.xlu0 %v3427, 64
        %v3602 = vpop.permute.xlu0 %3601
        %3603 = vrot.lane.b32.xlu0 %v3428, 64
        %v3604 = vpop.permute.xlu0 %3603
        %3605 = vrot.lane.b32.xlu0 %v3429, 64
        %v3606 = vpop.permute.xlu0 %3605
        %3607 = vrot.lane.b32.xlu0 %v3430, 64
        %v3608 = vpop.permute.xlu0 %3607
        %3609 = vrot.lane.b32.xlu0 %v3431, 64
        %v3610 = vpop.permute.xlu0 %3609
        %3611 = vrot.lane.b32.xlu0 %v3432, 64
        %v3612 = vpop.permute.xlu0 %3611
        %3625 = vrot.lane.b32.xlu0 %v3469, 64
        %v3626 = vpop.permute.xlu0 %3625
        %3627 = vrot.lane.b32.xlu0 %v3470, 64
        %v3628 = vpop.permute.xlu0 %3627
        %3629 = vrot.lane.b32.xlu0 %v3471, 64
        %v3630 = vpop.permute.xlu0 %3629
        %3631 = vrot.lane.b32.xlu0 %v3472, 64
        %v3632 = vpop.permute.xlu0 %3631
        %3633 = vrot.lane.b32.xlu0 %v3473, 64
        %v3634 = vpop.permute.xlu0 %3633
        %3635 = vrot.lane.b32.xlu0 %v3474, 64
        %v3636 = vpop.permute.xlu0 %3635
        %3637 = vrot.lane.b32.xlu0 %v3475, 64
        %v3638 = vpop.permute.xlu0 %3637
        %3639 = vrot.lane.b32.xlu0 %v3476, 64
        %v3640 = vpop.permute.xlu0 %3639
        %3641 = vrot.lane.b32.xlu0 %v3477, 64
        %v3642 = vpop.permute.xlu0 %3641
        %3643 = vrot.lane.b32.xlu0 %v3478, 64
        %v3644 = vpop.permute.xlu0 %3643
        %3645 = vrot.lane.b32.xlu0 %v3479, 64
        %v3646 = vpop.permute.xlu0 %3645
        %3647 = vrot.lane.b32.xlu0 %v3480, 64
        %v3648 = vpop.permute.xlu0 %3647
        %v3651 = vsel %vm364, %v3301, %v3518
        %v3654 = vsel %vm364, %v3302, %v3520
        %v3657 = vsel %vm364, %v3303, %v3522
        %v3660 = vsel %vm364, %v3304, %v3524
        %v3663 = vsel %vm364, %v3305, %v3526
        %v3666 = vsel %vm364, %v3306, %v3528
        %v3669 = vsel %vm364, %v3307, %v3530
        %v3672 = vsel %vm364, %v3308, %v3532
        %v3675 = vsel %vm364, %v3309, %v3534
        %v3678 = vsel %vm364, %v3310, %v3536
        %v3681 = vsel %vm364, %v3311, %v3538
        %v3684 = vsel %vm364, %v3312, %v3540
        %v3687 = vsel %vm364, %v3349, %v3554
        %v3690 = vsel %vm364, %v3350, %v3556
        %v3693 = vsel %vm364, %v3351, %v3558
        %v3696 = vsel %vm364, %v3352, %v3560
        %v3699 = vsel %vm364, %v3353, %v3562
        %v3702 = vsel %vm364, %v3354, %v3564
        %v3705 = vsel %vm364, %v3355, %v3566
        %v3708 = vsel %vm364, %v3356, %v3568
        %v3711 = vsel %vm364, %v3357, %v3570
        %v3714 = vsel %vm364, %v3358, %v3572
        %v3717 = vsel %vm364, %v3359, %v3574
        %v3720 = vsel %vm364, %v3360, %v3576
        %v3723 = vsel %vm364, %v3397, %v3590
        %v3726 = vsel %vm364, %v3398, %v3592
        %v3729 = vsel %vm364, %v3399, %v3594
        %v3732 = vsel %vm364, %v3400, %v3596
        %v3735 = vsel %vm364, %v3401, %v3598
        %v3738 = vsel %vm364, %v3402, %v3600
        %v3741 = vsel %vm364, %v3403, %v3602
        %v3744 = vsel %vm364, %v3404, %v3604
        %v3747 = vsel %vm364, %v3405, %v3606
        %v3750 = vsel %vm364, %v3406, %v3608
        %v3753 = vsel %vm364, %v3407, %v3610
        %v3756 = vsel %vm364, %v3408, %v3612
        %v3759 = vsel %vm364, %v3445, %v3626
        %v3762 = vsel %vm364, %v3446, %v3628
        %v3765 = vsel %vm364, %v3447, %v3630
        %v3768 = vsel %vm364, %v3448, %v3632
        %v3771 = vsel %vm364, %v3449, %v3634
        %v3774 = vsel %vm364, %v3450, %v3636
        %v3777 = vsel %vm364, %v3451, %v3638
        %v3780 = vsel %vm364, %v3452, %v3640
        %v3783 = vsel %vm364, %v3453, %v3642
        %v3786 = vsel %vm364, %v3454, %v3644
        %v3789 = vsel %vm364, %v3455, %v3646
        %v3792 = vsel %vm364, %v3456, %v3648
        %v3813 = vcombine.low %v3651, %v3687
        %v3814 = vcombine.low %v3723, %v3759
        %v3816 = vunpack.c.l.s4 1983009808
        %v3817 = vunpack.c.0.s8 %v3816
        %v3818 = vlaneseq
        %v3819 = vshrl.u32 %v3818, 7
        %v3820 = vsub.s32 %v3817, %v3819
        %v3821 = vrot.slane %v3813, %v3820
        %v3823 = vunpack.c.l.s4 1983009808
        %v3824 = vunpack.c.0.s8 %v3823
        %v3825 = vlaneseq
        %v3826 = vshrl.u32 %v3825, 7
        %v3827 = vsub.s32 %v3824, %v3826
        %v3828 = vrot.slane %v3814, %v3827
        %v3829 = vcombine.low %v3821, %v3828
        %v3831 = vunpack.c.l.s4 1983009808
        %v3832 = vunpack.c.0.s8 %v3831
        %v3833 = vlaneseq
        %v3834 = vshrl.u32 %v3833, 7
        %v3835 = vsub.s32 %v3832, %v3834
        %v3836 = vrot.slane %v3493, %v3835
        %v3837 = vcombine.low %v3654, %v3690
        %v3838 = vcombine.low %v3726, %v3762
        %v3840 = vunpack.c.l.s4 1983009808
        %v3841 = vunpack.c.0.s8 %v3840
        %v3842 = vlaneseq
        %v3843 = vshrl.u32 %v3842, 7
        %v3844 = vsub.s32 %v3841, %v3843
        %v3845 = vrot.slane %v3837, %v3844
        %v3847 = vunpack.c.l.s4 1983009808
        %v3848 = vunpack.c.0.s8 %v3847
        %v3849 = vlaneseq
        %v3850 = vshrl.u32 %v3849, 7
        %v3851 = vsub.s32 %v3848, %v3850
        %v3852 = vrot.slane %v3838, %v3851
        %v3853 = vcombine.low %v3845, %v3852
        %v3855 = vunpack.c.l.s4 1983009808
        %v3856 = vunpack.c.0.s8 %v3855
        %v3857 = vlaneseq
        %v3858 = vshrl.u32 %v3857, 7
        %v3859 = vsub.s32 %v3856, %v3858
        %v3860 = vrot.slane %v3494, %v3859
        %v3861 = vcombine.low %v3657, %v3693
        %v3862 = vcombine.low %v3729, %v3765
        %v3864 = vunpack.c.l.s4 1983009808
        %v3865 = vunpack.c.0.s8 %v3864
        %v3866 = vlaneseq
        %v3867 = vshrl.u32 %v3866, 7
        %v3868 = vsub.s32 %v3865, %v3867
        %v3869 = vrot.slane %v3861, %v3868
        %v3871 = vunpack.c.l.s4 1983009808
        %v3872 = vunpack.c.0.s8 %v3871
        %v3873 = vlaneseq
        %v3874 = vshrl.u32 %v3873, 7
        %v3875 = vsub.s32 %v3872, %v3874
        %v3876 = vrot.slane %v3862, %v3875
        %v3877 = vcombine.low %v3869, %v3876
        %v3879 = vunpack.c.l.s4 1983009808
        %v3880 = vunpack.c.0.s8 %v3879
        %v3881 = vlaneseq
        %v3882 = vshrl.u32 %v3881, 7
        %v3883 = vsub.s32 %v3880, %v3882
        %v3884 = vrot.slane %v3495, %v3883
        %v3885 = vcombine.low %v3660, %v3696
        %v3886 = vcombine.low %v3732, %v3768
        %v3888 = vunpack.c.l.s4 1983009808
        %v3889 = vunpack.c.0.s8 %v3888
        %v3890 = vlaneseq
        %v3891 = vshrl.u32 %v3890, 7
        %v3892 = vsub.s32 %v3889, %v3891
        %v3893 = vrot.slane %v3885, %v3892
        %v3895 = vunpack.c.l.s4 1983009808
        %v3896 = vunpack.c.0.s8 %v3895
        %v3897 = vlaneseq
        %v3898 = vshrl.u32 %v3897, 7
        %v3899 = vsub.s32 %v3896, %v3898
        %v3900 = vrot.slane %v3886, %v3899
        %v3901 = vcombine.low %v3893, %v3900
        %v3903 = vunpack.c.l.s4 1983009808
        %v3904 = vunpack.c.0.s8 %v3903
        %v3905 = vlaneseq
        %v3906 = vshrl.u32 %v3905, 7
        %v3907 = vsub.s32 %v3904, %v3906
        %v3908 = vrot.slane %v3496, %v3907
        %v3909 = vld [vmem:[%s5] sm:$0xf]
        %v3910 = vld [vmem:[%s5 + $0x4] sm:$0xf]
        %v3911 = vld [vmem:[%s5 + $0x8] sm:$0xf]
        %v3912 = vld [vmem:[%s5 + $0xc] sm:$0xf]
        %v3913 = vld [vmem:[%s5 + $0x10] sm:$0xf]
        %v3914 = vld [vmem:[%s5 + $0x14] sm:$0xf]
        %v3915 = vld [vmem:[%s5 + $0x18] sm:$0xf]
        %v3916 = vld [vmem:[%s5 + $0x1c] sm:$0xf]
        %v3917 = vld [vmem:[%s5 + $0x20] sm:$0xf]
        %v3918 = vld [vmem:[%s5 + $0x24] sm:$0xf]
        %v3919 = vld [vmem:[%s5 + $0x28] sm:$0xf]
        %v3920 = vld [vmem:[%s5 + $0x2c] sm:$0xf]
        %v3921 = vld [vmem:[%s5 + $0x30] sm:$0xf]
        %v3922 = vld [vmem:[%s5 + $0x34] sm:$0xf]
        %v3923 = vld [vmem:[%s5 + $0x38] sm:$0xf]
        %v3924 = vld [vmem:[%s5 + $0x3c] sm:$0xf]
        %v3925 = vld [vmem:[%s5 + $0x40] sm:$0xf]
        %v3926 = vld [vmem:[%s5 + $0x44] sm:$0xf]
        %v3927 = vld [vmem:[%s5 + $0x48] sm:$0xf]
        %v3928 = vld [vmem:[%s5 + $0x4c] sm:$0xf]
        %v3929 = vld [vmem:[%s5 + $0x50] sm:$0xf]
        %v3930 = vld [vmem:[%s5 + $0x54] sm:$0xf]
        %v3931 = vld [vmem:[%s5 + $0x58] sm:$0xf]
        %v3932 = vld [vmem:[%s5 + $0x5c] sm:$0xf]
        %v3933 = vld [vmem:[%s5 + $0x60] sm:$0xf]
        %v3934 = vld [vmem:[%s5 + $0x64] sm:$0xf]
        %v3935 = vld [vmem:[%s5 + $0x68] sm:$0xf]
        %v3936 = vld [vmem:[%s5 + $0x6c] sm:$0xf]
        %v3937 = vld [vmem:[%s5 + $0x70] sm:$0xf]
        %v3938 = vld [vmem:[%s5 + $0x74] sm:$0xf]
        %v3939 = vld [vmem:[%s5 + $0x78] sm:$0xf]
        %v3940 = vld [vmem:[%s5 + $0x7c] sm:$0xf]
        %v3941 = vld [vmem:[%s5 + $0x80] sm:$0xf]
        %v3942 = vld [vmem:[%s5 + $0x84] sm:$0xf]
        %v3943 = vld [vmem:[%s5 + $0x88] sm:$0xf]
        %v3944 = vld [vmem:[%s5 + $0x8c] sm:$0xf]
        %v3945 = vld [vmem:[%s5 + $0x90] sm:$0xf]
        %v3946 = vld [vmem:[%s5 + $0x94] sm:$0xf]
        %v3947 = vld [vmem:[%s5 + $0x98] sm:$0xf]
        %v3948 = vld [vmem:[%s5 + $0x9c] sm:$0xf]
        %v3949 = vld [vmem:[%s5 + $0xa0] sm:$0xf]
        %v3950 = vld [vmem:[%s5 + $0xa4] sm:$0xf]
        %v3951 = vld [vmem:[%s5 + $0xa8] sm:$0xf]
        %v3952 = vld [vmem:[%s5 + $0xac] sm:$0xf]
        %v3953 = vld [vmem:[%s5 + $0xb0] sm:$0xf]
        %v3954 = vld [vmem:[%s5 + $0xb4] sm:$0xf]
        %v3955 = vld [vmem:[%s5 + $0xb8] sm:$0xf]
        %v3956 = vld [vmem:[%s5 + $0xbc] sm:$0xf]
        %v3957 = vld [vmem:[%s5 + $0xc0] sm:$0xf]
        %v3958 = vld [vmem:[%s5 + $0xc4] sm:$0xf]
        %v3959 = vld [vmem:[%s5 + $0xc8] sm:$0xf]
        %v3960 = vld [vmem:[%s5 + $0xcc] sm:$0xf]
        %v3961 = vld [vmem:[%s5 + $0xd0] sm:$0xf]
        %v3962 = vld [vmem:[%s5 + $0xd4] sm:$0xf]
        %v3963 = vld [vmem:[%s5 + $0xd8] sm:$0xf]
        %v3964 = vld [vmem:[%s5 + $0xdc] sm:$0xf]
        %v3965 = vld [vmem:[%s5 + $0xe0] sm:$0xf]
        %v3966 = vld [vmem:[%s5 + $0xe4] sm:$0xf]
        %v3967 = vld [vmem:[%s5 + $0xe8] sm:$0xf]
        %v3968 = vld [vmem:[%s5 + $0xec] sm:$0xf]
        %v3969 = vld [vmem:[%s5 + $0xf0] sm:$0xf]
        %v3970 = vld [vmem:[%s5 + $0xf4] sm:$0xf]
        %v3971 = vld [vmem:[%s5 + $0xf8] sm:$0xf]
        %v3972 = vld [vmem:[%s5 + $0xfc] sm:$0xf]
        %v3973 = vld [vmem:[%s5 + $0x100] sm:$0xf]
        %v3974 = vld [vmem:[%s5 + $0x104] sm:$0xf]
        %v3975 = vld [vmem:[%s5 + $0x108] sm:$0xf]
        %v3976 = vld [vmem:[%s5 + $0x10c] sm:$0xf]
        %v3977 = vld [vmem:[%s5 + $0x110] sm:$0xf]
        %v3978 = vld [vmem:[%s5 + $0x114] sm:$0xf]
        %v3979 = vld [vmem:[%s5 + $0x118] sm:$0xf]
        %v3980 = vld [vmem:[%s5 + $0x11c] sm:$0xf]
        %v3986 = vcombine.low %v3663, %v3699
        %v3987 = vcombine.low %v3735, %v3771
        %v3989 = vunpack.c.l.s4 1983009808
        %v3990 = vunpack.c.0.s8 %v3989
        %v3991 = vlaneseq
        %v3992 = vshrl.u32 %v3991, 7
        %v3993 = vsub.s32 %v3990, %v3992
        %v3994 = vrot.slane %v3986, %v3993
        %v3996 = vunpack.c.l.s4 1983009808
        %v3997 = vunpack.c.0.s8 %v3996
        %v3998 = vlaneseq
        %v3999 = vshrl.u32 %v3998, 7
        %v4000 = vsub.s32 %v3997, %v3999
        %v4001 = vrot.slane %v3987, %v4000
        %v4002 = vcombine.low %v3994, %v4001
        %v4004 = vunpack.c.l.s4 1983009808
        %v4005 = vunpack.c.0.s8 %v4004
        %v4006 = vlaneseq
        %v4007 = vshrl.u32 %v4006, 7
        %v4008 = vsub.s32 %v4005, %v4007
        %v4009 = vrot.slane %v3497, %v4008
        %s4010 = scalar_lea.vmem %s5, 288
        %v4011 = vld [vmem:[%s4010] sm:$0xf]
        %v4012 = vld [vmem:[%s4010 + $0x4] sm:$0xf]
        %v4013 = vld [vmem:[%s4010 + $0x8] sm:$0xf]
        %v4014 = vld [vmem:[%s4010 + $0xc] sm:$0xf]
        %v4015 = vld [vmem:[%s4010 + $0x10] sm:$0xf]
        %v4016 = vld [vmem:[%s4010 + $0x14] sm:$0xf]
        %v4017 = vld [vmem:[%s4010 + $0x18] sm:$0xf]
        %v4018 = vld [vmem:[%s4010 + $0x1c] sm:$0xf]
        %v4019 = vld [vmem:[%s4010 + $0x20] sm:$0xf]
        %v4020 = vld [vmem:[%s4010 + $0x24] sm:$0xf]
        %v4021 = vld [vmem:[%s4010 + $0x28] sm:$0xf]
        %v4022 = vld [vmem:[%s4010 + $0x2c] sm:$0xf]
        %v4023 = vld [vmem:[%s4010 + $0x30] sm:$0xf]
        %v4024 = vld [vmem:[%s4010 + $0x34] sm:$0xf]
        %v4025 = vld [vmem:[%s4010 + $0x38] sm:$0xf]
        %v4026 = vld [vmem:[%s4010 + $0x3c] sm:$0xf]
        %v4027 = vld [vmem:[%s4010 + $0x40] sm:$0xf]
        %v4028 = vld [vmem:[%s4010 + $0x44] sm:$0xf]
        %v4029 = vld [vmem:[%s4010 + $0x48] sm:$0xf]
        %v4030 = vld [vmem:[%s4010 + $0x4c] sm:$0xf]
        %v4031 = vld [vmem:[%s4010 + $0x50] sm:$0xf]
        %v4032 = vld [vmem:[%s4010 + $0x54] sm:$0xf]
        %v4033 = vld [vmem:[%s4010 + $0x58] sm:$0xf]
        %v4034 = vld [vmem:[%s4010 + $0x5c] sm:$0xf]
        %v4035 = vld [vmem:[%s4010 + $0x60] sm:$0xf]
        %v4036 = vld [vmem:[%s4010 + $0x64] sm:$0xf]
        %v4037 = vld [vmem:[%s4010 + $0x68] sm:$0xf]
        %v4038 = vld [vmem:[%s4010 + $0x6c] sm:$0xf]
        %v4039 = vld [vmem:[%s4010 + $0x70] sm:$0xf]
        %v4040 = vld [vmem:[%s4010 + $0x74] sm:$0xf]
        %v4041 = vld [vmem:[%s4010 + $0x78] sm:$0xf]
        %v4042 = vld [vmem:[%s4010 + $0x7c] sm:$0xf]
        %v4043 = vld [vmem:[%s4010 + $0x80] sm:$0xf]
        %v4044 = vld [vmem:[%s4010 + $0x84] sm:$0xf]
        %v4045 = vld [vmem:[%s4010 + $0x88] sm:$0xf]
        %v4046 = vld [vmem:[%s4010 + $0x8c] sm:$0xf]
        %v4047 = vld [vmem:[%s4010 + $0x90] sm:$0xf]
        %v4048 = vld [vmem:[%s4010 + $0x94] sm:$0xf]
        %v4049 = vld [vmem:[%s4010 + $0x98] sm:$0xf]
        %v4050 = vld [vmem:[%s4010 + $0x9c] sm:$0xf]
        %v4051 = vld [vmem:[%s4010 + $0xa0] sm:$0xf]
        %v4052 = vld [vmem:[%s4010 + $0xa4] sm:$0xf]
        %v4053 = vld [vmem:[%s4010 + $0xa8] sm:$0xf]
        %v4054 = vld [vmem:[%s4010 + $0xac] sm:$0xf]
        %v4055 = vld [vmem:[%s4010 + $0xb0] sm:$0xf]
        %v4056 = vld [vmem:[%s4010 + $0xb4] sm:$0xf]
        %v4057 = vld [vmem:[%s4010 + $0xb8] sm:$0xf]
        %v4058 = vld [vmem:[%s4010 + $0xbc] sm:$0xf]
        %v4059 = vld [vmem:[%s4010 + $0xc0] sm:$0xf]
        %v4060 = vld [vmem:[%s4010 + $0xc4] sm:$0xf]
        %v4061 = vld [vmem:[%s4010 + $0xc8] sm:$0xf]
        %v4062 = vld [vmem:[%s4010 + $0xcc] sm:$0xf]
        %v4063 = vld [vmem:[%s4010 + $0xd0] sm:$0xf]
        %v4064 = vld [vmem:[%s4010 + $0xd4] sm:$0xf]
        %v4065 = vld [vmem:[%s4010 + $0xd8] sm:$0xf]
        %v4066 = vld [vmem:[%s4010 + $0xdc] sm:$0xf]
        %v4067 = vld [vmem:[%s4010 + $0xe0] sm:$0xf]
        %v4068 = vld [vmem:[%s4010 + $0xe4] sm:$0xf]
        %v4069 = vld [vmem:[%s4010 + $0xe8] sm:$0xf]
        %v4070 = vld [vmem:[%s4010 + $0xec] sm:$0xf]
        %v4071 = vld [vmem:[%s4010 + $0xf0] sm:$0xf]
        %v4072 = vld [vmem:[%s4010 + $0xf4] sm:$0xf]
        %v4073 = vld [vmem:[%s4010 + $0xf8] sm:$0xf]
        %v4074 = vld [vmem:[%s4010 + $0xfc] sm:$0xf]
        %v4075 = vld [vmem:[%s4010 + $0x100] sm:$0xf]
        %v4076 = vld [vmem:[%s4010 + $0x104] sm:$0xf]
        %v4077 = vld [vmem:[%s4010 + $0x108] sm:$0xf]
        %v4078 = vld [vmem:[%s4010 + $0x10c] sm:$0xf]
        %v4079 = vld [vmem:[%s4010 + $0x110] sm:$0xf]
        %v4080 = vld [vmem:[%s4010 + $0x114] sm:$0xf]
        %v4081 = vld [vmem:[%s4010 + $0x118] sm:$0xf]
        %v4082 = vld [vmem:[%s4010 + $0x11c] sm:$0xf]
        %v4083 = vcombine.low %v3853, %v3877
        %v4084 = vcombine.high %v3853, %v3877
        %v4085 = vcombine.low %v3901, %v4002
        %v4086 = vcombine.high %v3901, %v4002
        %v4088 = vunpack.c.l.s4 1983009808
        %v4089 = vunpack.c.0.s8 %v4088
        %v4090 = vlaneseq
        %v4091 = vshrl.u32 %v4090, 7
        %v4092 = vsub.s32 %v4089, %v4091
        %v4093 = vrot.slane %v4083, %v4092
        %v4095 = vunpack.c.l.s4 1983009808
        %v4096 = vunpack.c.0.s8 %v4095
        %v4097 = vlaneseq
        %v4098 = vshrl.u32 %v4097, 7
        %v4099 = vsub.s32 %v4096, %v4098
        %v4100 = vrot.slane %v4084, %v4099
        %v4102 = vunpack.c.l.s4 1983009808
        %v4103 = vunpack.c.0.s8 %v4102
        %v4104 = vlaneseq
        %v4105 = vshrl.u32 %v4104, 7
        %v4106 = vsub.s32 %v4103, %v4105
        %v4107 = vrot.slane %v4085, %v4106
        %v4109 = vunpack.c.l.s4 1983009808
        %v4110 = vunpack.c.0.s8 %v4109
        %v4111 = vlaneseq
        %v4112 = vshrl.u32 %v4111, 7
        %v4113 = vsub.s32 %v4110, %v4112
        %v4114 = vrot.slane %v4086, %v4113
        %v4115 = vcombine.low %v4093, %v4107
        %v4116 = vcombine.high %v4093, %v4107
        %v4117 = vcombine.low %v4100, %v4114
        %v4118 = vcombine.high %v4100, %v4114
        %v4119 = vcombine.low %v3860, %v3884
        %v4120 = vcombine.low %v3908, %v4009
        %v4122 = vunpack.c.l.s4 1983009808
        %v4123 = vunpack.c.0.s8 %v4122
        %v4124 = vlaneseq
        %v4125 = vshrl.u32 %v4124, 7
        %v4126 = vsub.s32 %v4123, %v4125
        %v4127 = vrot.slane %v4119, %v4126
        %v4129 = vunpack.c.l.s4 1983009808
        %v4130 = vunpack.c.0.s8 %v4129
        %v4131 = vlaneseq
        %v4132 = vshrl.u32 %v4131, 7
        %v4133 = vsub.s32 %v4130, %v4132
        %v4134 = vrot.slane %v4120, %v4133
        %v4135 = vcombine.low %v4127, %v4134
        %v4212 = vunpack.c.l.b16 %v4011
        %v4213 = vunpack.c.l.b16 %v4012
        %v4214 = vunpack.c.l.b16 %v4013
        %v4215 = vunpack.c.l.b16 %v4014
        %v4216 = vunpack.c.l.b16 %v4015
        %v4217 = vunpack.c.l.b16 %v4016
        %v4218 = vunpack.c.l.b16 %v4017
        %v4219 = vunpack.c.l.b16 %v4018
        %v4220 = vunpack.c.l.b16 %v4019
        %v4221 = vunpack.c.l.b16 %v4020
        %v4222 = vunpack.c.l.b16 %v4021
        %v4223 = vunpack.c.l.b16 %v4022
        %v4224 = vunpack.c.l.b16 %v4023
        %v4225 = vunpack.c.l.b16 %v4024
        %v4226 = vunpack.c.l.b16 %v4025
        %v4227 = vunpack.c.l.b16 %v4026
        %v4228 = vunpack.c.l.b16 %v4027
        %v4229 = vunpack.c.l.b16 %v4028
        %v4230 = vunpack.c.l.b16 %v4029
        %v4231 = vunpack.c.l.b16 %v4030
        %v4232 = vunpack.c.l.b16 %v4031
        %v4233 = vunpack.c.l.b16 %v4032
        %v4234 = vunpack.c.l.b16 %v4033
        %v4235 = vunpack.c.l.b16 %v4034
        %v4236 = vunpack.c.l.b16 %v4035
        %v4237 = vunpack.c.l.b16 %v4036
        %v4238 = vunpack.c.l.b16 %v4037
        %v4239 = vunpack.c.l.b16 %v4038
        %v4240 = vunpack.c.l.b16 %v4039
        %v4241 = vunpack.c.l.b16 %v4040
        %v4242 = vunpack.c.l.b16 %v4041
        %v4243 = vunpack.c.l.b16 %v4042
        %v4244 = vunpack.c.l.b16 %v4043
        %v4245 = vunpack.c.l.b16 %v4044
        %v4246 = vunpack.c.l.b16 %v4045
        %v4247 = vunpack.c.l.b16 %v4046
        %v4248 = vunpack.c.l.b16 %v4047
        %v4249 = vunpack.c.l.b16 %v4048
        %v4250 = vunpack.c.l.b16 %v4049
        %v4251 = vunpack.c.l.b16 %v4050
        %v4252 = vunpack.c.l.b16 %v4051
        %v4253 = vunpack.c.l.b16 %v4052
        %v4254 = vunpack.c.l.b16 %v4053
        %v4255 = vunpack.c.l.b16 %v4054
        %v4256 = vunpack.c.l.b16 %v4055
        %v4257 = vunpack.c.l.b16 %v4056
        %v4258 = vunpack.c.l.b16 %v4057
        %v4259 = vunpack.c.l.b16 %v4058
        %v4260 = vunpack.c.l.b16 %v4059
        %v4261 = vunpack.c.l.b16 %v4060
        %v4262 = vunpack.c.l.b16 %v4061
        %v4263 = vunpack.c.l.b16 %v4062
        %v4264 = vunpack.c.l.b16 %v4063
        %v4265 = vunpack.c.l.b16 %v4064
        %v4266 = vunpack.c.l.b16 %v4065
        %v4267 = vunpack.c.l.b16 %v4066
        %v4268 = vunpack.c.l.b16 %v4067
        %v4269 = vunpack.c.l.b16 %v4068
        %v4270 = vunpack.c.l.b16 %v4069
        %v4271 = vunpack.c.l.b16 %v4070
        %v4272 = vunpack.c.l.b16 %v4071
        %v4273 = vunpack.c.l.b16 %v4072
        %v4274 = vunpack.c.l.b16 %v4073
        %v4275 = vunpack.c.l.b16 %v4074
        %v4276 = vunpack.c.l.b16 %v4075
        %v4277 = vunpack.c.l.b16 %v4076
        %v4278 = vunpack.c.l.b16 %v4077
        %v4279 = vunpack.c.l.b16 %v4078
        %v4280 = vunpack.c.l.b16 %v4079
        %v4281 = vunpack.c.l.b16 %v4080
        %v4282 = vunpack.c.l.b16 %v4081
        %v4283 = vunpack.c.l.b16 %v4082
        %v4284 = vpack.c.b16 %v4213, %v4212
        %v4285 = vpack.c.b16 %v4215, %v4214
        %v4286 = vpack.c.b16 %v4217, %v4216
        %v4287 = vpack.c.b16 %v4219, %v4218
        %v4288 = vpack.c.b16 %v4221, %v4220
        %v4289 = vpack.c.b16 %v4223, %v4222
        %v4290 = vpack.c.b16 %v4225, %v4224
        %v4291 = vpack.c.b16 %v4227, %v4226
        %v4292 = vpack.c.b16 %v4229, %v4228
        %v4293 = vpack.c.b16 %v4231, %v4230
        %v4294 = vpack.c.b16 %v4233, %v4232
        %v4295 = vpack.c.b16 %v4235, %v4234
        %v4296 = vpack.c.b16 %v4237, %v4236
        %v4297 = vpack.c.b16 %v4239, %v4238
        %v4298 = vpack.c.b16 %v4241, %v4240
        %v4299 = vpack.c.b16 %v4243, %v4242
        %v4300 = vpack.c.b16 %v4245, %v4244
        %v4301 = vpack.c.b16 %v4247, %v4246
        %v4302 = vpack.c.b16 %v4249, %v4248
        %v4303 = vpack.c.b16 %v4251, %v4250
        %v4304 = vpack.c.b16 %v4253, %v4252
        %v4305 = vpack.c.b16 %v4255, %v4254
        %v4306 = vpack.c.b16 %v4257, %v4256
        %v4307 = vpack.c.b16 %v4259, %v4258
        %v4308 = vpack.c.b16 %v4261, %v4260
        %v4309 = vpack.c.b16 %v4263, %v4262
        %v4310 = vpack.c.b16 %v4265, %v4264
        %v4311 = vpack.c.b16 %v4267, %v4266
        %v4312 = vpack.c.b16 %v4269, %v4268
        %v4313 = vpack.c.b16 %v4271, %v4270
        %v4314 = vpack.c.b16 %v4273, %v4272
        %v4315 = vpack.c.b16 %v4275, %v4274
        %v4316 = vpack.c.b16 %v4277, %v4276
        %v4317 = vpack.c.b16 %v4279, %v4278
        %v4318 = vpack.c.b16 %v4281, %v4280
        %v4319 = vpack.c.b16 %v4283, %v4282
        %v4357 = vsel %vm364, %v4135, 0
        %4359 = vmatprep.subr.bf16.mxu0 0
        %4360 = vmatpush1.bf16.msra.mxu0 %v4284
        %4361 = vmatprep.subr.bf16.mxu0 0
        %4362 = vmatpush1.bf16.msra.mxu0 %v4285
        %4363 = vmatprep.subr.bf16.mxu0 0
        %4364 = vmatpush1.bf16.msra.mxu0 %v4286
        %4365 = vmatprep.subr.bf16.mxu0 0
        %4366 = vmatpush1.bf16.msra.mxu0 %v4287
        %4367 = vmatprep.subr.bf16.mxu0 0
        %4368 = vmatpush1.bf16.msra.mxu0 %v4288
        %4369 = vmatprep.subr.bf16.mxu0 0
        %4370 = vmatpush1.bf16.msra.mxu0 %v4289
        %4371 = vmatprep.subr.bf16.mxu0 0
        %4372 = vmatpush1.bf16.msra.mxu0 %v4290
        %4373 = vmatprep.subr.bf16.mxu0 0
        %4374 = vmatpush1.bf16.msra.mxu0 %v4291
        %4375 = vmatprep.subr.bf16.mxu0 0
        %4376 = vmatpush1.bf16.msra.mxu0 %v4292
        %4377 = vmatprep.subr.bf16.mxu0 0
        %4378 = vmatpush1.bf16.msra.mxu0 %v4293
        %4379 = vmatprep.subr.bf16.mxu0 0
        %4380 = vmatpush1.bf16.msra.mxu0 %v4294
        %4381 = vmatprep.subr.bf16.mxu0 0
        %4382 = vmatpush1.bf16.msra.mxu0 %v4295
        %4383 = vmatprep.subr.bf16.mxu0 0
        %4384 = vmatpush1.bf16.msra.mxu0 %v4296
        %4385 = vmatprep.subr.bf16.mxu0 0
        %4386 = vmatpush1.bf16.msra.mxu0 %v4297
        %4387 = vmatprep.subr.bf16.mxu0 0
        %4388 = vmatpush1.bf16.msra.mxu0 %v4298
        %4389 = vmatprep.subr.bf16.mxu0 0
        %4390 = vmatpush1.bf16.msra.mxu0 %v4299
        %4391 = vmatprep.mubr.bf16.mxu0 %v4116
        %4392 = vmatmul.mubr.bf16.gmra.mrb[0].mxu0 %v4115
        %v4393 = vpop.f32.mrb[0].mxu0
        %v4394 = vadd.f32 0.0, %v4393
        %v4395 = vpop.f32.mrb[0].mxu0
        %v4396 = vpop.f32.mrb[0].mxu0
        %v4397 = vadd.f32 0.0, %v4396
        %v4398 = vpop.f32.mrb[0].mxu0
        %4399 = vdwg.mxu0
        %4400 = vmatprep.subr.bf16.mxu0 0
        %4401 = vmatpush1.bf16.msra.mxu0 %v4300
        %4402 = vmatprep.subr.bf16.mxu0 0
        %4403 = vmatpush1.bf16.msra.mxu0 %v4301
        %4404 = vmatprep.subr.bf16.mxu0 0
        %4405 = vmatpush1.bf16.msra.mxu0 %v4302
        %4406 = vmatprep.subr.bf16.mxu0 0
        %4407 = vmatpush1.bf16.msra.mxu0 %v4303
        %4408 = vmatprep.subr.bf16.mxu0 0
        %4409 = vmatpush1.bf16.msra.mxu0 %v4304
        %4410 = vmatprep.subr.bf16.mxu0 0
        %4411 = vmatpush1.bf16.msra.mxu0 %v4305
        %4412 = vmatprep.subr.bf16.mxu0 0
        %4413 = vmatpush1.bf16.msra.mxu0 %v4306
        %4414 = vmatprep.subr.bf16.mxu0 0
        %4415 = vmatpush1.bf16.msra.mxu0 %v4307
        %4416 = vmatprep.subr.bf16.mxu0 0
        %4417 = vmatpush1.bf16.msra.mxu0 %v4308
        %4418 = vmatprep.subr.bf16.mxu0 0
        %4419 = vmatpush1.bf16.msra.mxu0 %v4309
        %4420 = vmatprep.subr.bf16.mxu0 0
        %4421 = vmatpush1.bf16.msra.mxu0 %v4310
        %4422 = vmatprep.subr.bf16.mxu0 0
        %4423 = vmatpush1.bf16.msra.mxu0 %v4311
        %4424 = vmatprep.subr.bf16.mxu0 0
        %4425 = vmatpush1.bf16.msra.mxu0 %v4312
        %4426 = vmatprep.subr.bf16.mxu0 0
        %4427 = vmatpush1.bf16.msra.mxu0 %v4313
        %4428 = vmatprep.subr.bf16.mxu0 0
        %4429 = vmatpush1.bf16.msra.mxu0 %v4314
        %4430 = vmatprep.subr.bf16.mxu0 0
        %4431 = vmatpush1.bf16.msra.mxu0 %v4315
        %4432 = vmatprep.mubr.bf16.mxu0 %v4118
        %4433 = vmatmul.mubr.bf16.gmra.mrb[0].mxu0 %v4117
        %v4434 = vpop.f32.mrb[0].mxu0
        %v4435 = vadd.f32 %v4394, %v4434
        %v4436 = vpop.f32.mrb[0].mxu0
        %v4437 = vpop.f32.mrb[0].mxu0
        %v4438 = vadd.f32 %v4397, %v4437
        %v4439 = vpop.f32.mrb[0].mxu0
        %4440 = vdwg.mxu0
        %4441 = vmatprep.subr.bf16.mxu0 0
        %4442 = vmatpush1.bf16.msra.mxu0 %v4316
        %4443 = vmatprep.subr.bf16.mxu0 0
        %4444 = vmatpush1.bf16.msra.mxu0 %v4317
        %4445 = vmatprep.subr.bf16.mxu0 0
        %4446 = vmatpush1.bf16.msra.mxu0 %v4318
        %4447 = vmatprep.subr.bf16.mxu0 0
        %4448 = vmatpush1.bf16.msra.mxu0 %v4319
        %4449 = vmatprep.subr.bf16.mxu0 0
        %4450 = vmatpush1.bf16.msra.mxu0 0
        %4451 = vmatprep.subr.bf16.mxu0 0
        %4452 = vmatpush1.bf16.msra.mxu0 0
        %4453 = vmatprep.subr.bf16.mxu0 0
        %4454 = vmatpush1.bf16.msra.mxu0 0
        %4455 = vmatprep.subr.bf16.mxu0 0
        %4456 = vmatpush1.bf16.msra.mxu0 0
        %4457 = vmatprep.subr.bf16.mxu0 0
        %4458 = vmatpush1.bf16.msra.mxu0 0
        %4459 = vmatprep.subr.bf16.mxu0 0
        %4460 = vmatpush1.bf16.msra.mxu0 0
        %4461 = vmatprep.subr.bf16.mxu0 0
        %4462 = vmatpush1.bf16.msra.mxu0 0
        %4463 = vmatprep.subr.bf16.mxu0 0
        %4464 = vmatpush1.bf16.msra.mxu0 0
        %4465 = vmatprep.subr.bf16.mxu0 0
        %4466 = vmatpush1.bf16.msra.mxu0 0
        %4467 = vmatprep.subr.bf16.mxu0 0
        %4468 = vmatpush1.bf16.msra.mxu0 0
        %4469 = vmatprep.subr.bf16.mxu0 0
        %4470 = vmatpush1.bf16.msra.mxu0 0
        %4471 = vmatprep.subr.bf16.mxu0 0
        %4472 = vmatpush1.bf16.msra.mxu0 0
        %4473 = vmatprep.mubr.bf16.mxu0 0
        %4474 = vmatmul.mubr.bf16.gmra.mrb[0].mxu0 %v4357
        %v4475 = vpop.f32.mrb[0].mxu0
        %v4476 = vadd.f32 %v4435, %v4475
        %v4477 = vpop.f32.mrb[0].mxu0
        %v4478 = vpop.f32.mrb[0].mxu0
        %v4479 = vadd.f32 %v4438, %v4478
        %v4480 = vpop.f32.mrb[0].mxu0
        %4481 = vdwg.mxu0
        %v4482 = vcombine.low %v3829, %v3853
        %v4483 = vcombine.high %v3829, %v3853
        %v4484 = vcombine.low %v3877, %v3901
        %v4485 = vcombine.high %v3877, %v3901
        %v4487 = vunpack.c.l.s4 1983009808
        %v4488 = vunpack.c.0.s8 %v4487
        %v4489 = vlaneseq
        %v4490 = vshrl.u32 %v4489, 7
        %v4491 = vsub.s32 %v4488, %v4490
        %v4492 = vrot.slane %v4482, %v4491
        %v4494 = vunpack.c.l.s4 1983009808
        %v4495 = vunpack.c.0.s8 %v4494
        %v4496 = vlaneseq
        %v4497 = vshrl.u32 %v4496, 7
        %v4498 = vsub.s32 %v4495, %v4497
        %v4499 = vrot.slane %v4483, %v4498
        %v4501 = vunpack.c.l.s4 1983009808
        %v4502 = vunpack.c.0.s8 %v4501
        %v4503 = vlaneseq
        %v4504 = vshrl.u32 %v4503, 7
        %v4505 = vsub.s32 %v4502, %v4504
        %v4506 = vrot.slane %v4484, %v4505
        %v4508 = vunpack.c.l.s4 1983009808
        %v4509 = vunpack.c.0.s8 %v4508
        %v4510 = vlaneseq
        %v4511 = vshrl.u32 %v4510, 7
        %v4512 = vsub.s32 %v4509, %v4511
        %v4513 = vrot.slane %v4485, %v4512
        %v4514 = vcombine.low %v4492, %v4506
        %v4515 = vcombine.high %v4492, %v4506
        %v4516 = vcombine.low %v4499, %v4513
        %v4517 = vcombine.high %v4499, %v4513
        %v4518 = vcombine.low %v3836, %v3860
        %v4519 = vcombine.low %v3884, %v3908
        %v4521 = vunpack.c.l.s4 1983009808
        %v4522 = vunpack.c.0.s8 %v4521
        %v4523 = vlaneseq
        %v4524 = vshrl.u32 %v4523, 7
        %v4525 = vsub.s32 %v4522, %v4524
        %v4526 = vrot.slane %v4518, %v4525
        %v4528 = vunpack.c.l.s4 1983009808
        %v4529 = vunpack.c.0.s8 %v4528
        %v4530 = vlaneseq
        %v4531 = vshrl.u32 %v4530, 7
        %v4532 = vsub.s32 %v4529, %v4531
        %v4533 = vrot.slane %v4519, %v4532
        %v4534 = vcombine.low %v4526, %v4533
        %v4611 = vunpack.c.l.b16 %v3909
        %v4612 = vunpack.c.l.b16 %v3910
        %v4613 = vunpack.c.l.b16 %v3911
        %v4614 = vunpack.c.l.b16 %v3912
        %v4615 = vunpack.c.l.b16 %v3913
        %v4616 = vunpack.c.l.b16 %v3914
        %v4617 = vunpack.c.l.b16 %v3915
        %v4618 = vunpack.c.l.b16 %v3916
        %v4619 = vunpack.c.l.b16 %v3917
        %v4620 = vunpack.c.l.b16 %v3918
        %v4621 = vunpack.c.l.b16 %v3919
        %v4622 = vunpack.c.l.b16 %v3920
        %v4623 = vunpack.c.l.b16 %v3921
        %v4624 = vunpack.c.l.b16 %v3922
        %v4625 = vunpack.c.l.b16 %v3923
        %v4626 = vunpack.c.l.b16 %v3924
        %v4627 = vunpack.c.l.b16 %v3925
        %v4628 = vunpack.c.l.b16 %v3926
        %v4629 = vunpack.c.l.b16 %v3927
        %v4630 = vunpack.c.l.b16 %v3928
        %v4631 = vunpack.c.l.b16 %v3929
        %v4632 = vunpack.c.l.b16 %v3930
        %v4633 = vunpack.c.l.b16 %v3931
        %v4634 = vunpack.c.l.b16 %v3932
        %v4635 = vunpack.c.l.b16 %v3933
        %v4636 = vunpack.c.l.b16 %v3934
        %v4637 = vunpack.c.l.b16 %v3935
        %v4638 = vunpack.c.l.b16 %v3936
        %v4639 = vunpack.c.l.b16 %v3937
        %v4640 = vunpack.c.l.b16 %v3938
        %v4641 = vunpack.c.l.b16 %v3939
        %v4642 = vunpack.c.l.b16 %v3940
        %v4643 = vunpack.c.l.b16 %v3941
        %v4644 = vunpack.c.l.b16 %v3942
        %v4645 = vunpack.c.l.b16 %v3943
        %v4646 = vunpack.c.l.b16 %v3944
        %v4647 = vunpack.c.l.b16 %v3945
        %v4648 = vunpack.c.l.b16 %v3946
        %v4649 = vunpack.c.l.b16 %v3947
        %v4650 = vunpack.c.l.b16 %v3948
        %v4651 = vunpack.c.l.b16 %v3949
        %v4652 = vunpack.c.l.b16 %v3950
        %v4653 = vunpack.c.l.b16 %v3951
        %v4654 = vunpack.c.l.b16 %v3952
        %v4655 = vunpack.c.l.b16 %v3953
        %v4656 = vunpack.c.l.b16 %v3954
        %v4657 = vunpack.c.l.b16 %v3955
        %v4658 = vunpack.c.l.b16 %v3956
        %v4659 = vunpack.c.l.b16 %v3957
        %v4660 = vunpack.c.l.b16 %v3958
        %v4661 = vunpack.c.l.b16 %v3959
        %v4662 = vunpack.c.l.b16 %v3960
        %v4663 = vunpack.c.l.b16 %v3961
        %v4664 = vunpack.c.l.b16 %v3962
        %v4665 = vunpack.c.l.b16 %v3963
        %v4666 = vunpack.c.l.b16 %v3964
        %v4667 = vunpack.c.l.b16 %v3965
        %v4668 = vunpack.c.l.b16 %v3966
        %v4669 = vunpack.c.l.b16 %v3967
        %v4670 = vunpack.c.l.b16 %v3968
        %v4671 = vunpack.c.l.b16 %v3969
        %v4672 = vunpack.c.l.b16 %v3970
        %v4673 = vunpack.c.l.b16 %v3971
        %v4674 = vunpack.c.l.b16 %v3972
        %v4675 = vunpack.c.l.b16 %v3973
        %v4676 = vunpack.c.l.b16 %v3974
        %v4677 = vunpack.c.l.b16 %v3975
        %v4678 = vunpack.c.l.b16 %v3976
        %v4679 = vunpack.c.l.b16 %v3977
        %v4680 = vunpack.c.l.b16 %v3978
        %v4681 = vunpack.c.l.b16 %v3979
        %v4682 = vunpack.c.l.b16 %v3980
        %v4683 = vpack.c.b16 %v4612, %v4611
        %v4684 = vpack.c.b16 %v4614, %v4613
        %v4685 = vpack.c.b16 %v4616, %v4615
        %v4686 = vpack.c.b16 %v4618, %v4617
        %v4687 = vpack.c.b16 %v4620, %v4619
        %v4688 = vpack.c.b16 %v4622, %v4621
        %v4689 = vpack.c.b16 %v4624, %v4623
        %v4690 = vpack.c.b16 %v4626, %v4625
        %v4691 = vpack.c.b16 %v4628, %v4627
        %v4692 = vpack.c.b16 %v4630, %v4629
        %v4693 = vpack.c.b16 %v4632, %v4631
        %v4694 = vpack.c.b16 %v4634, %v4633
        %v4695 = vpack.c.b16 %v4636, %v4635
        %v4696 = vpack.c.b16 %v4638, %v4637
        %v4697 = vpack.c.b16 %v4640, %v4639
        %v4698 = vpack.c.b16 %v4642, %v4641
        %v4699 = vpack.c.b16 %v4644, %v4643
        %v4700 = vpack.c.b16 %v4646, %v4645
        %v4701 = vpack.c.b16 %v4648, %v4647
        %v4702 = vpack.c.b16 %v4650, %v4649
        %v4703 = vpack.c.b16 %v4652, %v4651
        %v4704 = vpack.c.b16 %v4654, %v4653
        %v4705 = vpack.c.b16 %v4656, %v4655
        %v4706 = vpack.c.b16 %v4658, %v4657
        %v4707 = vpack.c.b16 %v4660, %v4659
        %v4708 = vpack.c.b16 %v4662, %v4661
        %v4709 = vpack.c.b16 %v4664, %v4663
        %v4710 = vpack.c.b16 %v4666, %v4665
        %v4711 = vpack.c.b16 %v4668, %v4667
        %v4712 = vpack.c.b16 %v4670, %v4669
        %v4713 = vpack.c.b16 %v4672, %v4671
        %v4714 = vpack.c.b16 %v4674, %v4673
        %v4715 = vpack.c.b16 %v4676, %v4675
        %v4716 = vpack.c.b16 %v4678, %v4677
        %v4717 = vpack.c.b16 %v4680, %v4679
        %v4718 = vpack.c.b16 %v4682, %v4681
        %v4756 = vsel %vm364, %v4534, 0
        %4758 = vmatprep.subr.bf16.mxu0 0
        %4759 = vmatpush1.bf16.msra.mxu0 %v4683
        %4760 = vmatprep.subr.bf16.mxu0 0
        %4761 = vmatpush1.bf16.msra.mxu0 %v4684
        %4762 = vmatprep.subr.bf16.mxu0 0
        %4763 = vmatpush1.bf16.msra.mxu0 %v4685
        %4764 = vmatprep.subr.bf16.mxu0 0
        %4765 = vmatpush1.bf16.msra.mxu0 %v4686
        %4766 = vmatprep.subr.bf16.mxu0 0
        %4767 = vmatpush1.bf16.msra.mxu0 %v4687
        %4768 = vmatprep.subr.bf16.mxu0 0
        %4769 = vmatpush1.bf16.msra.mxu0 %v4688
        %4770 = vmatprep.subr.bf16.mxu0 0
        %4771 = vmatpush1.bf16.msra.mxu0 %v4689
        %4772 = vmatprep.subr.bf16.mxu0 0
        %4773 = vmatpush1.bf16.msra.mxu0 %v4690
        %4774 = vmatprep.subr.bf16.mxu0 0
        %4775 = vmatpush1.bf16.msra.mxu0 %v4691
        %4776 = vmatprep.subr.bf16.mxu0 0
        %4777 = vmatpush1.bf16.msra.mxu0 %v4692
        %4778 = vmatprep.subr.bf16.mxu0 0
        %4779 = vmatpush1.bf16.msra.mxu0 %v4693
        %4780 = vmatprep.subr.bf16.mxu0 0
        %4781 = vmatpush1.bf16.msra.mxu0 %v4694
        %4782 = vmatprep.subr.bf16.mxu0 0
        %4783 = vmatpush1.bf16.msra.mxu0 %v4695
        %4784 = vmatprep.subr.bf16.mxu0 0
        %4785 = vmatpush1.bf16.msra.mxu0 %v4696
        %4786 = vmatprep.subr.bf16.mxu0 0
        %4787 = vmatpush1.bf16.msra.mxu0 %v4697
        %4788 = vmatprep.subr.bf16.mxu0 0
        %4789 = vmatpush1.bf16.msra.mxu0 %v4698
        %4790 = vmatprep.mubr.bf16.mxu0 %v4515
        %4791 = vmatmul.mubr.bf16.gmra.mrb[0].mxu0 %v4514
        %v4792 = vpop.f32.mrb[0].mxu0
        %v4793 = vadd.f32 %v4476, %v4792
        %v4794 = vpop.f32.mrb[0].mxu0
        %v4795 = vpop.f32.mrb[0].mxu0
        %v4796 = vadd.f32 %v4479, %v4795
        %v4797 = vpop.f32.mrb[0].mxu0
        %4798 = vdwg.mxu0
        %4799 = vmatprep.subr.bf16.mxu0 0
        %4800 = vmatpush1.bf16.msra.mxu0 %v4699
        %4801 = vmatprep.subr.bf16.mxu0 0
        %4802 = vmatpush1.bf16.msra.mxu0 %v4700
        %4803 = vmatprep.subr.bf16.mxu0 0
        %4804 = vmatpush1.bf16.msra.mxu0 %v4701
        %4805 = vmatprep.subr.bf16.mxu0 0
        %4806 = vmatpush1.bf16.msra.mxu0 %v4702
        %4807 = vmatprep.subr.bf16.mxu0 0
        %4808 = vmatpush1.bf16.msra.mxu0 %v4703
        %4809 = vmatprep.subr.bf16.mxu0 0
        %4810 = vmatpush1.bf16.msra.mxu0 %v4704
        %4811 = vmatprep.subr.bf16.mxu0 0
        %4812 = vmatpush1.bf16.msra.mxu0 %v4705
        %4813 = vmatprep.subr.bf16.mxu0 0
        %4814 = vmatpush1.bf16.msra.mxu0 %v4706
        %4815 = vmatprep.subr.bf16.mxu0 0
        %4816 = vmatpush1.bf16.msra.mxu0 %v4707
        %4817 = vmatprep.subr.bf16.mxu0 0
        %4818 = vmatpush1.bf16.msra.mxu0 %v4708
        %4819 = vmatprep.subr.bf16.mxu0 0
        %4820 = vmatpush1.bf16.msra.mxu0 %v4709
        %4821 = vmatprep.subr.bf16.mxu0 0
        %4822 = vmatpush1.bf16.msra.mxu0 %v4710
        %4823 = vmatprep.subr.bf16.mxu0 0
        %4824 = vmatpush1.bf16.msra.mxu0 %v4711
        %4825 = vmatprep.subr.bf16.mxu0 0
        %4826 = vmatpush1.bf16.msra.mxu0 %v4712
        %4827 = vmatprep.subr.bf16.mxu0 0
        %4828 = vmatpush1.bf16.msra.mxu0 %v4713
        %4829 = vmatprep.subr.bf16.mxu0 0
        %4830 = vmatpush1.bf16.msra.mxu0 %v4714
        %4831 = vmatprep.mubr.bf16.mxu0 %v4517
        %4832 = vmatmul.mubr.bf16.gmra.mrb[0].mxu0 %v4516
        %v4833 = vpop.f32.mrb[0].mxu0
        %v4834 = vadd.f32 %v4793, %v4833
        %v4835 = vpop.f32.mrb[0].mxu0
        %v4836 = vpop.f32.mrb[0].mxu0
        %v4837 = vadd.f32 %v4796, %v4836
        %v4838 = vpop.f32.mrb[0].mxu0
        %4839 = vdwg.mxu0
        %4840 = vmatprep.subr.bf16.mxu0 0
        %4841 = vmatpush1.bf16.msra.mxu0 %v4715
        %4842 = vmatprep.subr.bf16.mxu0 0
        %4843 = vmatpush1.bf16.msra.mxu0 %v4716
        %4844 = vmatprep.subr.bf16.mxu0 0
        %4845 = vmatpush1.bf16.msra.mxu0 %v4717
        %4846 = vmatprep.subr.bf16.mxu0 0
        %4847 = vmatpush1.bf16.msra.mxu0 %v4718
        %4848 = vmatprep.subr.bf16.mxu0 0
        %4849 = vmatpush1.bf16.msra.mxu0 0
        %4850 = vmatprep.subr.bf16.mxu0 0
        %4851 = vmatpush1.bf16.msra.mxu0 0
        %4852 = vmatprep.subr.bf16.mxu0 0
        %4853 = vmatpush1.bf16.msra.mxu0 0
        %4854 = vmatprep.subr.bf16.mxu0 0
        %4855 = vmatpush1.bf16.msra.mxu0 0
        %4856 = vmatprep.subr.bf16.mxu0 0
        %4857 = vmatpush1.bf16.msra.mxu0 0
        %4858 = vmatprep.subr.bf16.mxu0 0
        %4859 = vmatpush1.bf16.msra.mxu0 0
        %4860 = vmatprep.subr.bf16.mxu0 0
        %4861 = vmatpush1.bf16.msra.mxu0 0
        %4862 = vmatprep.subr.bf16.mxu0 0
        %4863 = vmatpush1.bf16.msra.mxu0 0
        %4864 = vmatprep.subr.bf16.mxu0 0
        %4865 = vmatpush1.bf16.msra.mxu0 0
        %4866 = vmatprep.subr.bf16.mxu0 0
        %4867 = vmatpush1.bf16.msra.mxu0 0
        %4868 = vmatprep.subr.bf16.mxu0 0
        %4869 = vmatpush1.bf16.msra.mxu0 0
        %4870 = vmatprep.subr.bf16.mxu0 0
        %4871 = vmatpush1.bf16.msra.mxu0 0
        %4872 = vmatprep.mubr.bf16.mxu0 0
        %4873 = vmatmul.mubr.bf16.gmra.mrb[0].mxu0 %v4756
        %v4874 = vpop.f32.mrb[0].mxu0
        %v4875 = vadd.f32 %v4834, %v4874
        %v4876 = vpop.f32.mrb[0].mxu0
        %v4877 = vpop.f32.mrb[0].mxu0
        %v4878 = vadd.f32 %v4837, %v4877
        %v4879 = vpop.f32.mrb[0].mxu0
        %4880 = vdwg.mxu0
        %v4886 = vcombine.low %v3666, %v3702
        %v4887 = vcombine.low %v3738, %v3774
        %v4889 = vunpack.c.l.s4 1983009808
        %v4890 = vunpack.c.0.s8 %v4889
        %v4891 = vlaneseq
        %v4892 = vshrl.u32 %v4891, 7
        %v4893 = vsub.s32 %v4890, %v4892
        %v4894 = vrot.slane %v4886, %v4893
        %v4896 = vunpack.c.l.s4 1983009808
        %v4897 = vunpack.c.0.s8 %v4896
        %v4898 = vlaneseq
        %v4899 = vshrl.u32 %v4898, 7
        %v4900 = vsub.s32 %v4897, %v4899
        %v4901 = vrot.slane %v4887, %v4900
        %v4902 = vcombine.low %v4894, %v4901
        %v4904 = vunpack.c.l.s4 1983009808
        %v4905 = vunpack.c.0.s8 %v4904
        %v4906 = vlaneseq
        %v4907 = vshrl.u32 %v4906, 7
        %v4908 = vsub.s32 %v4905, %v4907
        %v4909 = vrot.slane %v3498, %v4908
        %s4910 = scalar_lea.vmem %s5, 576
        %v4911 = vld [vmem:[%s4910] sm:$0xf]
        %v4912 = vld [vmem:[%s4910 + $0x4] sm:$0xf]
        %v4913 = vld [vmem:[%s4910 + $0x8] sm:$0xf]
        %v4914 = vld [vmem:[%s4910 + $0xc] sm:$0xf]
        %v4915 = vld [vmem:[%s4910 + $0x10] sm:$0xf]
        %v4916 = vld [vmem:[%s4910 + $0x14] sm:$0xf]
        %v4917 = vld [vmem:[%s4910 + $0x18] sm:$0xf]
        %v4918 = vld [vmem:[%s4910 + $0x1c] sm:$0xf]
        %v4919 = vld [vmem:[%s4910 + $0x20] sm:$0xf]
        %v4920 = vld [vmem:[%s4910 + $0x24] sm:$0xf]
        %v4921 = vld [vmem:[%s4910 + $0x28] sm:$0xf]
        %v4922 = vld [vmem:[%s4910 + $0x2c] sm:$0xf]
        %v4923 = vld [vmem:[%s4910 + $0x30] sm:$0xf]
        %v4924 = vld [vmem:[%s4910 + $0x34] sm:$0xf]
        %v4925 = vld [vmem:[%s4910 + $0x38] sm:$0xf]
        %v4926 = vld [vmem:[%s4910 + $0x3c] sm:$0xf]
        %v4927 = vld [vmem:[%s4910 + $0x40] sm:$0xf]
        %v4928 = vld [vmem:[%s4910 + $0x44] sm:$0xf]
        %v4929 = vld [vmem:[%s4910 + $0x48] sm:$0xf]
        %v4930 = vld [vmem:[%s4910 + $0x4c] sm:$0xf]
        %v4931 = vld [vmem:[%s4910 + $0x50] sm:$0xf]
        %v4932 = vld [vmem:[%s4910 + $0x54] sm:$0xf]
        %v4933 = vld [vmem:[%s4910 + $0x58] sm:$0xf]
        %v4934 = vld [vmem:[%s4910 + $0x5c] sm:$0xf]
        %v4935 = vld [vmem:[%s4910 + $0x60] sm:$0xf]
        %v4936 = vld [vmem:[%s4910 + $0x64] sm:$0xf]
        %v4937 = vld [vmem:[%s4910 + $0x68] sm:$0xf]
        %v4938 = vld [vmem:[%s4910 + $0x6c] sm:$0xf]
        %v4939 = vld [vmem:[%s4910 + $0x70] sm:$0xf]
        %v4940 = vld [vmem:[%s4910 + $0x74] sm:$0xf]
        %v4941 = vld [vmem:[%s4910 + $0x78] sm:$0xf]
        %v4942 = vld [vmem:[%s4910 + $0x7c] sm:$0xf]
        %v4943 = vld [vmem:[%s4910 + $0x80] sm:$0xf]
        %v4944 = vld [vmem:[%s4910 + $0x84] sm:$0xf]
        %v4945 = vld [vmem:[%s4910 + $0x88] sm:$0xf]
        %v4946 = vld [vmem:[%s4910 + $0x8c] sm:$0xf]
        %v4947 = vld [vmem:[%s4910 + $0x90] sm:$0xf]
        %v4948 = vld [vmem:[%s4910 + $0x94] sm:$0xf]
        %v4949 = vld [vmem:[%s4910 + $0x98] sm:$0xf]
        %v4950 = vld [vmem:[%s4910 + $0x9c] sm:$0xf]
        %v4951 = vld [vmem:[%s4910 + $0xa0] sm:$0xf]
        %v4952 = vld [vmem:[%s4910 + $0xa4] sm:$0xf]
        %v4953 = vld [vmem:[%s4910 + $0xa8] sm:$0xf]
        %v4954 = vld [vmem:[%s4910 + $0xac] sm:$0xf]
        %v4955 = vld [vmem:[%s4910 + $0xb0] sm:$0xf]
        %v4956 = vld [vmem:[%s4910 + $0xb4] sm:$0xf]
        %v4957 = vld [vmem:[%s4910 + $0xb8] sm:$0xf]
        %v4958 = vld [vmem:[%s4910 + $0xbc] sm:$0xf]
        %v4959 = vld [vmem:[%s4910 + $0xc0] sm:$0xf]
        %v4960 = vld [vmem:[%s4910 + $0xc4] sm:$0xf]
        %v4961 = vld [vmem:[%s4910 + $0xc8] sm:$0xf]
        %v4962 = vld [vmem:[%s4910 + $0xcc] sm:$0xf]
        %v4963 = vld [vmem:[%s4910 + $0xd0] sm:$0xf]
        %v4964 = vld [vmem:[%s4910 + $0xd4] sm:$0xf]
        %v4965 = vld [vmem:[%s4910 + $0xd8] sm:$0xf]
        %v4966 = vld [vmem:[%s4910 + $0xdc] sm:$0xf]
        %v4967 = vld [vmem:[%s4910 + $0xe0] sm:$0xf]
        %v4968 = vld [vmem:[%s4910 + $0xe4] sm:$0xf]
        %v4969 = vld [vmem:[%s4910 + $0xe8] sm:$0xf]
        %v4970 = vld [vmem:[%s4910 + $0xec] sm:$0xf]
        %v4971 = vld [vmem:[%s4910 + $0xf0] sm:$0xf]
        %v4972 = vld [vmem:[%s4910 + $0xf4] sm:$0xf]
        %v4973 = vld [vmem:[%s4910 + $0xf8] sm:$0xf]
        %v4974 = vld [vmem:[%s4910 + $0xfc] sm:$0xf]
        %v4975 = vld [vmem:[%s4910 + $0x100] sm:$0xf]
        %v4976 = vld [vmem:[%s4910 + $0x104] sm:$0xf]
        %v4977 = vld [vmem:[%s4910 + $0x108] sm:$0xf]
        %v4978 = vld [vmem:[%s4910 + $0x10c] sm:$0xf]
        %v4979 = vld [vmem:[%s4910 + $0x110] sm:$0xf]
        %v4980 = vld [vmem:[%s4910 + $0x114] sm:$0xf]
        %v4981 = vld [vmem:[%s4910 + $0x118] sm:$0xf]
        %v4982 = vld [vmem:[%s4910 + $0x11c] sm:$0xf]
        %v4983 = vcombine.low %v4002, %v4902
        %v4984 = vcombine.high %v4002, %v4902
        %v4986 = vunpack.c.l.s4 1983009808
        %v4987 = vunpack.c.0.s8 %v4986
        %v4988 = vlaneseq
        %v4989 = vshrl.u32 %v4988, 7
        %v4990 = vsub.s32 %v4987, %v4989
        %v4991 = vrot.slane %v4983, %v4990
        %v4993 = vunpack.c.l.s4 1983009808
        %v4994 = vunpack.c.0.s8 %v4993
        %v4995 = vlaneseq
        %v4996 = vshrl.u32 %v4995, 7
        %v4997 = vsub.s32 %v4994, %v4996
        %v4998 = vrot.slane %v4984, %v4997
        %v4999 = vcombine.low %v4506, %v4991
        %v5000 = vcombine.high %v4506, %v4991
        %v5001 = vcombine.low %v4513, %v4998
        %v5002 = vcombine.high %v4513, %v4998
        %v5003 = vcombine.low %v4009, %v4909
        %v5005 = vunpack.c.l.s4 1983009808
        %v5006 = vunpack.c.0.s8 %v5005
        %v5007 = vlaneseq
        %v5008 = vshrl.u32 %v5007, 7
        %v5009 = vsub.s32 %v5006, %v5008
        %v5010 = vrot.slane %v5003, %v5009
        %v5011 = vcombine.low %v4533, %v5010
        %v5088 = vunpack.c.l.b16 %v4911
        %v5089 = vunpack.c.l.b16 %v4912
        %v5090 = vunpack.c.l.b16 %v4913
        %v5091 = vunpack.c.l.b16 %v4914
        %v5092 = vunpack.c.l.b16 %v4915
        %v5093 = vunpack.c.l.b16 %v4916
        %v5094 = vunpack.c.l.b16 %v4917
        %v5095 = vunpack.c.l.b16 %v4918
        %v5096 = vunpack.c.l.b16 %v4919
        %v5097 = vunpack.c.l.b16 %v4920
        %v5098 = vunpack.c.l.b16 %v4921
        %v5099 = vunpack.c.l.b16 %v4922
        %v5100 = vunpack.c.l.b16 %v4923
        %v5101 = vunpack.c.l.b16 %v4924
        %v5102 = vunpack.c.l.b16 %v4925
        %v5103 = vunpack.c.l.b16 %v4926
        %v5104 = vunpack.c.l.b16 %v4927
        %v5105 = vunpack.c.l.b16 %v4928
        %v5106 = vunpack.c.l.b16 %v4929
        %v5107 = vunpack.c.l.b16 %v4930
        %v5108 = vunpack.c.l.b16 %v4931
        %v5109 = vunpack.c.l.b16 %v4932
        %v5110 = vunpack.c.l.b16 %v4933
        %v5111 = vunpack.c.l.b16 %v4934
        %v5112 = vunpack.c.l.b16 %v4935
        %v5113 = vunpack.c.l.b16 %v4936
        %v5114 = vunpack.c.l.b16 %v4937
        %v5115 = vunpack.c.l.b16 %v4938
        %v5116 = vunpack.c.l.b16 %v4939
        %v5117 = vunpack.c.l.b16 %v4940
        %v5118 = vunpack.c.l.b16 %v4941
        %v5119 = vunpack.c.l.b16 %v4942
        %v5120 = vunpack.c.l.b16 %v4943
        %v5121 = vunpack.c.l.b16 %v4944
        %v5122 = vunpack.c.l.b16 %v4945
        %v5123 = vunpack.c.l.b16 %v4946
        %v5124 = vunpack.c.l.b16 %v4947
        %v5125 = vunpack.c.l.b16 %v4948
        %v5126 = vunpack.c.l.b16 %v4949
        %v5127 = vunpack.c.l.b16 %v4950
        %v5128 = vunpack.c.l.b16 %v4951
        %v5129 = vunpack.c.l.b16 %v4952
        %v5130 = vunpack.c.l.b16 %v4953
        %v5131 = vunpack.c.l.b16 %v4954
        %v5132 = vunpack.c.l.b16 %v4955
        %v5133 = vunpack.c.l.b16 %v4956
        %v5134 = vunpack.c.l.b16 %v4957
        %v5135 = vunpack.c.l.b16 %v4958
        %v5136 = vunpack.c.l.b16 %v4959
        %v5137 = vunpack.c.l.b16 %v4960
        %v5138 = vunpack.c.l.b16 %v4961
        %v5139 = vunpack.c.l.b16 %v4962
        %v5140 = vunpack.c.l.b16 %v4963
        %v5141 = vunpack.c.l.b16 %v4964
        %v5142 = vunpack.c.l.b16 %v4965
        %v5143 = vunpack.c.l.b16 %v4966
        %v5144 = vunpack.c.l.b16 %v4967
        %v5145 = vunpack.c.l.b16 %v4968
        %v5146 = vunpack.c.l.b16 %v4969
        %v5147 = vunpack.c.l.b16 %v4970
        %v5148 = vunpack.c.l.b16 %v4971
        %v5149 = vunpack.c.l.b16 %v4972
        %v5150 = vunpack.c.l.b16 %v4973
        %v5151 = vunpack.c.l.b16 %v4974
        %v5152 = vunpack.c.l.b16 %v4975
        %v5153 = vunpack.c.l.b16 %v4976
        %v5154 = vunpack.c.l.b16 %v4977
        %v5155 = vunpack.c.l.b16 %v4978
        %v5156 = vunpack.c.l.b16 %v4979
        %v5157 = vunpack.c.l.b16 %v4980
        %v5158 = vunpack.c.l.b16 %v4981
        %v5159 = vunpack.c.l.b16 %v4982
        %v5160 = vpack.c.b16 %v5089, %v5088
        %v5161 = vpack.c.b16 %v5091, %v5090
        %v5162 = vpack.c.b16 %v5093, %v5092
        %v5163 = vpack.c.b16 %v5095, %v5094
        %v5164 = vpack.c.b16 %v5097, %v5096
        %v5165 = vpack.c.b16 %v5099, %v5098
        %v5166 = vpack.c.b16 %v5101, %v5100
        %v5167 = vpack.c.b16 %v5103, %v5102
        %v5168 = vpack.c.b16 %v5105, %v5104
        %v5169 = vpack.c.b16 %v5107, %v5106
        %v5170 = vpack.c.b16 %v5109, %v5108
        %v5171 = vpack.c.b16 %v5111, %v5110
        %v5172 = vpack.c.b16 %v5113, %v5112
        %v5173 = vpack.c.b16 %v5115, %v5114
        %v5174 = vpack.c.b16 %v5117, %v5116
        %v5175 = vpack.c.b16 %v5119, %v5118
        %v5176 = vpack.c.b16 %v5121, %v5120
        %v5177 = vpack.c.b16 %v5123, %v5122
        %v5178 = vpack.c.b16 %v5125, %v5124
        %v5179 = vpack.c.b16 %v5127, %v5126
        %v5180 = vpack.c.b16 %v5129, %v5128
        %v5181 = vpack.c.b16 %v5131, %v5130
        %v5182 = vpack.c.b16 %v5133, %v5132
        %v5183 = vpack.c.b16 %v5135, %v5134
        %v5184 = vpack.c.b16 %v5137, %v5136
        %v5185 = vpack.c.b16 %v5139, %v5138
        %v5186 = vpack.c.b16 %v5141, %v5140
        %v5187 = vpack.c.b16 %v5143, %v5142
        %v5188 = vpack.c.b16 %v5145, %v5144
        %v5189 = vpack.c.b16 %v5147, %v5146
        %v5190 = vpack.c.b16 %v5149, %v5148
        %v5191 = vpack.c.b16 %v5151, %v5150
        %v5192 = vpack.c.b16 %v5153, %v5152
        %v5193 = vpack.c.b16 %v5155, %v5154
        %v5194 = vpack.c.b16 %v5157, %v5156
        %v5195 = vpack.c.b16 %v5159, %v5158
        %v5233 = vsel %vm364, %v5011, 0
        %5235 = vmatprep.subr.bf16.mxu0 0
        %5236 = vmatpush1.bf16.msra.mxu0 %v5160
        %5237 = vmatprep.subr.bf16.mxu0 0
        %5238 = vmatpush1.bf16.msra.mxu0 %v5161
        %5239 = vmatprep.subr.bf16.mxu0 0
        %5240 = vmatpush1.bf16.msra.mxu0 %v5162
        %5241 = vmatprep.subr.bf16.mxu0 0
        %5242 = vmatpush1.bf16.msra.mxu0 %v5163
        %5243 = vmatprep.subr.bf16.mxu0 0
        %5244 = vmatpush1.bf16.msra.mxu0 %v5164
        %5245 = vmatprep.subr.bf16.mxu0 0
        %5246 = vmatpush1.bf16.msra.mxu0 %v5165
        %5247 = vmatprep.subr.bf16.mxu0 0
        %5248 = vmatpush1.bf16.msra.mxu0 %v5166
        %5249 = vmatprep.subr.bf16.mxu0 0
        %5250 = vmatpush1.bf16.msra.mxu0 %v5167
        %5251 = vmatprep.subr.bf16.mxu0 0
        %5252 = vmatpush1.bf16.msra.mxu0 %v5168
        %5253 = vmatprep.subr.bf16.mxu0 0
        %5254 = vmatpush1.bf16.msra.mxu0 %v5169
        %5255 = vmatprep.subr.bf16.mxu0 0
        %5256 = vmatpush1.bf16.msra.mxu0 %v5170
        %5257 = vmatprep.subr.bf16.mxu0 0
        %5258 = vmatpush1.bf16.msra.mxu0 %v5171
        %5259 = vmatprep.subr.bf16.mxu0 0
        %5260 = vmatpush1.bf16.msra.mxu0 %v5172
        %5261 = vmatprep.subr.bf16.mxu0 0
        %5262 = vmatpush1.bf16.msra.mxu0 %v5173
        %5263 = vmatprep.subr.bf16.mxu0 0
        %5264 = vmatpush1.bf16.msra.mxu0 %v5174
        %5265 = vmatprep.subr.bf16.mxu0 0
        %5266 = vmatpush1.bf16.msra.mxu0 %v5175
        %5267 = vmatprep.mubr.bf16.mxu0 %v5000
        %5268 = vmatmul.mubr.bf16.gmra.mrb[0].mxu0 %v4999
        %v5269 = vpop.f32.mrb[0].mxu0
        %v5270 = vadd.f32 0.0, %v5269
        %v5271 = vpop.f32.mrb[0].mxu0
        %v5272 = vpop.f32.mrb[0].mxu0
        %v5273 = vadd.f32 0.0, %v5272
        %v5274 = vpop.f32.mrb[0].mxu0
        %5275 = vdwg.mxu0
        %5276 = vmatprep.subr.bf16.mxu0 0
        %5277 = vmatpush1.bf16.msra.mxu0 %v5176
        %5278 = vmatprep.subr.bf16.mxu0 0
        %5279 = vmatpush1.bf16.msra.mxu0 %v5177
        %5280 = vmatprep.subr.bf16.mxu0 0
        %5281 = vmatpush1.bf16.msra.mxu0 %v5178
        %5282 = vmatprep.subr.bf16.mxu0 0
        %5283 = vmatpush1.bf16.msra.mxu0 %v5179
        %5284 = vmatprep.subr.bf16.mxu0 0
        %5285 = vmatpush1.bf16.msra.mxu0 %v5180
        %5286 = vmatprep.subr.bf16.mxu0 0
        %5287 = vmatpush1.bf16.msra.mxu0 %v5181
        %5288 = vmatprep.subr.bf16.mxu0 0
        %5289 = vmatpush1.bf16.msra.mxu0 %v5182
        %5290 = vmatprep.subr.bf16.mxu0 0
        %5291 = vmatpush1.bf16.msra.mxu0 %v5183
        %5292 = vmatprep.subr.bf16.mxu0 0
        %5293 = vmatpush1.bf16.msra.mxu0 %v5184
        %5294 = vmatprep.subr.bf16.mxu0 0
        %5295 = vmatpush1.bf16.msra.mxu0 %v5185
        %5296 = vmatprep.subr.bf16.mxu0 0
        %5297 = vmatpush1.bf16.msra.mxu0 %v5186
        %5298 = vmatprep.subr.bf16.mxu0 0
        %5299 = vmatpush1.bf16.msra.mxu0 %v5187
        %5300 = vmatprep.subr.bf16.mxu0 0
        %5301 = vmatpush1.bf16.msra.mxu0 %v5188
        %5302 = vmatprep.subr.bf16.mxu0 0
        %5303 = vmatpush1.bf16.msra.mxu0 %v5189
        %5304 = vmatprep.subr.bf16.mxu0 0
        %5305 = vmatpush1.bf16.msra.mxu0 %v5190
        %5306 = vmatprep.subr.bf16.mxu0 0
        %5307 = vmatpush1.bf16.msra.mxu0 %v5191
        %5308 = vmatprep.mubr.bf16.mxu0 %v5002
        %5309 = vmatmul.mubr.bf16.gmra.mrb[0].mxu0 %v5001
        %v5310 = vpop.f32.mrb[0].mxu0
        %v5311 = vadd.f32 %v5270, %v5310
        %v5312 = vpop.f32.mrb[0].mxu0
        %v5313 = vpop.f32.mrb[0].mxu0
        %v5314 = vadd.f32 %v5273, %v5313
        %v5315 = vpop.f32.mrb[0].mxu0
        %5316 = vdwg.mxu0
        %5317 = vmatprep.subr.bf16.mxu0 0
        %5318 = vmatpush1.bf16.msra.mxu0 %v5192
        %5319 = vmatprep.subr.bf16.mxu0 0
        %5320 = vmatpush1.bf16.msra.mxu0 %v5193
        %5321 = vmatprep.subr.bf16.mxu0 0
        %5322 = vmatpush1.bf16.msra.mxu0 %v5194
        %5323 = vmatprep.subr.bf16.mxu0 0
        %5324 = vmatpush1.bf16.msra.mxu0 %v5195
        %5325 = vmatprep.subr.bf16.mxu0 0
        %5326 = vmatpush1.bf16.msra.mxu0 0
        %5327 = vmatprep.subr.bf16.mxu0 0
        %5328 = vmatpush1.bf16.msra.mxu0 0
        %5329 = vmatprep.subr.bf16.mxu0 0
        %5330 = vmatpush1.bf16.msra.mxu0 0
        %5331 = vmatprep.subr.bf16.mxu0 0
        %5332 = vmatpush1.bf16.msra.mxu0 0
        %5333 = vmatprep.subr.bf16.mxu0 0
        %5334 = vmatpush1.bf16.msra.mxu0 0
        %5335 = vmatprep.subr.bf16.mxu0 0
        %5336 = vmatpush1.bf16.msra.mxu0 0
        %5337 = vmatprep.subr.bf16.mxu0 0
        %5338 = vmatpush1.bf16.msra.mxu0 0
        %5339 = vmatprep.subr.bf16.mxu0 0
        %5340 = vmatpush1.bf16.msra.mxu0 0
        %5341 = vmatprep.subr.bf16.mxu0 0
        %5342 = vmatpush1.bf16.msra.mxu0 0
        %5343 = vmatprep.subr.bf16.mxu0 0
        %5344 = vmatpush1.bf16.msra.mxu0 0
        %5345 = vmatprep.subr.bf16.mxu0 0
        %5346 = vmatpush1.bf16.msra.mxu0 0
        %5347 = vmatprep.subr.bf16.mxu0 0
        %5348 = vmatpush1.bf16.msra.mxu0 0
        %5349 = vmatprep.mubr.bf16.mxu0 0
        %5350 = vmatmul.mubr.bf16.gmra.mrb[0].mxu0 %v5233
        %v5351 = vpop.f32.mrb[0].mxu0
        %v5352 = vadd.f32 %v5311, %v5351
        %v5353 = vpop.f32.mrb[0].mxu0
        %v5354 = vpop.f32.mrb[0].mxu0
        %v5355 = vadd.f32 %v5314, %v5354
        %v5356 = vpop.f32.mrb[0].mxu0
        %5357 = vdwg.mxu0
        %v5358 = vadd.f32 %v4875, %v5352
        %v5359 = vadd.f32 %v4878, %v5355
        %v5365 = vcombine.low %v3669, %v3705
        %v5366 = vcombine.low %v3741, %v3777
        %v5368 = vunpack.c.l.s4 1983009808
        %v5369 = vunpack.c.0.s8 %v5368
        %v5370 = vlaneseq
        %v5371 = vshrl.u32 %v5370, 7
        %v5372 = vsub.s32 %v5369, %v5371
        %v5373 = vrot.slane %v5365, %v5372
        %v5375 = vunpack.c.l.s4 1983009808
        %v5376 = vunpack.c.0.s8 %v5375
        %v5377 = vlaneseq
        %v5378 = vshrl.u32 %v5377, 7
        %v5379 = vsub.s32 %v5376, %v5378
        %v5380 = vrot.slane %v5366, %v5379
        %v5381 = vcombine.low %v5373, %v5380
        %v5383 = vunpack.c.l.s4 1983009808
        %v5384 = vunpack.c.0.s8 %v5383
        %v5385 = vlaneseq
        %v5386 = vshrl.u32 %v5385, 7
        %v5387 = vsub.s32 %v5384, %v5386
        %v5388 = vrot.slane %v3499, %v5387
        %s5389 = scalar_lea.vmem %s5, 864
        %v5390 = vld [vmem:[%s5389] sm:$0xf]
        %v5391 = vld [vmem:[%s5389 + $0x4] sm:$0xf]
        %v5392 = vld [vmem:[%s5389 + $0x8] sm:$0xf]
        %v5393 = vld [vmem:[%s5389 + $0xc] sm:$0xf]
        %v5394 = vld [vmem:[%s5389 + $0x10] sm:$0xf]
        %v5395 = vld [vmem:[%s5389 + $0x14] sm:$0xf]
        %v5396 = vld [vmem:[%s5389 + $0x18] sm:$0xf]
        %v5397 = vld [vmem:[%s5389 + $0x1c] sm:$0xf]
        %v5398 = vld [vmem:[%s5389 + $0x20] sm:$0xf]
        %v5399 = vld [vmem:[%s5389 + $0x24] sm:$0xf]
        %v5400 = vld [vmem:[%s5389 + $0x28] sm:$0xf]
        %v5401 = vld [vmem:[%s5389 + $0x2c] sm:$0xf]
        %v5402 = vld [vmem:[%s5389 + $0x30] sm:$0xf]
        %v5403 = vld [vmem:[%s5389 + $0x34] sm:$0xf]
        %v5404 = vld [vmem:[%s5389 + $0x38] sm:$0xf]
        %v5405 = vld [vmem:[%s5389 + $0x3c] sm:$0xf]
        %v5406 = vld [vmem:[%s5389 + $0x40] sm:$0xf]
        %v5407 = vld [vmem:[%s5389 + $0x44] sm:$0xf]
        %v5408 = vld [vmem:[%s5389 + $0x48] sm:$0xf]
        %v5409 = vld [vmem:[%s5389 + $0x4c] sm:$0xf]
        %v5410 = vld [vmem:[%s5389 + $0x50] sm:$0xf]
        %v5411 = vld [vmem:[%s5389 + $0x54] sm:$0xf]
        %v5412 = vld [vmem:[%s5389 + $0x58] sm:$0xf]
        %v5413 = vld [vmem:[%s5389 + $0x5c] sm:$0xf]
        %v5414 = vld [vmem:[%s5389 + $0x60] sm:$0xf]
        %v5415 = vld [vmem:[%s5389 + $0x64] sm:$0xf]
        %v5416 = vld [vmem:[%s5389 + $0x68] sm:$0xf]
        %v5417 = vld [vmem:[%s5389 + $0x6c] sm:$0xf]
        %v5418 = vld [vmem:[%s5389 + $0x70] sm:$0xf]
        %v5419 = vld [vmem:[%s5389 + $0x74] sm:$0xf]
        %v5420 = vld [vmem:[%s5389 + $0x78] sm:$0xf]
        %v5421 = vld [vmem:[%s5389 + $0x7c] sm:$0xf]
        %v5422 = vld [vmem:[%s5389 + $0x80] sm:$0xf]
        %v5423 = vld [vmem:[%s5389 + $0x84] sm:$0xf]
        %v5424 = vld [vmem:[%s5389 + $0x88] sm:$0xf]
        %v5425 = vld [vmem:[%s5389 + $0x8c] sm:$0xf]
        %v5426 = vld [vmem:[%s5389 + $0x90] sm:$0xf]
        %v5427 = vld [vmem:[%s5389 + $0x94] sm:$0xf]
        %v5428 = vld [vmem:[%s5389 + $0x98] sm:$0xf]
        %v5429 = vld [vmem:[%s5389 + $0x9c] sm:$0xf]
        %v5430 = vld [vmem:[%s5389 + $0xa0] sm:$0xf]
        %v5431 = vld [vmem:[%s5389 + $0xa4] sm:$0xf]
        %v5432 = vld [vmem:[%s5389 + $0xa8] sm:$0xf]
        %v5433 = vld [vmem:[%s5389 + $0xac] sm:$0xf]
        %v5434 = vld [vmem:[%s5389 + $0xb0] sm:$0xf]
        %v5435 = vld [vmem:[%s5389 + $0xb4] sm:$0xf]
        %v5436 = vld [vmem:[%s5389 + $0xb8] sm:$0xf]
        %v5437 = vld [vmem:[%s5389 + $0xbc] sm:$0xf]
        %v5438 = vld [vmem:[%s5389 + $0xc0] sm:$0xf]
        %v5439 = vld [vmem:[%s5389 + $0xc4] sm:$0xf]
        %v5440 = vld [vmem:[%s5389 + $0xc8] sm:$0xf]
        %v5441 = vld [vmem:[%s5389 + $0xcc] sm:$0xf]
        %v5442 = vld [vmem:[%s5389 + $0xd0] sm:$0xf]
        %v5443 = vld [vmem:[%s5389 + $0xd4] sm:$0xf]
        %v5444 = vld [vmem:[%s5389 + $0xd8] sm:$0xf]
        %v5445 = vld [vmem:[%s5389 + $0xdc] sm:$0xf]
        %v5446 = vld [vmem:[%s5389 + $0xe0] sm:$0xf]
        %v5447 = vld [vmem:[%s5389 + $0xe4] sm:$0xf]
        %v5448 = vld [vmem:[%s5389 + $0xe8] sm:$0xf]
        %v5449 = vld [vmem:[%s5389 + $0xec] sm:$0xf]
        %v5450 = vld [vmem:[%s5389 + $0xf0] sm:$0xf]
        %v5451 = vld [vmem:[%s5389 + $0xf4] sm:$0xf]
        %v5452 = vld [vmem:[%s5389 + $0xf8] sm:$0xf]
        %v5453 = vld [vmem:[%s5389 + $0xfc] sm:$0xf]
        %v5454 = vld [vmem:[%s5389 + $0x100] sm:$0xf]
        %v5455 = vld [vmem:[%s5389 + $0x104] sm:$0xf]
        %v5456 = vld [vmem:[%s5389 + $0x108] sm:$0xf]
        %v5457 = vld [vmem:[%s5389 + $0x10c] sm:$0xf]
        %v5458 = vld [vmem:[%s5389 + $0x110] sm:$0xf]
        %v5459 = vld [vmem:[%s5389 + $0x114] sm:$0xf]
        %v5460 = vld [vmem:[%s5389 + $0x118] sm:$0xf]
        %v5461 = vld [vmem:[%s5389 + $0x11c] sm:$0xf]
        %v5462 = vcombine.low %v4902, %v5381
        %v5463 = vcombine.high %v4902, %v5381
        %v5465 = vunpack.c.l.s4 1983009808
        %v5466 = vunpack.c.0.s8 %v5465
        %v5467 = vlaneseq
        %v5468 = vshrl.u32 %v5467, 7
        %v5469 = vsub.s32 %v5466, %v5468
        %v5470 = vrot.slane %v5462, %v5469
        %v5472 = vunpack.c.l.s4 1983009808
        %v5473 = vunpack.c.0.s8 %v5472
        %v5474 = vlaneseq
        %v5475 = vshrl.u32 %v5474, 7
        %v5476 = vsub.s32 %v5473, %v5475
        %v5477 = vrot.slane %v5463, %v5476
        %v5478 = vcombine.low %v4107, %v5470
        %v5479 = vcombine.high %v4107, %v5470
        %v5480 = vcombine.low %v4114, %v5477
        %v5481 = vcombine.high %v4114, %v5477
        %v5482 = vcombine.low %v4909, %v5388
        %v5484 = vunpack.c.l.s4 1983009808
        %v5485 = vunpack.c.0.s8 %v5484
        %v5486 = vlaneseq
        %v5487 = vshrl.u32 %v5486, 7
        %v5488 = vsub.s32 %v5485, %v5487
        %v5489 = vrot.slane %v5482, %v5488
        %v5490 = vcombine.low %v4134, %v5489
        %v5567 = vunpack.c.l.b16 %v5390
        %v5568 = vunpack.c.l.b16 %v5391
        %v5569 = vunpack.c.l.b16 %v5392
        %v5570 = vunpack.c.l.b16 %v5393
        %v5571 = vunpack.c.l.b16 %v5394
        %v5572 = vunpack.c.l.b16 %v5395
        %v5573 = vunpack.c.l.b16 %v5396
        %v5574 = vunpack.c.l.b16 %v5397
        %v5575 = vunpack.c.l.b16 %v5398
        %v5576 = vunpack.c.l.b16 %v5399
        %v5577 = vunpack.c.l.b16 %v5400
        %v5578 = vunpack.c.l.b16 %v5401
        %v5579 = vunpack.c.l.b16 %v5402
        %v5580 = vunpack.c.l.b16 %v5403
        %v5581 = vunpack.c.l.b16 %v5404
        %v5582 = vunpack.c.l.b16 %v5405
        %v5583 = vunpack.c.l.b16 %v5406
        %v5584 = vunpack.c.l.b16 %v5407
        %v5585 = vunpack.c.l.b16 %v5408
        %v5586 = vunpack.c.l.b16 %v5409
        %v5587 = vunpack.c.l.b16 %v5410
        %v5588 = vunpack.c.l.b16 %v5411
        %v5589 = vunpack.c.l.b16 %v5412
        %v5590 = vunpack.c.l.b16 %v5413
        %v5591 = vunpack.c.l.b16 %v5414
        %v5592 = vunpack.c.l.b16 %v5415
        %v5593 = vunpack.c.l.b16 %v5416
        %v5594 = vunpack.c.l.b16 %v5417
        %v5595 = vunpack.c.l.b16 %v5418
        %v5596 = vunpack.c.l.b16 %v5419
        %v5597 = vunpack.c.l.b16 %v5420
        %v5598 = vunpack.c.l.b16 %v5421
        %v5599 = vunpack.c.l.b16 %v5422
        %v5600 = vunpack.c.l.b16 %v5423
        %v5601 = vunpack.c.l.b16 %v5424
        %v5602 = vunpack.c.l.b16 %v5425
        %v5603 = vunpack.c.l.b16 %v5426
        %v5604 = vunpack.c.l.b16 %v5427
        %v5605 = vunpack.c.l.b16 %v5428
        %v5606 = vunpack.c.l.b16 %v5429
        %v5607 = vunpack.c.l.b16 %v5430
        %v5608 = vunpack.c.l.b16 %v5431
        %v5609 = vunpack.c.l.b16 %v5432
        %v5610 = vunpack.c.l.b16 %v5433
        %v5611 = vunpack.c.l.b16 %v5434
        %v5612 = vunpack.c.l.b16 %v5435
        %v5613 = vunpack.c.l.b16 %v5436
        %v5614 = vunpack.c.l.b16 %v5437
        %v5615 = vunpack.c.l.b16 %v5438
        %v5616 = vunpack.c.l.b16 %v5439
        %v5617 = vunpack.c.l.b16 %v5440
        %v5618 = vunpack.c.l.b16 %v5441
        %v5619 = vunpack.c.l.b16 %v5442
        %v5620 = vunpack.c.l.b16 %v5443
        %v5621 = vunpack.c.l.b16 %v5444
        %v5622 = vunpack.c.l.b16 %v5445
        %v5623 = vunpack.c.l.b16 %v5446
        %v5624 = vunpack.c.l.b16 %v5447
        %v5625 = vunpack.c.l.b16 %v5448
        %v5626 = vunpack.c.l.b16 %v5449
        %v5627 = vunpack.c.l.b16 %v5450
        %v5628 = vunpack.c.l.b16 %v5451
        %v5629 = vunpack.c.l.b16 %v5452
        %v5630 = vunpack.c.l.b16 %v5453
        %v5631 = vunpack.c.l.b16 %v5454
        %v5632 = vunpack.c.l.b16 %v5455
        %v5633 = vunpack.c.l.b16 %v5456
        %v5634 = vunpack.c.l.b16 %v5457
        %v5635 = vunpack.c.l.b16 %v5458
        %v5636 = vunpack.c.l.b16 %v5459
        %v5637 = vunpack.c.l.b16 %v5460
        %v5638 = vunpack.c.l.b16 %v5461
        %v5639 = vpack.c.b16 %v5568, %v5567
        %v5640 = vpack.c.b16 %v5570, %v5569
        %v5641 = vpack.c.b16 %v5572, %v5571
        %v5642 = vpack.c.b16 %v5574, %v5573
        %v5643 = vpack.c.b16 %v5576, %v5575
        %v5644 = vpack.c.b16 %v5578, %v5577
        %v5645 = vpack.c.b16 %v5580, %v5579
        %v5646 = vpack.c.b16 %v5582, %v5581
        %v5647 = vpack.c.b16 %v5584, %v5583
        %v5648 = vpack.c.b16 %v5586, %v5585
        %v5649 = vpack.c.b16 %v5588, %v5587
        %v5650 = vpack.c.b16 %v5590, %v5589
        %v5651 = vpack.c.b16 %v5592, %v5591
        %v5652 = vpack.c.b16 %v5594, %v5593
        %v5653 = vpack.c.b16 %v5596, %v5595
        %v5654 = vpack.c.b16 %v5598, %v5597
        %v5655 = vpack.c.b16 %v5600, %v5599
        %v5656 = vpack.c.b16 %v5602, %v5601
        %v5657 = vpack.c.b16 %v5604, %v5603
        %v5658 = vpack.c.b16 %v5606, %v5605
        %v5659 = vpack.c.b16 %v5608, %v5607
        %v5660 = vpack.c.b16 %v5610, %v5609
        %v5661 = vpack.c.b16 %v5612, %v5611
        %v5662 = vpack.c.b16 %v5614, %v5613
        %v5663 = vpack.c.b16 %v5616, %v5615
        %v5664 = vpack.c.b16 %v5618, %v5617
        %v5665 = vpack.c.b16 %v5620, %v5619
        %v5666 = vpack.c.b16 %v5622, %v5621
        %v5667 = vpack.c.b16 %v5624, %v5623
        %v5668 = vpack.c.b16 %v5626, %v5625
        %v5669 = vpack.c.b16 %v5628, %v5627
        %v5670 = vpack.c.b16 %v5630, %v5629
        %v5671 = vpack.c.b16 %v5632, %v5631
        %v5672 = vpack.c.b16 %v5634, %v5633
        %v5673 = vpack.c.b16 %v5636, %v5635
        %v5674 = vpack.c.b16 %v5638, %v5637
        %v5712 = vsel %vm364, %v5490, 0
        %5714 = vmatprep.subr.bf16.mxu0 0
        %5715 = vmatpush1.bf16.msra.mxu0 %v5639
        %5716 = vmatprep.subr.bf16.mxu0 0
        %5717 = vmatpush1.bf16.msra.mxu0 %v5640
        %5718 = vmatprep.subr.bf16.mxu0 0
        %5719 = vmatpush1.bf16.msra.mxu0 %v5641
        %5720 = vmatprep.subr.bf16.mxu0 0
        %5721 = vmatpush1.bf16.msra.mxu0 %v5642
        %5722 = vmatprep.subr.bf16.mxu0 0
        %5723 = vmatpush1.bf16.msra.mxu0 %v5643
        %5724 = vmatprep.subr.bf16.mxu0 0
        %5725 = vmatpush1.bf16.msra.mxu0 %v5644
        %5726 = vmatprep.subr.bf16.mxu0 0
        %5727 = vmatpush1.bf16.msra.mxu0 %v5645
        %5728 = vmatprep.subr.bf16.mxu0 0
        %5729 = vmatpush1.bf16.msra.mxu0 %v5646
        %5730 = vmatprep.subr.bf16.mxu0 0
        %5731 = vmatpush1.bf16.msra.mxu0 %v5647
        %5732 = vmatprep.subr.bf16.mxu0 0
        %5733 = vmatpush1.bf16.msra.mxu0 %v5648
        %5734 = vmatprep.subr.bf16.mxu0 0
        %5735 = vmatpush1.bf16.msra.mxu0 %v5649
        %5736 = vmatprep.subr.bf16.mxu0 0
        %5737 = vmatpush1.bf16.msra.mxu0 %v5650
        %5738 = vmatprep.subr.bf16.mxu0 0
        %5739 = vmatpush1.bf16.msra.mxu0 %v5651
        %5740 = vmatprep.subr.bf16.mxu0 0
        %5741 = vmatpush1.bf16.msra.mxu0 %v5652
        %5742 = vmatprep.subr.bf16.mxu0 0
        %5743 = vmatpush1.bf16.msra.mxu0 %v5653
        %5744 = vmatprep.subr.bf16.mxu0 0
        %5745 = vmatpush1.bf16.msra.mxu0 %v5654
        %5746 = vmatprep.mubr.bf16.mxu0 %v5479
        %5747 = vmatmul.mubr.bf16.gmra.mrb[0].mxu0 %v5478
        %v5748 = vpop.f32.mrb[0].mxu0
        %v5749 = vadd.f32 0.0, %v5748
        %v5750 = vpop.f32.mrb[0].mxu0
        %v5751 = vpop.f32.mrb[0].mxu0
        %v5752 = vadd.f32 0.0, %v5751
        %v5753 = vpop.f32.mrb[0].mxu0
        %5754 = vdwg.mxu0
        %5755 = vmatprep.subr.bf16.mxu0 0
        %5756 = vmatpush1.bf16.msra.mxu0 %v5655
        %5757 = vmatprep.subr.bf16.mxu0 0
        %5758 = vmatpush1.bf16.msra.mxu0 %v5656
        %5759 = vmatprep.subr.bf16.mxu0 0
        %5760 = vmatpush1.bf16.msra.mxu0 %v5657
        %5761 = vmatprep.subr.bf16.mxu0 0
        %5762 = vmatpush1.bf16.msra.mxu0 %v5658
        %5763 = vmatprep.subr.bf16.mxu0 0
        %5764 = vmatpush1.bf16.msra.mxu0 %v5659
        %5765 = vmatprep.subr.bf16.mxu0 0
        %5766 = vmatpush1.bf16.msra.mxu0 %v5660
        %5767 = vmatprep.subr.bf16.mxu0 0
        %5768 = vmatpush1.bf16.msra.mxu0 %v5661
        %5769 = vmatprep.subr.bf16.mxu0 0
        %5770 = vmatpush1.bf16.msra.mxu0 %v5662
        %5771 = vmatprep.subr.bf16.mxu0 0
        %5772 = vmatpush1.bf16.msra.mxu0 %v5663
        %5773 = vmatprep.subr.bf16.mxu0 0
        %5774 = vmatpush1.bf16.msra.mxu0 %v5664
        %5775 = vmatprep.subr.bf16.mxu0 0
        %5776 = vmatpush1.bf16.msra.mxu0 %v5665
        %5777 = vmatprep.subr.bf16.mxu0 0
        %5778 = vmatpush1.bf16.msra.mxu0 %v5666
        %5779 = vmatprep.subr.bf16.mxu0 0
        %5780 = vmatpush1.bf16.msra.mxu0 %v5667
        %5781 = vmatprep.subr.bf16.mxu0 0
        %5782 = vmatpush1.bf16.msra.mxu0 %v5668
        %5783 = vmatprep.subr.bf16.mxu0 0
        %5784 = vmatpush1.bf16.msra.mxu0 %v5669
        %5785 = vmatprep.subr.bf16.mxu0 0
        %5786 = vmatpush1.bf16.msra.mxu0 %v5670
        %5787 = vmatprep.mubr.bf16.mxu0 %v5481
        %5788 = vmatmul.mubr.bf16.gmra.mrb[0].mxu0 %v5480
        %v5789 = vpop.f32.mrb[0].mxu0
        %v5790 = vadd.f32 %v5749, %v5789
        %v5791 = vpop.f32.mrb[0].mxu0
        %v5792 = vpop.f32.mrb[0].mxu0
        %v5793 = vadd.f32 %v5752, %v5792
        %v5794 = vpop.f32.mrb[0].mxu0
        %5795 = vdwg.mxu0
        %5796 = vmatprep.subr.bf16.mxu0 0
        %5797 = vmatpush1.bf16.msra.mxu0 %v5671
        %5798 = vmatprep.subr.bf16.mxu0 0
        %5799 = vmatpush1.bf16.msra.mxu0 %v5672
        %5800 = vmatprep.subr.bf16.mxu0 0
        %5801 = vmatpush1.bf16.msra.mxu0 %v5673
        %5802 = vmatprep.subr.bf16.mxu0 0
        %5803 = vmatpush1.bf16.msra.mxu0 %v5674
        %5804 = vmatprep.subr.bf16.mxu0 0
        %5805 = vmatpush1.bf16.msra.mxu0 0
        %5806 = vmatprep.subr.bf16.mxu0 0
        %5807 = vmatpush1.bf16.msra.mxu0 0
        %5808 = vmatprep.subr.bf16.mxu0 0
        %5809 = vmatpush1.bf16.msra.mxu0 0
        %5810 = vmatprep.subr.bf16.mxu0 0
        %5811 = vmatpush1.bf16.msra.mxu0 0
        %5812 = vmatprep.subr.bf16.mxu0 0
        %5813 = vmatpush1.bf16.msra.mxu0 0
        %5814 = vmatprep.subr.bf16.mxu0 0
        %5815 = vmatpush1.bf16.msra.mxu0 0
        %5816 = vmatprep.subr.bf16.mxu0 0
        %5817 = vmatpush1.bf16.msra.mxu0 0
        %5818 = vmatprep.subr.bf16.mxu0 0
        %5819 = vmatpush1.bf16.msra.mxu0 0
        %5820 = vmatprep.subr.bf16.mxu0 0
        %5821 = vmatpush1.bf16.msra.mxu0 0
        %5822 = vmatprep.subr.bf16.mxu0 0
        %5823 = vmatpush1.bf16.msra.mxu0 0
        %5824 = vmatprep.subr.bf16.mxu0 0
        %5825 = vmatpush1.bf16.msra.mxu0 0
        %5826 = vmatprep.subr.bf16.mxu0 0
        %5827 = vmatpush1.bf16.msra.mxu0 0
        %5828 = vmatprep.mubr.bf16.mxu0 0
        %5829 = vmatmul.mubr.bf16.gmra.mrb[0].mxu0 %v5712
        %v5830 = vpop.f32.mrb[0].mxu0
        %v5831 = vadd.f32 %v5790, %v5830
        %v5832 = vpop.f32.mrb[0].mxu0
        %v5833 = vpop.f32.mrb[0].mxu0
        %v5834 = vadd.f32 %v5793, %v5833
        %v5835 = vpop.f32.mrb[0].mxu0
        %5836 = vdwg.mxu0
        %v5837 = vadd.f32 %v5358, %v5831
        %v5838 = vadd.f32 %v5359, %v5834
        %v5844 = vcombine.low %v3672, %v3708
        %v5845 = vcombine.low %v3744, %v3780
        %v5847 = vunpack.c.l.s4 1983009808
        %v5848 = vunpack.c.0.s8 %v5847
        %v5849 = vlaneseq
        %v5850 = vshrl.u32 %v5849, 7
        %v5851 = vsub.s32 %v5848, %v5850
        %v5852 = vrot.slane %v5844, %v5851
        %v5854 = vunpack.c.l.s4 1983009808
        %v5855 = vunpack.c.0.s8 %v5854
        %v5856 = vlaneseq
        %v5857 = vshrl.u32 %v5856, 7
        %v5858 = vsub.s32 %v5855, %v5857
        %v5859 = vrot.slane %v5845, %v5858
        %v5860 = vcombine.low %v5852, %v5859
        %v5862 = vunpack.c.l.s4 1983009808
        %v5863 = vunpack.c.0.s8 %v5862
        %v5864 = vlaneseq
        %v5865 = vshrl.u32 %v5864, 7
        %v5866 = vsub.s32 %v5863, %v5865
        %v5867 = vrot.slane %v3500, %v5866
        %s5868 = scalar_lea.vmem %s5, 1152
        %v5869 = vld [vmem:[%s5868] sm:$0xf]
        %v5870 = vld [vmem:[%s5868 + $0x4] sm:$0xf]
        %v5871 = vld [vmem:[%s5868 + $0x8] sm:$0xf]
        %v5872 = vld [vmem:[%s5868 + $0xc] sm:$0xf]
        %v5873 = vld [vmem:[%s5868 + $0x10] sm:$0xf]
        %v5874 = vld [vmem:[%s5868 + $0x14] sm:$0xf]
        %v5875 = vld [vmem:[%s5868 + $0x18] sm:$0xf]
        %v5876 = vld [vmem:[%s5868 + $0x1c] sm:$0xf]
        %v5877 = vld [vmem:[%s5868 + $0x20] sm:$0xf]
        %v5878 = vld [vmem:[%s5868 + $0x24] sm:$0xf]
        %v5879 = vld [vmem:[%s5868 + $0x28] sm:$0xf]
        %v5880 = vld [vmem:[%s5868 + $0x2c] sm:$0xf]
        %v5881 = vld [vmem:[%s5868 + $0x30] sm:$0xf]
        %v5882 = vld [vmem:[%s5868 + $0x34] sm:$0xf]
        %v5883 = vld [vmem:[%s5868 + $0x38] sm:$0xf]
        %v5884 = vld [vmem:[%s5868 + $0x3c] sm:$0xf]
        %v5885 = vld [vmem:[%s5868 + $0x40] sm:$0xf]
        %v5886 = vld [vmem:[%s5868 + $0x44] sm:$0xf]
        %v5887 = vld [vmem:[%s5868 + $0x48] sm:$0xf]
        %v5888 = vld [vmem:[%s5868 + $0x4c] sm:$0xf]
        %v5889 = vld [vmem:[%s5868 + $0x50] sm:$0xf]
        %v5890 = vld [vmem:[%s5868 + $0x54] sm:$0xf]
        %v5891 = vld [vmem:[%s5868 + $0x58] sm:$0xf]
        %v5892 = vld [vmem:[%s5868 + $0x5c] sm:$0xf]
        %v5893 = vld [vmem:[%s5868 + $0x60] sm:$0xf]
        %v5894 = vld [vmem:[%s5868 + $0x64] sm:$0xf]
        %v5895 = vld [vmem:[%s5868 + $0x68] sm:$0xf]
        %v5896 = vld [vmem:[%s5868 + $0x6c] sm:$0xf]
        %v5897 = vld [vmem:[%s5868 + $0x70] sm:$0xf]
        %v5898 = vld [vmem:[%s5868 + $0x74] sm:$0xf]
        %v5899 = vld [vmem:[%s5868 + $0x78] sm:$0xf]
        %v5900 = vld [vmem:[%s5868 + $0x7c] sm:$0xf]
        %v5901 = vld [vmem:[%s5868 + $0x80] sm:$0xf]
        %v5902 = vld [vmem:[%s5868 + $0x84] sm:$0xf]
        %v5903 = vld [vmem:[%s5868 + $0x88] sm:$0xf]
        %v5904 = vld [vmem:[%s5868 + $0x8c] sm:$0xf]
        %v5905 = vld [vmem:[%s5868 + $0x90] sm:$0xf]
        %v5906 = vld [vmem:[%s5868 + $0x94] sm:$0xf]
        %v5907 = vld [vmem:[%s5868 + $0x98] sm:$0xf]
        %v5908 = vld [vmem:[%s5868 + $0x9c] sm:$0xf]
        %v5909 = vld [vmem:[%s5868 + $0xa0] sm:$0xf]
        %v5910 = vld [vmem:[%s5868 + $0xa4] sm:$0xf]
        %v5911 = vld [vmem:[%s5868 + $0xa8] sm:$0xf]
        %v5912 = vld [vmem:[%s5868 + $0xac] sm:$0xf]
        %v5913 = vld [vmem:[%s5868 + $0xb0] sm:$0xf]
        %v5914 = vld [vmem:[%s5868 + $0xb4] sm:$0xf]
        %v5915 = vld [vmem:[%s5868 + $0xb8] sm:$0xf]
        %v5916 = vld [vmem:[%s5868 + $0xbc] sm:$0xf]
        %v5917 = vld [vmem:[%s5868 + $0xc0] sm:$0xf]
        %v5918 = vld [vmem:[%s5868 + $0xc4] sm:$0xf]
        %v5919 = vld [vmem:[%s5868 + $0xc8] sm:$0xf]
        %v5920 = vld [vmem:[%s5868 + $0xcc] sm:$0xf]
        %v5921 = vld [vmem:[%s5868 + $0xd0] sm:$0xf]
        %v5922 = vld [vmem:[%s5868 + $0xd4] sm:$0xf]
        %v5923 = vld [vmem:[%s5868 + $0xd8] sm:$0xf]
        %v5924 = vld [vmem:[%s5868 + $0xdc] sm:$0xf]
        %v5925 = vld [vmem:[%s5868 + $0xe0] sm:$0xf]
        %v5926 = vld [vmem:[%s5868 + $0xe4] sm:$0xf]
        %v5927 = vld [vmem:[%s5868 + $0xe8] sm:$0xf]
        %v5928 = vld [vmem:[%s5868 + $0xec] sm:$0xf]
        %v5929 = vld [vmem:[%s5868 + $0xf0] sm:$0xf]
        %v5930 = vld [vmem:[%s5868 + $0xf4] sm:$0xf]
        %v5931 = vld [vmem:[%s5868 + $0xf8] sm:$0xf]
        %v5932 = vld [vmem:[%s5868 + $0xfc] sm:$0xf]
        %v5933 = vld [vmem:[%s5868 + $0x100] sm:$0xf]
        %v5934 = vld [vmem:[%s5868 + $0x104] sm:$0xf]
        %v5935 = vld [vmem:[%s5868 + $0x108] sm:$0xf]
        %v5936 = vld [vmem:[%s5868 + $0x10c] sm:$0xf]
        %v5937 = vld [vmem:[%s5868 + $0x110] sm:$0xf]
        %v5938 = vld [vmem:[%s5868 + $0x114] sm:$0xf]
        %v5939 = vld [vmem:[%s5868 + $0x118] sm:$0xf]
        %v5940 = vld [vmem:[%s5868 + $0x11c] sm:$0xf]
        %v5941 = vcombine.low %v5381, %v5860
        %v5942 = vcombine.high %v5381, %v5860
        %v5944 = vunpack.c.l.s4 1983009808
        %v5945 = vunpack.c.0.s8 %v5944
        %v5946 = vlaneseq
        %v5947 = vshrl.u32 %v5946, 7
        %v5948 = vsub.s32 %v5945, %v5947
        %v5949 = vrot.slane %v5941, %v5948
        %v5951 = vunpack.c.l.s4 1983009808
        %v5952 = vunpack.c.0.s8 %v5951
        %v5953 = vlaneseq
        %v5954 = vshrl.u32 %v5953, 7
        %v5955 = vsub.s32 %v5952, %v5954
        %v5956 = vrot.slane %v5942, %v5955
        %v5957 = vcombine.low %v4991, %v5949
        %v5958 = vcombine.high %v4991, %v5949
        %v5959 = vcombine.low %v4998, %v5956
        %v5960 = vcombine.high %v4998, %v5956
        %v5961 = vcombine.low %v5388, %v5867
        %v5963 = vunpack.c.l.s4 1983009808
        %v5964 = vunpack.c.0.s8 %v5963
        %v5965 = vlaneseq
        %v5966 = vshrl.u32 %v5965, 7
        %v5967 = vsub.s32 %v5964, %v5966
        %v5968 = vrot.slane %v5961, %v5967
        %v5969 = vcombine.low %v5010, %v5968
        %v6046 = vunpack.c.l.b16 %v5869
        %v6047 = vunpack.c.l.b16 %v5870
        %v6048 = vunpack.c.l.b16 %v5871
        %v6049 = vunpack.c.l.b16 %v5872
        %v6050 = vunpack.c.l.b16 %v5873
        %v6051 = vunpack.c.l.b16 %v5874
        %v6052 = vunpack.c.l.b16 %v5875
        %v6053 = vunpack.c.l.b16 %v5876
        %v6054 = vunpack.c.l.b16 %v5877
        %v6055 = vunpack.c.l.b16 %v5878
        %v6056 = vunpack.c.l.b16 %v5879
        %v6057 = vunpack.c.l.b16 %v5880
        %v6058 = vunpack.c.l.b16 %v5881
        %v6059 = vunpack.c.l.b16 %v5882
        %v6060 = vunpack.c.l.b16 %v5883
        %v6061 = vunpack.c.l.b16 %v5884
        %v6062 = vunpack.c.l.b16 %v5885
        %v6063 = vunpack.c.l.b16 %v5886
        %v6064 = vunpack.c.l.b16 %v5887
        %v6065 = vunpack.c.l.b16 %v5888
        %v6066 = vunpack.c.l.b16 %v5889
        %v6067 = vunpack.c.l.b16 %v5890
        %v6068 = vunpack.c.l.b16 %v5891
        %v6069 = vunpack.c.l.b16 %v5892
        %v6070 = vunpack.c.l.b16 %v5893
        %v6071 = vunpack.c.l.b16 %v5894
        %v6072 = vunpack.c.l.b16 %v5895
        %v6073 = vunpack.c.l.b16 %v5896
        %v6074 = vunpack.c.l.b16 %v5897
        %v6075 = vunpack.c.l.b16 %v5898
        %v6076 = vunpack.c.l.b16 %v5899
        %v6077 = vunpack.c.l.b16 %v5900
        %v6078 = vunpack.c.l.b16 %v5901
        %v6079 = vunpack.c.l.b16 %v5902
        %v6080 = vunpack.c.l.b16 %v5903
        %v6081 = vunpack.c.l.b16 %v5904
        %v6082 = vunpack.c.l.b16 %v5905
        %v6083 = vunpack.c.l.b16 %v5906
        %v6084 = vunpack.c.l.b16 %v5907
        %v6085 = vunpack.c.l.b16 %v5908
        %v6086 = vunpack.c.l.b16 %v5909
        %v6087 = vunpack.c.l.b16 %v5910
        %v6088 = vunpack.c.l.b16 %v5911
        %v6089 = vunpack.c.l.b16 %v5912
        %v6090 = vunpack.c.l.b16 %v5913
        %v6091 = vunpack.c.l.b16 %v5914
        %v6092 = vunpack.c.l.b16 %v5915
        %v6093 = vunpack.c.l.b16 %v5916
        %v6094 = vunpack.c.l.b16 %v5917
        %v6095 = vunpack.c.l.b16 %v5918
        %v6096 = vunpack.c.l.b16 %v5919
        %v6097 = vunpack.c.l.b16 %v5920
        %v6098 = vunpack.c.l.b16 %v5921
        %v6099 = vunpack.c.l.b16 %v5922
        %v6100 = vunpack.c.l.b16 %v5923
        %v6101 = vunpack.c.l.b16 %v5924
        %v6102 = vunpack.c.l.b16 %v5925
        %v6103 = vunpack.c.l.b16 %v5926
        %v6104 = vunpack.c.l.b16 %v5927
        %v6105 = vunpack.c.l.b16 %v5928
        %v6106 = vunpack.c.l.b16 %v5929
        %v6107 = vunpack.c.l.b16 %v5930
        %v6108 = vunpack.c.l.b16 %v5931
        %v6109 = vunpack.c.l.b16 %v5932
        %v6110 = vunpack.c.l.b16 %v5933
        %v6111 = vunpack.c.l.b16 %v5934
        %v6112 = vunpack.c.l.b16 %v5935
        %v6113 = vunpack.c.l.b16 %v5936
        %v6114 = vunpack.c.l.b16 %v5937
        %v6115 = vunpack.c.l.b16 %v5938
        %v6116 = vunpack.c.l.b16 %v5939
        %v6117 = vunpack.c.l.b16 %v5940
        %v6118 = vpack.c.b16 %v6047, %v6046
        %v6119 = vpack.c.b16 %v6049, %v6048
        %v6120 = vpack.c.b16 %v6051, %v6050
        %v6121 = vpack.c.b16 %v6053, %v6052
        %v6122 = vpack.c.b16 %v6055, %v6054
        %v6123 = vpack.c.b16 %v6057, %v6056
        %v6124 = vpack.c.b16 %v6059, %v6058
        %v6125 = vpack.c.b16 %v6061, %v6060
        %v6126 = vpack.c.b16 %v6063, %v6062
        %v6127 = vpack.c.b16 %v6065, %v6064
        %v6128 = vpack.c.b16 %v6067, %v6066
        %v6129 = vpack.c.b16 %v6069, %v6068
        %v6130 = vpack.c.b16 %v6071, %v6070
        %v6131 = vpack.c.b16 %v6073, %v6072
        %v6132 = vpack.c.b16 %v6075, %v6074
        %v6133 = vpack.c.b16 %v6077, %v6076
        %v6134 = vpack.c.b16 %v6079, %v6078
        %v6135 = vpack.c.b16 %v6081, %v6080
        %v6136 = vpack.c.b16 %v6083, %v6082
        %v6137 = vpack.c.b16 %v6085, %v6084
        %v6138 = vpack.c.b16 %v6087, %v6086
        %v6139 = vpack.c.b16 %v6089, %v6088
        %v6140 = vpack.c.b16 %v6091, %v6090
        %v6141 = vpack.c.b16 %v6093, %v6092
        %v6142 = vpack.c.b16 %v6095, %v6094
        %v6143 = vpack.c.b16 %v6097, %v6096
        %v6144 = vpack.c.b16 %v6099, %v6098
        %v6145 = vpack.c.b16 %v6101, %v6100
        %v6146 = vpack.c.b16 %v6103, %v6102
        %v6147 = vpack.c.b16 %v6105, %v6104
        %v6148 = vpack.c.b16 %v6107, %v6106
        %v6149 = vpack.c.b16 %v6109, %v6108
        %v6150 = vpack.c.b16 %v6111, %v6110
        %v6151 = vpack.c.b16 %v6113, %v6112
        %v6152 = vpack.c.b16 %v6115, %v6114
        %v6153 = vpack.c.b16 %v6117, %v6116
        %v6191 = vsel %vm364, %v5969, 0
        %6193 = vmatprep.subr.bf16.mxu0 0
        %6194 = vmatpush1.bf16.msra.mxu0 %v6118
        %6195 = vmatprep.subr.bf16.mxu0 0
        %6196 = vmatpush1.bf16.msra.mxu0 %v6119
        %6197 = vmatprep.subr.bf16.mxu0 0
        %6198 = vmatpush1.bf16.msra.mxu0 %v6120
        %6199 = vmatprep.subr.bf16.mxu0 0
        %6200 = vmatpush1.bf16.msra.mxu0 %v6121
        %6201 = vmatprep.subr.bf16.mxu0 0
        %6202 = vmatpush1.bf16.msra.mxu0 %v6122
        %6203 = vmatprep.subr.bf16.mxu0 0
        %6204 = vmatpush1.bf16.msra.mxu0 %v6123
        %6205 = vmatprep.subr.bf16.mxu0 0
        %6206 = vmatpush1.bf16.msra.mxu0 %v6124
        %6207 = vmatprep.subr.bf16.mxu0 0
        %6208 = vmatpush1.bf16.msra.mxu0 %v6125
        %6209 = vmatprep.subr.bf16.mxu0 0
        %6210 = vmatpush1.bf16.msra.mxu0 %v6126
        %6211 = vmatprep.subr.bf16.mxu0 0
        %6212 = vmatpush1.bf16.msra.mxu0 %v6127
        %6213 = vmatprep.subr.bf16.mxu0 0
        %6214 = vmatpush1.bf16.msra.mxu0 %v6128
        %6215 = vmatprep.subr.bf16.mxu0 0
        %6216 = vmatpush1.bf16.msra.mxu0 %v6129
        %6217 = vmatprep.subr.bf16.mxu0 0
        %6218 = vmatpush1.bf16.msra.mxu0 %v6130
        %6219 = vmatprep.subr.bf16.mxu0 0
        %6220 = vmatpush1.bf16.msra.mxu0 %v6131
        %6221 = vmatprep.subr.bf16.mxu0 0
        %6222 = vmatpush1.bf16.msra.mxu0 %v6132
        %6223 = vmatprep.subr.bf16.mxu0 0
        %6224 = vmatpush1.bf16.msra.mxu0 %v6133
        %6225 = vmatprep.mubr.bf16.mxu0 %v5958
        %6226 = vmatmul.mubr.bf16.gmra.mrb[0].mxu0 %v5957
        %v6227 = vpop.f32.mrb[0].mxu0
        %v6228 = vadd.f32 0.0, %v6227
        %v6229 = vpop.f32.mrb[0].mxu0
        %v6230 = vpop.f32.mrb[0].mxu0
        %v6231 = vadd.f32 0.0, %v6230
        %v6232 = vpop.f32.mrb[0].mxu0
        %6233 = vdwg.mxu0
        %6234 = vmatprep.subr.bf16.mxu0 0
        %6235 = vmatpush1.bf16.msra.mxu0 %v6134
        %6236 = vmatprep.subr.bf16.mxu0 0
        %6237 = vmatpush1.bf16.msra.mxu0 %v6135
        %6238 = vmatprep.subr.bf16.mxu0 0
        %6239 = vmatpush1.bf16.msra.mxu0 %v6136
        %6240 = vmatprep.subr.bf16.mxu0 0
        %6241 = vmatpush1.bf16.msra.mxu0 %v6137
        %6242 = vmatprep.subr.bf16.mxu0 0
        %6243 = vmatpush1.bf16.msra.mxu0 %v6138
        %6244 = vmatprep.subr.bf16.mxu0 0
        %6245 = vmatpush1.bf16.msra.mxu0 %v6139
        %6246 = vmatprep.subr.bf16.mxu0 0
        %6247 = vmatpush1.bf16.msra.mxu0 %v6140
        %6248 = vmatprep.subr.bf16.mxu0 0
        %6249 = vmatpush1.bf16.msra.mxu0 %v6141
        %6250 = vmatprep.subr.bf16.mxu0 0
        %6251 = vmatpush1.bf16.msra.mxu0 %v6142
        %6252 = vmatprep.subr.bf16.mxu0 0
        %6253 = vmatpush1.bf16.msra.mxu0 %v6143
        %6254 = vmatprep.subr.bf16.mxu0 0
        %6255 = vmatpush1.bf16.msra.mxu0 %v6144
        %6256 = vmatprep.subr.bf16.mxu0 0
        %6257 = vmatpush1.bf16.msra.mxu0 %v6145
        %6258 = vmatprep.subr.bf16.mxu0 0
        %6259 = vmatpush1.bf16.msra.mxu0 %v6146
        %6260 = vmatprep.subr.bf16.mxu0 0
        %6261 = vmatpush1.bf16.msra.mxu0 %v6147
        %6262 = vmatprep.subr.bf16.mxu0 0
        %6263 = vmatpush1.bf16.msra.mxu0 %v6148
        %6264 = vmatprep.subr.bf16.mxu0 0
        %6265 = vmatpush1.bf16.msra.mxu0 %v6149
        %6266 = vmatprep.mubr.bf16.mxu0 %v5960
        %6267 = vmatmul.mubr.bf16.gmra.mrb[0].mxu0 %v5959
        %v6268 = vpop.f32.mrb[0].mxu0
        %v6269 = vadd.f32 %v6228, %v6268
        %v6270 = vpop.f32.mrb[0].mxu0
        %v6271 = vpop.f32.mrb[0].mxu0
        %v6272 = vadd.f32 %v6231, %v6271
        %v6273 = vpop.f32.mrb[0].mxu0
        %6274 = vdwg.mxu0
        %6275 = vmatprep.subr.bf16.mxu0 0
        %6276 = vmatpush1.bf16.msra.mxu0 %v6150
        %6277 = vmatprep.subr.bf16.mxu0 0
        %6278 = vmatpush1.bf16.msra.mxu0 %v6151
        %6279 = vmatprep.subr.bf16.mxu0 0
        %6280 = vmatpush1.bf16.msra.mxu0 %v6152
        %6281 = vmatprep.subr.bf16.mxu0 0
        %6282 = vmatpush1.bf16.msra.mxu0 %v6153
        %6283 = vmatprep.subr.bf16.mxu0 0
        %6284 = vmatpush1.bf16.msra.mxu0 0
        %6285 = vmatprep.subr.bf16.mxu0 0
        %6286 = vmatpush1.bf16.msra.mxu0 0
        %6287 = vmatprep.subr.bf16.mxu0 0
        %6288 = vmatpush1.bf16.msra.mxu0 0
        %6289 = vmatprep.subr.bf16.mxu0 0
        %6290 = vmatpush1.bf16.msra.mxu0 0
        %6291 = vmatprep.subr.bf16.mxu0 0
        %6292 = vmatpush1.bf16.msra.mxu0 0
        %6293 = vmatprep.subr.bf16.mxu0 0
        %6294 = vmatpush1.bf16.msra.mxu0 0
        %6295 = vmatprep.subr.bf16.mxu0 0
        %6296 = vmatpush1.bf16.msra.mxu0 0
        %6297 = vmatprep.subr.bf16.mxu0 0
        %6298 = vmatpush1.bf16.msra.mxu0 0
        %6299 = vmatprep.subr.bf16.mxu0 0
        %6300 = vmatpush1.bf16.msra.mxu0 0
        %6301 = vmatprep.subr.bf16.mxu0 0
        %6302 = vmatpush1.bf16.msra.mxu0 0
        %6303 = vmatprep.subr.bf16.mxu0 0
        %6304 = vmatpush1.bf16.msra.mxu0 0
        %6305 = vmatprep.subr.bf16.mxu0 0
        %6306 = vmatpush1.bf16.msra.mxu0 0
        %6307 = vmatprep.mubr.bf16.mxu0 0
        %6308 = vmatmul.mubr.bf16.gmra.mrb[0].mxu0 %v6191
        %v6309 = vpop.f32.mrb[0].mxu0
        %v6310 = vadd.f32 %v6269, %v6309
        %v6311 = vpop.f32.mrb[0].mxu0
        %v6312 = vpop.f32.mrb[0].mxu0
        %v6313 = vadd.f32 %v6272, %v6312
        %v6314 = vpop.f32.mrb[0].mxu0
        %6315 = vdwg.mxu0
        %v6316 = vadd.f32 %v5837, %v6310
        %v6317 = vadd.f32 %v5838, %v6313
        %v6323 = vcombine.low %v3675, %v3711
        %v6324 = vcombine.low %v3747, %v3783
        %v6326 = vunpack.c.l.s4 1983009808
        %v6327 = vunpack.c.0.s8 %v6326
        %v6328 = vlaneseq
        %v6329 = vshrl.u32 %v6328, 7
        %v6330 = vsub.s32 %v6327, %v6329
        %v6331 = vrot.slane %v6323, %v6330
        %v6333 = vunpack.c.l.s4 1983009808
        %v6334 = vunpack.c.0.s8 %v6333
        %v6335 = vlaneseq
        %v6336 = vshrl.u32 %v6335, 7
        %v6337 = vsub.s32 %v6334, %v6336
        %v6338 = vrot.slane %v6324, %v6337
        %v6339 = vcombine.low %v6331, %v6338
        %v6341 = vunpack.c.l.s4 1983009808
        %v6342 = vunpack.c.0.s8 %v6341
        %v6343 = vlaneseq
        %v6344 = vshrl.u32 %v6343, 7
        %v6345 = vsub.s32 %v6342, %v6344
        %v6346 = vrot.slane %v3501, %v6345
        %s6347 = scalar_lea.vmem %s5, 1440
        %v6348 = vld [vmem:[%s6347] sm:$0xf]
        %v6349 = vld [vmem:[%s6347 + $0x4] sm:$0xf]
        %v6350 = vld [vmem:[%s6347 + $0x8] sm:$0xf]
        %v6351 = vld [vmem:[%s6347 + $0xc] sm:$0xf]
        %v6352 = vld [vmem:[%s6347 + $0x10] sm:$0xf]
        %v6353 = vld [vmem:[%s6347 + $0x14] sm:$0xf]
        %v6354 = vld [vmem:[%s6347 + $0x18] sm:$0xf]
        %v6355 = vld [vmem:[%s6347 + $0x1c] sm:$0xf]
        %v6356 = vld [vmem:[%s6347 + $0x20] sm:$0xf]
        %v6357 = vld [vmem:[%s6347 + $0x24] sm:$0xf]
        %v6358 = vld [vmem:[%s6347 + $0x28] sm:$0xf]
        %v6359 = vld [vmem:[%s6347 + $0x2c] sm:$0xf]
        %v6360 = vld [vmem:[%s6347 + $0x30] sm:$0xf]
        %v6361 = vld [vmem:[%s6347 + $0x34] sm:$0xf]
        %v6362 = vld [vmem:[%s6347 + $0x38] sm:$0xf]
        %v6363 = vld [vmem:[%s6347 + $0x3c] sm:$0xf]
        %v6364 = vld [vmem:[%s6347 + $0x40] sm:$0xf]
        %v6365 = vld [vmem:[%s6347 + $0x44] sm:$0xf]
        %v6366 = vld [vmem:[%s6347 + $0x48] sm:$0xf]
        %v6367 = vld [vmem:[%s6347 + $0x4c] sm:$0xf]
        %v6368 = vld [vmem:[%s6347 + $0x50] sm:$0xf]
        %v6369 = vld [vmem:[%s6347 + $0x54] sm:$0xf]
        %v6370 = vld [vmem:[%s6347 + $0x58] sm:$0xf]
        %v6371 = vld [vmem:[%s6347 + $0x5c] sm:$0xf]
        %v6372 = vld [vmem:[%s6347 + $0x60] sm:$0xf]
        %v6373 = vld [vmem:[%s6347 + $0x64] sm:$0xf]
        %v6374 = vld [vmem:[%s6347 + $0x68] sm:$0xf]
        %v6375 = vld [vmem:[%s6347 + $0x6c] sm:$0xf]
        %v6376 = vld [vmem:[%s6347 + $0x70] sm:$0xf]
        %v6377 = vld [vmem:[%s6347 + $0x74] sm:$0xf]
        %v6378 = vld [vmem:[%s6347 + $0x78] sm:$0xf]
        %v6379 = vld [vmem:[%s6347 + $0x7c] sm:$0xf]
        %v6380 = vld [vmem:[%s6347 + $0x80] sm:$0xf]
        %v6381 = vld [vmem:[%s6347 + $0x84] sm:$0xf]
        %v6382 = vld [vmem:[%s6347 + $0x88] sm:$0xf]
        %v6383 = vld [vmem:[%s6347 + $0x8c] sm:$0xf]
        %v6384 = vld [vmem:[%s6347 + $0x90] sm:$0xf]
        %v6385 = vld [vmem:[%s6347 + $0x94] sm:$0xf]
        %v6386 = vld [vmem:[%s6347 + $0x98] sm:$0xf]
        %v6387 = vld [vmem:[%s6347 + $0x9c] sm:$0xf]
        %v6388 = vld [vmem:[%s6347 + $0xa0] sm:$0xf]
        %v6389 = vld [vmem:[%s6347 + $0xa4] sm:$0xf]
        %v6390 = vld [vmem:[%s6347 + $0xa8] sm:$0xf]
        %v6391 = vld [vmem:[%s6347 + $0xac] sm:$0xf]
        %v6392 = vld [vmem:[%s6347 + $0xb0] sm:$0xf]
        %v6393 = vld [vmem:[%s6347 + $0xb4] sm:$0xf]
        %v6394 = vld [vmem:[%s6347 + $0xb8] sm:$0xf]
        %v6395 = vld [vmem:[%s6347 + $0xbc] sm:$0xf]
        %v6396 = vld [vmem:[%s6347 + $0xc0] sm:$0xf]
        %v6397 = vld [vmem:[%s6347 + $0xc4] sm:$0xf]
        %v6398 = vld [vmem:[%s6347 + $0xc8] sm:$0xf]
        %v6399 = vld [vmem:[%s6347 + $0xcc] sm:$0xf]
        %v6400 = vld [vmem:[%s6347 + $0xd0] sm:$0xf]
        %v6401 = vld [vmem:[%s6347 + $0xd4] sm:$0xf]
        %v6402 = vld [vmem:[%s6347 + $0xd8] sm:$0xf]
        %v6403 = vld [vmem:[%s6347 + $0xdc] sm:$0xf]
        %v6404 = vld [vmem:[%s6347 + $0xe0] sm:$0xf]
        %v6405 = vld [vmem:[%s6347 + $0xe4] sm:$0xf]
        %v6406 = vld [vmem:[%s6347 + $0xe8] sm:$0xf]
        %v6407 = vld [vmem:[%s6347 + $0xec] sm:$0xf]
        %v6408 = vld [vmem:[%s6347 + $0xf0] sm:$0xf]
        %v6409 = vld [vmem:[%s6347 + $0xf4] sm:$0xf]
        %v6410 = vld [vmem:[%s6347 + $0xf8] sm:$0xf]
        %v6411 = vld [vmem:[%s6347 + $0xfc] sm:$0xf]
        %v6412 = vld [vmem:[%s6347 + $0x100] sm:$0xf]
        %v6413 = vld [vmem:[%s6347 + $0x104] sm:$0xf]
        %v6414 = vld [vmem:[%s6347 + $0x108] sm:$0xf]
        %v6415 = vld [vmem:[%s6347 + $0x10c] sm:$0xf]
        %v6416 = vld [vmem:[%s6347 + $0x110] sm:$0xf]
        %v6417 = vld [vmem:[%s6347 + $0x114] sm:$0xf]
        %v6418 = vld [vmem:[%s6347 + $0x118] sm:$0xf]
        %v6419 = vld [vmem:[%s6347 + $0x11c] sm:$0xf]
        %v6420 = vcombine.low %v5860, %v6339
        %v6421 = vcombine.high %v5860, %v6339
        %v6423 = vunpack.c.l.s4 1983009808
        %v6424 = vunpack.c.0.s8 %v6423
        %v6425 = vlaneseq
        %v6426 = vshrl.u32 %v6425, 7
        %v6427 = vsub.s32 %v6424, %v6426
        %v6428 = vrot.slane %v6420, %v6427
        %v6430 = vunpack.c.l.s4 1983009808
        %v6431 = vunpack.c.0.s8 %v6430
        %v6432 = vlaneseq
        %v6433 = vshrl.u32 %v6432, 7
        %v6434 = vsub.s32 %v6431, %v6433
        %v6435 = vrot.slane %v6421, %v6434
        %v6436 = vcombine.low %v5470, %v6428
        %v6437 = vcombine.high %v5470, %v6428
        %v6438 = vcombine.low %v5477, %v6435
        %v6439 = vcombine.high %v5477, %v6435
        %v6440 = vcombine.low %v5867, %v6346
        %v6442 = vunpack.c.l.s4 1983009808
        %v6443 = vunpack.c.0.s8 %v6442
        %v6444 = vlaneseq
        %v6445 = vshrl.u32 %v6444, 7
        %v6446 = vsub.s32 %v6443, %v6445
        %v6447 = vrot.slane %v6440, %v6446
        %v6448 = vcombine.low %v5489, %v6447
        %v6525 = vunpack.c.l.b16 %v6348
        %v6526 = vunpack.c.l.b16 %v6349
        %v6527 = vunpack.c.l.b16 %v6350
        %v6528 = vunpack.c.l.b16 %v6351
        %v6529 = vunpack.c.l.b16 %v6352
        %v6530 = vunpack.c.l.b16 %v6353
        %v6531 = vunpack.c.l.b16 %v6354
        %v6532 = vunpack.c.l.b16 %v6355
        %v6533 = vunpack.c.l.b16 %v6356
        %v6534 = vunpack.c.l.b16 %v6357
        %v6535 = vunpack.c.l.b16 %v6358
        %v6536 = vunpack.c.l.b16 %v6359
        %v6537 = vunpack.c.l.b16 %v6360
        %v6538 = vunpack.c.l.b16 %v6361
        %v6539 = vunpack.c.l.b16 %v6362
        %v6540 = vunpack.c.l.b16 %v6363
        %v6541 = vunpack.c.l.b16 %v6364
        %v6542 = vunpack.c.l.b16 %v6365
        %v6543 = vunpack.c.l.b16 %v6366
        %v6544 = vunpack.c.l.b16 %v6367
        %v6545 = vunpack.c.l.b16 %v6368
        %v6546 = vunpack.c.l.b16 %v6369
        %v6547 = vunpack.c.l.b16 %v6370
        %v6548 = vunpack.c.l.b16 %v6371
        %v6549 = vunpack.c.l.b16 %v6372
        %v6550 = vunpack.c.l.b16 %v6373
        %v6551 = vunpack.c.l.b16 %v6374
        %v6552 = vunpack.c.l.b16 %v6375
        %v6553 = vunpack.c.l.b16 %v6376
        %v6554 = vunpack.c.l.b16 %v6377
        %v6555 = vunpack.c.l.b16 %v6378
        %v6556 = vunpack.c.l.b16 %v6379
        %v6557 = vunpack.c.l.b16 %v6380
        %v6558 = vunpack.c.l.b16 %v6381
        %v6559 = vunpack.c.l.b16 %v6382
        %v6560 = vunpack.c.l.b16 %v6383
        %v6561 = vunpack.c.l.b16 %v6384
        %v6562 = vunpack.c.l.b16 %v6385
        %v6563 = vunpack.c.l.b16 %v6386
        %v6564 = vunpack.c.l.b16 %v6387
        %v6565 = vunpack.c.l.b16 %v6388
        %v6566 = vunpack.c.l.b16 %v6389
        %v6567 = vunpack.c.l.b16 %v6390
        %v6568 = vunpack.c.l.b16 %v6391
        %v6569 = vunpack.c.l.b16 %v6392
        %v6570 = vunpack.c.l.b16 %v6393
        %v6571 = vunpack.c.l.b16 %v6394
        %v6572 = vunpack.c.l.b16 %v6395
        %v6573 = vunpack.c.l.b16 %v6396
        %v6574 = vunpack.c.l.b16 %v6397
        %v6575 = vunpack.c.l.b16 %v6398
        %v6576 = vunpack.c.l.b16 %v6399
        %v6577 = vunpack.c.l.b16 %v6400
        %v6578 = vunpack.c.l.b16 %v6401
        %v6579 = vunpack.c.l.b16 %v6402
        %v6580 = vunpack.c.l.b16 %v6403
        %v6581 = vunpack.c.l.b16 %v6404
        %v6582 = vunpack.c.l.b16 %v6405
        %v6583 = vunpack.c.l.b16 %v6406
        %v6584 = vunpack.c.l.b16 %v6407
        %v6585 = vunpack.c.l.b16 %v6408
        %v6586 = vunpack.c.l.b16 %v6409
        %v6587 = vunpack.c.l.b16 %v6410
        %v6588 = vunpack.c.l.b16 %v6411
        %v6589 = vunpack.c.l.b16 %v6412
        %v6590 = vunpack.c.l.b16 %v6413
        %v6591 = vunpack.c.l.b16 %v6414
        %v6592 = vunpack.c.l.b16 %v6415
        %v6593 = vunpack.c.l.b16 %v6416
        %v6594 = vunpack.c.l.b16 %v6417
        %v6595 = vunpack.c.l.b16 %v6418
        %v6596 = vunpack.c.l.b16 %v6419
        %v6597 = vpack.c.b16 %v6526, %v6525
        %v6598 = vpack.c.b16 %v6528, %v6527
        %v6599 = vpack.c.b16 %v6530, %v6529
        %v6600 = vpack.c.b16 %v6532, %v6531
        %v6601 = vpack.c.b16 %v6534, %v6533
        %v6602 = vpack.c.b16 %v6536, %v6535
        %v6603 = vpack.c.b16 %v6538, %v6537
        %v6604 = vpack.c.b16 %v6540, %v6539
        %v6605 = vpack.c.b16 %v6542, %v6541
        %v6606 = vpack.c.b16 %v6544, %v6543
        %v6607 = vpack.c.b16 %v6546, %v6545
        %v6608 = vpack.c.b16 %v6548, %v6547
        %v6609 = vpack.c.b16 %v6550, %v6549
        %v6610 = vpack.c.b16 %v6552, %v6551
        %v6611 = vpack.c.b16 %v6554, %v6553
        %v6612 = vpack.c.b16 %v6556, %v6555
        %v6613 = vpack.c.b16 %v6558, %v6557
        %v6614 = vpack.c.b16 %v6560, %v6559
        %v6615 = vpack.c.b16 %v6562, %v6561
        %v6616 = vpack.c.b16 %v6564, %v6563
        %v6617 = vpack.c.b16 %v6566, %v6565
        %v6618 = vpack.c.b16 %v6568, %v6567
        %v6619 = vpack.c.b16 %v6570, %v6569
        %v6620 = vpack.c.b16 %v6572, %v6571
        %v6621 = vpack.c.b16 %v6574, %v6573
        %v6622 = vpack.c.b16 %v6576, %v6575
        %v6623 = vpack.c.b16 %v6578, %v6577
        %v6624 = vpack.c.b16 %v6580, %v6579
        %v6625 = vpack.c.b16 %v6582, %v6581
        %v6626 = vpack.c.b16 %v6584, %v6583
        %v6627 = vpack.c.b16 %v6586, %v6585
        %v6628 = vpack.c.b16 %v6588, %v6587
        %v6629 = vpack.c.b16 %v6590, %v6589
        %v6630 = vpack.c.b16 %v6592, %v6591
        %v6631 = vpack.c.b16 %v6594, %v6593
        %v6632 = vpack.c.b16 %v6596, %v6595
        %v6670 = vsel %vm364, %v6448, 0
        %6672 = vmatprep.subr.bf16.mxu0 0
        %6673 = vmatpush1.bf16.msra.mxu0 %v6597
        %6674 = vmatprep.subr.bf16.mxu0 0
        %6675 = vmatpush1.bf16.msra.mxu0 %v6598
        %6676 = vmatprep.subr.bf16.mxu0 0
        %6677 = vmatpush1.bf16.msra.mxu0 %v6599
        %6678 = vmatprep.subr.bf16.mxu0 0
        %6679 = vmatpush1.bf16.msra.mxu0 %v6600
        %6680 = vmatprep.subr.bf16.mxu0 0
        %6681 = vmatpush1.bf16.msra.mxu0 %v6601
        %6682 = vmatprep.subr.bf16.mxu0 0
        %6683 = vmatpush1.bf16.msra.mxu0 %v6602
        %6684 = vmatprep.subr.bf16.mxu0 0
        %6685 = vmatpush1.bf16.msra.mxu0 %v6603
        %6686 = vmatprep.subr.bf16.mxu0 0
        %6687 = vmatpush1.bf16.msra.mxu0 %v6604
        %6688 = vmatprep.subr.bf16.mxu0 0
        %6689 = vmatpush1.bf16.msra.mxu0 %v6605
        %6690 = vmatprep.subr.bf16.mxu0 0
        %6691 = vmatpush1.bf16.msra.mxu0 %v6606
        %6692 = vmatprep.subr.bf16.mxu0 0
        %6693 = vmatpush1.bf16.msra.mxu0 %v6607
        %6694 = vmatprep.subr.bf16.mxu0 0
        %6695 = vmatpush1.bf16.msra.mxu0 %v6608
        %6696 = vmatprep.subr.bf16.mxu0 0
        %6697 = vmatpush1.bf16.msra.mxu0 %v6609
        %6698 = vmatprep.subr.bf16.mxu0 0
        %6699 = vmatpush1.bf16.msra.mxu0 %v6610
        %6700 = vmatprep.subr.bf16.mxu0 0
        %6701 = vmatpush1.bf16.msra.mxu0 %v6611
        %6702 = vmatprep.subr.bf16.mxu0 0
        %6703 = vmatpush1.bf16.msra.mxu0 %v6612
        %6704 = vmatprep.mubr.bf16.mxu0 %v6437
        %6705 = vmatmul.mubr.bf16.gmra.mrb[0].mxu0 %v6436
        %v6706 = vpop.f32.mrb[0].mxu0
        %v6707 = vadd.f32 0.0, %v6706
        %v6708 = vpop.f32.mrb[0].mxu0
        %v6709 = vpop.f32.mrb[0].mxu0
        %v6710 = vadd.f32 0.0, %v6709
        %v6711 = vpop.f32.mrb[0].mxu0
        %6712 = vdwg.mxu0
        %6713 = vmatprep.subr.bf16.mxu0 0
        %6714 = vmatpush1.bf16.msra.mxu0 %v6613
        %6715 = vmatprep.subr.bf16.mxu0 0
        %6716 = vmatpush1.bf16.msra.mxu0 %v6614
        %6717 = vmatprep.subr.bf16.mxu0 0
        %6718 = vmatpush1.bf16.msra.mxu0 %v6615
        %6719 = vmatprep.subr.bf16.mxu0 0
        %6720 = vmatpush1.bf16.msra.mxu0 %v6616
        %6721 = vmatprep.subr.bf16.mxu0 0
        %6722 = vmatpush1.bf16.msra.mxu0 %v6617
        %6723 = vmatprep.subr.bf16.mxu0 0
        %6724 = vmatpush1.bf16.msra.mxu0 %v6618
        %6725 = vmatprep.subr.bf16.mxu0 0
        %6726 = vmatpush1.bf16.msra.mxu0 %v6619
        %6727 = vmatprep.subr.bf16.mxu0 0
        %6728 = vmatpush1.bf16.msra.mxu0 %v6620
        %6729 = vmatprep.subr.bf16.mxu0 0
        %6730 = vmatpush1.bf16.msra.mxu0 %v6621
        %6731 = vmatprep.subr.bf16.mxu0 0
        %6732 = vmatpush1.bf16.msra.mxu0 %v6622
        %6733 = vmatprep.subr.bf16.mxu0 0
        %6734 = vmatpush1.bf16.msra.mxu0 %v6623
        %6735 = vmatprep.subr.bf16.mxu0 0
        %6736 = vmatpush1.bf16.msra.mxu0 %v6624
        %6737 = vmatprep.subr.bf16.mxu0 0
        %6738 = vmatpush1.bf16.msra.mxu0 %v6625
        %6739 = vmatprep.subr.bf16.mxu0 0
        %6740 = vmatpush1.bf16.msra.mxu0 %v6626
        %6741 = vmatprep.subr.bf16.mxu0 0
        %6742 = vmatpush1.bf16.msra.mxu0 %v6627
        %6743 = vmatprep.subr.bf16.mxu0 0
        %6744 = vmatpush1.bf16.msra.mxu0 %v6628
        %6745 = vmatprep.mubr.bf16.mxu0 %v6439
        %6746 = vmatmul.mubr.bf16.gmra.mrb[0].mxu0 %v6438
        %v6747 = vpop.f32.mrb[0].mxu0
        %v6748 = vadd.f32 %v6707, %v6747
        %v6749 = vpop.f32.mrb[0].mxu0
        %v6750 = vpop.f32.mrb[0].mxu0
        %v6751 = vadd.f32 %v6710, %v6750
        %v6752 = vpop.f32.mrb[0].mxu0
        %6753 = vdwg.mxu0
        %6754 = vmatprep.subr.bf16.mxu0 0
        %6755 = vmatpush1.bf16.msra.mxu0 %v6629
        %6756 = vmatprep.subr.bf16.mxu0 0
        %6757 = vmatpush1.bf16.msra.mxu0 %v6630
        %6758 = vmatprep.subr.bf16.mxu0 0
        %6759 = vmatpush1.bf16.msra.mxu0 %v6631
        %6760 = vmatprep.subr.bf16.mxu0 0
        %6761 = vmatpush1.bf16.msra.mxu0 %v6632
        %6762 = vmatprep.subr.bf16.mxu0 0
        %6763 = vmatpush1.bf16.msra.mxu0 0
        %6764 = vmatprep.subr.bf16.mxu0 0
        %6765 = vmatpush1.bf16.msra.mxu0 0
        %6766 = vmatprep.subr.bf16.mxu0 0
        %6767 = vmatpush1.bf16.msra.mxu0 0
        %6768 = vmatprep.subr.bf16.mxu0 0
        %6769 = vmatpush1.bf16.msra.mxu0 0
        %6770 = vmatprep.subr.bf16.mxu0 0
        %6771 = vmatpush1.bf16.msra.mxu0 0
        %6772 = vmatprep.subr.bf16.mxu0 0
        %6773 = vmatpush1.bf16.msra.mxu0 0
        %6774 = vmatprep.subr.bf16.mxu0 0
        %6775 = vmatpush1.bf16.msra.mxu0 0
        %6776 = vmatprep.subr.bf16.mxu0 0
        %6777 = vmatpush1.bf16.msra.mxu0 0
        %6778 = vmatprep.subr.bf16.mxu0 0
        %6779 = vmatpush1.bf16.msra.mxu0 0
        %6780 = vmatprep.subr.bf16.mxu0 0
        %6781 = vmatpush1.bf16.msra.mxu0 0
        %6782 = vmatprep.subr.bf16.mxu0 0
        %6783 = vmatpush1.bf16.msra.mxu0 0
        %6784 = vmatprep.subr.bf16.mxu0 0
        %6785 = vmatpush1.bf16.msra.mxu0 0
        %6786 = vmatprep.mubr.bf16.mxu0 0
        %6787 = vmatmul.mubr.bf16.gmra.mrb[0].mxu0 %v6670
        %v6788 = vpop.f32.mrb[0].mxu0
        %v6789 = vadd.f32 %v6748, %v6788
        %v6790 = vpop.f32.mrb[0].mxu0
        %v6791 = vpop.f32.mrb[0].mxu0
        %v6792 = vadd.f32 %v6751, %v6791
        %v6793 = vpop.f32.mrb[0].mxu0
        %6794 = vdwg.mxu0
        %v6795 = vadd.f32 %v6316, %v6789
        %v6796 = vadd.f32 %v6317, %v6792
        %v6802 = vcombine.low %v3678, %v3714
        %v6803 = vcombine.low %v3750, %v3786
        %v6805 = vunpack.c.l.s4 1983009808
        %v6806 = vunpack.c.0.s8 %v6805
        %v6807 = vlaneseq
        %v6808 = vshrl.u32 %v6807, 7
        %v6809 = vsub.s32 %v6806, %v6808
        %v6810 = vrot.slane %v6802, %v6809
        %v6812 = vunpack.c.l.s4 1983009808
        %v6813 = vunpack.c.0.s8 %v6812
        %v6814 = vlaneseq
        %v6815 = vshrl.u32 %v6814, 7
        %v6816 = vsub.s32 %v6813, %v6815
        %v6817 = vrot.slane %v6803, %v6816
        %v6818 = vcombine.low %v6810, %v6817
        %v6820 = vunpack.c.l.s4 1983009808
        %v6821 = vunpack.c.0.s8 %v6820
        %v6822 = vlaneseq
        %v6823 = vshrl.u32 %v6822, 7
        %v6824 = vsub.s32 %v6821, %v6823
        %v6825 = vrot.slane %v3502, %v6824
        %s6826 = scalar_lea.vmem %s5, 1728
        %v6827 = vld [vmem:[%s6826] sm:$0xf]
        %v6828 = vld [vmem:[%s6826 + $0x4] sm:$0xf]
        %v6829 = vld [vmem:[%s6826 + $0x8] sm:$0xf]
        %v6830 = vld [vmem:[%s6826 + $0xc] sm:$0xf]
        %v6831 = vld [vmem:[%s6826 + $0x10] sm:$0xf]
        %v6832 = vld [vmem:[%s6826 + $0x14] sm:$0xf]
        %v6833 = vld [vmem:[%s6826 + $0x18] sm:$0xf]
        %v6834 = vld [vmem:[%s6826 + $0x1c] sm:$0xf]
        %v6835 = vld [vmem:[%s6826 + $0x20] sm:$0xf]
        %v6836 = vld [vmem:[%s6826 + $0x24] sm:$0xf]
        %v6837 = vld [vmem:[%s6826 + $0x28] sm:$0xf]
        %v6838 = vld [vmem:[%s6826 + $0x2c] sm:$0xf]
        %v6839 = vld [vmem:[%s6826 + $0x30] sm:$0xf]
        %v6840 = vld [vmem:[%s6826 + $0x34] sm:$0xf]
        %v6841 = vld [vmem:[%s6826 + $0x38] sm:$0xf]
        %v6842 = vld [vmem:[%s6826 + $0x3c] sm:$0xf]
        %v6843 = vld [vmem:[%s6826 + $0x40] sm:$0xf]
        %v6844 = vld [vmem:[%s6826 + $0x44] sm:$0xf]
        %v6845 = vld [vmem:[%s6826 + $0x48] sm:$0xf]
        %v6846 = vld [vmem:[%s6826 + $0x4c] sm:$0xf]
        %v6847 = vld [vmem:[%s6826 + $0x50] sm:$0xf]
        %v6848 = vld [vmem:[%s6826 + $0x54] sm:$0xf]
        %v6849 = vld [vmem:[%s6826 + $0x58] sm:$0xf]
        %v6850 = vld [vmem:[%s6826 + $0x5c] sm:$0xf]
        %v6851 = vld [vmem:[%s6826 + $0x60] sm:$0xf]
        %v6852 = vld [vmem:[%s6826 + $0x64] sm:$0xf]
        %v6853 = vld [vmem:[%s6826 + $0x68] sm:$0xf]
        %v6854 = vld [vmem:[%s6826 + $0x6c] sm:$0xf]
        %v6855 = vld [vmem:[%s6826 + $0x70] sm:$0xf]
        %v6856 = vld [vmem:[%s6826 + $0x74] sm:$0xf]
        %v6857 = vld [vmem:[%s6826 + $0x78] sm:$0xf]
        %v6858 = vld [vmem:[%s6826 + $0x7c] sm:$0xf]
        %v6859 = vld [vmem:[%s6826 + $0x80] sm:$0xf]
        %v6860 = vld [vmem:[%s6826 + $0x84] sm:$0xf]
        %v6861 = vld [vmem:[%s6826 + $0x88] sm:$0xf]
        %v6862 = vld [vmem:[%s6826 + $0x8c] sm:$0xf]
        %v6863 = vld [vmem:[%s6826 + $0x90] sm:$0xf]
        %v6864 = vld [vmem:[%s6826 + $0x94] sm:$0xf]
        %v6865 = vld [vmem:[%s6826 + $0x98] sm:$0xf]
        %v6866 = vld [vmem:[%s6826 + $0x9c] sm:$0xf]
        %v6867 = vld [vmem:[%s6826 + $0xa0] sm:$0xf]
        %v6868 = vld [vmem:[%s6826 + $0xa4] sm:$0xf]
        %v6869 = vld [vmem:[%s6826 + $0xa8] sm:$0xf]
        %v6870 = vld [vmem:[%s6826 + $0xac] sm:$0xf]
        %v6871 = vld [vmem:[%s6826 + $0xb0] sm:$0xf]
        %v6872 = vld [vmem:[%s6826 + $0xb4] sm:$0xf]
        %v6873 = vld [vmem:[%s6826 + $0xb8] sm:$0xf]
        %v6874 = vld [vmem:[%s6826 + $0xbc] sm:$0xf]
        %v6875 = vld [vmem:[%s6826 + $0xc0] sm:$0xf]
        %v6876 = vld [vmem:[%s6826 + $0xc4] sm:$0xf]
        %v6877 = vld [vmem:[%s6826 + $0xc8] sm:$0xf]
        %v6878 = vld [vmem:[%s6826 + $0xcc] sm:$0xf]
        %v6879 = vld [vmem:[%s6826 + $0xd0] sm:$0xf]
        %v6880 = vld [vmem:[%s6826 + $0xd4] sm:$0xf]
        %v6881 = vld [vmem:[%s6826 + $0xd8] sm:$0xf]
        %v6882 = vld [vmem:[%s6826 + $0xdc] sm:$0xf]
        %v6883 = vld [vmem:[%s6826 + $0xe0] sm:$0xf]
        %v6884 = vld [vmem:[%s6826 + $0xe4] sm:$0xf]
        %v6885 = vld [vmem:[%s6826 + $0xe8] sm:$0xf]
        %v6886 = vld [vmem:[%s6826 + $0xec] sm:$0xf]
        %v6887 = vld [vmem:[%s6826 + $0xf0] sm:$0xf]
        %v6888 = vld [vmem:[%s6826 + $0xf4] sm:$0xf]
        %v6889 = vld [vmem:[%s6826 + $0xf8] sm:$0xf]
        %v6890 = vld [vmem:[%s6826 + $0xfc] sm:$0xf]
        %v6891 = vld [vmem:[%s6826 + $0x100] sm:$0xf]
        %v6892 = vld [vmem:[%s6826 + $0x104] sm:$0xf]
        %v6893 = vld [vmem:[%s6826 + $0x108] sm:$0xf]
        %v6894 = vld [vmem:[%s6826 + $0x10c] sm:$0xf]
        %v6895 = vld [vmem:[%s6826 + $0x110] sm:$0xf]
        %v6896 = vld [vmem:[%s6826 + $0x114] sm:$0xf]
        %v6897 = vld [vmem:[%s6826 + $0x118] sm:$0xf]
        %v6898 = vld [vmem:[%s6826 + $0x11c] sm:$0xf]
        %v6899 = vcombine.low %v6339, %v6818
        %v6900 = vcombine.high %v6339, %v6818
        %v6902 = vunpack.c.l.s4 1983009808
        %v6903 = vunpack.c.0.s8 %v6902
        %v6904 = vlaneseq
        %v6905 = vshrl.u32 %v6904, 7
        %v6906 = vsub.s32 %v6903, %v6905
        %v6907 = vrot.slane %v6899, %v6906
        %v6909 = vunpack.c.l.s4 1983009808
        %v6910 = vunpack.c.0.s8 %v6909
        %v6911 = vlaneseq
        %v6912 = vshrl.u32 %v6911, 7
        %v6913 = vsub.s32 %v6910, %v6912
        %v6914 = vrot.slane %v6900, %v6913
        %v6915 = vcombine.low %v5949, %v6907
        %v6916 = vcombine.high %v5949, %v6907
        %v6917 = vcombine.low %v5956, %v6914
        %v6918 = vcombine.high %v5956, %v6914
        %v6919 = vcombine.low %v6346, %v6825
        %v6921 = vunpack.c.l.s4 1983009808
        %v6922 = vunpack.c.0.s8 %v6921
        %v6923 = vlaneseq
        %v6924 = vshrl.u32 %v6923, 7
        %v6925 = vsub.s32 %v6922, %v6924
        %v6926 = vrot.slane %v6919, %v6925
        %v6927 = vcombine.low %v5968, %v6926
        %v7004 = vunpack.c.l.b16 %v6827
        %v7005 = vunpack.c.l.b16 %v6828
        %v7006 = vunpack.c.l.b16 %v6829
        %v7007 = vunpack.c.l.b16 %v6830
        %v7008 = vunpack.c.l.b16 %v6831
        %v7009 = vunpack.c.l.b16 %v6832
        %v7010 = vunpack.c.l.b16 %v6833
        %v7011 = vunpack.c.l.b16 %v6834
        %v7012 = vunpack.c.l.b16 %v6835
        %v7013 = vunpack.c.l.b16 %v6836
        %v7014 = vunpack.c.l.b16 %v6837
        %v7015 = vunpack.c.l.b16 %v6838
        %v7016 = vunpack.c.l.b16 %v6839
        %v7017 = vunpack.c.l.b16 %v6840
        %v7018 = vunpack.c.l.b16 %v6841
        %v7019 = vunpack.c.l.b16 %v6842
        %v7020 = vunpack.c.l.b16 %v6843
        %v7021 = vunpack.c.l.b16 %v6844
        %v7022 = vunpack.c.l.b16 %v6845
        %v7023 = vunpack.c.l.b16 %v6846
        %v7024 = vunpack.c.l.b16 %v6847
        %v7025 = vunpack.c.l.b16 %v6848
        %v7026 = vunpack.c.l.b16 %v6849
        %v7027 = vunpack.c.l.b16 %v6850
        %v7028 = vunpack.c.l.b16 %v6851
        %v7029 = vunpack.c.l.b16 %v6852
        %v7030 = vunpack.c.l.b16 %v6853
        %v7031 = vunpack.c.l.b16 %v6854
        %v7032 = vunpack.c.l.b16 %v6855
        %v7033 = vunpack.c.l.b16 %v6856
        %v7034 = vunpack.c.l.b16 %v6857
        %v7035 = vunpack.c.l.b16 %v6858
        %v7036 = vunpack.c.l.b16 %v6859
        %v7037 = vunpack.c.l.b16 %v6860
        %v7038 = vunpack.c.l.b16 %v6861
        %v7039 = vunpack.c.l.b16 %v6862
        %v7040 = vunpack.c.l.b16 %v6863
        %v7041 = vunpack.c.l.b16 %v6864
        %v7042 = vunpack.c.l.b16 %v6865
        %v7043 = vunpack.c.l.b16 %v6866
        %v7044 = vunpack.c.l.b16 %v6867
        %v7045 = vunpack.c.l.b16 %v6868
        %v7046 = vunpack.c.l.b16 %v6869
        %v7047 = vunpack.c.l.b16 %v6870
        %v7048 = vunpack.c.l.b16 %v6871
        %v7049 = vunpack.c.l.b16 %v6872
        %v7050 = vunpack.c.l.b16 %v6873
        %v7051 = vunpack.c.l.b16 %v6874
        %v7052 = vunpack.c.l.b16 %v6875
        %v7053 = vunpack.c.l.b16 %v6876
        %v7054 = vunpack.c.l.b16 %v6877
        %v7055 = vunpack.c.l.b16 %v6878
        %v7056 = vunpack.c.l.b16 %v6879
        %v7057 = vunpack.c.l.b16 %v6880
        %v7058 = vunpack.c.l.b16 %v6881
        %v7059 = vunpack.c.l.b16 %v6882
        %v7060 = vunpack.c.l.b16 %v6883
        %v7061 = vunpack.c.l.b16 %v6884
        %v7062 = vunpack.c.l.b16 %v6885
        %v7063 = vunpack.c.l.b16 %v6886
        %v7064 = vunpack.c.l.b16 %v6887
        %v7065 = vunpack.c.l.b16 %v6888
        %v7066 = vunpack.c.l.b16 %v6889
        %v7067 = vunpack.c.l.b16 %v6890
        %v7068 = vunpack.c.l.b16 %v6891
        %v7069 = vunpack.c.l.b16 %v6892
        %v7070 = vunpack.c.l.b16 %v6893
        %v7071 = vunpack.c.l.b16 %v6894
        %v7072 = vunpack.c.l.b16 %v6895
        %v7073 = vunpack.c.l.b16 %v6896
        %v7074 = vunpack.c.l.b16 %v6897
        %v7075 = vunpack.c.l.b16 %v6898
        %v7076 = vpack.c.b16 %v7005, %v7004
        %v7077 = vpack.c.b16 %v7007, %v7006
        %v7078 = vpack.c.b16 %v7009, %v7008
        %v7079 = vpack.c.b16 %v7011, %v7010
        %v7080 = vpack.c.b16 %v7013, %v7012
        %v7081 = vpack.c.b16 %v7015, %v7014
        %v7082 = vpack.c.b16 %v7017, %v7016
        %v7083 = vpack.c.b16 %v7019, %v7018
        %v7084 = vpack.c.b16 %v7021, %v7020
        %v7085 = vpack.c.b16 %v7023, %v7022
        %v7086 = vpack.c.b16 %v7025, %v7024
        %v7087 = vpack.c.b16 %v7027, %v7026
        %v7088 = vpack.c.b16 %v7029, %v7028
        %v7089 = vpack.c.b16 %v7031, %v7030
        %v7090 = vpack.c.b16 %v7033, %v7032
        %v7091 = vpack.c.b16 %v7035, %v7034
        %v7092 = vpack.c.b16 %v7037, %v7036
        %v7093 = vpack.c.b16 %v7039, %v7038
        %v7094 = vpack.c.b16 %v7041, %v7040
        %v7095 = vpack.c.b16 %v7043, %v7042
        %v7096 = vpack.c.b16 %v7045, %v7044
        %v7097 = vpack.c.b16 %v7047, %v7046
        %v7098 = vpack.c.b16 %v7049, %v7048
        %v7099 = vpack.c.b16 %v7051, %v7050
        %v7100 = vpack.c.b16 %v7053, %v7052
        %v7101 = vpack.c.b16 %v7055, %v7054
        %v7102 = vpack.c.b16 %v7057, %v7056
        %v7103 = vpack.c.b16 %v7059, %v7058
        %v7104 = vpack.c.b16 %v7061, %v7060
        %v7105 = vpack.c.b16 %v7063, %v7062
        %v7106 = vpack.c.b16 %v7065, %v7064
        %v7107 = vpack.c.b16 %v7067, %v7066
        %v7108 = vpack.c.b16 %v7069, %v7068
        %v7109 = vpack.c.b16 %v7071, %v7070
        %v7110 = vpack.c.b16 %v7073, %v7072
        %v7111 = vpack.c.b16 %v7075, %v7074
        %v7149 = vsel %vm364, %v6927, 0
        %7151 = vmatprep.subr.bf16.mxu0 0
        %7152 = vmatpush1.bf16.msra.mxu0 %v7076
        %7153 = vmatprep.subr.bf16.mxu0 0
        %7154 = vmatpush1.bf16.msra.mxu0 %v7077
        %7155 = vmatprep.subr.bf16.mxu0 0
        %7156 = vmatpush1.bf16.msra.mxu0 %v7078
        %7157 = vmatprep.subr.bf16.mxu0 0
        %7158 = vmatpush1.bf16.msra.mxu0 %v7079
        %7159 = vmatprep.subr.bf16.mxu0 0
        %7160 = vmatpush1.bf16.msra.mxu0 %v7080
        %7161 = vmatprep.subr.bf16.mxu0 0
        %7162 = vmatpush1.bf16.msra.mxu0 %v7081
        %7163 = vmatprep.subr.bf16.mxu0 0
        %7164 = vmatpush1.bf16.msra.mxu0 %v7082
        %7165 = vmatprep.subr.bf16.mxu0 0
        %7166 = vmatpush1.bf16.msra.mxu0 %v7083
        %7167 = vmatprep.subr.bf16.mxu0 0
        %7168 = vmatpush1.bf16.msra.mxu0 %v7084
        %7169 = vmatprep.subr.bf16.mxu0 0
        %7170 = vmatpush1.bf16.msra.mxu0 %v7085
        %7171 = vmatprep.subr.bf16.mxu0 0
        %7172 = vmatpush1.bf16.msra.mxu0 %v7086
        %7173 = vmatprep.subr.bf16.mxu0 0
        %7174 = vmatpush1.bf16.msra.mxu0 %v7087
        %7175 = vmatprep.subr.bf16.mxu0 0
        %7176 = vmatpush1.bf16.msra.mxu0 %v7088
        %7177 = vmatprep.subr.bf16.mxu0 0
        %7178 = vmatpush1.bf16.msra.mxu0 %v7089
        %7179 = vmatprep.subr.bf16.mxu0 0
        %7180 = vmatpush1.bf16.msra.mxu0 %v7090
        %7181 = vmatprep.subr.bf16.mxu0 0
        %7182 = vmatpush1.bf16.msra.mxu0 %v7091
        %7183 = vmatprep.mubr.bf16.mxu0 %v6916
        %7184 = vmatmul.mubr.bf16.gmra.mrb[0].mxu0 %v6915
        %v7185 = vpop.f32.mrb[0].mxu0
        %v7186 = vadd.f32 0.0, %v7185
        %v7187 = vpop.f32.mrb[0].mxu0
        %v7188 = vpop.f32.mrb[0].mxu0
        %v7189 = vadd.f32 0.0, %v7188
        %v7190 = vpop.f32.mrb[0].mxu0
        %7191 = vdwg.mxu0
        %7192 = vmatprep.subr.bf16.mxu0 0
        %7193 = vmatpush1.bf16.msra.mxu0 %v7092
        %7194 = vmatprep.subr.bf16.mxu0 0
        %7195 = vmatpush1.bf16.msra.mxu0 %v7093
        %7196 = vmatprep.subr.bf16.mxu0 0
        %7197 = vmatpush1.bf16.msra.mxu0 %v7094
        %7198 = vmatprep.subr.bf16.mxu0 0
        %7199 = vmatpush1.bf16.msra.mxu0 %v7095
        %7200 = vmatprep.subr.bf16.mxu0 0
        %7201 = vmatpush1.bf16.msra.mxu0 %v7096
        %7202 = vmatprep.subr.bf16.mxu0 0
        %7203 = vmatpush1.bf16.msra.mxu0 %v7097
        %7204 = vmatprep.subr.bf16.mxu0 0
        %7205 = vmatpush1.bf16.msra.mxu0 %v7098
        %7206 = vmatprep.subr.bf16.mxu0 0
        %7207 = vmatpush1.bf16.msra.mxu0 %v7099
        %7208 = vmatprep.subr.bf16.mxu0 0
        %7209 = vmatpush1.bf16.msra.mxu0 %v7100
        %7210 = vmatprep.subr.bf16.mxu0 0
        %7211 = vmatpush1.bf16.msra.mxu0 %v7101
        %7212 = vmatprep.subr.bf16.mxu0 0
        %7213 = vmatpush1.bf16.msra.mxu0 %v7102
        %7214 = vmatprep.subr.bf16.mxu0 0
        %7215 = vmatpush1.bf16.msra.mxu0 %v7103
        %7216 = vmatprep.subr.bf16.mxu0 0
        %7217 = vmatpush1.bf16.msra.mxu0 %v7104
        %7218 = vmatprep.subr.bf16.mxu0 0
        %7219 = vmatpush1.bf16.msra.mxu0 %v7105
        %7220 = vmatprep.subr.bf16.mxu0 0
        %7221 = vmatpush1.bf16.msra.mxu0 %v7106
        %7222 = vmatprep.subr.bf16.mxu0 0
        %7223 = vmatpush1.bf16.msra.mxu0 %v7107
        %7224 = vmatprep.mubr.bf16.mxu0 %v6918
        %7225 = vmatmul.mubr.bf16.gmra.mrb[0].mxu0 %v6917
        %v7226 = vpop.f32.mrb[0].mxu0
        %v7227 = vadd.f32 %v7186, %v7226
        %v7228 = vpop.f32.mrb[0].mxu0
        %v7229 = vpop.f32.mrb[0].mxu0
        %v7230 = vadd.f32 %v7189, %v7229
        %v7231 = vpop.f32.mrb[0].mxu0
        %7232 = vdwg.mxu0
        %7233 = vmatprep.subr.bf16.mxu0 0
        %7234 = vmatpush1.bf16.msra.mxu0 %v7108
        %7235 = vmatprep.subr.bf16.mxu0 0
        %7236 = vmatpush1.bf16.msra.mxu0 %v7109
        %7237 = vmatprep.subr.bf16.mxu0 0
        %7238 = vmatpush1.bf16.msra.mxu0 %v7110
        %7239 = vmatprep.subr.bf16.mxu0 0
        %7240 = vmatpush1.bf16.msra.mxu0 %v7111
        %7241 = vmatprep.subr.bf16.mxu0 0
        %7242 = vmatpush1.bf16.msra.mxu0 0
        %7243 = vmatprep.subr.bf16.mxu0 0
        %7244 = vmatpush1.bf16.msra.mxu0 0
        %7245 = vmatprep.subr.bf16.mxu0 0
        %7246 = vmatpush1.bf16.msra.mxu0 0
        %7247 = vmatprep.subr.bf16.mxu0 0
        %7248 = vmatpush1.bf16.msra.mxu0 0
        %7249 = vmatprep.subr.bf16.mxu0 0
        %7250 = vmatpush1.bf16.msra.mxu0 0
        %7251 = vmatprep.subr.bf16.mxu0 0
        %7252 = vmatpush1.bf16.msra.mxu0 0
        %7253 = vmatprep.subr.bf16.mxu0 0
        %7254 = vmatpush1.bf16.msra.mxu0 0
        %7255 = vmatprep.subr.bf16.mxu0 0
        %7256 = vmatpush1.bf16.msra.mxu0 0
        %7257 = vmatprep.subr.bf16.mxu0 0
        %7258 = vmatpush1.bf16.msra.mxu0 0
        %7259 = vmatprep.subr.bf16.mxu0 0
        %7260 = vmatpush1.bf16.msra.mxu0 0
        %7261 = vmatprep.subr.bf16.mxu0 0
        %7262 = vmatpush1.bf16.msra.mxu0 0
        %7263 = vmatprep.subr.bf16.mxu0 0
        %7264 = vmatpush1.bf16.msra.mxu0 0
        %7265 = vmatprep.mubr.bf16.mxu0 0
        %7266 = vmatmul.mubr.bf16.gmra.mrb[0].mxu0 %v7149
        %v7267 = vpop.f32.mrb[0].mxu0
        %v7268 = vadd.f32 %v7227, %v7267
        %v7269 = vpop.f32.mrb[0].mxu0
        %v7270 = vpop.f32.mrb[0].mxu0
        %v7271 = vadd.f32 %v7230, %v7270
        %v7272 = vpop.f32.mrb[0].mxu0
        %7273 = vdwg.mxu0
        %v7274 = vadd.f32 %v6795, %v7268
        %v7275 = vadd.f32 %v6796, %v7271
        %v7281 = vcombine.low %v3681, %v3717
        %v7282 = vcombine.low %v3753, %v3789
        %v7284 = vunpack.c.l.s4 1983009808
        %v7285 = vunpack.c.0.s8 %v7284
        %v7286 = vlaneseq
        %v7287 = vshrl.u32 %v7286, 7
        %v7288 = vsub.s32 %v7285, %v7287
        %v7289 = vrot.slane %v7281, %v7288
        %v7291 = vunpack.c.l.s4 1983009808
        %v7292 = vunpack.c.0.s8 %v7291
        %v7293 = vlaneseq
        %v7294 = vshrl.u32 %v7293, 7
        %v7295 = vsub.s32 %v7292, %v7294
        %v7296 = vrot.slane %v7282, %v7295
        %v7297 = vcombine.low %v7289, %v7296
        %v7299 = vunpack.c.l.s4 1983009808
        %v7300 = vunpack.c.0.s8 %v7299
        %v7301 = vlaneseq
        %v7302 = vshrl.u32 %v7301, 7
        %v7303 = vsub.s32 %v7300, %v7302
        %v7304 = vrot.slane %v3503, %v7303
        %s7305 = scalar_lea.vmem %s5, 2016
        %v7306 = vld [vmem:[%s7305] sm:$0xf]
        %v7307 = vld [vmem:[%s7305 + $0x4] sm:$0xf]
        %v7308 = vld [vmem:[%s7305 + $0x8] sm:$0xf]
        %v7309 = vld [vmem:[%s7305 + $0xc] sm:$0xf]
        %v7310 = vld [vmem:[%s7305 + $0x10] sm:$0xf]
        %v7311 = vld [vmem:[%s7305 + $0x14] sm:$0xf]
        %v7312 = vld [vmem:[%s7305 + $0x18] sm:$0xf]
        %v7313 = vld [vmem:[%s7305 + $0x1c] sm:$0xf]
        %v7314 = vld [vmem:[%s7305 + $0x20] sm:$0xf]
        %v7315 = vld [vmem:[%s7305 + $0x24] sm:$0xf]
        %v7316 = vld [vmem:[%s7305 + $0x28] sm:$0xf]
        %v7317 = vld [vmem:[%s7305 + $0x2c] sm:$0xf]
        %v7318 = vld [vmem:[%s7305 + $0x30] sm:$0xf]
        %v7319 = vld [vmem:[%s7305 + $0x34] sm:$0xf]
        %v7320 = vld [vmem:[%s7305 + $0x38] sm:$0xf]
        %v7321 = vld [vmem:[%s7305 + $0x3c] sm:$0xf]
        %v7322 = vld [vmem:[%s7305 + $0x40] sm:$0xf]
        %v7323 = vld [vmem:[%s7305 + $0x44] sm:$0xf]
        %v7324 = vld [vmem:[%s7305 + $0x48] sm:$0xf]
        %v7325 = vld [vmem:[%s7305 + $0x4c] sm:$0xf]
        %v7326 = vld [vmem:[%s7305 + $0x50] sm:$0xf]
        %v7327 = vld [vmem:[%s7305 + $0x54] sm:$0xf]
        %v7328 = vld [vmem:[%s7305 + $0x58] sm:$0xf]
        %v7329 = vld [vmem:[%s7305 + $0x5c] sm:$0xf]
        %v7330 = vld [vmem:[%s7305 + $0x60] sm:$0xf]
        %v7331 = vld [vmem:[%s7305 + $0x64] sm:$0xf]
        %v7332 = vld [vmem:[%s7305 + $0x68] sm:$0xf]
        %v7333 = vld [vmem:[%s7305 + $0x6c] sm:$0xf]
        %v7334 = vld [vmem:[%s7305 + $0x70] sm:$0xf]
        %v7335 = vld [vmem:[%s7305 + $0x74] sm:$0xf]
        %v7336 = vld [vmem:[%s7305 + $0x78] sm:$0xf]
        %v7337 = vld [vmem:[%s7305 + $0x7c] sm:$0xf]
        %v7338 = vld [vmem:[%s7305 + $0x80] sm:$0xf]
        %v7339 = vld [vmem:[%s7305 + $0x84] sm:$0xf]
        %v7340 = vld [vmem:[%s7305 + $0x88] sm:$0xf]
        %v7341 = vld [vmem:[%s7305 + $0x8c] sm:$0xf]
        %v7342 = vld [vmem:[%s7305 + $0x90] sm:$0xf]
        %v7343 = vld [vmem:[%s7305 + $0x94] sm:$0xf]
        %v7344 = vld [vmem:[%s7305 + $0x98] sm:$0xf]
        %v7345 = vld [vmem:[%s7305 + $0x9c] sm:$0xf]
        %v7346 = vld [vmem:[%s7305 + $0xa0] sm:$0xf]
        %v7347 = vld [vmem:[%s7305 + $0xa4] sm:$0xf]
        %v7348 = vld [vmem:[%s7305 + $0xa8] sm:$0xf]
        %v7349 = vld [vmem:[%s7305 + $0xac] sm:$0xf]
        %v7350 = vld [vmem:[%s7305 + $0xb0] sm:$0xf]
        %v7351 = vld [vmem:[%s7305 + $0xb4] sm:$0xf]
        %v7352 = vld [vmem:[%s7305 + $0xb8] sm:$0xf]
        %v7353 = vld [vmem:[%s7305 + $0xbc] sm:$0xf]
        %v7354 = vld [vmem:[%s7305 + $0xc0] sm:$0xf]
        %v7355 = vld [vmem:[%s7305 + $0xc4] sm:$0xf]
        %v7356 = vld [vmem:[%s7305 + $0xc8] sm:$0xf]
        %v7357 = vld [vmem:[%s7305 + $0xcc] sm:$0xf]
        %v7358 = vld [vmem:[%s7305 + $0xd0] sm:$0xf]
        %v7359 = vld [vmem:[%s7305 + $0xd4] sm:$0xf]
        %v7360 = vld [vmem:[%s7305 + $0xd8] sm:$0xf]
        %v7361 = vld [vmem:[%s7305 + $0xdc] sm:$0xf]
        %v7362 = vld [vmem:[%s7305 + $0xe0] sm:$0xf]
        %v7363 = vld [vmem:[%s7305 + $0xe4] sm:$0xf]
        %v7364 = vld [vmem:[%s7305 + $0xe8] sm:$0xf]
        %v7365 = vld [vmem:[%s7305 + $0xec] sm:$0xf]
        %v7366 = vld [vmem:[%s7305 + $0xf0] sm:$0xf]
        %v7367 = vld [vmem:[%s7305 + $0xf4] sm:$0xf]
        %v7368 = vld [vmem:[%s7305 + $0xf8] sm:$0xf]
        %v7369 = vld [vmem:[%s7305 + $0xfc] sm:$0xf]
        %v7370 = vld [vmem:[%s7305 + $0x100] sm:$0xf]
        %v7371 = vld [vmem:[%s7305 + $0x104] sm:$0xf]
        %v7372 = vld [vmem:[%s7305 + $0x108] sm:$0xf]
        %v7373 = vld [vmem:[%s7305 + $0x10c] sm:$0xf]
        %v7374 = vld [vmem:[%s7305 + $0x110] sm:$0xf]
        %v7375 = vld [vmem:[%s7305 + $0x114] sm:$0xf]
        %v7376 = vld [vmem:[%s7305 + $0x118] sm:$0xf]
        %v7377 = vld [vmem:[%s7305 + $0x11c] sm:$0xf]
        %v7378 = vcombine.low %v6818, %v7297
        %v7379 = vcombine.high %v6818, %v7297
        %v7381 = vunpack.c.l.s4 1983009808
        %v7382 = vunpack.c.0.s8 %v7381
        %v7383 = vlaneseq
        %v7384 = vshrl.u32 %v7383, 7
        %v7385 = vsub.s32 %v7382, %v7384
        %v7386 = vrot.slane %v7378, %v7385
        %v7388 = vunpack.c.l.s4 1983009808
        %v7389 = vunpack.c.0.s8 %v7388
        %v7390 = vlaneseq
        %v7391 = vshrl.u32 %v7390, 7
        %v7392 = vsub.s32 %v7389, %v7391
        %v7393 = vrot.slane %v7379, %v7392
        %v7394 = vcombine.low %v6428, %v7386
        %v7395 = vcombine.high %v6428, %v7386
        %v7396 = vcombine.low %v6435, %v7393
        %v7397 = vcombine.high %v6435, %v7393
        %v7398 = vcombine.low %v6825, %v7304
        %v7400 = vunpack.c.l.s4 1983009808
        %v7401 = vunpack.c.0.s8 %v7400
        %v7402 = vlaneseq
        %v7403 = vshrl.u32 %v7402, 7
        %v7404 = vsub.s32 %v7401, %v7403
        %v7405 = vrot.slane %v7398, %v7404
        %v7406 = vcombine.low %v6447, %v7405
        %v7483 = vunpack.c.l.b16 %v7306
        %v7484 = vunpack.c.l.b16 %v7307
        %v7485 = vunpack.c.l.b16 %v7308
        %v7486 = vunpack.c.l.b16 %v7309
        %v7487 = vunpack.c.l.b16 %v7310
        %v7488 = vunpack.c.l.b16 %v7311
        %v7489 = vunpack.c.l.b16 %v7312
        %v7490 = vunpack.c.l.b16 %v7313
        %v7491 = vunpack.c.l.b16 %v7314
        %v7492 = vunpack.c.l.b16 %v7315
        %v7493 = vunpack.c.l.b16 %v7316
        %v7494 = vunpack.c.l.b16 %v7317
        %v7495 = vunpack.c.l.b16 %v7318
        %v7496 = vunpack.c.l.b16 %v7319
        %v7497 = vunpack.c.l.b16 %v7320
        %v7498 = vunpack.c.l.b16 %v7321
        %v7499 = vunpack.c.l.b16 %v7322
        %v7500 = vunpack.c.l.b16 %v7323
        %v7501 = vunpack.c.l.b16 %v7324
        %v7502 = vunpack.c.l.b16 %v7325
        %v7503 = vunpack.c.l.b16 %v7326
        %v7504 = vunpack.c.l.b16 %v7327
        %v7505 = vunpack.c.l.b16 %v7328
        %v7506 = vunpack.c.l.b16 %v7329
        %v7507 = vunpack.c.l.b16 %v7330
        %v7508 = vunpack.c.l.b16 %v7331
        %v7509 = vunpack.c.l.b16 %v7332
        %v7510 = vunpack.c.l.b16 %v7333
        %v7511 = vunpack.c.l.b16 %v7334
        %v7512 = vunpack.c.l.b16 %v7335
        %v7513 = vunpack.c.l.b16 %v7336
        %v7514 = vunpack.c.l.b16 %v7337
        %v7515 = vunpack.c.l.b16 %v7338
        %v7516 = vunpack.c.l.b16 %v7339
        %v7517 = vunpack.c.l.b16 %v7340
        %v7518 = vunpack.c.l.b16 %v7341
        %v7519 = vunpack.c.l.b16 %v7342
        %v7520 = vunpack.c.l.b16 %v7343
        %v7521 = vunpack.c.l.b16 %v7344
        %v7522 = vunpack.c.l.b16 %v7345
        %v7523 = vunpack.c.l.b16 %v7346
        %v7524 = vunpack.c.l.b16 %v7347
        %v7525 = vunpack.c.l.b16 %v7348
        %v7526 = vunpack.c.l.b16 %v7349
        %v7527 = vunpack.c.l.b16 %v7350
        %v7528 = vunpack.c.l.b16 %v7351
        %v7529 = vunpack.c.l.b16 %v7352
        %v7530 = vunpack.c.l.b16 %v7353
        %v7531 = vunpack.c.l.b16 %v7354
        %v7532 = vunpack.c.l.b16 %v7355
        %v7533 = vunpack.c.l.b16 %v7356
        %v7534 = vunpack.c.l.b16 %v7357
        %v7535 = vunpack.c.l.b16 %v7358
        %v7536 = vunpack.c.l.b16 %v7359
        %v7537 = vunpack.c.l.b16 %v7360
        %v7538 = vunpack.c.l.b16 %v7361
        %v7539 = vunpack.c.l.b16 %v7362
        %v7540 = vunpack.c.l.b16 %v7363
        %v7541 = vunpack.c.l.b16 %v7364
        %v7542 = vunpack.c.l.b16 %v7365
        %v7543 = vunpack.c.l.b16 %v7366
        %v7544 = vunpack.c.l.b16 %v7367
        %v7545 = vunpack.c.l.b16 %v7368
        %v7546 = vunpack.c.l.b16 %v7369
        %v7547 = vunpack.c.l.b16 %v7370
        %v7548 = vunpack.c.l.b16 %v7371
        %v7549 = vunpack.c.l.b16 %v7372
        %v7550 = vunpack.c.l.b16 %v7373
        %v7551 = vunpack.c.l.b16 %v7374
        %v7552 = vunpack.c.l.b16 %v7375
        %v7553 = vunpack.c.l.b16 %v7376
        %v7554 = vunpack.c.l.b16 %v7377
        %v7555 = vpack.c.b16 %v7484, %v7483
        %v7556 = vpack.c.b16 %v7486, %v7485
        %v7557 = vpack.c.b16 %v7488, %v7487
        %v7558 = vpack.c.b16 %v7490, %v7489
        %v7559 = vpack.c.b16 %v7492, %v7491
        %v7560 = vpack.c.b16 %v7494, %v7493
        %v7561 = vpack.c.b16 %v7496, %v7495
        %v7562 = vpack.c.b16 %v7498, %v7497
        %v7563 = vpack.c.b16 %v7500, %v7499
        %v7564 = vpack.c.b16 %v7502, %v7501
        %v7565 = vpack.c.b16 %v7504, %v7503
        %v7566 = vpack.c.b16 %v7506, %v7505
        %v7567 = vpack.c.b16 %v7508, %v7507
        %v7568 = vpack.c.b16 %v7510, %v7509
        %v7569 = vpack.c.b16 %v7512, %v7511
        %v7570 = vpack.c.b16 %v7514, %v7513
        %v7571 = vpack.c.b16 %v7516, %v7515
        %v7572 = vpack.c.b16 %v7518, %v7517
        %v7573 = vpack.c.b16 %v7520, %v7519
        %v7574 = vpack.c.b16 %v7522, %v7521
        %v7575 = vpack.c.b16 %v7524, %v7523
        %v7576 = vpack.c.b16 %v7526, %v7525
        %v7577 = vpack.c.b16 %v7528, %v7527
        %v7578 = vpack.c.b16 %v7530, %v7529
        %v7579 = vpack.c.b16 %v7532, %v7531
        %v7580 = vpack.c.b16 %v7534, %v7533
        %v7581 = vpack.c.b16 %v7536, %v7535
        %v7582 = vpack.c.b16 %v7538, %v7537
        %v7583 = vpack.c.b16 %v7540, %v7539
        %v7584 = vpack.c.b16 %v7542, %v7541
        %v7585 = vpack.c.b16 %v7544, %v7543
        %v7586 = vpack.c.b16 %v7546, %v7545
        %v7587 = vpack.c.b16 %v7548, %v7547
        %v7588 = vpack.c.b16 %v7550, %v7549
        %v7589 = vpack.c.b16 %v7552, %v7551
        %v7590 = vpack.c.b16 %v7554, %v7553
        %v7628 = vsel %vm364, %v7406, 0
        %7630 = vmatprep.subr.bf16.mxu0 0
        %7631 = vmatpush1.bf16.msra.mxu0 %v7555
        %7632 = vmatprep.subr.bf16.mxu0 0
        %7633 = vmatpush1.bf16.msra.mxu0 %v7556
        %7634 = vmatprep.subr.bf16.mxu0 0
        %7635 = vmatpush1.bf16.msra.mxu0 %v7557
        %7636 = vmatprep.subr.bf16.mxu0 0
        %7637 = vmatpush1.bf16.msra.mxu0 %v7558
        %7638 = vmatprep.subr.bf16.mxu0 0
        %7639 = vmatpush1.bf16.msra.mxu0 %v7559
        %7640 = vmatprep.subr.bf16.mxu0 0
        %7641 = vmatpush1.bf16.msra.mxu0 %v7560
        %7642 = vmatprep.subr.bf16.mxu0 0
        %7643 = vmatpush1.bf16.msra.mxu0 %v7561
        %7644 = vmatprep.subr.bf16.mxu0 0
        %7645 = vmatpush1.bf16.msra.mxu0 %v7562
        %7646 = vmatprep.subr.bf16.mxu0 0
        %7647 = vmatpush1.bf16.msra.mxu0 %v7563
        %7648 = vmatprep.subr.bf16.mxu0 0
        %7649 = vmatpush1.bf16.msra.mxu0 %v7564
        %7650 = vmatprep.subr.bf16.mxu0 0
        %7651 = vmatpush1.bf16.msra.mxu0 %v7565
        %7652 = vmatprep.subr.bf16.mxu0 0
        %7653 = vmatpush1.bf16.msra.mxu0 %v7566
        %7654 = vmatprep.subr.bf16.mxu0 0
        %7655 = vmatpush1.bf16.msra.mxu0 %v7567
        %7656 = vmatprep.subr.bf16.mxu0 0
        %7657 = vmatpush1.bf16.msra.mxu0 %v7568
        %7658 = vmatprep.subr.bf16.mxu0 0
        %7659 = vmatpush1.bf16.msra.mxu0 %v7569
        %7660 = vmatprep.subr.bf16.mxu0 0
        %7661 = vmatpush1.bf16.msra.mxu0 %v7570
        %7662 = vmatprep.mubr.bf16.mxu0 %v7395
        %7663 = vmatmul.mubr.bf16.gmra.mrb[0].mxu0 %v7394
        %v7664 = vpop.f32.mrb[0].mxu0
        %v7665 = vadd.f32 0.0, %v7664
        %v7666 = vpop.f32.mrb[0].mxu0
        %v7667 = vpop.f32.mrb[0].mxu0
        %v7668 = vadd.f32 0.0, %v7667
        %v7669 = vpop.f32.mrb[0].mxu0
        %7670 = vdwg.mxu0
        %7671 = vmatprep.subr.bf16.mxu0 0
        %7672 = vmatpush1.bf16.msra.mxu0 %v7571
        %7673 = vmatprep.subr.bf16.mxu0 0
        %7674 = vmatpush1.bf16.msra.mxu0 %v7572
        %7675 = vmatprep.subr.bf16.mxu0 0
        %7676 = vmatpush1.bf16.msra.mxu0 %v7573
        %7677 = vmatprep.subr.bf16.mxu0 0
        %7678 = vmatpush1.bf16.msra.mxu0 %v7574
        %7679 = vmatprep.subr.bf16.mxu0 0
        %7680 = vmatpush1.bf16.msra.mxu0 %v7575
        %7681 = vmatprep.subr.bf16.mxu0 0
        %7682 = vmatpush1.bf16.msra.mxu0 %v7576
        %7683 = vmatprep.subr.bf16.mxu0 0
        %7684 = vmatpush1.bf16.msra.mxu0 %v7577
        %7685 = vmatprep.subr.bf16.mxu0 0
        %7686 = vmatpush1.bf16.msra.mxu0 %v7578
        %7687 = vmatprep.subr.bf16.mxu0 0
        %7688 = vmatpush1.bf16.msra.mxu0 %v7579
        %7689 = vmatprep.subr.bf16.mxu0 0
        %7690 = vmatpush1.bf16.msra.mxu0 %v7580
        %7691 = vmatprep.subr.bf16.mxu0 0
        %7692 = vmatpush1.bf16.msra.mxu0 %v7581
        %7693 = vmatprep.subr.bf16.mxu0 0
        %7694 = vmatpush1.bf16.msra.mxu0 %v7582
        %7695 = vmatprep.subr.bf16.mxu0 0
        %7696 = vmatpush1.bf16.msra.mxu0 %v7583
        %7697 = vmatprep.subr.bf16.mxu0 0
        %7698 = vmatpush1.bf16.msra.mxu0 %v7584
        %7699 = vmatprep.subr.bf16.mxu0 0
        %7700 = vmatpush1.bf16.msra.mxu0 %v7585
        %7701 = vmatprep.subr.bf16.mxu0 0
        %7702 = vmatpush1.bf16.msra.mxu0 %v7586
        %7703 = vmatprep.mubr.bf16.mxu0 %v7397
        %7704 = vmatmul.mubr.bf16.gmra.mrb[0].mxu0 %v7396
        %v7705 = vpop.f32.mrb[0].mxu0
        %v7706 = vadd.f32 %v7665, %v7705
        %v7707 = vpop.f32.mrb[0].mxu0
        %v7708 = vpop.f32.mrb[0].mxu0
        %v7709 = vadd.f32 %v7668, %v7708
        %v7710 = vpop.f32.mrb[0].mxu0
        %7711 = vdwg.mxu0
        %7712 = vmatprep.subr.bf16.mxu0 0
        %7713 = vmatpush1.bf16.msra.mxu0 %v7587
        %7714 = vmatprep.subr.bf16.mxu0 0
        %7715 = vmatpush1.bf16.msra.mxu0 %v7588
        %7716 = vmatprep.subr.bf16.mxu0 0
        %7717 = vmatpush1.bf16.msra.mxu0 %v7589
        %7718 = vmatprep.subr.bf16.mxu0 0
        %7719 = vmatpush1.bf16.msra.mxu0 %v7590
        %7720 = vmatprep.subr.bf16.mxu0 0
        %7721 = vmatpush1.bf16.msra.mxu0 0
        %7722 = vmatprep.subr.bf16.mxu0 0
        %7723 = vmatpush1.bf16.msra.mxu0 0
        %7724 = vmatprep.subr.bf16.mxu0 0
        %7725 = vmatpush1.bf16.msra.mxu0 0
        %7726 = vmatprep.subr.bf16.mxu0 0
        %7727 = vmatpush1.bf16.msra.mxu0 0
        %7728 = vmatprep.subr.bf16.mxu0 0
        %7729 = vmatpush1.bf16.msra.mxu0 0
        %7730 = vmatprep.subr.bf16.mxu0 0
        %7731 = vmatpush1.bf16.msra.mxu0 0
        %7732 = vmatprep.subr.bf16.mxu0 0
        %7733 = vmatpush1.bf16.msra.mxu0 0
        %7734 = vmatprep.subr.bf16.mxu0 0
        %7735 = vmatpush1.bf16.msra.mxu0 0
        %7736 = vmatprep.subr.bf16.mxu0 0
        %7737 = vmatpush1.bf16.msra.mxu0 0
        %7738 = vmatprep.subr.bf16.mxu0 0
        %7739 = vmatpush1.bf16.msra.mxu0 0
        %7740 = vmatprep.subr.bf16.mxu0 0
        %7741 = vmatpush1.bf16.msra.mxu0 0
        %7742 = vmatprep.subr.bf16.mxu0 0
        %7743 = vmatpush1.bf16.msra.mxu0 0
        %7744 = vmatprep.mubr.bf16.mxu0 0
        %7745 = vmatmul.mubr.bf16.gmra.mrb[0].mxu0 %v7628
        %v7746 = vpop.f32.mrb[0].mxu0
        %v7747 = vadd.f32 %v7706, %v7746
        %v7748 = vpop.f32.mrb[0].mxu0
        %v7749 = vpop.f32.mrb[0].mxu0
        %v7750 = vadd.f32 %v7709, %v7749
        %v7751 = vpop.f32.mrb[0].mxu0
        %7752 = vdwg.mxu0
        %v7753 = vadd.f32 %v7274, %v7747
        %v7754 = vadd.f32 %v7275, %v7750
        %v7760 = vcombine.low %v3684, %v3720
        %v7761 = vcombine.low %v3756, %v3792
        %v7763 = vunpack.c.l.s4 1983009808
        %v7764 = vunpack.c.0.s8 %v7763
        %v7765 = vlaneseq
        %v7766 = vshrl.u32 %v7765, 7
        %v7767 = vsub.s32 %v7764, %v7766
        %v7768 = vrot.slane %v7760, %v7767
        %v7770 = vunpack.c.l.s4 1983009808
        %v7771 = vunpack.c.0.s8 %v7770
        %v7772 = vlaneseq
        %v7773 = vshrl.u32 %v7772, 7
        %v7774 = vsub.s32 %v7771, %v7773
        %v7775 = vrot.slane %v7761, %v7774
        %v7776 = vcombine.low %v7768, %v7775
        %v7778 = vunpack.c.l.s4 1983009808
        %v7779 = vunpack.c.0.s8 %v7778
        %v7780 = vlaneseq
        %v7781 = vshrl.u32 %v7780, 7
        %v7782 = vsub.s32 %v7779, %v7781
        %v7783 = vrot.slane %v3504, %v7782
        %s7784 = scalar_lea.vmem %s5, 2304
        %v7785 = vld [vmem:[%s7784] sm:$0xf]
        %v7786 = vld [vmem:[%s7784 + $0x4] sm:$0xf]
        %v7787 = vld [vmem:[%s7784 + $0x8] sm:$0xf]
        %v7788 = vld [vmem:[%s7784 + $0xc] sm:$0xf]
        %v7789 = vld [vmem:[%s7784 + $0x10] sm:$0xf]
        %v7790 = vld [vmem:[%s7784 + $0x14] sm:$0xf]
        %v7791 = vld [vmem:[%s7784 + $0x18] sm:$0xf]
        %v7792 = vld [vmem:[%s7784 + $0x1c] sm:$0xf]
        %v7793 = vld [vmem:[%s7784 + $0x20] sm:$0xf]
        %v7794 = vld [vmem:[%s7784 + $0x24] sm:$0xf]
        %v7795 = vld [vmem:[%s7784 + $0x28] sm:$0xf]
        %v7796 = vld [vmem:[%s7784 + $0x2c] sm:$0xf]
        %v7797 = vld [vmem:[%s7784 + $0x30] sm:$0xf]
        %v7798 = vld [vmem:[%s7784 + $0x34] sm:$0xf]
        %v7799 = vld [vmem:[%s7784 + $0x38] sm:$0xf]
        %v7800 = vld [vmem:[%s7784 + $0x3c] sm:$0xf]
        %v7801 = vld [vmem:[%s7784 + $0x40] sm:$0xf]
        %v7802 = vld [vmem:[%s7784 + $0x44] sm:$0xf]
        %v7803 = vld [vmem:[%s7784 + $0x48] sm:$0xf]
        %v7804 = vld [vmem:[%s7784 + $0x4c] sm:$0xf]
        %v7805 = vld [vmem:[%s7784 + $0x50] sm:$0xf]
        %v7806 = vld [vmem:[%s7784 + $0x54] sm:$0xf]
        %v7807 = vld [vmem:[%s7784 + $0x58] sm:$0xf]
        %v7808 = vld [vmem:[%s7784 + $0x5c] sm:$0xf]
        %v7809 = vld [vmem:[%s7784 + $0x60] sm:$0xf]
        %v7810 = vld [vmem:[%s7784 + $0x64] sm:$0xf]
        %v7811 = vld [vmem:[%s7784 + $0x68] sm:$0xf]
        %v7812 = vld [vmem:[%s7784 + $0x6c] sm:$0xf]
        %v7813 = vld [vmem:[%s7784 + $0x70] sm:$0xf]
        %v7814 = vld [vmem:[%s7784 + $0x74] sm:$0xf]
        %v7815 = vld [vmem:[%s7784 + $0x78] sm:$0xf]
        %v7816 = vld [vmem:[%s7784 + $0x7c] sm:$0xf]
        %v7817 = vld [vmem:[%s7784 + $0x80] sm:$0xf]
        %v7818 = vld [vmem:[%s7784 + $0x84] sm:$0xf]
        %v7819 = vld [vmem:[%s7784 + $0x88] sm:$0xf]
        %v7820 = vld [vmem:[%s7784 + $0x8c] sm:$0xf]
        %v7821 = vld [vmem:[%s7784 + $0x90] sm:$0xf]
        %v7822 = vld [vmem:[%s7784 + $0x94] sm:$0xf]
        %v7823 = vld [vmem:[%s7784 + $0x98] sm:$0xf]
        %v7824 = vld [vmem:[%s7784 + $0x9c] sm:$0xf]
        %v7825 = vld [vmem:[%s7784 + $0xa0] sm:$0xf]
        %v7826 = vld [vmem:[%s7784 + $0xa4] sm:$0xf]
        %v7827 = vld [vmem:[%s7784 + $0xa8] sm:$0xf]
        %v7828 = vld [vmem:[%s7784 + $0xac] sm:$0xf]
        %v7829 = vld [vmem:[%s7784 + $0xb0] sm:$0xf]
        %v7830 = vld [vmem:[%s7784 + $0xb4] sm:$0xf]
        %v7831 = vld [vmem:[%s7784 + $0xb8] sm:$0xf]
        %v7832 = vld [vmem:[%s7784 + $0xbc] sm:$0xf]
        %v7833 = vld [vmem:[%s7784 + $0xc0] sm:$0xf]
        %v7834 = vld [vmem:[%s7784 + $0xc4] sm:$0xf]
        %v7835 = vld [vmem:[%s7784 + $0xc8] sm:$0xf]
        %v7836 = vld [vmem:[%s7784 + $0xcc] sm:$0xf]
        %v7837 = vld [vmem:[%s7784 + $0xd0] sm:$0xf]
        %v7838 = vld [vmem:[%s7784 + $0xd4] sm:$0xf]
        %v7839 = vld [vmem:[%s7784 + $0xd8] sm:$0xf]
        %v7840 = vld [vmem:[%s7784 + $0xdc] sm:$0xf]
        %v7841 = vld [vmem:[%s7784 + $0xe0] sm:$0xf]
        %v7842 = vld [vmem:[%s7784 + $0xe4] sm:$0xf]
        %v7843 = vld [vmem:[%s7784 + $0xe8] sm:$0xf]
        %v7844 = vld [vmem:[%s7784 + $0xec] sm:$0xf]
        %v7845 = vld [vmem:[%s7784 + $0xf0] sm:$0xf]
        %v7846 = vld [vmem:[%s7784 + $0xf4] sm:$0xf]
        %v7847 = vld [vmem:[%s7784 + $0xf8] sm:$0xf]
        %v7848 = vld [vmem:[%s7784 + $0xfc] sm:$0xf]
        %v7849 = vld [vmem:[%s7784 + $0x100] sm:$0xf]
        %v7850 = vld [vmem:[%s7784 + $0x104] sm:$0xf]
        %v7851 = vld [vmem:[%s7784 + $0x108] sm:$0xf]
        %v7852 = vld [vmem:[%s7784 + $0x10c] sm:$0xf]
        %v7853 = vld [vmem:[%s7784 + $0x110] sm:$0xf]
        %v7854 = vld [vmem:[%s7784 + $0x114] sm:$0xf]
        %v7855 = vld [vmem:[%s7784 + $0x118] sm:$0xf]
        %v7856 = vld [vmem:[%s7784 + $0x11c] sm:$0xf]
        %v7857 = vcombine.low %v7297, %v7776
        %v7858 = vcombine.high %v7297, %v7776
        %v7860 = vunpack.c.l.s4 1983009808
        %v7861 = vunpack.c.0.s8 %v7860
        %v7862 = vlaneseq
        %v7863 = vshrl.u32 %v7862, 7
        %v7864 = vsub.s32 %v7861, %v7863
        %v7865 = vrot.slane %v7857, %v7864
        %v7867 = vunpack.c.l.s4 1983009808
        %v7868 = vunpack.c.0.s8 %v7867
        %v7869 = vlaneseq
        %v7870 = vshrl.u32 %v7869, 7
        %v7871 = vsub.s32 %v7868, %v7870
        %v7872 = vrot.slane %v7858, %v7871
        %v7873 = vcombine.low %v6907, %v7865
        %v7874 = vcombine.high %v6907, %v7865
        %v7875 = vcombine.low %v6914, %v7872
        %v7876 = vcombine.high %v6914, %v7872
        %v7877 = vcombine.low %v7304, %v7783
        %v7879 = vunpack.c.l.s4 1983009808
        %v7880 = vunpack.c.0.s8 %v7879
        %v7881 = vlaneseq
        %v7882 = vshrl.u32 %v7881, 7
        %v7883 = vsub.s32 %v7880, %v7882
        %v7884 = vrot.slane %v7877, %v7883
        %v7885 = vcombine.low %v6926, %v7884
        %v7962 = vunpack.c.l.b16 %v7785
        %v7963 = vunpack.c.l.b16 %v7786
        %v7964 = vunpack.c.l.b16 %v7787
        %v7965 = vunpack.c.l.b16 %v7788
        %v7966 = vunpack.c.l.b16 %v7789
        %v7967 = vunpack.c.l.b16 %v7790
        %v7968 = vunpack.c.l.b16 %v7791
        %v7969 = vunpack.c.l.b16 %v7792
        %v7970 = vunpack.c.l.b16 %v7793
        %v7971 = vunpack.c.l.b16 %v7794
        %v7972 = vunpack.c.l.b16 %v7795
        %v7973 = vunpack.c.l.b16 %v7796
        %v7974 = vunpack.c.l.b16 %v7797
        %v7975 = vunpack.c.l.b16 %v7798
        %v7976 = vunpack.c.l.b16 %v7799
        %v7977 = vunpack.c.l.b16 %v7800
        %v7978 = vunpack.c.l.b16 %v7801
        %v7979 = vunpack.c.l.b16 %v7802
        %v7980 = vunpack.c.l.b16 %v7803
        %v7981 = vunpack.c.l.b16 %v7804
        %v7982 = vunpack.c.l.b16 %v7805
        %v7983 = vunpack.c.l.b16 %v7806
        %v7984 = vunpack.c.l.b16 %v7807
        %v7985 = vunpack.c.l.b16 %v7808
        %v7986 = vunpack.c.l.b16 %v7809
        %v7987 = vunpack.c.l.b16 %v7810
        %v7988 = vunpack.c.l.b16 %v7811
        %v7989 = vunpack.c.l.b16 %v7812
        %v7990 = vunpack.c.l.b16 %v7813
        %v7991 = vunpack.c.l.b16 %v7814
        %v7992 = vunpack.c.l.b16 %v7815
        %v7993 = vunpack.c.l.b16 %v7816
        %v7994 = vunpack.c.l.b16 %v7817
        %v7995 = vunpack.c.l.b16 %v7818
        %v7996 = vunpack.c.l.b16 %v7819
        %v7997 = vunpack.c.l.b16 %v7820
        %v7998 = vunpack.c.l.b16 %v7821
        %v7999 = vunpack.c.l.b16 %v7822
        %v8000 = vunpack.c.l.b16 %v7823
        %v8001 = vunpack.c.l.b16 %v7824
        %v8002 = vunpack.c.l.b16 %v7825
        %v8003 = vunpack.c.l.b16 %v7826
        %v8004 = vunpack.c.l.b16 %v7827
        %v8005 = vunpack.c.l.b16 %v7828
        %v8006 = vunpack.c.l.b16 %v7829
        %v8007 = vunpack.c.l.b16 %v7830
        %v8008 = vunpack.c.l.b16 %v7831
        %v8009 = vunpack.c.l.b16 %v7832
        %v8010 = vunpack.c.l.b16 %v7833
        %v8011 = vunpack.c.l.b16 %v7834
        %v8012 = vunpack.c.l.b16 %v7835
        %v8013 = vunpack.c.l.b16 %v7836
        %v8014 = vunpack.c.l.b16 %v7837
        %v8015 = vunpack.c.l.b16 %v7838
        %v8016 = vunpack.c.l.b16 %v7839
        %v8017 = vunpack.c.l.b16 %v7840
        %v8018 = vunpack.c.l.b16 %v7841
        %v8019 = vunpack.c.l.b16 %v7842
        %v8020 = vunpack.c.l.b16 %v7843
        %v8021 = vunpack.c.l.b16 %v7844
        %v8022 = vunpack.c.l.b16 %v7845
        %v8023 = vunpack.c.l.b16 %v7846
        %v8024 = vunpack.c.l.b16 %v7847
        %v8025 = vunpack.c.l.b16 %v7848
        %v8026 = vunpack.c.l.b16 %v7849
        %v8027 = vunpack.c.l.b16 %v7850
        %v8028 = vunpack.c.l.b16 %v7851
        %v8029 = vunpack.c.l.b16 %v7852
        %v8030 = vunpack.c.l.b16 %v7853
        %v8031 = vunpack.c.l.b16 %v7854
        %v8032 = vunpack.c.l.b16 %v7855
        %v8033 = vunpack.c.l.b16 %v7856
        %v8034 = vpack.c.b16 %v7963, %v7962
        %v8035 = vpack.c.b16 %v7965, %v7964
        %v8036 = vpack.c.b16 %v7967, %v7966
        %v8037 = vpack.c.b16 %v7969, %v7968
        %v8038 = vpack.c.b16 %v7971, %v7970
        %v8039 = vpack.c.b16 %v7973, %v7972
        %v8040 = vpack.c.b16 %v7975, %v7974
        %v8041 = vpack.c.b16 %v7977, %v7976
        %v8042 = vpack.c.b16 %v7979, %v7978
        %v8043 = vpack.c.b16 %v7981, %v7980
        %v8044 = vpack.c.b16 %v7983, %v7982
        %v8045 = vpack.c.b16 %v7985, %v7984
        %v8046 = vpack.c.b16 %v7987, %v7986
        %v8047 = vpack.c.b16 %v7989, %v7988
        %v8048 = vpack.c.b16 %v7991, %v7990
        %v8049 = vpack.c.b16 %v7993, %v7992
        %v8050 = vpack.c.b16 %v7995, %v7994
        %v8051 = vpack.c.b16 %v7997, %v7996
        %v8052 = vpack.c.b16 %v7999, %v7998
        %v8053 = vpack.c.b16 %v8001, %v8000
        %v8054 = vpack.c.b16 %v8003, %v8002
        %v8055 = vpack.c.b16 %v8005, %v8004
        %v8056 = vpack.c.b16 %v8007, %v8006
        %v8057 = vpack.c.b16 %v8009, %v8008
        %v8058 = vpack.c.b16 %v8011, %v8010
        %v8059 = vpack.c.b16 %v8013, %v8012
        %v8060 = vpack.c.b16 %v8015, %v8014
        %v8061 = vpack.c.b16 %v8017, %v8016
        %v8062 = vpack.c.b16 %v8019, %v8018
        %v8063 = vpack.c.b16 %v8021, %v8020
        %v8064 = vpack.c.b16 %v8023, %v8022
        %v8065 = vpack.c.b16 %v8025, %v8024
        %v8066 = vpack.c.b16 %v8027, %v8026
        %v8067 = vpack.c.b16 %v8029, %v8028
        %v8068 = vpack.c.b16 %v8031, %v8030
        %v8069 = vpack.c.b16 %v8033, %v8032
        %v8107 = vsel %vm364, %v7885, 0
        %8109 = vmatprep.subr.bf16.mxu0 0
        %8110 = vmatpush1.bf16.msra.mxu0 %v8034
        %8111 = vmatprep.subr.bf16.mxu0 0
        %8112 = vmatpush1.bf16.msra.mxu0 %v8035
        %8113 = vmatprep.subr.bf16.mxu0 0
        %8114 = vmatpush1.bf16.msra.mxu0 %v8036
        %8115 = vmatprep.subr.bf16.mxu0 0
        %8116 = vmatpush1.bf16.msra.mxu0 %v8037
        %8117 = vmatprep.subr.bf16.mxu0 0
        %8118 = vmatpush1.bf16.msra.mxu0 %v8038
        %8119 = vmatprep.subr.bf16.mxu0 0
        %8120 = vmatpush1.bf16.msra.mxu0 %v8039
        %8121 = vmatprep.subr.bf16.mxu0 0
        %8122 = vmatpush1.bf16.msra.mxu0 %v8040
        %8123 = vmatprep.subr.bf16.mxu0 0
        %8124 = vmatpush1.bf16.msra.mxu0 %v8041
        %8125 = vmatprep.subr.bf16.mxu0 0
        %8126 = vmatpush1.bf16.msra.mxu0 %v8042
        %8127 = vmatprep.subr.bf16.mxu0 0
        %8128 = vmatpush1.bf16.msra.mxu0 %v8043
        %8129 = vmatprep.subr.bf16.mxu0 0
        %8130 = vmatpush1.bf16.msra.mxu0 %v8044
        %8131 = vmatprep.subr.bf16.mxu0 0
        %8132 = vmatpush1.bf16.msra.mxu0 %v8045
        %8133 = vmatprep.subr.bf16.mxu0 0
        %8134 = vmatpush1.bf16.msra.mxu0 %v8046
        %8135 = vmatprep.subr.bf16.mxu0 0
        %8136 = vmatpush1.bf16.msra.mxu0 %v8047
        %8137 = vmatprep.subr.bf16.mxu0 0
        %8138 = vmatpush1.bf16.msra.mxu0 %v8048
        %8139 = vmatprep.subr.bf16.mxu0 0
        %8140 = vmatpush1.bf16.msra.mxu0 %v8049
        %8141 = vmatprep.mubr.bf16.mxu0 %v7874
        %8142 = vmatmul.mubr.bf16.gmra.mrb[0].mxu0 %v7873
        %v8143 = vpop.f32.mrb[0].mxu0
        %v8144 = vadd.f32 0.0, %v8143
        %v8145 = vpop.f32.mrb[0].mxu0
        %v8146 = vpop.f32.mrb[0].mxu0
        %v8147 = vadd.f32 0.0, %v8146
        %v8148 = vpop.f32.mrb[0].mxu0
        %8149 = vdwg.mxu0
        %8150 = vmatprep.subr.bf16.mxu0 0
        %8151 = vmatpush1.bf16.msra.mxu0 %v8050
        %8152 = vmatprep.subr.bf16.mxu0 0
        %8153 = vmatpush1.bf16.msra.mxu0 %v8051
        %8154 = vmatprep.subr.bf16.mxu0 0
        %8155 = vmatpush1.bf16.msra.mxu0 %v8052
        %8156 = vmatprep.subr.bf16.mxu0 0
        %8157 = vmatpush1.bf16.msra.mxu0 %v8053
        %8158 = vmatprep.subr.bf16.mxu0 0
        %8159 = vmatpush1.bf16.msra.mxu0 %v8054
        %8160 = vmatprep.subr.bf16.mxu0 0
        %8161 = vmatpush1.bf16.msra.mxu0 %v8055
        %8162 = vmatprep.subr.bf16.mxu0 0
        %8163 = vmatpush1.bf16.msra.mxu0 %v8056
        %8164 = vmatprep.subr.bf16.mxu0 0
        %8165 = vmatpush1.bf16.msra.mxu0 %v8057
        %8166 = vmatprep.subr.bf16.mxu0 0
        %8167 = vmatpush1.bf16.msra.mxu0 %v8058
        %8168 = vmatprep.subr.bf16.mxu0 0
        %8169 = vmatpush1.bf16.msra.mxu0 %v8059
        %8170 = vmatprep.subr.bf16.mxu0 0
        %8171 = vmatpush1.bf16.msra.mxu0 %v8060
        %8172 = vmatprep.subr.bf16.mxu0 0
        %8173 = vmatpush1.bf16.msra.mxu0 %v8061
        %8174 = vmatprep.subr.bf16.mxu0 0
        %8175 = vmatpush1.bf16.msra.mxu0 %v8062
        %8176 = vmatprep.subr.bf16.mxu0 0
        %8177 = vmatpush1.bf16.msra.mxu0 %v8063
        %8178 = vmatprep.subr.bf16.mxu0 0
        %8179 = vmatpush1.bf16.msra.mxu0 %v8064
        %8180 = vmatprep.subr.bf16.mxu0 0
        %8181 = vmatpush1.bf16.msra.mxu0 %v8065
        %8182 = vmatprep.mubr.bf16.mxu0 %v7876
        %8183 = vmatmul.mubr.bf16.gmra.mrb[0].mxu0 %v7875
        %v8184 = vpop.f32.mrb[0].mxu0
        %v8185 = vadd.f32 %v8144, %v8184
        %v8186 = vpop.f32.mrb[0].mxu0
        %v8187 = vpop.f32.mrb[0].mxu0
        %v8188 = vadd.f32 %v8147, %v8187
        %v8189 = vpop.f32.mrb[0].mxu0
        %8190 = vdwg.mxu0
        %8191 = vmatprep.subr.bf16.mxu0 0
        %8192 = vmatpush1.bf16.msra.mxu0 %v8066
        %8193 = vmatprep.subr.bf16.mxu0 0
        %8194 = vmatpush1.bf16.msra.mxu0 %v8067
        %8195 = vmatprep.subr.bf16.mxu0 0
        %8196 = vmatpush1.bf16.msra.mxu0 %v8068
        %8197 = vmatprep.subr.bf16.mxu0 0
        %8198 = vmatpush1.bf16.msra.mxu0 %v8069
        %8199 = vmatprep.subr.bf16.mxu0 0
        %8200 = vmatpush1.bf16.msra.mxu0 0
        %8201 = vmatprep.subr.bf16.mxu0 0
        %8202 = vmatpush1.bf16.msra.mxu0 0
        %8203 = vmatprep.subr.bf16.mxu0 0
        %8204 = vmatpush1.bf16.msra.mxu0 0
        %8205 = vmatprep.subr.bf16.mxu0 0
        %8206 = vmatpush1.bf16.msra.mxu0 0
        %8207 = vmatprep.subr.bf16.mxu0 0
        %8208 = vmatpush1.bf16.msra.mxu0 0
        %8209 = vmatprep.subr.bf16.mxu0 0
        %8210 = vmatpush1.bf16.msra.mxu0 0
        %8211 = vmatprep.subr.bf16.mxu0 0
        %8212 = vmatpush1.bf16.msra.mxu0 0
        %8213 = vmatprep.subr.bf16.mxu0 0
        %8214 = vmatpush1.bf16.msra.mxu0 0
        %8215 = vmatprep.subr.bf16.mxu0 0
        %8216 = vmatpush1.bf16.msra.mxu0 0
        %8217 = vmatprep.subr.bf16.mxu0 0
        %8218 = vmatpush1.bf16.msra.mxu0 0
        %8219 = vmatprep.subr.bf16.mxu0 0
        %8220 = vmatpush1.bf16.msra.mxu0 0
        %8221 = vmatprep.subr.bf16.mxu0 0
        %8222 = vmatpush1.bf16.msra.mxu0 0
        %8223 = vmatprep.mubr.bf16.mxu0 0
        %8224 = vmatmul.mubr.bf16.gmra.mrb[0].mxu0 %v8107
        %v8225 = vpop.f32.mrb[0].mxu0
        %v8226 = vadd.f32 %v8185, %v8225
        %v8227 = vpop.f32.mrb[0].mxu0
        %v8228 = vpop.f32.mrb[0].mxu0
        %v8229 = vadd.f32 %v8188, %v8228
        %v8230 = vpop.f32.mrb[0].mxu0
        %8231 = vdwg.mxu0
        %v8232 = vadd.f32 %v7753, %v8226
        %v8233 = vadd.f32 %v7754, %v8229
        %v8234 = vld [vmem:[%s6] sm:$0x1]
        %v8236 = vlaneseq
        %v8237 = vshrl.u32 %v8236, 7
        %v8238 = vsub.s32 0, %v8237
        %v8239 = vrot.slane %v8234, %v8238
        %v8241 = vadd.f32 %v8232, %v8239
        %v8242 = vadd.f32 %v8233, %v8239
        %v8243 = vmax.f32 %v8241, 0.0
        %v8244 = vmax.f32 %v8242, 0.0
        %v8247 = vcombine.high %v8243, %v8243
        %v8248 = vcombine.high %v8244, %v8244
        %s8251 = scalar_lea.vmem [#allocation4], 48
        %vm8252 = vcmask 257024
        %8253 = vst.msk [vmem:[%s8251 + $0x3] sm:$0xf] %vm8252, %v8243
        %8254 = vst.msk [vmem:[%s8251 + $0x13] sm:$0xf] %vm8252, %v8247
        %8255 = vst.msk [vmem:[%s8251 + $0x23] sm:$0xf] %vm8252, %v8244
        %8256 = vst.msk [vmem:[%s8251 + $0x33] sm:$0xf] %vm8252, %v8248
        %v8257 = vld [vmem:[#allocation4] sm:$0xf]
        %v8258 = vld [vmem:[#allocation4 + $0x10] sm:$0xf]
        %v8259 = vld [vmem:[#allocation4 + $0x20] sm:$0xf]
        %v8260 = vld [vmem:[#allocation4 + $0x30] sm:$0xf]
        %v8261 = vld [vmem:[#allocation4 + $0x40] sm:$0xf]
        %v8262 = vld [vmem:[#allocation4 + $0x50] sm:$0xf]
        %v8263 = vld [vmem:[#allocation4 + $0x60] sm:$0xf]
        %v8264 = vld [vmem:[#allocation4 + $0x70] sm:$0xf]
        %v8265 = vld [vmem:[#allocation4 + $0x80] sm:$0xf]
        %v8266 = vld [vmem:[#allocation4 + $0x90] sm:$0xf]
        %v8267 = vld [vmem:[#allocation4 + $0x1] sm:$0xf]
        %v8268 = vld [vmem:[#allocation4 + $0x11] sm:$0xf]
        %v8269 = vld [vmem:[#allocation4 + $0x21] sm:$0xf]
        %v8270 = vld [vmem:[#allocation4 + $0x31] sm:$0xf]
        %v8271 = vld [vmem:[#allocation4 + $0x41] sm:$0xf]
        %v8272 = vld [vmem:[#allocation4 + $0x51] sm:$0xf]
        %v8273 = vld [vmem:[#allocation4 + $0x61] sm:$0xf]
        %v8274 = vld [vmem:[#allocation4 + $0x71] sm:$0xf]
        %v8275 = vld [vmem:[#allocation4 + $0x81] sm:$0xf]
        %v8276 = vld [vmem:[#allocation4 + $0x91] sm:$0xf]
        %v8277 = vld [vmem:[#allocation4 + $0x2] sm:$0xf]
        %v8278 = vld [vmem:[#allocation4 + $0x12] sm:$0xf]
        %v8279 = vld [vmem:[#allocation4 + $0x22] sm:$0xf]
        %v8280 = vld [vmem:[#allocation4 + $0x32] sm:$0xf]
        %v8281 = vld [vmem:[#allocation4 + $0x42] sm:$0xf]
        %v8282 = vld [vmem:[#allocation4 + $0x52] sm:$0xf]
        %v8283 = vld [vmem:[#allocation4 + $0x62] sm:$0xf]
        %v8284 = vld [vmem:[#allocation4 + $0x72] sm:$0xf]
        %v8285 = vld [vmem:[#allocation4 + $0x82] sm:$0xf]
        %v8286 = vld [vmem:[#allocation4 + $0x92] sm:$0xf]
        %v8287 = vld [vmem:[#allocation4 + $0x3] sm:$0xf]
        %v8288 = vld [vmem:[#allocation4 + $0x13] sm:$0xf]
        %v8289 = vld [vmem:[#allocation4 + $0x23] sm:$0xf]
        %v8290 = vld [vmem:[#allocation4 + $0x33] sm:$0xf]
        %v8291 = vld [vmem:[#allocation4 + $0x43] sm:$0xf]
        %v8292 = vld [vmem:[#allocation4 + $0x53] sm:$0xf]
        %v8293 = vld [vmem:[#allocation4 + $0x63] sm:$0xf]
        %v8294 = vld [vmem:[#allocation4 + $0x73] sm:$0xf]
        %v8295 = vld [vmem:[#allocation4 + $0x83] sm:$0xf]
        %v8296 = vld [vmem:[#allocation4 + $0x93] sm:$0xf]
        %v8297 = vld [vmem:[#allocation4 + $0x4] sm:$0xf]
        %v8298 = vld [vmem:[#allocation4 + $0x14] sm:$0xf]
        %v8299 = vld [vmem:[#allocation4 + $0x24] sm:$0xf]
        %v8300 = vld [vmem:[#allocation4 + $0x34] sm:$0xf]
        %v8301 = vld [vmem:[#allocation4 + $0x44] sm:$0xf]
        %v8302 = vld [vmem:[#allocation4 + $0x54] sm:$0xf]
        %v8303 = vld [vmem:[#allocation4 + $0x64] sm:$0xf]
        %v8304 = vld [vmem:[#allocation4 + $0x74] sm:$0xf]
        %v8305 = vld [vmem:[#allocation4 + $0x84] sm:$0xf]
        %v8306 = vld [vmem:[#allocation4 + $0x94] sm:$0xf]
        %v8307 = vld [vmem:[#allocation4 + $0x5] sm:$0xf]
        %v8308 = vld [vmem:[#allocation4 + $0x15] sm:$0xf]
        %v8309 = vld [vmem:[#allocation4 + $0x25] sm:$0xf]
        %v8310 = vld [vmem:[#allocation4 + $0x35] sm:$0xf]
        %v8311 = vld [vmem:[#allocation4 + $0x45] sm:$0xf]
        %v8312 = vld [vmem:[#allocation4 + $0x55] sm:$0xf]
        %v8313 = vld [vmem:[#allocation4 + $0x65] sm:$0xf]
        %v8314 = vld [vmem:[#allocation4 + $0x75] sm:$0xf]
        %v8315 = vld [vmem:[#allocation4 + $0x85] sm:$0xf]
        %v8316 = vld [vmem:[#allocation4 + $0x95] sm:$0xf]
        %v8317 = vld [vmem:[#allocation4 + $0x6] sm:$0xf]
        %v8318 = vld [vmem:[#allocation4 + $0x16] sm:$0xf]
        %v8319 = vld [vmem:[#allocation4 + $0x26] sm:$0xf]
        %v8320 = vld [vmem:[#allocation4 + $0x36] sm:$0xf]
        %v8321 = vld [vmem:[#allocation4 + $0x46] sm:$0xf]
        %v8322 = vld [vmem:[#allocation4 + $0x56] sm:$0xf]
        %v8323 = vld [vmem:[#allocation4 + $0x66] sm:$0xf]
        %v8324 = vld [vmem:[#allocation4 + $0x76] sm:$0xf]
        %v8325 = vld [vmem:[#allocation4 + $0x86] sm:$0xf]
        %v8326 = vld [vmem:[#allocation4 + $0x96] sm:$0xf]
        %8337 = vrot.lane.b32.xlu0 %v8267, 32
        %v8338 = vpop.permute.xlu0 %8337
        %8339 = vrot.lane.b32.xlu0 %v8268, 32
        %v8340 = vpop.permute.xlu0 %8339
        %8341 = vrot.lane.b32.xlu0 %v8269, 32
        %v8342 = vpop.permute.xlu0 %8341
        %8343 = vrot.lane.b32.xlu0 %v8270, 32
        %v8344 = vpop.permute.xlu0 %8343
        %8345 = vrot.lane.b32.xlu0 %v8271, 32
        %v8346 = vpop.permute.xlu0 %8345
        %8347 = vrot.lane.b32.xlu0 %v8272, 32
        %v8348 = vpop.permute.xlu0 %8347
        %8349 = vrot.lane.b32.xlu0 %v8273, 32
        %v8350 = vpop.permute.xlu0 %8349
        %8351 = vrot.lane.b32.xlu0 %v8274, 32
        %v8352 = vpop.permute.xlu0 %8351
        %8353 = vrot.lane.b32.xlu0 %v8275, 32
        %v8354 = vpop.permute.xlu0 %8353
        %8355 = vrot.lane.b32.xlu0 %v8276, 32
        %v8356 = vpop.permute.xlu0 %8355
        %8377 = vrot.lane.b32.xlu0 %v8277, 64
        %v8378 = vpop.permute.xlu0 %8377
        %8379 = vrot.lane.b32.xlu0 %v8278, 64
        %v8380 = vpop.permute.xlu0 %8379
        %8381 = vrot.lane.b32.xlu0 %v8279, 64
        %v8382 = vpop.permute.xlu0 %8381
        %8383 = vrot.lane.b32.xlu0 %v8280, 64
        %v8384 = vpop.permute.xlu0 %8383
        %8385 = vrot.lane.b32.xlu0 %v8281, 64
        %v8386 = vpop.permute.xlu0 %8385
        %8387 = vrot.lane.b32.xlu0 %v8282, 64
        %v8388 = vpop.permute.xlu0 %8387
        %8389 = vrot.lane.b32.xlu0 %v8283, 64
        %v8390 = vpop.permute.xlu0 %8389
        %8391 = vrot.lane.b32.xlu0 %v8284, 64
        %v8392 = vpop.permute.xlu0 %8391
        %8393 = vrot.lane.b32.xlu0 %v8285, 64
        %v8394 = vpop.permute.xlu0 %8393
        %8395 = vrot.lane.b32.xlu0 %v8286, 64
        %v8396 = vpop.permute.xlu0 %8395
        %8417 = vrot.lane.b32.xlu0 %v8287, 96
        %v8418 = vpop.permute.xlu0 %8417
        %8419 = vrot.lane.b32.xlu0 %v8288, 96
        %v8420 = vpop.permute.xlu0 %8419
        %8421 = vrot.lane.b32.xlu0 %v8289, 96
        %v8422 = vpop.permute.xlu0 %8421
        %8423 = vrot.lane.b32.xlu0 %v8290, 96
        %v8424 = vpop.permute.xlu0 %8423
        %8425 = vrot.lane.b32.xlu0 %v8291, 96
        %v8426 = vpop.permute.xlu0 %8425
        %8427 = vrot.lane.b32.xlu0 %v8292, 96
        %v8428 = vpop.permute.xlu0 %8427
        %8429 = vrot.lane.b32.xlu0 %v8293, 96
        %v8430 = vpop.permute.xlu0 %8429
        %8431 = vrot.lane.b32.xlu0 %v8294, 96
        %v8432 = vpop.permute.xlu0 %8431
        %8433 = vrot.lane.b32.xlu0 %v8295, 96
        %v8434 = vpop.permute.xlu0 %8433
        %8435 = vrot.lane.b32.xlu0 %v8296, 96
        %v8436 = vpop.permute.xlu0 %8435
        %8457 = vrot.lane.b32.xlu0 %v8307, 32
        %v8458 = vpop.permute.xlu0 %8457
        %8459 = vrot.lane.b32.xlu0 %v8308, 32
        %v8460 = vpop.permute.xlu0 %8459
        %8461 = vrot.lane.b32.xlu0 %v8309, 32
        %v8462 = vpop.permute.xlu0 %8461
        %8463 = vrot.lane.b32.xlu0 %v8310, 32
        %v8464 = vpop.permute.xlu0 %8463
        %8465 = vrot.lane.b32.xlu0 %v8311, 32
        %v8466 = vpop.permute.xlu0 %8465
        %8467 = vrot.lane.b32.xlu0 %v8312, 32
        %v8468 = vpop.permute.xlu0 %8467
        %8469 = vrot.lane.b32.xlu0 %v8313, 32
        %v8470 = vpop.permute.xlu0 %8469
        %8471 = vrot.lane.b32.xlu0 %v8314, 32
        %v8472 = vpop.permute.xlu0 %8471
        %8473 = vrot.lane.b32.xlu0 %v8315, 32
        %v8474 = vpop.permute.xlu0 %8473
        %8475 = vrot.lane.b32.xlu0 %v8316, 32
        %v8476 = vpop.permute.xlu0 %8475
        %8497 = vrot.lane.b32.xlu0 %v8317, 64
        %v8498 = vpop.permute.xlu0 %8497
        %8499 = vrot.lane.b32.xlu0 %v8318, 64
        %v8500 = vpop.permute.xlu0 %8499
        %8501 = vrot.lane.b32.xlu0 %v8319, 64
        %v8502 = vpop.permute.xlu0 %8501
        %8503 = vrot.lane.b32.xlu0 %v8320, 64
        %v8504 = vpop.permute.xlu0 %8503
        %8505 = vrot.lane.b32.xlu0 %v8321, 64
        %v8506 = vpop.permute.xlu0 %8505
        %8507 = vrot.lane.b32.xlu0 %v8322, 64
        %v8508 = vpop.permute.xlu0 %8507
        %8509 = vrot.lane.b32.xlu0 %v8323, 64
        %v8510 = vpop.permute.xlu0 %8509
        %8511 = vrot.lane.b32.xlu0 %v8324, 64
        %v8512 = vpop.permute.xlu0 %8511
        %8513 = vrot.lane.b32.xlu0 %v8325, 64
        %v8514 = vpop.permute.xlu0 %8513
        %8515 = vrot.lane.b32.xlu0 %v8326, 64
        %v8516 = vpop.permute.xlu0 %8515
        %v8527 = vsel %vm334, %v8257, %v8338
        %v8528 = vsel %vm334, %v8258, %v8340
        %v8529 = vsel %vm334, %v8259, %v8342
        %v8530 = vsel %vm334, %v8260, %v8344
        %v8531 = vsel %vm334, %v8261, %v8346
        %v8532 = vsel %vm334, %v8262, %v8348
        %v8533 = vsel %vm334, %v8263, %v8350
        %v8534 = vsel %vm334, %v8264, %v8352
        %v8535 = vsel %vm334, %v8265, %v8354
        %v8536 = vsel %vm334, %v8266, %v8356
        %v8537 = vsel %vm364, %v8527, %v8378
        %v8538 = vsel %vm364, %v8528, %v8380
        %v8539 = vsel %vm364, %v8529, %v8382
        %v8540 = vsel %vm364, %v8530, %v8384
        %v8541 = vsel %vm364, %v8531, %v8386
        %v8542 = vsel %vm364, %v8532, %v8388
        %v8543 = vsel %vm364, %v8533, %v8390
        %v8544 = vsel %vm364, %v8534, %v8392
        %v8545 = vsel %vm364, %v8535, %v8394
        %v8546 = vsel %vm364, %v8536, %v8396
        %v8547 = vsel %vm1679, %v8537, %v8418
        %v8548 = vsel %vm1679, %v8538, %v8420
        %v8549 = vsel %vm1679, %v8539, %v8422
        %v8550 = vsel %vm1679, %v8540, %v8424
        %v8551 = vsel %vm1679, %v8541, %v8426
        %v8552 = vsel %vm1679, %v8542, %v8428
        %v8553 = vsel %vm1679, %v8543, %v8430
        %v8554 = vsel %vm1679, %v8544, %v8432
        %v8555 = vsel %vm1679, %v8545, %v8434
        %v8556 = vsel %vm1679, %v8546, %v8436
        %v8557 = vsel %vm334, %v8297, %v8458
        %v8558 = vsel %vm334, %v8298, %v8460
        %v8559 = vsel %vm334, %v8299, %v8462
        %v8560 = vsel %vm334, %v8300, %v8464
        %v8561 = vsel %vm334, %v8301, %v8466
        %v8562 = vsel %vm334, %v8302, %v8468
        %v8563 = vsel %vm334, %v8303, %v8470
        %v8564 = vsel %vm334, %v8304, %v8472
        %v8565 = vsel %vm334, %v8305, %v8474
        %v8566 = vsel %vm334, %v8306, %v8476
        %v8567 = vsel %vm364, %v8557, %v8498
        %v8568 = vsel %vm364, %v8558, %v8500
        %v8569 = vsel %vm364, %v8559, %v8502
        %v8570 = vsel %vm364, %v8560, %v8504
        %v8571 = vsel %vm364, %v8561, %v8506
        %v8572 = vsel %vm364, %v8562, %v8508
        %v8573 = vsel %vm364, %v8563, %v8510
        %v8574 = vsel %vm364, %v8564, %v8512
        %v8575 = vsel %vm364, %v8565, %v8514
        %v8576 = vsel %vm364, %v8566, %v8516
        %v8577 = vld [vmem:[%s7] ss:$8 sm:$0x3]
        %v8579 = vlaneseq
        %v8580 = vshrl.u32 %v8579, 7
        %v8581 = vsub.s32 0, %v8580
        %v8582 = vrot.slane %v8577, %v8581
        %v8583 = vlaneseq
        %v8584 = vshrl.u32 %v8583, 7
        %v8585 = vsub.s32 1, %v8584
        %v8586 = vrot.slane %v8577, %v8585
        %v8589 = vmul.f32 %v8547, %v8582
        %v8590 = vmul.f32 %v8567, %v8586
        %v8591 = vmul.f32 %v8548, %v8582
        %v8592 = vmul.f32 %v8568, %v8586
        %v8593 = vmul.f32 %v8549, %v8582
        %v8594 = vmul.f32 %v8569, %v8586
        %v8595 = vmul.f32 %v8550, %v8582
        %v8596 = vmul.f32 %v8570, %v8586
        %v8597 = vsel %vm1070, %v8589, 0.0
        %vm8598 = vcmask 781312
        %v8599 = vsel %vm8598, %v8590, 0.0
        %v8600 = vadd.f32 %v8597, %v8599
        %8601 = vadd.xlane.f32.xlu0 %v8600
        %v8602 = vpop.xlane.xlu0 %8601
        %v8603 = vsel %vm1070, %v8591, 0.0
        %v8604 = vsel %vm8598, %v8592, 0.0
        %v8605 = vadd.f32 %v8603, %v8604
        %8606 = vadd.xlane.f32.xlu0 %v8605
        %v8607 = vpop.xlane.xlu0 %8606
        %v8608 = vsel %vm1070, %v8593, 0.0
        %v8609 = vsel %vm8598, %v8594, 0.0
        %v8610 = vadd.f32 %v8608, %v8609
        %8611 = vadd.xlane.f32.xlu0 %v8610
        %v8612 = vpop.xlane.xlu0 %8611
        %v8613 = vsel %vm1070, %v8595, 0.0
        %v8614 = vsel %vm8598, %v8596, 0.0
        %v8615 = vadd.f32 %v8613, %v8614
        %8616 = vadd.xlane.f32.xlu0 %v8615
        %v8617 = vpop.xlane.xlu0 %8616
        %v8618 = vadd.f32 %v8602, 0.0
        %v8619 = vadd.f32 %v8607, 0.0
        %v8620 = vadd.f32 %v8612, 0.0
        %v8621 = vadd.f32 %v8617, 0.0
        %s8622 = scalar_lea.vmem %s7, 1
        %v8623 = vld [vmem:[%s8622] ss:$8 sm:$0x3]
        %v8625 = vlaneseq
        %v8626 = vshrl.u32 %v8625, 7
        %v8627 = vsub.s32 0, %v8626
        %v8628 = vrot.slane %v8623, %v8627
        %v8629 = vlaneseq
        %v8630 = vshrl.u32 %v8629, 7
        %v8631 = vsub.s32 1, %v8630
        %v8632 = vrot.slane %v8623, %v8631
        %v8635 = vmul.f32 %v8548, %v8628
        %v8636 = vmul.f32 %v8568, %v8632
        %v8637 = vmul.f32 %v8549, %v8628
        %v8638 = vmul.f32 %v8569, %v8632
        %v8639 = vmul.f32 %v8550, %v8628
        %v8640 = vmul.f32 %v8570, %v8632
        %v8641 = vmul.f32 %v8551, %v8628
        %v8642 = vmul.f32 %v8571, %v8632
        %v8643 = vsel %vm1070, %v8635, 0.0
        %v8644 = vsel %vm8598, %v8636, 0.0
        %v8645 = vadd.f32 %v8643, %v8644
        %8646 = vadd.xlane.f32.xlu0 %v8645
        %v8647 = vpop.xlane.xlu0 %8646
        %v8648 = vsel %vm1070, %v8637, 0.0
        %v8649 = vsel %vm8598, %v8638, 0.0
        %v8650 = vadd.f32 %v8648, %v8649
        %8651 = vadd.xlane.f32.xlu0 %v8650
        %v8652 = vpop.xlane.xlu0 %8651
        %v8653 = vsel %vm1070, %v8639, 0.0
        %v8654 = vsel %vm8598, %v8640, 0.0
        %v8655 = vadd.f32 %v8653, %v8654
        %8656 = vadd.xlane.f32.xlu0 %v8655
        %v8657 = vpop.xlane.xlu0 %8656
        %v8658 = vsel %vm1070, %v8641, 0.0
        %v8659 = vsel %vm8598, %v8642, 0.0
        %v8660 = vadd.f32 %v8658, %v8659
        %8661 = vadd.xlane.f32.xlu0 %v8660
        %v8662 = vpop.xlane.xlu0 %8661
        %v8663 = vadd.f32 %v8618, %v8647
        %v8664 = vadd.f32 %v8619, %v8652
        %v8665 = vadd.f32 %v8620, %v8657
        %v8666 = vadd.f32 %v8621, %v8662
        %s8667 = scalar_lea.vmem %s7, 2
        %v8668 = vld [vmem:[%s8667] ss:$8 sm:$0x3]
        %v8670 = vlaneseq
        %v8671 = vshrl.u32 %v8670, 7
        %v8672 = vsub.s32 0, %v8671
        %v8673 = vrot.slane %v8668, %v8672
        %v8674 = vlaneseq
        %v8675 = vshrl.u32 %v8674, 7
        %v8676 = vsub.s32 1, %v8675
        %v8677 = vrot.slane %v8668, %v8676
        %v8680 = vmul.f32 %v8549, %v8673
        %v8681 = vmul.f32 %v8569, %v8677
        %v8682 = vmul.f32 %v8550, %v8673
        %v8683 = vmul.f32 %v8570, %v8677
        %v8684 = vmul.f32 %v8551, %v8673
        %v8685 = vmul.f32 %v8571, %v8677
        %v8686 = vmul.f32 %v8552, %v8673
        %v8687 = vmul.f32 %v8572, %v8677
        %v8688 = vsel %vm1070, %v8680, 0.0
        %v8689 = vsel %vm8598, %v8681, 0.0
        %v8690 = vadd.f32 %v8688, %v8689
        %8691 = vadd.xlane.f32.xlu0 %v8690
        %v8692 = vpop.xlane.xlu0 %8691
        %v8693 = vsel %vm1070, %v8682, 0.0
        %v8694 = vsel %vm8598, %v8683, 0.0
        %v8695 = vadd.f32 %v8693, %v8694
        %8696 = vadd.xlane.f32.xlu0 %v8695
        %v8697 = vpop.xlane.xlu0 %8696
        %v8698 = vsel %vm1070, %v8684, 0.0
        %v8699 = vsel %vm8598, %v8685, 0.0
        %v8700 = vadd.f32 %v8698, %v8699
        %8701 = vadd.xlane.f32.xlu0 %v8700
        %v8702 = vpop.xlane.xlu0 %8701
        %v8703 = vsel %vm1070, %v8686, 0.0
        %v8704 = vsel %vm8598, %v8687, 0.0
        %v8705 = vadd.f32 %v8703, %v8704
        %8706 = vadd.xlane.f32.xlu0 %v8705
        %v8707 = vpop.xlane.xlu0 %8706
        %v8708 = vadd.f32 %v8663, %v8692
        %v8709 = vadd.f32 %v8664, %v8697
        %v8710 = vadd.f32 %v8665, %v8702
        %v8711 = vadd.f32 %v8666, %v8707
        %s8712 = scalar_lea.vmem %s7, 3
        %v8713 = vld [vmem:[%s8712] ss:$8 sm:$0x3]
        %v8715 = vlaneseq
        %v8716 = vshrl.u32 %v8715, 7
        %v8717 = vsub.s32 0, %v8716
        %v8718 = vrot.slane %v8713, %v8717
        %v8719 = vlaneseq
        %v8720 = vshrl.u32 %v8719, 7
        %v8721 = vsub.s32 1, %v8720
        %v8722 = vrot.slane %v8713, %v8721
        %v8725 = vmul.f32 %v8550, %v8718
        %v8726 = vmul.f32 %v8570, %v8722
        %v8727 = vmul.f32 %v8551, %v8718
        %v8728 = vmul.f32 %v8571, %v8722
        %v8729 = vmul.f32 %v8552, %v8718
        %v8730 = vmul.f32 %v8572, %v8722
        %v8731 = vmul.f32 %v8553, %v8718
        %v8732 = vmul.f32 %v8573, %v8722
        %v8733 = vsel %vm1070, %v8725, 0.0
        %v8734 = vsel %vm8598, %v8726, 0.0
        %v8735 = vadd.f32 %v8733, %v8734
        %8736 = vadd.xlane.f32.xlu0 %v8735
        %v8737 = vpop.xlane.xlu0 %8736
        %v8738 = vsel %vm1070, %v8727, 0.0
        %v8739 = vsel %vm8598, %v8728, 0.0
        %v8740 = vadd.f32 %v8738, %v8739
        %8741 = vadd.xlane.f32.xlu0 %v8740
        %v8742 = vpop.xlane.xlu0 %8741
        %v8743 = vsel %vm1070, %v8729, 0.0
        %v8744 = vsel %vm8598, %v8730, 0.0
        %v8745 = vadd.f32 %v8743, %v8744
        %8746 = vadd.xlane.f32.xlu0 %v8745
        %v8747 = vpop.xlane.xlu0 %8746
        %v8748 = vsel %vm1070, %v8731, 0.0
        %v8749 = vsel %vm8598, %v8732, 0.0
        %v8750 = vadd.f32 %v8748, %v8749
        %8751 = vadd.xlane.f32.xlu0 %v8750
        %v8752 = vpop.xlane.xlu0 %8751
        %v8753 = vadd.f32 %v8708, %v8737
        %v8754 = vadd.f32 %v8709, %v8742
        %v8755 = vadd.f32 %v8710, %v8747
        %v8756 = vadd.f32 %v8711, %v8752
        %s8757 = scalar_lea.vmem %s7, 4
        %v8758 = vld [vmem:[%s8757] ss:$8 sm:$0x3]
        %v8760 = vlaneseq
        %v8761 = vshrl.u32 %v8760, 7
        %v8762 = vsub.s32 0, %v8761
        %v8763 = vrot.slane %v8758, %v8762
        %v8764 = vlaneseq
        %v8765 = vshrl.u32 %v8764, 7
        %v8766 = vsub.s32 1, %v8765
        %v8767 = vrot.slane %v8758, %v8766
        %v8770 = vmul.f32 %v8551, %v8763
        %v8771 = vmul.f32 %v8571, %v8767
        %v8772 = vmul.f32 %v8552, %v8763
        %v8773 = vmul.f32 %v8572, %v8767
        %v8774 = vmul.f32 %v8553, %v8763
        %v8775 = vmul.f32 %v8573, %v8767
        %v8776 = vmul.f32 %v8554, %v8763
        %v8777 = vmul.f32 %v8574, %v8767
        %v8778 = vsel %vm1070, %v8770, 0.0
        %v8779 = vsel %vm8598, %v8771, 0.0
        %v8780 = vadd.f32 %v8778, %v8779
        %8781 = vadd.xlane.f32.xlu0 %v8780
        %v8782 = vpop.xlane.xlu0 %8781
        %v8783 = vsel %vm1070, %v8772, 0.0
        %v8784 = vsel %vm8598, %v8773, 0.0
        %v8785 = vadd.f32 %v8783, %v8784
        %8786 = vadd.xlane.f32.xlu0 %v8785
        %v8787 = vpop.xlane.xlu0 %8786
        %v8788 = vsel %vm1070, %v8774, 0.0
        %v8789 = vsel %vm8598, %v8775, 0.0
        %v8790 = vadd.f32 %v8788, %v8789
        %8791 = vadd.xlane.f32.xlu0 %v8790
        %v8792 = vpop.xlane.xlu0 %8791
        %v8793 = vsel %vm1070, %v8776, 0.0
        %v8794 = vsel %vm8598, %v8777, 0.0
        %v8795 = vadd.f32 %v8793, %v8794
        %8796 = vadd.xlane.f32.xlu0 %v8795
        %v8797 = vpop.xlane.xlu0 %8796
        %v8798 = vadd.f32 %v8753, %v8782
        %v8799 = vadd.f32 %v8754, %v8787
        %v8800 = vadd.f32 %v8755, %v8792
        %v8801 = vadd.f32 %v8756, %v8797
        %s8802 = scalar_lea.vmem %s7, 5
        %v8803 = vld [vmem:[%s8802] ss:$8 sm:$0x3]
        %v8805 = vlaneseq
        %v8806 = vshrl.u32 %v8805, 7
        %v8807 = vsub.s32 0, %v8806
        %v8808 = vrot.slane %v8803, %v8807
        %v8809 = vlaneseq
        %v8810 = vshrl.u32 %v8809, 7
        %v8811 = vsub.s32 1, %v8810
        %v8812 = vrot.slane %v8803, %v8811
        %v8815 = vmul.f32 %v8552, %v8808
        %v8816 = vmul.f32 %v8572, %v8812
        %v8817 = vmul.f32 %v8553, %v8808
        %v8818 = vmul.f32 %v8573, %v8812
        %v8819 = vmul.f32 %v8554, %v8808
        %v8820 = vmul.f32 %v8574, %v8812
        %v8821 = vmul.f32 %v8555, %v8808
        %v8822 = vmul.f32 %v8575, %v8812
        %v8823 = vsel %vm1070, %v8815, 0.0
        %v8824 = vsel %vm8598, %v8816, 0.0
        %v8825 = vadd.f32 %v8823, %v8824
        %8826 = vadd.xlane.f32.xlu0 %v8825
        %v8827 = vpop.xlane.xlu0 %8826
        %v8828 = vsel %vm1070, %v8817, 0.0
        %v8829 = vsel %vm8598, %v8818, 0.0
        %v8830 = vadd.f32 %v8828, %v8829
        %8831 = vadd.xlane.f32.xlu0 %v8830
        %v8832 = vpop.xlane.xlu0 %8831
        %v8833 = vsel %vm1070, %v8819, 0.0
        %v8834 = vsel %vm8598, %v8820, 0.0
        %v8835 = vadd.f32 %v8833, %v8834
        %8836 = vadd.xlane.f32.xlu0 %v8835
        %v8837 = vpop.xlane.xlu0 %8836
        %v8838 = vsel %vm1070, %v8821, 0.0
        %v8839 = vsel %vm8598, %v8822, 0.0
        %v8840 = vadd.f32 %v8838, %v8839
        %8841 = vadd.xlane.f32.xlu0 %v8840
        %v8842 = vpop.xlane.xlu0 %8841
        %v8843 = vadd.f32 %v8798, %v8827
        %v8844 = vadd.f32 %v8799, %v8832
        %v8845 = vadd.f32 %v8800, %v8837
        %v8846 = vadd.f32 %v8801, %v8842
        %s8847 = scalar_lea.vmem %s7, 6
        %v8848 = vld [vmem:[%s8847] ss:$8 sm:$0x3]
        %v8850 = vlaneseq
        %v8851 = vshrl.u32 %v8850, 7
        %v8852 = vsub.s32 0, %v8851
        %v8853 = vrot.slane %v8848, %v8852
        %v8854 = vlaneseq
        %v8855 = vshrl.u32 %v8854, 7
        %v8856 = vsub.s32 1, %v8855
        %v8857 = vrot.slane %v8848, %v8856
        %v8860 = vmul.f32 %v8553, %v8853
        %v8861 = vmul.f32 %v8573, %v8857
        %v8862 = vmul.f32 %v8554, %v8853
        %v8863 = vmul.f32 %v8574, %v8857
        %v8864 = vmul.f32 %v8555, %v8853
        %v8865 = vmul.f32 %v8575, %v8857
        %v8866 = vmul.f32 %v8556, %v8853
        %v8867 = vmul.f32 %v8576, %v8857
        %v8868 = vsel %vm1070, %v8860, 0.0
        %v8869 = vsel %vm8598, %v8861, 0.0
        %v8870 = vadd.f32 %v8868, %v8869
        %8871 = vadd.xlane.f32.xlu0 %v8870
        %v8872 = vpop.xlane.xlu0 %8871
        %v8873 = vsel %vm1070, %v8862, 0.0
        %v8874 = vsel %vm8598, %v8863, 0.0
        %v8875 = vadd.f32 %v8873, %v8874
        %8876 = vadd.xlane.f32.xlu0 %v8875
        %v8877 = vpop.xlane.xlu0 %8876
        %v8878 = vsel %vm1070, %v8864, 0.0
        %v8879 = vsel %vm8598, %v8865, 0.0
        %v8880 = vadd.f32 %v8878, %v8879
        %8881 = vadd.xlane.f32.xlu0 %v8880
        %v8882 = vpop.xlane.xlu0 %8881
        %v8883 = vsel %vm1070, %v8866, 0.0
        %v8884 = vsel %vm8598, %v8867, 0.0
        %v8885 = vadd.f32 %v8883, %v8884
        %8886 = vadd.xlane.f32.xlu0 %v8885
        %v8887 = vpop.xlane.xlu0 %8886
        %v8888 = vadd.f32 %v8843, %v8872
        %v8889 = vadd.f32 %v8844, %v8877
        %v8890 = vadd.f32 %v8845, %v8882
        %v8891 = vadd.f32 %v8846, %v8887
        %v8892 = vld [vmem:[#allocation5] sm:$0x1]
        %v8894 = vlaneseq
        %v8895 = vshrl.u32 %v8894, 7
        %v8896 = vsub.s32 0, %v8895
        %v8897 = vrot.slane %v8892, %v8896
        %8898 = vset.pattern.permute.xlu0 0
        %8899 = vperm.xlu0 %8898, %v8897
        %v8900 = vpop.permute.xlu0 %8899
        %v8902 = vadd.f32 %v8888, %v8900
        %v8903 = vadd.f32 %v8889, %v8900
        %v8904 = vadd.f32 %v8890, %v8900
        %v8905 = vadd.f32 %v8891, %v8900
        %v8906 = vmax.f32 %v8902, 0.0
        %v8907 = vmax.f32 %v8903, 0.0
        %v8908 = vmax.f32 %v8904, 0.0
        %v8909 = vmax.f32 %v8905, 0.0
        %v8914 = vlaneseq
        %v8915 = vand.u32 %v8914, 127
        %v8916 = vlaneseq
        %v8917 = vshrl.u32 %v8916, 7
        %v8918 = vsub.s32 %v8915, %v8917
        %v8919 = vrot.slane %v8906, %v8918
        %v8920 = vlaneseq
        %v8921 = vshrl.u32 %v8920, 7
        %v8922 = vsub.s32 %v8915, %v8921
        %v8923 = vrot.slane %v8907, %v8922
        %v8924 = vlaneseq
        %v8925 = vshrl.u32 %v8924, 7
        %v8926 = vsub.s32 %v8915, %v8925
        %v8927 = vrot.slane %v8908, %v8926
        %v8928 = vlaneseq
        %v8929 = vshrl.u32 %v8928, 7
        %v8930 = vsub.s32 %v8915, %v8929
        %v8931 = vrot.slane %v8909, %v8930
        %vm8932 = vcmask 1041409
        %v8933 = vsel %vm8932, %v8923, %v8919
        %vm8934 = vcmask 1042434
        %v8935 = vsel %vm8934, %v8927, %v8933
        %vm8936 = vcmask 1043459
        %v8937 = vsel %vm8936, %v8931, %v8935
        %vm8939 = vcmask 27648
        %8940 = vst.msk [vmem:[%s327] sm:$0xf] %vm8939, %v8937
        %s8941 = sand.u32 %s227, 1
        %s8942 = scalar_lea.sflag [#allocation7], %s8941
        %s8943 = sand.u32 %s227, 1
        %s8944 = smul.addr %s8943, 4
        %s8945 = scalar_lea.vmem [#allocation6], %s8944
        // Predicated region
        $region57: #{layoutnet_forward.1} parent=55 // pred_check
          %p8946 = pneg %p237
        $region58: #{layoutnet_forward.1} parent=55 // pred_check_branch
          %8948 = sbr.rel (%p8946) target = $region60
        $region59: #{layoutnet_forward.1} parent=55 // pred_region
          %s8950 = ssub.s32 64, 64
          %8951 = vsyncadd %s8942, %s8950
          %s8952 = smul.addr %s25, 64
          %s8953 = scalar_lea.hbm %s9, %s8952
          %s8955 = sshll.u32 %s8945, 4
          %s8956 = int_to_ptr.vmem [resolvable:$true] %s8955
          %8958 = dma.vmem_to_hbm [thread:$0]  %s8956, 64, %s8953, %s8942
        $region60: #{layoutnet_forward.1} parent=55 // pred_fallthru
          _
      $region56: #{layoutnet_forward.1} parent=5 // pred_fallthru
        _
      %p8959 = scmp.le.s32.totalorder 2, %s20
      // Predicated region
      $region61: #{layoutnet_forward.1} parent=5 // pred_check
        %p8960 = pneg %p8959
      $region62: #{layoutnet_forward.1} parent=5 // pred_check_branch
        %8962 = sbr.rel (%p8960) target = $region64
      $region63: #{layoutnet_forward.1} parent=5 // pred_region
        %s8963 = ssub.s32 %s20, 2
        // Predicated region
        $region65: #{layoutnet_forward.1} parent=63 // pred_check
          %p8964 = pneg %p243
        $region66: #{layoutnet_forward.1} parent=63 // pred_check_branch
          %8966 = sbr.rel (%p8964) target = $region68
        $region67: #{layoutnet_forward.1} parent=63 // pred_region
          %s8967 = sand.u32 %s228, 1
          %s8968 = scalar_lea.sflag [#allocation7], %s8967
          %s8969 = sand.u32 %s228, 1
          %s8970 = smul.addr %s8969, 4
          %s8971 = scalar_lea.vmem [#allocation6], %s8970
          %8972 = dma.done %s8968, 64
        $region68: #{layoutnet_forward.1} parent=63 // pred_fallthru
          _
      $region64: #{layoutnet_forward.1} parent=5 // pred_fallthru
        _
    $region6: #{layoutnet_forward.1} parent=1 // loop_footer
      %s24 = sadd.s32 1, %s20
    $region7: #{layoutnet_forward.1} parent=1 // loop_footer_branch
      %19 = sbr.rel target = $region3
    $region8: #{layoutnet_forward.1} parent=1 // loop_exit
      _
    %8973 = vsyncpa [#allocation7], 1
    %s8974 = scalar_lea.sflag [#allocation7], 1
    %8975 = vsyncpa %s8974, 1

</llo_original>
